<compile_context>
chip_gen: v5e
topology: v5e:2x2
jax: 0.10.0
libtpu: 0.0.40
codegen_flags: <defaults>
</compile_context>

<pallas_src>
import functools
import numpy as np
import jax
import jax.numpy as jnp
from jax.experimental import pallas as pl
from jax.experimental.pallas import tpu as pltpu

BN_EPS = 1e-3      # BatchNorm2d(eps=0.001)
SIGW = 0.5         # sigmoid(w), w = -log(init_tau - 1) = 0 for init_tau = 2.0
V_TH = 1.0         # ParametricLIFNode default threshold
LI_TAU = 2.0       # assumed LI readout time constant


# ----------------------------------------------------------------------------
# Pallas kernels
# ----------------------------------------------------------------------------

def conv_bn_plif_kernel(x_ref, w_ref, o_ref, *, sigw, v_th):
    """Fused conv-as-matmul (BN folded into w) + ParametricLIF over time.

    x_ref: (T, K, tm)     bf16 im2col patches, lane axis = batch*space tile (tm)
    w_ref: (Cout, K)      bf16 weights with BN eval scale folded in
    o_ref: (T, Cout, tm)  bf16 output spikes (lane-dense along tm)
    """
    T = x_ref.shape[0]
    cout, tm = o_ref.shape[1], o_ref.shape[2]
    w = w_ref[...]
    v = jnp.zeros((cout, tm), jnp.float32)
    for t in range(T):                                   # T small & static -> unrolled
        s = jnp.dot(w, x_ref[t], preferred_element_type=jnp.float32)
        h = v + (s - v) * sigw                           # charge (decay_input=True)
        spk = (h >= v_th).astype(jnp.float32)            # fire
        v = h * (1.0 - spk)                              # hard reset (v_reset = 0)
        o_ref[t] = spk.astype(o_ref.dtype)


def tail_kernel(x_ref, wf_ref, wc_ref, out_ref, feat_ref, *, sigw, v_th, inv_tau):
    """Fused fc_feat matmul + PLIF + time-mean + classifier matmul + LI readout.

    x_ref:   (T, N, D1) bf16 flattened conv spikes
    wf_ref:  (D1, F)    bf16
    wc_ref:  (F, C)     bf16
    out_ref: (T, N, C)  f32 LI readout per step
    feat_ref:(N, F)     f32 time-mean of PLIF feature spikes
    """
    T = x_ref.shape[0]
    n = x_ref.shape[1]
    f = wf_ref.shape[1]
    c = wc_ref.shape[1]
    wf = wf_ref[...]
    wc = wc_ref[...]
    v1 = jnp.zeros((n, f), jnp.float32)
    v2 = jnp.zeros((n, c), jnp.float32)
    acc = jnp.zeros((n, f), jnp.float32)
    for t in range(T):
        y = jnp.dot(x_ref[t], wf, preferred_element_type=jnp.float32)   # (N, F)
        h = v1 + (y - v1) * sigw
        spk = (h >= v_th).astype(jnp.float32)
        v1 = h * (1.0 - spk)
        acc = acc + spk
        logit = jnp.dot(spk.astype(wc.dtype), wc,
                        preferred_element_type=jnp.float32)             # (N, C)
        v2 = v2 + (logit - v2) * inv_tau                                # LI readout
        out_ref[t] = v2
    feat_ref[...] = acc * (1.0 / T)


# ----------------------------------------------------------------------------
# Tiling helpers
# ----------------------------------------------------------------------------

def _round_up(x, m):
    return (x + m - 1) // m * m


def _pick_tile(mp, max_tile=2048):
    """Largest multiple-of-128 tile dividing mp and <= max_tile; prefer >= 2
    grid steps (megacore sharding on v7x) when the array is big enough."""
    nb = mp // 128
    cands = [d for d in range(1, nb + 1) if nb % d == 0 and d * 128 <= max_tile]
    multi = [d for d in cands if nb // d >= 2]
    d = max(multi) if (multi and mp > 256) else max(cands)
    return d * 128


# ----------------------------------------------------------------------------
# Model stages
# ----------------------------------------------------------------------------

def conv_bn_plif_stage(x, w, stride, pad):
    """x: (T, Cin, N, H, W) bf16 spikes; w: (Cout, Cin, 3, 3) f32.
    Returns spikes (T, Cout, N, Ho, Wo) bf16. Dropout (eval) == identity."""
    T, cin, n, h, wd = x.shape
    cout = w.shape[0]
    ho = (h + 2 * pad - 3) // stride + 1
    wo = (wd + 2 * pad - 3) // stride + 1
    m = n * ho * wo
    k = cin * 9

    # im2col directly in (T, K, M) layout with K-order (cin, ky, kx) -- matches
    # torch w.reshape(Cout, Cin*9) -- and M = (N, Ho, Wo); no transposes needed.
    xp = jnp.pad(x, ((0, 0), (0, 0), (0, 0), (pad, pad), (pad, pad)))
    cols = []
    for ky in range(3):
        for kx in range(3):
            cols.append(xp[:, :, :,
                           ky:ky + (ho - 1) * stride + 1:stride,
                           kx:kx + (wo - 1) * stride + 1:stride])
    patches = jnp.stack(cols, axis=2)                     # (T, Cin, 9, N, Ho, Wo)
    patches = patches.reshape(T, k, m).astype(jnp.bfloat16)

    mp = _round_up(m, 128)
    if mp != m:
        patches = jnp.pad(patches, ((0, 0), (0, 0), (0, mp - m)))
    tm = _pick_tile(mp)

    # BatchNorm2d (eval, init stats: gamma=1, beta=0, mean=0, var=1) folded into w.
    bn_scale = 1.0 / np.sqrt(1.0 + BN_EPS)
    wmat = (w.reshape(cout, k) * bn_scale).astype(jnp.bfloat16)   # (Cout, K)

    out = pl.pallas_call(
        functools.partial(conv_bn_plif_kernel, sigw=SIGW, v_th=V_TH),
        out_shape=jax.ShapeDtypeStruct((T, cout, mp), jnp.bfloat16),
        grid=(mp // tm,),
        in_specs=[
            pl.BlockSpec((T, k, tm), lambda i: (0, 0, i)),
            pl.BlockSpec((cout, k), lambda i: (0, 0)),
        ],
        out_specs=pl.BlockSpec((T, cout, tm), lambda i: (0, 0, i)),
        compiler_params=pltpu.CompilerParams(dimension_semantics=("parallel",)),
    )(patches, wmat)

    return out[:, :, :m].reshape(T, cout, n, ho, wo)


def tail_forward(x, w_feat, w_cls):
    """x: (T, N, D1) bf16 flattened spikes. Returns (LI readout (T,N,classes) f32,
    features (N, feat) f32 = time-mean of PLIF feature spikes)."""
    T, n, d1 = x.shape
    f = w_feat.shape[1]
    c = w_cls.shape[1]
    out, feat = pl.pallas_call(
        functools.partial(tail_kernel, sigw=SIGW, v_th=V_TH, inv_tau=1.0 / LI_TAU),
        out_shape=(jax.ShapeDtypeStruct((T, n, c), jnp.float32),
                   jax.ShapeDtypeStruct((n, f), jnp.float32)),
        grid=(1,),
        in_specs=[
            pl.BlockSpec((T, n, d1), lambda i: (0, 0, 0)),
            pl.BlockSpec((d1, f), lambda i: (0, 0)),
            pl.BlockSpec((f, c), lambda i: (0, 0)),
        ],
        out_specs=(pl.BlockSpec((T, n, c), lambda i: (0, 0, 0)),
                   pl.BlockSpec((n, f), lambda i: (0, 0))),
        compiler_params=pltpu.CompilerParams(dimension_semantics=("arbitrary",)),
    )(x.astype(jnp.bfloat16), w_feat.astype(jnp.bfloat16), w_cls.astype(jnp.bfloat16))
    return out, feat


@jax.jit
def all_conv_plif_li_forward(spike, params):
    """spike: (N, C, H, W, T) -> (out_spikes (N, classes, T) f32, features (N, feat) f32)."""
    # torch does permute(4,0,1,2,3) -> (T,N,C,H,W); we keep (T,C,N,H,W) internally
    # (numerically identical, avoids inter-stage transposes).
    x = jnp.transpose(spike, (4, 1, 0, 2, 3)).astype(jnp.bfloat16)

    x = conv_bn_plif_stage(x, params["conv1"], stride=2, pad=1)
    x = conv_bn_plif_stage(x, params["conv2"], stride=2, pad=1)
    x = conv_bn_plif_stage(x, params["conv3"], stride=2, pad=1)
    x = conv_bn_plif_stage(x, params["conv4"], stride=2, pad=0)
    x = conv_bn_plif_stage(x, params["conv5"], stride=1, pad=1)

    # Flatten in torch (C, H, W) order -> (T, N, C*H*W)   (tiny tensor here)
    T, c5, n, hh, ww = x.shape
    flat = jnp.transpose(x, (0, 2, 1, 3, 4)).reshape(T, n, c5 * hh * ww)

    out, features = tail_forward(flat, params["fc_feat"], params["fc_cls"])

    out = jnp.transpose(out, (1, 2, 0))      # (T, N, classes) -> (N, classes, T)
    return out, features


# ----------------------------------------------------------------------------
# Deterministic parameter construction
# ----------------------------------------------------------------------------

def make_params(key, inp_features=2, channels=4, feat_neur=32, classes=12):
    ks = jax.random.split(key, 7)

    def kaiming_conv(k, cout, cin):
        # kaiming_normal_(mode='fan_out', nonlinearity='relu'): std = sqrt(2/(cout*9))
        std = np.sqrt(2.0 / (cout * 3 * 3))
        return jax.random.normal(k, (cout, cin, 3, 3), jnp.float32) * std

    def linear_w(k, fan_in, fan_out):
        std = 1.0 / np.sqrt(fan_in)
        # stored as (fan_in, fan_out) so that y = x @ W
        return jax.random.normal(k, (fan_in, fan_out), jnp.float32) * std

    return {
        "conv1": kaiming_conv(ks[0], channels, inp_features),
        "conv2": kaiming_conv(ks[1], 2 * channels, channels),
        "conv3": kaiming_conv(ks[2], 4 * channels, 2 * channels),
        "conv4": kaiming_conv(ks[3], 8 * channels, 4 * channels),
        "conv5": kaiming_conv(ks[4], 8 * channels, 8 * channels),
        "fc_feat": linear_w(ks[5], 6 * 6 * 8 * channels, feat_neur),
        "fc_cls": linear_w(ks[6], feat_neur, classes),
    }


# ----------------------------------------------------------------------------
# Main
# ----------------------------------------------------------------------------

if __name__ == "__main__":
    key = jax.random.PRNGKey(0)
    k_in, k_par = jax.random.split(key)

    # H = W = 100 so the conv stack ends at 6x6, matching Linear(6*6*8*channels, ...)
    N, C_in, H, W, T = 2, 2, 100, 100, 4
    channels, feat_neur, classes = 4, 32, 12

    spike_in = (jax.random.uniform(k_in, (N, C_in, H, W, T)) < 0.3).astype(jnp.float32)
    params = make_params(k_par, inp_features=C_in, channels=channels,
                         feat_neur=feat_neur, classes=classes)

    out_spikes, features = all_conv_plif_li_forward(spike_in, params)
    jax.block_until_ready((out_spikes, features))

    assert out_spikes.shape == (N, classes, T), out_spikes.shape
    assert features.shape == (N, feat_neur), features.shape
    assert bool(jnp.all(jnp.isfinite(out_spikes))) and bool(jnp.all(jnp.isfinite(features)))

    print("KERNEL_OK")
</pallas_src>

<mosaic_0001>
module attributes {stable_mosaic.version = 11 : i64} {
  func.func @conv_bn_plif_kernel(%arg0: i32, %arg1: memref<4x18x1280xbf16, #tpu.memory_space<vmem>>, %arg2: memref<4x18xbf16, #tpu.memory_space<vmem>>, %arg3: memref<4x4x1280xbf16, #tpu.memory_space<vmem>>) attributes {dimension_semantics = [#tpu.dimension_semantics<parallel>], iteration_bounds = array<i64: 4>, scalar_prefetch = 0 : i64, scratch_operands = 0 : i64, tpu.core_type = #tpu.core_type<tc>, window_params = [{transform_indices = @transform_0, window_bounds = array<i64: 4, 18, 1280>}, {pipeline_mode = #tpu.pipeline_mode<synchronous>, transform_indices = @transform_1, window_bounds = array<i64: 4, 18>}, {transform_indices = @transform_2, window_bounds = array<i64: 4, 4, 1280>}]} {
    %c0 = arith.constant 0 : index
    %c0_0 = arith.constant 0 : index
    %0 = vector.load %arg2[%c0, %c0_0] : memref<4x18xbf16, #tpu.memory_space<vmem>>, vector<4x18xbf16>
    %cst = arith.constant 0.000000e+00 : f32
    %1 = vector.broadcast %cst : f32 to vector<4x1280xf32>
    %c0_1 = arith.constant 0 : index
    %c0_2 = arith.constant 0 : index
    %c0_3 = arith.constant 0 : index
    %2 = vector.load %arg1[%c0_1, %c0_2, %c0_3] : memref<4x18x1280xbf16, #tpu.memory_space<vmem>>, vector<1x18x1280xbf16>
    %3 = vector.shape_cast %2 : vector<1x18x1280xbf16> to vector<18x1280xbf16>
    %cst_4 = arith.constant dense<0.000000e+00> : vector<4x1280xf32>
    %4 = tpu.matmul %0, %3, %cst_4 {dimension_numbers = #tpu.dot_dimension_numbers<[1], [0], [0], [1], [0, 0, 1, 1], [], []>} : vector<4x18xbf16>, vector<18x1280xbf16>, vector<4x1280xf32> -> vector<4x1280xf32>
    %5 = arith.subf %4, %1 : vector<4x1280xf32>
    %cst_5 = arith.constant 5.000000e-01 : f32
    %6 = vector.broadcast %cst_5 : f32 to vector<4x1280xf32>
    %7 = arith.mulf %5, %6 : vector<4x1280xf32>
    %8 = arith.addf %1, %7 : vector<4x1280xf32>
    %cst_6 = arith.constant 1.000000e+00 : f32
    %9 = vector.broadcast %cst_6 : f32 to vector<4x1280xf32>
    %10 = arith.cmpf oge, %8, %9 : vector<4x1280xf32>
    %11 = arith.extui %10 : vector<4x1280xi1> to vector<4x1280xi32>
    %12 = arith.sitofp %11 : vector<4x1280xi32> to vector<4x1280xf32>
    %cst_7 = arith.constant 1.000000e+00 : f32
    %13 = vector.broadcast %cst_7 : f32 to vector<4x1280xf32>
    %14 = arith.subf %13, %12 : vector<4x1280xf32>
    %15 = arith.mulf %8, %14 : vector<4x1280xf32>
    %16 = arith.truncf %12 : vector<4x1280xf32> to vector<4x1280xbf16>
    %c0_8 = arith.constant 0 : index
    %c0_9 = arith.constant 0 : index
    %c0_10 = arith.constant 0 : index
    %17 = vector.load %arg3[%c0_8, %c0_9, %c0_10] : memref<4x4x1280xbf16, #tpu.memory_space<vmem>>, vector<1x4x1280xbf16>
    %18 = vector.shape_cast %17 : vector<1x4x1280xbf16> to vector<4x1280xbf16>
    %19 = vector.shape_cast %16 : vector<4x1280xbf16> to vector<1x4x1280xbf16>
    tpu.vector_store %arg3[%c0_8, %c0_9, %c0_10], %19 {strides = array<i32>} : memref<4x4x1280xbf16, #tpu.memory_space<vmem>>, vector<1x4x1280xbf16>,
    %c1 = arith.constant 1 : index
    %c0_11 = arith.constant 0 : index
    %c0_12 = arith.constant 0 : index
    %20 = vector.load %arg1[%c1, %c0_11, %c0_12] : memref<4x18x1280xbf16, #tpu.memory_space<vmem>>, vector<1x18x1280xbf16>
    %21 = vector.shape_cast %20 : vector<1x18x1280xbf16> to vector<18x1280xbf16>
    %cst_13 = arith.constant dense<0.000000e+00> : vector<4x1280xf32>
    %22 = tpu.matmul %0, %21, %cst_13 {dimension_numbers = #tpu.dot_dimension_numbers<[1], [0], [0], [1], [0, 0, 1, 1], [], []>} : vector<4x18xbf16>, vector<18x1280xbf16>, vector<4x1280xf32> -> vector<4x1280xf32>
    %23 = arith.subf %22, %15 : vector<4x1280xf32>
    %cst_14 = arith.constant 5.000000e-01 : f32
    %24 = vector.broadcast %cst_14 : f32 to vector<4x1280xf32>
    %25 = arith.mulf %23, %24 : vector<4x1280xf32>
    %26 = arith.addf %15, %25 : vector<4x1280xf32>
    %cst_15 = arith.constant 1.000000e+00 : f32
    %27 = vector.broadcast %cst_15 : f32 to vector<4x1280xf32>
    %28 = arith.cmpf oge, %26, %27 : vector<4x1280xf32>
    %29 = arith.extui %28 : vector<4x1280xi1> to vector<4x1280xi32>
    %30 = arith.sitofp %29 : vector<4x1280xi32> to vector<4x1280xf32>
    %cst_16 = arith.constant 1.000000e+00 : f32
    %31 = vector.broadcast %cst_16 : f32 to vector<4x1280xf32>
    %32 = arith.subf %31, %30 : vector<4x1280xf32>
    %33 = arith.mulf %26, %32 : vector<4x1280xf32>
    %34 = arith.truncf %30 : vector<4x1280xf32> to vector<4x1280xbf16>
    %c1_17 = arith.constant 1 : index
    %c0_18 = arith.constant 0 : index
    %c0_19 = arith.constant 0 : index
    %35 = vector.load %arg3[%c1_17, %c0_18, %c0_19] : memref<4x4x1280xbf16, #tpu.memory_space<vmem>>, vector<1x4x1280xbf16>
    %36 = vector.shape_cast %35 : vector<1x4x1280xbf16> to vector<4x1280xbf16>
    %37 = vector.shape_cast %34 : vector<4x1280xbf16> to vector<1x4x1280xbf16>
    tpu.vector_store %arg3[%c1_17, %c0_18, %c0_19], %37 {strides = array<i32>} : memref<4x4x1280xbf16, #tpu.memory_space<vmem>>, vector<1x4x1280xbf16>,
    %c2 = arith.constant 2 : index
    %c0_20 = arith.constant 0 : index
    %c0_21 = arith.constant 0 : index
    %38 = vector.load %arg1[%c2, %c0_20, %c0_21] : memref<4x18x1280xbf16, #tpu.memory_space<vmem>>, vector<1x18x1280xbf16>
    %39 = vector.shape_cast %38 : vector<1x18x1280xbf16> to vector<18x1280xbf16>
    %cst_22 = arith.constant dense<0.000000e+00> : vector<4x1280xf32>
    %40 = tpu.matmul %0, %39, %cst_22 {dimension_numbers = #tpu.dot_dimension_numbers<[1], [0], [0], [1], [0, 0, 1, 1], [], []>} : vector<4x18xbf16>, vector<18x1280xbf16>, vector<4x1280xf32> -> vector<4x1280xf32>
    %41 = arith.subf %40, %33 : vector<4x1280xf32>
    %cst_23 = arith.constant 5.000000e-01 : f32
    %42 = vector.broadcast %cst_23 : f32 to vector<4x1280xf32>
    %43 = arith.mulf %41, %42 : vector<4x1280xf32>
    %44 = arith.addf %33, %43 : vector<4x1280xf32>
    %cst_24 = arith.constant 1.000000e+00 : f32
    %45 = vector.broadcast %cst_24 : f32 to vector<4x1280xf32>
    %46 = arith.cmpf oge, %44, %45 : vector<4x1280xf32>
    %47 = arith.extui %46 : vector<4x1280xi1> to vector<4x1280xi32>
    %48 = arith.sitofp %47 : vector<4x1280xi32> to vector<4x1280xf32>
    %cst_25 = arith.constant 1.000000e+00 : f32
    %49 = vector.broadcast %cst_25 : f32 to vector<4x1280xf32>
    %50 = arith.subf %49, %48 : vector<4x1280xf32>
    %51 = arith.mulf %44, %50 : vector<4x1280xf32>
    %52 = arith.truncf %48 : vector<4x1280xf32> to vector<4x1280xbf16>
    %c2_26 = arith.constant 2 : index
    %c0_27 = arith.constant 0 : index
    %c0_28 = arith.constant 0 : index
    %53 = vector.load %arg3[%c2_26, %c0_27, %c0_28] : memref<4x4x1280xbf16, #tpu.memory_space<vmem>>, vector<1x4x1280xbf16>
    %54 = vector.shape_cast %53 : vector<1x4x1280xbf16> to vector<4x1280xbf16>
    %55 = vector.shape_cast %52 : vector<4x1280xbf16> to vector<1x4x1280xbf16>
    tpu.vector_store %arg3[%c2_26, %c0_27, %c0_28], %55 {strides = array<i32>} : memref<4x4x1280xbf16, #tpu.memory_space<vmem>>, vector<1x4x1280xbf16>,
    %c3 = arith.constant 3 : index
    %c0_29 = arith.constant 0 : index
    %c0_30 = arith.constant 0 : index
    %56 = vector.load %arg1[%c3, %c0_29, %c0_30] : memref<4x18x1280xbf16, #tpu.memory_space<vmem>>, vector<1x18x1280xbf16>
    %57 = vector.shape_cast %56 : vector<1x18x1280xbf16> to vector<18x1280xbf16>
    %cst_31 = arith.constant dense<0.000000e+00> : vector<4x1280xf32>
    %58 = tpu.matmul %0, %57, %cst_31 {dimension_numbers = #tpu.dot_dimension_numbers<[1], [0], [0], [1], [0, 0, 1, 1], [], []>} : vector<4x18xbf16>, vector<18x1280xbf16>, vector<4x1280xf32> -> vector<4x1280xf32>
    %59 = arith.subf %58, %51 : vector<4x1280xf32>
    %cst_32 = arith.constant 5.000000e-01 : f32
    %60 = vector.broadcast %cst_32 : f32 to vector<4x1280xf32>
    %61 = arith.mulf %59, %60 : vector<4x1280xf32>
    %62 = arith.addf %51, %61 : vector<4x1280xf32>
    %cst_33 = arith.constant 1.000000e+00 : f32
    %63 = vector.broadcast %cst_33 : f32 to vector<4x1280xf32>
    %64 = arith.cmpf oge, %62, %63 : vector<4x1280xf32>
    %65 = arith.extui %64 : vector<4x1280xi1> to vector<4x1280xi32>
    %66 = arith.sitofp %65 : vector<4x1280xi32> to vector<4x1280xf32>
    %67 = arith.truncf %66 : vector<4x1280xf32> to vector<4x1280xbf16>
    %c3_34 = arith.constant 3 : index
    %c0_35 = arith.constant 0 : index
    %c0_36 = arith.constant 0 : index
    %68 = vector.load %arg3[%c3_34, %c0_35, %c0_36] : memref<4x4x1280xbf16, #tpu.memory_space<vmem>>, vector<1x4x1280xbf16>
    %69 = vector.shape_cast %68 : vector<1x4x1280xbf16> to vector<4x1280xbf16>
    %70 = vector.shape_cast %67 : vector<4x1280xbf16> to vector<1x4x1280xbf16>
    tpu.vector_store %arg3[%c3_34, %c0_35, %c0_36], %70 {strides = array<i32>} : memref<4x4x1280xbf16, #tpu.memory_space<vmem>>, vector<1x4x1280xbf16>,
    return
  }
  func.func @transform_0(%arg0: i32) -> (i32, i32, i32) {
    %c0_i32 = arith.constant 0 : i32
    %c0_i32_0 = arith.constant 0 : i32
    %c0_i32_1 = arith.constant 0 : i32
    return %c0_i32, %c0_i32_0, %arg0 : i32, i32, i32
  }
  func.func @transform_1(%arg0: i32) -> (i32, i32) {
    %c0_i32 = arith.constant 0 : i32
    %c0_i32_0 = arith.constant 0 : i32
    %c0_i32_1 = arith.constant 0 : i32
    return %c0_i32, %c0_i32_0 : i32, i32
  }
  func.func @transform_2(%arg0: i32) -> (i32, i32, i32) {
    %c0_i32 = arith.constant 0 : i32
    %c0_i32_0 = arith.constant 0 : i32
    %c0_i32_1 = arith.constant 0 : i32
    return %c0_i32, %c0_i32_0, %arg0 : i32, i32, i32
  }
}

module attributes {stable_mosaic.version = 11 : i64} {
  func.func @conv_bn_plif_kernel(%arg0: i32, %arg1: memref<4x36x640xbf16, #tpu.memory_space<vmem>>, %arg2: memref<8x36xbf16, #tpu.memory_space<vmem>>, %arg3: memref<4x8x640xbf16, #tpu.memory_space<vmem>>) attributes {dimension_semantics = [#tpu.dimension_semantics<parallel>], iteration_bounds = array<i64: 2>, scalar_prefetch = 0 : i64, scratch_operands = 0 : i64, tpu.core_type = #tpu.core_type<tc>, window_params = [{transform_indices = @transform_0, window_bounds = array<i64: 4, 36, 640>}, {pipeline_mode = #tpu.pipeline_mode<synchronous>, transform_indices = @transform_1, window_bounds = array<i64: 8, 36>}, {transform_indices = @transform_2, window_bounds = array<i64: 4, 8, 640>}]} {
    %c0 = arith.constant 0 : index
    %c0_0 = arith.constant 0 : index
    %0 = vector.load %arg2[%c0, %c0_0] : memref<8x36xbf16, #tpu.memory_space<vmem>>, vector<8x36xbf16>
    %cst = arith.constant 0.000000e+00 : f32
    %1 = vector.broadcast %cst : f32 to vector<8x640xf32>
    %c0_1 = arith.constant 0 : index
    %c0_2 = arith.constant 0 : index
    %c0_3 = arith.constant 0 : index
    %2 = vector.load %arg1[%c0_1, %c0_2, %c0_3] : memref<4x36x640xbf16, #tpu.memory_space<vmem>>, vector<1x36x640xbf16>
    %3 = vector.shape_cast %2 : vector<1x36x640xbf16> to vector<36x640xbf16>
    %cst_4 = arith.constant dense<0.000000e+00> : vector<8x640xf32>
    %4 = tpu.matmul %0, %3, %cst_4 {dimension_numbers = #tpu.dot_dimension_numbers<[1], [0], [0], [1], [0, 0, 1, 1], [], []>} : vector<8x36xbf16>, vector<36x640xbf16>, vector<8x640xf32> -> vector<8x640xf32>
    %5 = arith.subf %4, %1 : vector<8x640xf32>
    %cst_5 = arith.constant 5.000000e-01 : f32
    %6 = vector.broadcast %cst_5 : f32 to vector<8x640xf32>
    %7 = arith.mulf %5, %6 : vector<8x640xf32>
    %8 = arith.addf %1, %7 : vector<8x640xf32>
    %cst_6 = arith.constant 1.000000e+00 : f32
    %9 = vector.broadcast %cst_6 : f32 to vector<8x640xf32>
    %10 = arith.cmpf oge, %8, %9 : vector<8x640xf32>
    %11 = arith.extui %10 : vector<8x640xi1> to vector<8x640xi32>
    %12 = arith.sitofp %11 : vector<8x640xi32> to vector<8x640xf32>
    %cst_7 = arith.constant 1.000000e+00 : f32
    %13 = vector.broadcast %cst_7 : f32 to vector<8x640xf32>
    %14 = arith.subf %13, %12 : vector<8x640xf32>
    %15 = arith.mulf %8, %14 : vector<8x640xf32>
    %16 = arith.truncf %12 : vector<8x640xf32> to vector<8x640xbf16>
    %c0_8 = arith.constant 0 : index
    %c0_9 = arith.constant 0 : index
    %c0_10 = arith.constant 0 : index
    %17 = vector.load %arg3[%c0_8, %c0_9, %c0_10] : memref<4x8x640xbf16, #tpu.memory_space<vmem>>, vector<1x8x640xbf16>
    %18 = vector.shape_cast %17 : vector<1x8x640xbf16> to vector<8x640xbf16>
    %19 = vector.shape_cast %16 : vector<8x640xbf16> to vector<1x8x640xbf16>
    tpu.vector_store %arg3[%c0_8, %c0_9, %c0_10], %19 {strides = array<i32>} : memref<4x8x640xbf16, #tpu.memory_space<vmem>>, vector<1x8x640xbf16>,
    %c1 = arith.constant 1 : index
    %c0_11 = arith.constant 0 : index
    %c0_12 = arith.constant 0 : index
    %20 = vector.load %arg1[%c1, %c0_11, %c0_12] : memref<4x36x640xbf16, #tpu.memory_space<vmem>>, vector<1x36x640xbf16>
    %21 = vector.shape_cast %20 : vector<1x36x640xbf16> to vector<36x640xbf16>
    %cst_13 = arith.constant dense<0.000000e+00> : vector<8x640xf32>
    %22 = tpu.matmul %0, %21, %cst_13 {dimension_numbers = #tpu.dot_dimension_numbers<[1], [0], [0], [1], [0, 0, 1, 1], [], []>} : vector<8x36xbf16>, vector<36x640xbf16>, vector<8x640xf32> -> vector<8x640xf32>
    %23 = arith.subf %22, %15 : vector<8x640xf32>
    %cst_14 = arith.constant 5.000000e-01 : f32
    %24 = vector.broadcast %cst_14 : f32 to vector<8x640xf32>
    %25 = arith.mulf %23, %24 : vector<8x640xf32>
    %26 = arith.addf %15, %25 : vector<8x640xf32>
    %cst_15 = arith.constant 1.000000e+00 : f32
    %27 = vector.broadcast %cst_15 : f32 to vector<8x640xf32>
    %28 = arith.cmpf oge, %26, %27 : vector<8x640xf32>
    %29 = arith.extui %28 : vector<8x640xi1> to vector<8x640xi32>
    %30 = arith.sitofp %29 : vector<8x640xi32> to vector<8x640xf32>
    %cst_16 = arith.constant 1.000000e+00 : f32
    %31 = vector.broadcast %cst_16 : f32 to vector<8x640xf32>
    %32 = arith.subf %31, %30 : vector<8x640xf32>
    %33 = arith.mulf %26, %32 : vector<8x640xf32>
    %34 = arith.truncf %30 : vector<8x640xf32> to vector<8x640xbf16>
    %c1_17 = arith.constant 1 : index
    %c0_18 = arith.constant 0 : index
    %c0_19 = arith.constant 0 : index
    %35 = vector.load %arg3[%c1_17, %c0_18, %c0_19] : memref<4x8x640xbf16, #tpu.memory_space<vmem>>, vector<1x8x640xbf16>
    %36 = vector.shape_cast %35 : vector<1x8x640xbf16> to vector<8x640xbf16>
    %37 = vector.shape_cast %34 : vector<8x640xbf16> to vector<1x8x640xbf16>
    tpu.vector_store %arg3[%c1_17, %c0_18, %c0_19], %37 {strides = array<i32>} : memref<4x8x640xbf16, #tpu.memory_space<vmem>>, vector<1x8x640xbf16>,
    %c2 = arith.constant 2 : index
    %c0_20 = arith.constant 0 : index
    %c0_21 = arith.constant 0 : index
    %38 = vector.load %arg1[%c2, %c0_20, %c0_21] : memref<4x36x640xbf16, #tpu.memory_space<vmem>>, vector<1x36x640xbf16>
    %39 = vector.shape_cast %38 : vector<1x36x640xbf16> to vector<36x640xbf16>
    %cst_22 = arith.constant dense<0.000000e+00> : vector<8x640xf32>
    %40 = tpu.matmul %0, %39, %cst_22 {dimension_numbers = #tpu.dot_dimension_numbers<[1], [0], [0], [1], [0, 0, 1, 1], [], []>} : vector<8x36xbf16>, vector<36x640xbf16>, vector<8x640xf32> -> vector<8x640xf32>
    %41 = arith.subf %40, %33 : vector<8x640xf32>
    %cst_23 = arith.constant 5.000000e-01 : f32
    %42 = vector.broadcast %cst_23 : f32 to vector<8x640xf32>
    %43 = arith.mulf %41, %42 : vector<8x640xf32>
    %44 = arith.addf %33, %43 : vector<8x640xf32>
    %cst_24 = arith.constant 1.000000e+00 : f32
    %45 = vector.broadcast %cst_24 : f32 to vector<8x640xf32>
    %46 = arith.cmpf oge, %44, %45 : vector<8x640xf32>
    %47 = arith.extui %46 : vector<8x640xi1> to vector<8x640xi32>
    %48 = arith.sitofp %47 : vector<8x640xi32> to vector<8x640xf32>
    %cst_25 = arith.constant 1.000000e+00 : f32
    %49 = vector.broadcast %cst_25 : f32 to vector<8x640xf32>
    %50 = arith.subf %49, %48 : vector<8x640xf32>
    %51 = arith.mulf %44, %50 : vector<8x640xf32>
    %52 = arith.truncf %48 : vector<8x640xf32> to vector<8x640xbf16>
    %c2_26 = arith.constant 2 : index
    %c0_27 = arith.constant 0 : index
    %c0_28 = arith.constant 0 : index
    %53 = vector.load %arg3[%c2_26, %c0_27, %c0_28] : memref<4x8x640xbf16, #tpu.memory_space<vmem>>, vector<1x8x640xbf16>
    %54 = vector.shape_cast %53 : vector<1x8x640xbf16> to vector<8x640xbf16>
    %55 = vector.shape_cast %52 : vector<8x640xbf16> to vector<1x8x640xbf16>
    tpu.vector_store %arg3[%c2_26, %c0_27, %c0_28], %55 {strides = array<i32>} : memref<4x8x640xbf16, #tpu.memory_space<vmem>>, vector<1x8x640xbf16>,
    %c3 = arith.constant 3 : index
    %c0_29 = arith.constant 0 : index
    %c0_30 = arith.constant 0 : index
    %56 = vector.load %arg1[%c3, %c0_29, %c0_30] : memref<4x36x640xbf16, #tpu.memory_space<vmem>>, vector<1x36x640xbf16>
    %57 = vector.shape_cast %56 : vector<1x36x640xbf16> to vector<36x640xbf16>
    %cst_31 = arith.constant dense<0.000000e+00> : vector<8x640xf32>
    %58 = tpu.matmul %0, %57, %cst_31 {dimension_numbers = #tpu.dot_dimension_numbers<[1], [0], [0], [1], [0, 0, 1, 1], [], []>} : vector<8x36xbf16>, vector<36x640xbf16>, vector<8x640xf32> -> vector<8x640xf32>
    %59 = arith.subf %58, %51 : vector<8x640xf32>
    %cst_32 = arith.constant 5.000000e-01 : f32
    %60 = vector.broadcast %cst_32 : f32 to vector<8x640xf32>
    %61 = arith.mulf %59, %60 : vector<8x640xf32>
    %62 = arith.addf %51, %61 : vector<8x640xf32>
    %cst_33 = arith.constant 1.000000e+00 : f32
    %63 = vector.broadcast %cst_33 : f32 to vector<8x640xf32>
    %64 = arith.cmpf oge, %62, %63 : vector<8x640xf32>
    %65 = arith.extui %64 : vector<8x640xi1> to vector<8x640xi32>
    %66 = arith.sitofp %65 : vector<8x640xi32> to vector<8x640xf32>
    %67 = arith.truncf %66 : vector<8x640xf32> to vector<8x640xbf16>
    %c3_34 = arith.constant 3 : index
    %c0_35 = arith.constant 0 : index
    %c0_36 = arith.constant 0 : index
    %68 = vector.load %arg3[%c3_34, %c0_35, %c0_36] : memref<4x8x640xbf16, #tpu.memory_space<vmem>>, vector<1x8x640xbf16>
    %69 = vector.shape_cast %68 : vector<1x8x640xbf16> to vector<8x640xbf16>
    %70 = vector.shape_cast %67 : vector<8x640xbf16> to vector<1x8x640xbf16>
    tpu.vector_store %arg3[%c3_34, %c0_35, %c0_36], %70 {strides = array<i32>} : memref<4x8x640xbf16, #tpu.memory_space<vmem>>, vector<1x8x640xbf16>,
    return
  }
  func.func @transform_0(%arg0: i32) -> (i32, i32, i32) {
    %c0_i32 = arith.constant 0 : i32
    %c0_i32_0 = arith.constant 0 : i32
    %c0_i32_1 = arith.constant 0 : i32
    return %c0_i32, %c0_i32_0, %arg0 : i32, i32, i32
  }
  func.func @transform_1(%arg0: i32) -> (i32, i32) {
    %c0_i32 = arith.constant 0 : i32
    %c0_i32_0 = arith.constant 0 : i32
    %c0_i32_1 = arith.constant 0 : i32
    return %c0_i32, %c0_i32_0 : i32, i32
  }
  func.func @transform_2(%arg0: i32) -> (i32, i32, i32) {
    %c0_i32 = arith.constant 0 : i32
    %c0_i32_0 = arith.constant 0 : i32
    %c0_i32_1 = arith.constant 0 : i32
    return %c0_i32, %c0_i32_0, %arg0 : i32, i32, i32
  }
}

module attributes {stable_mosaic.version = 11 : i64} {
  func.func @conv_bn_plif_kernel(%arg0: i32, %arg1: memref<4x72x128xbf16, #tpu.memory_space<vmem>>, %arg2: memref<16x72xbf16, #tpu.memory_space<vmem>>, %arg3: memref<4x16x128xbf16, #tpu.memory_space<vmem>>) attributes {dimension_semantics = [#tpu.dimension_semantics<parallel>], iteration_bounds = array<i64: 3>, scalar_prefetch = 0 : i64, scratch_operands = 0 : i64, tpu.core_type = #tpu.core_type<tc>, window_params = [{transform_indices = @transform_0, window_bounds = array<i64: 4, 72, 128>}, {pipeline_mode = #tpu.pipeline_mode<synchronous>, transform_indices = @transform_1, window_bounds = array<i64: 16, 72>}, {transform_indices = @transform_2, window_bounds = array<i64: 4, 16, 128>}]} {
    %c0 = arith.constant 0 : index
    %c0_0 = arith.constant 0 : index
    %0 = vector.load %arg2[%c0, %c0_0] : memref<16x72xbf16, #tpu.memory_space<vmem>>, vector<16x72xbf16>
    %cst = arith.constant 0.000000e+00 : f32
    %1 = vector.broadcast %cst : f32 to vector<16x128xf32>
    %c0_1 = arith.constant 0 : index
    %c0_2 = arith.constant 0 : index
    %c0_3 = arith.constant 0 : index
    %2 = vector.load %arg1[%c0_1, %c0_2, %c0_3] : memref<4x72x128xbf16, #tpu.memory_space<vmem>>, vector<1x72x128xbf16>
    %3 = vector.shape_cast %2 : vector<1x72x128xbf16> to vector<72x128xbf16>
    %cst_4 = arith.constant dense<0.000000e+00> : vector<16x128xf32>
    %4 = tpu.matmul %0, %3, %cst_4 {dimension_numbers = #tpu.dot_dimension_numbers<[1], [0], [0], [1], [0, 0, 1, 1], [], []>} : vector<16x72xbf16>, vector<72x128xbf16>, vector<16x128xf32> -> vector<16x128xf32>
    %5 = arith.subf %4, %1 : vector<16x128xf32>
    %cst_5 = arith.constant 5.000000e-01 : f32
    %6 = vector.broadcast %cst_5 : f32 to vector<16x128xf32>
    %7 = arith.mulf %5, %6 : vector<16x128xf32>
    %8 = arith.addf %1, %7 : vector<16x128xf32>
    %cst_6 = arith.constant 1.000000e+00 : f32
    %9 = vector.broadcast %cst_6 : f32 to vector<16x128xf32>
    %10 = arith.cmpf oge, %8, %9 : vector<16x128xf32>
    %11 = arith.extui %10 : vector<16x128xi1> to vector<16x128xi32>
    %12 = arith.sitofp %11 : vector<16x128xi32> to vector<16x128xf32>
    %cst_7 = arith.constant 1.000000e+00 : f32
    %13 = vector.broadcast %cst_7 : f32 to vector<16x128xf32>
    %14 = arith.subf %13, %12 : vector<16x128xf32>
    %15 = arith.mulf %8, %14 : vector<16x128xf32>
    %16 = arith.truncf %12 : vector<16x128xf32> to vector<16x128xbf16>
    %c0_8 = arith.constant 0 : index
    %c0_9 = arith.constant 0 : index
    %c0_10 = arith.constant 0 : index
    %17 = vector.load %arg3[%c0_8, %c0_9, %c0_10] : memref<4x16x128xbf16, #tpu.memory_space<vmem>>, vector<1x16x128xbf16>
    %18 = vector.shape_cast %17 : vector<1x16x128xbf16> to vector<16x128xbf16>
    %19 = vector.shape_cast %16 : vector<16x128xbf16> to vector<1x16x128xbf16>
    tpu.vector_store %arg3[%c0_8, %c0_9, %c0_10], %19 {strides = array<i32>} : memref<4x16x128xbf16, #tpu.memory_space<vmem>>, vector<1x16x128xbf16>,
    %c1 = arith.constant 1 : index
    %c0_11 = arith.constant 0 : index
    %c0_12 = arith.constant 0 : index
    %20 = vector.load %arg1[%c1, %c0_11, %c0_12] : memref<4x72x128xbf16, #tpu.memory_space<vmem>>, vector<1x72x128xbf16>
    %21 = vector.shape_cast %20 : vector<1x72x128xbf16> to vector<72x128xbf16>
    %cst_13 = arith.constant dense<0.000000e+00> : vector<16x128xf32>
    %22 = tpu.matmul %0, %21, %cst_13 {dimension_numbers = #tpu.dot_dimension_numbers<[1], [0], [0], [1], [0, 0, 1, 1], [], []>} : vector<16x72xbf16>, vector<72x128xbf16>, vector<16x128xf32> -> vector<16x128xf32>
    %23 = arith.subf %22, %15 : vector<16x128xf32>
    %cst_14 = arith.constant 5.000000e-01 : f32
    %24 = vector.broadcast %cst_14 : f32 to vector<16x128xf32>
    %25 = arith.mulf %23, %24 : vector<16x128xf32>
    %26 = arith.addf %15, %25 : vector<16x128xf32>
    %cst_15 = arith.constant 1.000000e+00 : f32
    %27 = vector.broadcast %cst_15 : f32 to vector<16x128xf32>
    %28 = arith.cmpf oge, %26, %27 : vector<16x128xf32>
    %29 = arith.extui %28 : vector<16x128xi1> to vector<16x128xi32>
    %30 = arith.sitofp %29 : vector<16x128xi32> to vector<16x128xf32>
    %cst_16 = arith.constant 1.000000e+00 : f32
    %31 = vector.broadcast %cst_16 : f32 to vector<16x128xf32>
    %32 = arith.subf %31, %30 : vector<16x128xf32>
    %33 = arith.mulf %26, %32 : vector<16x128xf32>
    %34 = arith.truncf %30 : vector<16x128xf32> to vector<16x128xbf16>
    %c1_17 = arith.constant 1 : index
    %c0_18 = arith.constant 0 : index
    %c0_19 = arith.constant 0 : index
    %35 = vector.load %arg3[%c1_17, %c0_18, %c0_19] : memref<4x16x128xbf16, #tpu.memory_space<vmem>>, vector<1x16x128xbf16>
    %36 = vector.shape_cast %35 : vector<1x16x128xbf16> to vector<16x128xbf16>
    %37 = vector.shape_cast %34 : vector<16x128xbf16> to vector<1x16x128xbf16>
    tpu.vector_store %arg3[%c1_17, %c0_18, %c0_19], %37 {strides = array<i32>} : memref<4x16x128xbf16, #tpu.memory_space<vmem>>, vector<1x16x128xbf16>,
    %c2 = arith.constant 2 : index
    %c0_20 = arith.constant 0 : index
    %c0_21 = arith.constant 0 : index
    %38 = vector.load %arg1[%c2, %c0_20, %c0_21] : memref<4x72x128xbf16, #tpu.memory_space<vmem>>, vector<1x72x128xbf16>
    %39 = vector.shape_cast %38 : vector<1x72x128xbf16> to vector<72x128xbf16>
    %cst_22 = arith.constant dense<0.000000e+00> : vector<16x128xf32>
    %40 = tpu.matmul %0, %39, %cst_22 {dimension_numbers = #tpu.dot_dimension_numbers<[1], [0], [0], [1], [0, 0, 1, 1], [], []>} : vector<16x72xbf16>, vector<72x128xbf16>, vector<16x128xf32> -> vector<16x128xf32>
    %41 = arith.subf %40, %33 : vector<16x128xf32>
    %cst_23 = arith.constant 5.000000e-01 : f32
    %42 = vector.broadcast %cst_23 : f32 to vector<16x128xf32>
    %43 = arith.mulf %41, %42 : vector<16x128xf32>
    %44 = arith.addf %33, %43 : vector<16x128xf32>
    %cst_24 = arith.constant 1.000000e+00 : f32
    %45 = vector.broadcast %cst_24 : f32 to vector<16x128xf32>
    %46 = arith.cmpf oge, %44, %45 : vector<16x128xf32>
    %47 = arith.extui %46 : vector<16x128xi1> to vector<16x128xi32>
    %48 = arith.sitofp %47 : vector<16x128xi32> to vector<16x128xf32>
    %cst_25 = arith.constant 1.000000e+00 : f32
    %49 = vector.broadcast %cst_25 : f32 to vector<16x128xf32>
    %50 = arith.subf %49, %48 : vector<16x128xf32>
    %51 = arith.mulf %44, %50 : vector<16x128xf32>
    %52 = arith.truncf %48 : vector<16x128xf32> to vector<16x128xbf16>
    %c2_26 = arith.constant 2 : index
    %c0_27 = arith.constant 0 : index
    %c0_28 = arith.constant 0 : index
    %53 = vector.load %arg3[%c2_26, %c0_27, %c0_28] : memref<4x16x128xbf16, #tpu.memory_space<vmem>>, vector<1x16x128xbf16>
    %54 = vector.shape_cast %53 : vector<1x16x128xbf16> to vector<16x128xbf16>
    %55 = vector.shape_cast %52 : vector<16x128xbf16> to vector<1x16x128xbf16>
    tpu.vector_store %arg3[%c2_26, %c0_27, %c0_28], %55 {strides = array<i32>} : memref<4x16x128xbf16, #tpu.memory_space<vmem>>, vector<1x16x128xbf16>,
    %c3 = arith.constant 3 : index
    %c0_29 = arith.constant 0 : index
    %c0_30 = arith.constant 0 : index
    %56 = vector.load %arg1[%c3, %c0_29, %c0_30] : memref<4x72x128xbf16, #tpu.memory_space<vmem>>, vector<1x72x128xbf16>
    %57 = vector.shape_cast %56 : vector<1x72x128xbf16> to vector<72x128xbf16>
    %cst_31 = arith.constant dense<0.000000e+00> : vector<16x128xf32>
    %58 = tpu.matmul %0, %57, %cst_31 {dimension_numbers = #tpu.dot_dimension_numbers<[1], [0], [0], [1], [0, 0, 1, 1], [], []>} : vector<16x72xbf16>, vector<72x128xbf16>, vector<16x128xf32> -> vector<16x128xf32>
    %59 = arith.subf %58, %51 : vector<16x128xf32>
    %cst_32 = arith.constant 5.000000e-01 : f32
    %60 = vector.broadcast %cst_32 : f32 to vector<16x128xf32>
    %61 = arith.mulf %59, %60 : vector<16x128xf32>
    %62 = arith.addf %51, %61 : vector<16x128xf32>
    %cst_33 = arith.constant 1.000000e+00 : f32
    %63 = vector.broadcast %cst_33 : f32 to vector<16x128xf32>
    %64 = arith.cmpf oge, %62, %63 : vector<16x128xf32>
    %65 = arith.extui %64 : vector<16x128xi1> to vector<16x128xi32>
    %66 = arith.sitofp %65 : vector<16x128xi32> to vector<16x128xf32>
    %67 = arith.truncf %66 : vector<16x128xf32> to vector<16x128xbf16>
    %c3_34 = arith.constant 3 : index
    %c0_35 = arith.constant 0 : index
    %c0_36 = arith.constant 0 : index
    %68 = vector.load %arg3[%c3_34, %c0_35, %c0_36] : memref<4x16x128xbf16, #tpu.memory_space<vmem>>, vector<1x16x128xbf16>
    %69 = vector.shape_cast %68 : vector<1x16x128xbf16> to vector<16x128xbf16>
    %70 = vector.shape_cast %67 : vector<16x128xbf16> to vector<1x16x128xbf16>
    tpu.vector_store %arg3[%c3_34, %c0_35, %c0_36], %70 {strides = array<i32>} : memref<4x16x128xbf16, #tpu.memory_space<vmem>>, vector<1x16x128xbf16>,
    return
  }
  func.func @transform_0(%arg0: i32) -> (i32, i32, i32) {
    %c0_i32 = arith.constant 0 : i32
    %c0_i32_0 = arith.constant 0 : i32
    %c0_i32_1 = arith.constant 0 : i32
    return %c0_i32, %c0_i32_0, %arg0 : i32, i32, i32
  }
  func.func @transform_1(%arg0: i32) -> (i32, i32) {
    %c0_i32 = arith.constant 0 : i32
    %c0_i32_0 = arith.constant 0 : i32
    %c0_i32_1 = arith.constant 0 : i32
    return %c0_i32, %c0_i32_0 : i32, i32
  }
  func.func @transform_2(%arg0: i32) -> (i32, i32, i32) {
    %c0_i32 = arith.constant 0 : i32
    %c0_i32_0 = arith.constant 0 : i32
    %c0_i32_1 = arith.constant 0 : i32
    return %c0_i32, %c0_i32_0, %arg0 : i32, i32, i32
  }
}

module attributes {stable_mosaic.version = 11 : i64} {
  func.func @conv_bn_plif_kernel(%arg0: i32, %arg1: memref<4x144x128xbf16, #tpu.memory_space<vmem>>, %arg2: memref<32x144xbf16, #tpu.memory_space<vmem>>, %arg3: memref<4x32x128xbf16, #tpu.memory_space<vmem>>) attributes {dimension_semantics = [#tpu.dimension_semantics<parallel>], iteration_bounds = array<i64: 1>, scalar_prefetch = 0 : i64, scratch_operands = 0 : i64, tpu.core_type = #tpu.core_type<tc>, window_params = [{transform_indices = @transform_0, window_bounds = array<i64: 4, 144, 128>}, {pipeline_mode = #tpu.pipeline_mode<synchronous>, transform_indices = @transform_1, window_bounds = array<i64: 32, 144>}, {transform_indices = @transform_2, window_bounds = array<i64: 4, 32, 128>}]} {
    %c0 = arith.constant 0 : index
    %c0_0 = arith.constant 0 : index
    %0 = vector.load %arg2[%c0, %c0_0] : memref<32x144xbf16, #tpu.memory_space<vmem>>, vector<32x144xbf16>
    %cst = arith.constant 0.000000e+00 : f32
    %1 = vector.broadcast %cst : f32 to vector<32x128xf32>
    %c0_1 = arith.constant 0 : index
    %c0_2 = arith.constant 0 : index
    %c0_3 = arith.constant 0 : index
    %2 = vector.load %arg1[%c0_1, %c0_2, %c0_3] : memref<4x144x128xbf16, #tpu.memory_space<vmem>>, vector<1x144x128xbf16>
    %3 = vector.shape_cast %2 : vector<1x144x128xbf16> to vector<144x128xbf16>
    %cst_4 = arith.constant dense<0.000000e+00> : vector<32x128xf32>
    %4 = tpu.matmul %0, %3, %cst_4 {dimension_numbers = #tpu.dot_dimension_numbers<[1], [0], [0], [1], [0, 0, 1, 1], [], []>} : vector<32x144xbf16>, vector<144x128xbf16>, vector<32x128xf32> -> vector<32x128xf32>
    %5 = arith.subf %4, %1 : vector<32x128xf32>
    %cst_5 = arith.constant 5.000000e-01 : f32
    %6 = vector.broadcast %cst_5 : f32 to vector<32x128xf32>
    %7 = arith.mulf %5, %6 : vector<32x128xf32>
    %8 = arith.addf %1, %7 : vector<32x128xf32>
    %cst_6 = arith.constant 1.000000e+00 : f32
    %9 = vector.broadcast %cst_6 : f32 to vector<32x128xf32>
    %10 = arith.cmpf oge, %8, %9 : vector<32x128xf32>
    %11 = arith.extui %10 : vector<32x128xi1> to vector<32x128xi32>
    %12 = arith.sitofp %11 : vector<32x128xi32> to vector<32x128xf32>
    %cst_7 = arith.constant 1.000000e+00 : f32
    %13 = vector.broadcast %cst_7 : f32 to vector<32x128xf32>
    %14 = arith.subf %13, %12 : vector<32x128xf32>
    %15 = arith.mulf %8, %14 : vector<32x128xf32>
    %16 = arith.truncf %12 : vector<32x128xf32> to vector<32x128xbf16>
    %c0_8 = arith.constant 0 : index
    %c0_9 = arith.constant 0 : index
    %c0_10 = arith.constant 0 : index
    %17 = vector.load %arg3[%c0_8, %c0_9, %c0_10] : memref<4x32x128xbf16, #tpu.memory_space<vmem>>, vector<1x32x128xbf16>
    %18 = vector.shape_cast %17 : vector<1x32x128xbf16> to vector<32x128xbf16>
    %19 = vector.shape_cast %16 : vector<32x128xbf16> to vector<1x32x128xbf16>
    tpu.vector_store %arg3[%c0_8, %c0_9, %c0_10], %19 {strides = array<i32>} : memref<4x32x128xbf16, #tpu.memory_space<vmem>>, vector<1x32x128xbf16>,
    %c1 = arith.constant 1 : index
    %c0_11 = arith.constant 0 : index
    %c0_12 = arith.constant 0 : index
    %20 = vector.load %arg1[%c1, %c0_11, %c0_12] : memref<4x144x128xbf16, #tpu.memory_space<vmem>>, vector<1x144x128xbf16>
    %21 = vector.shape_cast %20 : vector<1x144x128xbf16> to vector<144x128xbf16>
    %cst_13 = arith.constant dense<0.000000e+00> : vector<32x128xf32>
    %22 = tpu.matmul %0, %21, %cst_13 {dimension_numbers = #tpu.dot_dimension_numbers<[1], [0], [0], [1], [0, 0, 1, 1], [], []>} : vector<32x144xbf16>, vector<144x128xbf16>, vector<32x128xf32> -> vector<32x128xf32>
    %23 = arith.subf %22, %15 : vector<32x128xf32>
    %cst_14 = arith.constant 5.000000e-01 : f32
    %24 = vector.broadcast %cst_14 : f32 to vector<32x128xf32>
    %25 = arith.mulf %23, %24 : vector<32x128xf32>
    %26 = arith.addf %15, %25 : vector<32x128xf32>
    %cst_15 = arith.constant 1.000000e+00 : f32
    %27 = vector.broadcast %cst_15 : f32 to vector<32x128xf32>
    %28 = arith.cmpf oge, %26, %27 : vector<32x128xf32>
    %29 = arith.extui %28 : vector<32x128xi1> to vector<32x128xi32>
    %30 = arith.sitofp %29 : vector<32x128xi32> to vector<32x128xf32>
    %cst_16 = arith.constant 1.000000e+00 : f32
    %31 = vector.broadcast %cst_16 : f32 to vector<32x128xf32>
    %32 = arith.subf %31, %30 : vector<32x128xf32>
    %33 = arith.mulf %26, %32 : vector<32x128xf32>
    %34 = arith.truncf %30 : vector<32x128xf32> to vector<32x128xbf16>
    %c1_17 = arith.constant 1 : index
    %c0_18 = arith.constant 0 : index
    %c0_19 = arith.constant 0 : index
    %35 = vector.load %arg3[%c1_17, %c0_18, %c0_19] : memref<4x32x128xbf16, #tpu.memory_space<vmem>>, vector<1x32x128xbf16>
    %36 = vector.shape_cast %35 : vector<1x32x128xbf16> to vector<32x128xbf16>
    %37 = vector.shape_cast %34 : vector<32x128xbf16> to vector<1x32x128xbf16>
    tpu.vector_store %arg3[%c1_17, %c0_18, %c0_19], %37 {strides = array<i32>} : memref<4x32x128xbf16, #tpu.memory_space<vmem>>, vector<1x32x128xbf16>,
    %c2 = arith.constant 2 : index
    %c0_20 = arith.constant 0 : index
    %c0_21 = arith.constant 0 : index
    %38 = vector.load %arg1[%c2, %c0_20, %c0_21] : memref<4x144x128xbf16, #tpu.memory_space<vmem>>, vector<1x144x128xbf16>
    %39 = vector.shape_cast %38 : vector<1x144x128xbf16> to vector<144x128xbf16>
    %cst_22 = arith.constant dense<0.000000e+00> : vector<32x128xf32>
    %40 = tpu.matmul %0, %39, %cst_22 {dimension_numbers = #tpu.dot_dimension_numbers<[1], [0], [0], [1], [0, 0, 1, 1], [], []>} : vector<32x144xbf16>, vector<144x128xbf16>, vector<32x128xf32> -> vector<32x128xf32>
    %41 = arith.subf %40, %33 : vector<32x128xf32>
    %cst_23 = arith.constant 5.000000e-01 : f32
    %42 = vector.broadcast %cst_23 : f32 to vector<32x128xf32>
    %43 = arith.mulf %41, %42 : vector<32x128xf32>
    %44 = arith.addf %33, %43 : vector<32x128xf32>
    %cst_24 = arith.constant 1.000000e+00 : f32
    %45 = vector.broadcast %cst_24 : f32 to vector<32x128xf32>
    %46 = arith.cmpf oge, %44, %45 : vector<32x128xf32>
    %47 = arith.extui %46 : vector<32x128xi1> to vector<32x128xi32>
    %48 = arith.sitofp %47 : vector<32x128xi32> to vector<32x128xf32>
    %cst_25 = arith.constant 1.000000e+00 : f32
    %49 = vector.broadcast %cst_25 : f32 to vector<32x128xf32>
    %50 = arith.subf %49, %48 : vector<32x128xf32>
    %51 = arith.mulf %44, %50 : vector<32x128xf32>
    %52 = arith.truncf %48 : vector<32x128xf32> to vector<32x128xbf16>
    %c2_26 = arith.constant 2 : index
    %c0_27 = arith.constant 0 : index
    %c0_28 = arith.constant 0 : index
    %53 = vector.load %arg3[%c2_26, %c0_27, %c0_28] : memref<4x32x128xbf16, #tpu.memory_space<vmem>>, vector<1x32x128xbf16>
    %54 = vector.shape_cast %53 : vector<1x32x128xbf16> to vector<32x128xbf16>
    %55 = vector.shape_cast %52 : vector<32x128xbf16> to vector<1x32x128xbf16>
    tpu.vector_store %arg3[%c2_26, %c0_27, %c0_28], %55 {strides = array<i32>} : memref<4x32x128xbf16, #tpu.memory_space<vmem>>, vector<1x32x128xbf16>,
    %c3 = arith.constant 3 : index
    %c0_29 = arith.constant 0 : index
    %c0_30 = arith.constant 0 : index
    %56 = vector.load %arg1[%c3, %c0_29, %c0_30] : memref<4x144x128xbf16, #tpu.memory_space<vmem>>, vector<1x144x128xbf16>
    %57 = vector.shape_cast %56 : vector<1x144x128xbf16> to vector<144x128xbf16>
    %cst_31 = arith.constant dense<0.000000e+00> : vector<32x128xf32>
    %58 = tpu.matmul %0, %57, %cst_31 {dimension_numbers = #tpu.dot_dimension_numbers<[1], [0], [0], [1], [0, 0, 1, 1], [], []>} : vector<32x144xbf16>, vector<144x128xbf16>, vector<32x128xf32> -> vector<32x128xf32>
    %59 = arith.subf %58, %51 : vector<32x128xf32>
    %cst_32 = arith.constant 5.000000e-01 : f32
    %60 = vector.broadcast %cst_32 : f32 to vector<32x128xf32>
    %61 = arith.mulf %59, %60 : vector<32x128xf32>
    %62 = arith.addf %51, %61 : vector<32x128xf32>
    %cst_33 = arith.constant 1.000000e+00 : f32
    %63 = vector.broadcast %cst_33 : f32 to vector<32x128xf32>
    %64 = arith.cmpf oge, %62, %63 : vector<32x128xf32>
    %65 = arith.extui %64 : vector<32x128xi1> to vector<32x128xi32>
    %66 = arith.sitofp %65 : vector<32x128xi32> to vector<32x128xf32>
    %67 = arith.truncf %66 : vector<32x128xf32> to vector<32x128xbf16>
    %c3_34 = arith.constant 3 : index
    %c0_35 = arith.constant 0 : index
    %c0_36 = arith.constant 0 : index
    %68 = vector.load %arg3[%c3_34, %c0_35, %c0_36] : memref<4x32x128xbf16, #tpu.memory_space<vmem>>, vector<1x32x128xbf16>
    %69 = vector.shape_cast %68 : vector<1x32x128xbf16> to vector<32x128xbf16>
    %70 = vector.shape_cast %67 : vector<32x128xbf16> to vector<1x32x128xbf16>
    tpu.vector_store %arg3[%c3_34, %c0_35, %c0_36], %70 {strides = array<i32>} : memref<4x32x128xbf16, #tpu.memory_space<vmem>>, vector<1x32x128xbf16>,
    return
  }
  func.func @transform_0(%arg0: i32) -> (i32, i32, i32) {
    %c0_i32 = arith.constant 0 : i32
    %c0_i32_0 = arith.constant 0 : i32
    %c0_i32_1 = arith.constant 0 : i32
    return %c0_i32, %c0_i32_0, %arg0 : i32, i32, i32
  }
  func.func @transform_1(%arg0: i32) -> (i32, i32) {
    %c0_i32 = arith.constant 0 : i32
    %c0_i32_0 = arith.constant 0 : i32
    %c0_i32_1 = arith.constant 0 : i32
    return %c0_i32, %c0_i32_0 : i32, i32
  }
  func.func @transform_2(%arg0: i32) -> (i32, i32, i32) {
    %c0_i32 = arith.constant 0 : i32
    %c0_i32_0 = arith.constant 0 : i32
    %c0_i32_1 = arith.constant 0 : i32
    return %c0_i32, %c0_i32_0, %arg0 : i32, i32, i32
  }
}

module attributes {stable_mosaic.version = 11 : i64} {
  func.func @conv_bn_plif_kernel(%arg0: i32, %arg1: memref<4x288x128xbf16, #tpu.memory_space<vmem>>, %arg2: memref<32x288xbf16, #tpu.memory_space<vmem>>, %arg3: memref<4x32x128xbf16, #tpu.memory_space<vmem>>) attributes {dimension_semantics = [#tpu.dimension_semantics<parallel>], iteration_bounds = array<i64: 1>, scalar_prefetch = 0 : i64, scratch_operands = 0 : i64, tpu.core_type = #tpu.core_type<tc>, window_params = [{transform_indices = @transform_0, window_bounds = array<i64: 4, 288, 128>}, {pipeline_mode = #tpu.pipeline_mode<synchronous>, transform_indices = @transform_1, window_bounds = array<i64: 32, 288>}, {transform_indices = @transform_2, window_bounds = array<i64: 4, 32, 128>}]} {
    %c0 = arith.constant 0 : index
    %c0_0 = arith.constant 0 : index
    %0 = vector.load %arg2[%c0, %c0_0] : memref<32x288xbf16, #tpu.memory_space<vmem>>, vector<32x288xbf16>
    %cst = arith.constant 0.000000e+00 : f32
    %1 = vector.broadcast %cst : f32 to vector<32x128xf32>
    %c0_1 = arith.constant 0 : index
    %c0_2 = arith.constant 0 : index
    %c0_3 = arith.constant 0 : index
    %2 = vector.load %arg1[%c0_1, %c0_2, %c0_3] : memref<4x288x128xbf16, #tpu.memory_space<vmem>>, vector<1x288x128xbf16>
    %3 = vector.shape_cast %2 : vector<1x288x128xbf16> to vector<288x128xbf16>
    %cst_4 = arith.constant dense<0.000000e+00> : vector<32x128xf32>
    %4 = tpu.matmul %0, %3, %cst_4 {dimension_numbers = #tpu.dot_dimension_numbers<[1], [0], [0], [1], [0, 0, 1, 1], [], []>} : vector<32x288xbf16>, vector<288x128xbf16>, vector<32x128xf32> -> vector<32x128xf32>
    %5 = arith.subf %4, %1 : vector<32x128xf32>
    %cst_5 = arith.constant 5.000000e-01 : f32
    %6 = vector.broadcast %cst_5 : f32 to vector<32x128xf32>
    %7 = arith.mulf %5, %6 : vector<32x128xf32>
    %8 = arith.addf %1, %7 : vector<32x128xf32>
    %cst_6 = arith.constant 1.000000e+00 : f32
    %9 = vector.broadcast %cst_6 : f32 to vector<32x128xf32>
    %10 = arith.cmpf oge, %8, %9 : vector<32x128xf32>
    %11 = arith.extui %10 : vector<32x128xi1> to vector<32x128xi32>
    %12 = arith.sitofp %11 : vector<32x128xi32> to vector<32x128xf32>
    %cst_7 = arith.constant 1.000000e+00 : f32
    %13 = vector.broadcast %cst_7 : f32 to vector<32x128xf32>
    %14 = arith.subf %13, %12 : vector<32x128xf32>
    %15 = arith.mulf %8, %14 : vector<32x128xf32>
    %16 = arith.truncf %12 : vector<32x128xf32> to vector<32x128xbf16>
    %c0_8 = arith.constant 0 : index
    %c0_9 = arith.constant 0 : index
    %c0_10 = arith.constant 0 : index
    %17 = vector.load %arg3[%c0_8, %c0_9, %c0_10] : memref<4x32x128xbf16, #tpu.memory_space<vmem>>, vector<1x32x128xbf16>
    %18 = vector.shape_cast %17 : vector<1x32x128xbf16> to vector<32x128xbf16>
    %19 = vector.shape_cast %16 : vector<32x128xbf16> to vector<1x32x128xbf16>
    tpu.vector_store %arg3[%c0_8, %c0_9, %c0_10], %19 {strides = array<i32>} : memref<4x32x128xbf16, #tpu.memory_space<vmem>>, vector<1x32x128xbf16>,
    %c1 = arith.constant 1 : index
    %c0_11 = arith.constant 0 : index
    %c0_12 = arith.constant 0 : index
    %20 = vector.load %arg1[%c1, %c0_11, %c0_12] : memref<4x288x128xbf16, #tpu.memory_space<vmem>>, vector<1x288x128xbf16>
    %21 = vector.shape_cast %20 : vector<1x288x128xbf16> to vector<288x128xbf16>
    %cst_13 = arith.constant dense<0.000000e+00> : vector<32x128xf32>
    %22 = tpu.matmul %0, %21, %cst_13 {dimension_numbers = #tpu.dot_dimension_numbers<[1], [0], [0], [1], [0, 0, 1, 1], [], []>} : vector<32x288xbf16>, vector<288x128xbf16>, vector<32x128xf32> -> vector<32x128xf32>
    %23 = arith.subf %22, %15 : vector<32x128xf32>
    %cst_14 = arith.constant 5.000000e-01 : f32
    %24 = vector.broadcast %cst_14 : f32 to vector<32x128xf32>
    %25 = arith.mulf %23, %24 : vector<32x128xf32>
    %26 = arith.addf %15, %25 : vector<32x128xf32>
    %cst_15 = arith.constant 1.000000e+00 : f32
    %27 = vector.broadcast %cst_15 : f32 to vector<32x128xf32>
    %28 = arith.cmpf oge, %26, %27 : vector<32x128xf32>
    %29 = arith.extui %28 : vector<32x128xi1> to vector<32x128xi32>
    %30 = arith.sitofp %29 : vector<32x128xi32> to vector<32x128xf32>
    %cst_16 = arith.constant 1.000000e+00 : f32
    %31 = vector.broadcast %cst_16 : f32 to vector<32x128xf32>
    %32 = arith.subf %31, %30 : vector<32x128xf32>
    %33 = arith.mulf %26, %32 : vector<32x128xf32>
    %34 = arith.truncf %30 : vector<32x128xf32> to vector<32x128xbf16>
    %c1_17 = arith.constant 1 : index
    %c0_18 = arith.constant 0 : index
    %c0_19 = arith.constant 0 : index
    %35 = vector.load %arg3[%c1_17, %c0_18, %c0_19] : memref<4x32x128xbf16, #tpu.memory_space<vmem>>, vector<1x32x128xbf16>
    %36 = vector.shape_cast %35 : vector<1x32x128xbf16> to vector<32x128xbf16>
    %37 = vector.shape_cast %34 : vector<32x128xbf16> to vector<1x32x128xbf16>
    tpu.vector_store %arg3[%c1_17, %c0_18, %c0_19], %37 {strides = array<i32>} : memref<4x32x128xbf16, #tpu.memory_space<vmem>>, vector<1x32x128xbf16>,
    %c2 = arith.constant 2 : index
    %c0_20 = arith.constant 0 : index
    %c0_21 = arith.constant 0 : index
    %38 = vector.load %arg1[%c2, %c0_20, %c0_21] : memref<4x288x128xbf16, #tpu.memory_space<vmem>>, vector<1x288x128xbf16>
    %39 = vector.shape_cast %38 : vector<1x288x128xbf16> to vector<288x128xbf16>
    %cst_22 = arith.constant dense<0.000000e+00> : vector<32x128xf32>
    %40 = tpu.matmul %0, %39, %cst_22 {dimension_numbers = #tpu.dot_dimension_numbers<[1], [0], [0], [1], [0, 0, 1, 1], [], []>} : vector<32x288xbf16>, vector<288x128xbf16>, vector<32x128xf32> -> vector<32x128xf32>
    %41 = arith.subf %40, %33 : vector<32x128xf32>
    %cst_23 = arith.constant 5.000000e-01 : f32
    %42 = vector.broadcast %cst_23 : f32 to vector<32x128xf32>
    %43 = arith.mulf %41, %42 : vector<32x128xf32>
    %44 = arith.addf %33, %43 : vector<32x128xf32>
    %cst_24 = arith.constant 1.000000e+00 : f32
    %45 = vector.broadcast %cst_24 : f32 to vector<32x128xf32>
    %46 = arith.cmpf oge, %44, %45 : vector<32x128xf32>
    %47 = arith.extui %46 : vector<32x128xi1> to vector<32x128xi32>
    %48 = arith.sitofp %47 : vector<32x128xi32> to vector<32x128xf32>
    %cst_25 = arith.constant 1.000000e+00 : f32
    %49 = vector.broadcast %cst_25 : f32 to vector<32x128xf32>
    %50 = arith.subf %49, %48 : vector<32x128xf32>
    %51 = arith.mulf %44, %50 : vector<32x128xf32>
    %52 = arith.truncf %48 : vector<32x128xf32> to vector<32x128xbf16>
    %c2_26 = arith.constant 2 : index
    %c0_27 = arith.constant 0 : index
    %c0_28 = arith.constant 0 : index
    %53 = vector.load %arg3[%c2_26, %c0_27, %c0_28] : memref<4x32x128xbf16, #tpu.memory_space<vmem>>, vector<1x32x128xbf16>
    %54 = vector.shape_cast %53 : vector<1x32x128xbf16> to vector<32x128xbf16>
    %55 = vector.shape_cast %52 : vector<32x128xbf16> to vector<1x32x128xbf16>
    tpu.vector_store %arg3[%c2_26, %c0_27, %c0_28], %55 {strides = array<i32>} : memref<4x32x128xbf16, #tpu.memory_space<vmem>>, vector<1x32x128xbf16>,
    %c3 = arith.constant 3 : index
    %c0_29 = arith.constant 0 : index
    %c0_30 = arith.constant 0 : index
    %56 = vector.load %arg1[%c3, %c0_29, %c0_30] : memref<4x288x128xbf16, #tpu.memory_space<vmem>>, vector<1x288x128xbf16>
    %57 = vector.shape_cast %56 : vector<1x288x128xbf16> to vector<288x128xbf16>
    %cst_31 = arith.constant dense<0.000000e+00> : vector<32x128xf32>
    %58 = tpu.matmul %0, %57, %cst_31 {dimension_numbers = #tpu.dot_dimension_numbers<[1], [0], [0], [1], [0, 0, 1, 1], [], []>} : vector<32x288xbf16>, vector<288x128xbf16>, vector<32x128xf32> -> vector<32x128xf32>
    %59 = arith.subf %58, %51 : vector<32x128xf32>
    %cst_32 = arith.constant 5.000000e-01 : f32
    %60 = vector.broadcast %cst_32 : f32 to vector<32x128xf32>
    %61 = arith.mulf %59, %60 : vector<32x128xf32>
    %62 = arith.addf %51, %61 : vector<32x128xf32>
    %cst_33 = arith.constant 1.000000e+00 : f32
    %63 = vector.broadcast %cst_33 : f32 to vector<32x128xf32>
    %64 = arith.cmpf oge, %62, %63 : vector<32x128xf32>
    %65 = arith.extui %64 : vector<32x128xi1> to vector<32x128xi32>
    %66 = arith.sitofp %65 : vector<32x128xi32> to vector<32x128xf32>
    %67 = arith.truncf %66 : vector<32x128xf32> to vector<32x128xbf16>
    %c3_34 = arith.constant 3 : index
    %c0_35 = arith.constant 0 : index
    %c0_36 = arith.constant 0 : index
    %68 = vector.load %arg3[%c3_34, %c0_35, %c0_36] : memref<4x32x128xbf16, #tpu.memory_space<vmem>>, vector<1x32x128xbf16>
    %69 = vector.shape_cast %68 : vector<1x32x128xbf16> to vector<32x128xbf16>
    %70 = vector.shape_cast %67 : vector<32x128xbf16> to vector<1x32x128xbf16>
    tpu.vector_store %arg3[%c3_34, %c0_35, %c0_36], %70 {strides = array<i32>} : memref<4x32x128xbf16, #tpu.memory_space<vmem>>, vector<1x32x128xbf16>,
    return
  }
  func.func @transform_0(%arg0: i32) -> (i32, i32, i32) {
    %c0_i32 = arith.constant 0 : i32
    %c0_i32_0 = arith.constant 0 : i32
    %c0_i32_1 = arith.constant 0 : i32
    return %c0_i32, %c0_i32_0, %arg0 : i32, i32, i32
  }
  func.func @transform_1(%arg0: i32) -> (i32, i32) {
    %c0_i32 = arith.constant 0 : i32
    %c0_i32_0 = arith.constant 0 : i32
    %c0_i32_1 = arith.constant 0 : i32
    return %c0_i32, %c0_i32_0 : i32, i32
  }
  func.func @transform_2(%arg0: i32) -> (i32, i32, i32) {
    %c0_i32 = arith.constant 0 : i32
    %c0_i32_0 = arith.constant 0 : i32
    %c0_i32_1 = arith.constant 0 : i32
    return %c0_i32, %c0_i32_0, %arg0 : i32, i32, i32
  }
}

module attributes {stable_mosaic.version = 11 : i64} {
  func.func @tail_kernel(%arg0: i32, %arg1: memref<4x2x1152xbf16, #tpu.memory_space<vmem>>, %arg2: memref<1152x32xbf16, #tpu.memory_space<vmem>>, %arg3: memref<32x12xbf16, #tpu.memory_space<vmem>>, %arg4: memref<4x2x12xf32, #tpu.memory_space<vmem>>, %arg5: memref<2x32xf32, #tpu.memory_space<vmem>>) attributes {dimension_semantics = [#tpu.dimension_semantics<arbitrary>], iteration_bounds = array<i64: 1>, scalar_prefetch = 0 : i64, scratch_operands = 0 : i64, tpu.core_type = #tpu.core_type<tc>, window_params = [{pipeline_mode = #tpu.pipeline_mode<synchronous>, transform_indices = @transform_0, window_bounds = array<i64: 4, 2, 1152>}, {pipeline_mode = #tpu.pipeline_mode<synchronous>, transform_indices = @transform_1, window_bounds = array<i64: 1152, 32>}, {pipeline_mode = #tpu.pipeline_mode<synchronous>, transform_indices = @transform_2, window_bounds = array<i64: 32, 12>}, {pipeline_mode = #tpu.pipeline_mode<synchronous>, transform_indices = @transform_3, window_bounds = array<i64: 4, 2, 12>}, {pipeline_mode = #tpu.pipeline_mode<synchronous>, transform_indices = @transform_4, window_bounds = array<i64: 2, 32>}]} {
    %c0 = arith.constant 0 : index
    %c0_0 = arith.constant 0 : index
    %0 = vector.load %arg2[%c0, %c0_0] : memref<1152x32xbf16, #tpu.memory_space<vmem>>, vector<1152x32xbf16>
    %c0_1 = arith.constant 0 : index
    %c0_2 = arith.constant 0 : index
    %1 = vector.load %arg3[%c0_1, %c0_2] : memref<32x12xbf16, #tpu.memory_space<vmem>>, vector<32x12xbf16>
    %cst = arith.constant 0.000000e+00 : f32
    %2 = vector.broadcast %cst : f32 to vector<2x32xf32>
    %cst_3 = arith.constant 0.000000e+00 : f32
    %3 = vector.broadcast %cst_3 : f32 to vector<2x12xf32>
    %cst_4 = arith.constant 0.000000e+00 : f32
    %4 = vector.broadcast %cst_4 : f32 to vector<2x32xf32>
    %c0_5 = arith.constant 0 : index
    %c0_6 = arith.constant 0 : index
    %c0_7 = arith.constant 0 : index
    %5 = vector.load %arg1[%c0_5, %c0_6, %c0_7] : memref<4x2x1152xbf16, #tpu.memory_space<vmem>>, vector<1x2x1152xbf16>
    %6 = vector.shape_cast %5 : vector<1x2x1152xbf16> to vector<2x1152xbf16>
    %cst_8 = arith.constant dense<0.000000e+00> : vector<2x32xf32>
    %7 = tpu.matmul %6, %0, %cst_8 {dimension_numbers = #tpu.dot_dimension_numbers<[1], [0], [0], [1], [0, 0, 1, 1], [], []>} : vector<2x1152xbf16>, vector<1152x32xbf16>, vector<2x32xf32> -> vector<2x32xf32>
    %8 = arith.subf %7, %2 : vector<2x32xf32>
    %cst_9 = arith.constant 5.000000e-01 : f32
    %9 = vector.broadcast %cst_9 : f32 to vector<2x32xf32>
    %10 = arith.mulf %8, %9 : vector<2x32xf32>
    %11 = arith.addf %2, %10 : vector<2x32xf32>
    %cst_10 = arith.constant 1.000000e+00 : f32
    %12 = vector.broadcast %cst_10 : f32 to vector<2x32xf32>
    %13 = arith.cmpf oge, %11, %12 : vector<2x32xf32>
    %14 = arith.extui %13 : vector<2x32xi1> to vector<2x32xi32>
    %15 = arith.sitofp %14 : vector<2x32xi32> to vector<2x32xf32>
    %cst_11 = arith.constant 1.000000e+00 : f32
    %16 = vector.broadcast %cst_11 : f32 to vector<2x32xf32>
    %17 = arith.subf %16, %15 : vector<2x32xf32>
    %18 = arith.mulf %11, %17 : vector<2x32xf32>
    %19 = arith.addf %4, %15 : vector<2x32xf32>
    %20 = arith.truncf %15 : vector<2x32xf32> to vector<2x32xbf16>
    %cst_12 = arith.constant dense<0.000000e+00> : vector<2x12xf32>
    %21 = tpu.matmul %20, %1, %cst_12 {dimension_numbers = #tpu.dot_dimension_numbers<[1], [0], [0], [1], [0, 0, 1, 1], [], []>} : vector<2x32xbf16>, vector<32x12xbf16>, vector<2x12xf32> -> vector<2x12xf32>
    %22 = arith.subf %21, %3 : vector<2x12xf32>
    %cst_13 = arith.constant 5.000000e-01 : f32
    %23 = vector.broadcast %cst_13 : f32 to vector<2x12xf32>
    %24 = arith.mulf %22, %23 : vector<2x12xf32>
    %25 = arith.addf %3, %24 : vector<2x12xf32>
    %c0_14 = arith.constant 0 : index
    %c0_15 = arith.constant 0 : index
    %c0_16 = arith.constant 0 : index
    %26 = vector.load %arg4[%c0_14, %c0_15, %c0_16] : memref<4x2x12xf32, #tpu.memory_space<vmem>>, vector<1x2x12xf32>
    %27 = vector.shape_cast %26 : vector<1x2x12xf32> to vector<2x12xf32>
    %28 = vector.shape_cast %25 : vector<2x12xf32> to vector<1x2x12xf32>
    tpu.vector_store %arg4[%c0_14, %c0_15, %c0_16], %28 {strides = array<i32>} : memref<4x2x12xf32, #tpu.memory_space<vmem>>, vector<1x2x12xf32>,
    %c1 = arith.constant 1 : index
    %c0_17 = arith.constant 0 : index
    %c0_18 = arith.constant 0 : index
    %29 = vector.load %arg1[%c1, %c0_17, %c0_18] : memref<4x2x1152xbf16, #tpu.memory_space<vmem>>, vector<1x2x1152xbf16>
    %30 = vector.shape_cast %29 : vector<1x2x1152xbf16> to vector<2x1152xbf16>
    %cst_19 = arith.constant dense<0.000000e+00> : vector<2x32xf32>
    %31 = tpu.matmul %30, %0, %cst_19 {dimension_numbers = #tpu.dot_dimension_numbers<[1], [0], [0], [1], [0, 0, 1, 1], [], []>} : vector<2x1152xbf16>, vector<1152x32xbf16>, vector<2x32xf32> -> vector<2x32xf32>
    %32 = arith.subf %31, %18 : vector<2x32xf32>
    %cst_20 = arith.constant 5.000000e-01 : f32
    %33 = vector.broadcast %cst_20 : f32 to vector<2x32xf32>
    %34 = arith.mulf %32, %33 : vector<2x32xf32>
    %35 = arith.addf %18, %34 : vector<2x32xf32>
    %cst_21 = arith.constant 1.000000e+00 : f32
    %36 = vector.broadcast %cst_21 : f32 to vector<2x32xf32>
    %37 = arith.cmpf oge, %35, %36 : vector<2x32xf32>
    %38 = arith.extui %37 : vector<2x32xi1> to vector<2x32xi32>
    %39 = arith.sitofp %38 : vector<2x32xi32> to vector<2x32xf32>
    %cst_22 = arith.constant 1.000000e+00 : f32
    %40 = vector.broadcast %cst_22 : f32 to vector<2x32xf32>
    %41 = arith.subf %40, %39 : vector<2x32xf32>
    %42 = arith.mulf %35, %41 : vector<2x32xf32>
    %43 = arith.addf %19, %39 : vector<2x32xf32>
    %44 = arith.truncf %39 : vector<2x32xf32> to vector<2x32xbf16>
    %cst_23 = arith.constant dense<0.000000e+00> : vector<2x12xf32>
    %45 = tpu.matmul %44, %1, %cst_23 {dimension_numbers = #tpu.dot_dimension_numbers<[1], [0], [0], [1], [0, 0, 1, 1], [], []>} : vector<2x32xbf16>, vector<32x12xbf16>, vector<2x12xf32> -> vector<2x12xf32>
    %46 = arith.subf %45, %25 : vector<2x12xf32>
    %cst_24 = arith.constant 5.000000e-01 : f32
    %47 = vector.broadcast %cst_24 : f32 to vector<2x12xf32>
    %48 = arith.mulf %46, %47 : vector<2x12xf32>
    %49 = arith.addf %25, %48 : vector<2x12xf32>
    %c1_25 = arith.constant 1 : index
    %c0_26 = arith.constant 0 : index
    %c0_27 = arith.constant 0 : index
    %50 = vector.load %arg4[%c1_25, %c0_26, %c0_27] : memref<4x2x12xf32, #tpu.memory_space<vmem>>, vector<1x2x12xf32>
    %51 = vector.shape_cast %50 : vector<1x2x12xf32> to vector<2x12xf32>
    %52 = vector.shape_cast %49 : vector<2x12xf32> to vector<1x2x12xf32>
    tpu.vector_store %arg4[%c1_25, %c0_26, %c0_27], %52 {strides = array<i32>} : memref<4x2x12xf32, #tpu.memory_space<vmem>>, vector<1x2x12xf32>,
    %c2 = arith.constant 2 : index
    %c0_28 = arith.constant 0 : index
    %c0_29 = arith.constant 0 : index
    %53 = vector.load %arg1[%c2, %c0_28, %c0_29] : memref<4x2x1152xbf16, #tpu.memory_space<vmem>>, vector<1x2x1152xbf16>
    %54 = vector.shape_cast %53 : vector<1x2x1152xbf16> to vector<2x1152xbf16>
    %cst_30 = arith.constant dense<0.000000e+00> : vector<2x32xf32>
    %55 = tpu.matmul %54, %0, %cst_30 {dimension_numbers = #tpu.dot_dimension_numbers<[1], [0], [0], [1], [0, 0, 1, 1], [], []>} : vector<2x1152xbf16>, vector<1152x32xbf16>, vector<2x32xf32> -> vector<2x32xf32>
    %56 = arith.subf %55, %42 : vector<2x32xf32>
    %cst_31 = arith.constant 5.000000e-01 : f32
    %57 = vector.broadcast %cst_31 : f32 to vector<2x32xf32>
    %58 = arith.mulf %56, %57 : vector<2x32xf32>
    %59 = arith.addf %42, %58 : vector<2x32xf32>
    %cst_32 = arith.constant 1.000000e+00 : f32
    %60 = vector.broadcast %cst_32 : f32 to vector<2x32xf32>
    %61 = arith.cmpf oge, %59, %60 : vector<2x32xf32>
    %62 = arith.extui %61 : vector<2x32xi1> to vector<2x32xi32>
    %63 = arith.sitofp %62 : vector<2x32xi32> to vector<2x32xf32>
    %cst_33 = arith.constant 1.000000e+00 : f32
    %64 = vector.broadcast %cst_33 : f32 to vector<2x32xf32>
    %65 = arith.subf %64, %63 : vector<2x32xf32>
    %66 = arith.mulf %59, %65 : vector<2x32xf32>
    %67 = arith.addf %43, %63 : vector<2x32xf32>
    %68 = arith.truncf %63 : vector<2x32xf32> to vector<2x32xbf16>
    %cst_34 = arith.constant dense<0.000000e+00> : vector<2x12xf32>
    %69 = tpu.matmul %68, %1, %cst_34 {dimension_numbers = #tpu.dot_dimension_numbers<[1], [0], [0], [1], [0, 0, 1, 1], [], []>} : vector<2x32xbf16>, vector<32x12xbf16>, vector<2x12xf32> -> vector<2x12xf32>
    %70 = arith.subf %69, %49 : vector<2x12xf32>
    %cst_35 = arith.constant 5.000000e-01 : f32
    %71 = vector.broadcast %cst_35 : f32 to vector<2x12xf32>
    %72 = arith.mulf %70, %71 : vector<2x12xf32>
    %73 = arith.addf %49, %72 : vector<2x12xf32>
    %c2_36 = arith.constant 2 : index
    %c0_37 = arith.constant 0 : index
    %c0_38 = arith.constant 0 : index
    %74 = vector.load %arg4[%c2_36, %c0_37, %c0_38] : memref<4x2x12xf32, #tpu.memory_space<vmem>>, vector<1x2x12xf32>
    %75 = vector.shape_cast %74 : vector<1x2x12xf32> to vector<2x12xf32>
    %76 = vector.shape_cast %73 : vector<2x12xf32> to vector<1x2x12xf32>
    tpu.vector_store %arg4[%c2_36, %c0_37, %c0_38], %76 {strides = array<i32>} : memref<4x2x12xf32, #tpu.memory_space<vmem>>, vector<1x2x12xf32>,
    %c3 = arith.constant 3 : index
    %c0_39 = arith.constant 0 : index
    %c0_40 = arith.constant 0 : index
    %77 = vector.load %arg1[%c3, %c0_39, %c0_40] : memref<4x2x1152xbf16, #tpu.memory_space<vmem>>, vector<1x2x1152xbf16>
    %78 = vector.shape_cast %77 : vector<1x2x1152xbf16> to vector<2x1152xbf16>
    %cst_41 = arith.constant dense<0.000000e+00> : vector<2x32xf32>
    %79 = tpu.matmul %78, %0, %cst_41 {dimension_numbers = #tpu.dot_dimension_numbers<[1], [0], [0], [1], [0, 0, 1, 1], [], []>} : vector<2x1152xbf16>, vector<1152x32xbf16>, vector<2x32xf32> -> vector<2x32xf32>
    %80 = arith.subf %79, %66 : vector<2x32xf32>
    %cst_42 = arith.constant 5.000000e-01 : f32
    %81 = vector.broadcast %cst_42 : f32 to vector<2x32xf32>
    %82 = arith.mulf %80, %81 : vector<2x32xf32>
    %83 = arith.addf %66, %82 : vector<2x32xf32>
    %cst_43 = arith.constant 1.000000e+00 : f32
    %84 = vector.broadcast %cst_43 : f32 to vector<2x32xf32>
    %85 = arith.cmpf oge, %83, %84 : vector<2x32xf32>
    %86 = arith.extui %85 : vector<2x32xi1> to vector<2x32xi32>
    %87 = arith.sitofp %86 : vector<2x32xi32> to vector<2x32xf32>
    %88 = arith.addf %67, %87 : vector<2x32xf32>
    %89 = arith.truncf %87 : vector<2x32xf32> to vector<2x32xbf16>
    %cst_44 = arith.constant dense<0.000000e+00> : vector<2x12xf32>
    %90 = tpu.matmul %89, %1, %cst_44 {dimension_numbers = #tpu.dot_dimension_numbers<[1], [0], [0], [1], [0, 0, 1, 1], [], []>} : vector<2x32xbf16>, vector<32x12xbf16>, vector<2x12xf32> -> vector<2x12xf32>
    %91 = arith.subf %90, %73 : vector<2x12xf32>
    %cst_45 = arith.constant 5.000000e-01 : f32
    %92 = vector.broadcast %cst_45 : f32 to vector<2x12xf32>
    %93 = arith.mulf %91, %92 : vector<2x12xf32>
    %94 = arith.addf %73, %93 : vector<2x12xf32>
    %c3_46 = arith.constant 3 : index
    %c0_47 = arith.constant 0 : index
    %c0_48 = arith.constant 0 : index
    %95 = vector.load %arg4[%c3_46, %c0_47, %c0_48] : memref<4x2x12xf32, #tpu.memory_space<vmem>>, vector<1x2x12xf32>
    %96 = vector.shape_cast %95 : vector<1x2x12xf32> to vector<2x12xf32>
    %97 = vector.shape_cast %94 : vector<2x12xf32> to vector<1x2x12xf32>
    tpu.vector_store %arg4[%c3_46, %c0_47, %c0_48], %97 {strides = array<i32>} : memref<4x2x12xf32, #tpu.memory_space<vmem>>, vector<1x2x12xf32>,
    %cst_49 = arith.constant 2.500000e-01 : f32
    %98 = vector.broadcast %cst_49 : f32 to vector<2x32xf32>
    %99 = arith.mulf %88, %98 : vector<2x32xf32>
    %c0_50 = arith.constant 0 : index
    %c0_51 = arith.constant 0 : index
    %100 = vector.load %arg5[%c0_50, %c0_51] : memref<2x32xf32, #tpu.memory_space<vmem>>, vector<2x32xf32>
    tpu.vector_store %arg5[%c0_50, %c0_51], %99 {strides = array<i32>} : memref<2x32xf32, #tpu.memory_space<vmem>>, vector<2x32xf32>,
    return
  }
  func.func @transform_0(%arg0: i32) -> (i32, i32, i32) {
    %c0_i32 = arith.constant 0 : i32
    %c0_i32_0 = arith.constant 0 : i32
    %c0_i32_1 = arith.constant 0 : i32
    %c0_i32_2 = arith.constant 0 : i32
    return %c0_i32, %c0_i32_0, %c0_i32_1 : i32, i32, i32
  }
  func.func @transform_1(%arg0: i32) -> (i32, i32) {
    %c0_i32 = arith.constant 0 : i32
    %c0_i32_0 = arith.constant 0 : i32
    %c0_i32_1 = arith.constant 0 : i32
    return %c0_i32, %c0_i32_0 : i32, i32
  }
  func.func @transform_2(%arg0: i32) -> (i32, i32) {
    %c0_i32 = arith.constant 0 : i32
    %c0_i32_0 = arith.constant 0 : i32
    %c0_i32_1 = arith.constant 0 : i32
    return %c0_i32, %c0_i32_0 : i32, i32
  }
  func.func @transform_3(%arg0: i32) -> (i32, i32, i32) {
    %c0_i32 = arith.constant 0 : i32
    %c0_i32_0 = arith.constant 0 : i32
    %c0_i32_1 = arith.constant 0 : i32
    %c0_i32_2 = arith.constant 0 : i32
    return %c0_i32, %c0_i32_0, %c0_i32_1 : i32, i32, i32
  }
  func.func @transform_4(%arg0: i32) -> (i32, i32) {
    %c0_i32 = arith.constant 0 : i32
    %c0_i32_0 = arith.constant 0 : i32
    %c0_i32_1 = arith.constant 0 : i32
    return %c0_i32, %c0_i32_0 : i32, i32
  }
}

</mosaic_0001>

<llo_original>
// kernel: all_conv_plif_li_forward.6
$region0: #{all_conv_plif_li_forward.6}
  #allocation0 [shape = 'u32[]', space=smem, size = 0x4, offset = 0x4, fixed_abs, tag = 'smem constant byte address 0x4 - core index']
  #allocation1 [shape = 'u32[72,128]{1,0:T(1,128)}', space=vmem, size = 0x9000, scoped, tag = 'internal scratch']
  %s0 = inlined_call_operand.vmem [shape: bf16[4,18,5120], index: 0, kind: input, shape index: {}]
  %s1 = inlined_call_operand.vmem [shape: bf16[4,18], index: 1, kind: input, shape index: {}]
  %s2 = inlined_call_operand.vmem [shape: bf16[4,4,5120], index: 2, kind: output, shape index: {}]
  %s3 = sld [smem:[#allocation0]]
  $region86: #{all_conv_plif_li_forward.6} parent=0
    _
  %s5 = ssub.s32 1, %s3
  %s6 = scalar_select 0, %s5, %s3
  $region1: #{all_conv_plif_li_forward.6} parent=0
    #allocation2 [shape = 'u8[491520]{0}', space=vmem, size = 0x78000, scoped, tag = 'input window, operand 0']
    #allocation3 [shape = 'u8[81920]{0}', space=vmem, size = 0x14000, scoped, tag = 'output window, operand 0']
    loop: start=0, step=1, limit=6
    $region2: #{all_conv_plif_li_forward.6} parent=1 // loop_pre_header
      _
    $region3: #{all_conv_plif_li_forward.6} parent=1 // loop_header
      %s8 = sphi 0, %s12
      %p9 = scmp.ge.s32.totalorder %s8, 6
      %s18 = sphi 0, %s20
      %s21 = sphi 0, %s18
      %s22 = sphi 0, %s21
      %s38 = sphi 0, %s22
      %s42 = sphi 0, %s42
      %s44 = sphi 0, %s42
      %s45 = sphi 0, %s44
      %s59 = sphi 0, %s45
      %s65 = sphi 0, %s67
      %s68 = sphi 0, %s65
      %s69 = sphi 0, %s68
      %s85 = sphi 0, %s69
    $region4: #{all_conv_plif_li_forward.6} parent=1 // loop_header_branch
      %11 = sbr.rel (%p9) target = $region8
    $region5: #{all_conv_plif_li_forward.6} parent=1 // loop_body
      %s13 = ssub.s32 %s8, 1
      %s14 = ssub.s32 %s8, 2
      %s15 = sadd.s32 %s8, 1
      %s16 = ssub.s32 %s8, %s15
      %p17 = scmp.eq.s32.totalorder %s16, 0
      %s19 = sadd.s32 %s18, 1
      %s20 = scalar_select %p17, %s18, %s19
      %p23 = pneg %p17
      %p24 = scmp.eq.s32.totalorder %s8, 3
      %p25 = por %p23, %p24
      %p26 = scmp.ne.s32.totalorder %s18, %s21
      %p27 = scmp.eq.s32.totalorder %s8, 0
      %p28 = por %p26, %p27
      %p29 = scmp.ne.s32.totalorder %s18, %s21
      %p30 = scmp.eq.s32.totalorder %s13, 3
      %p31 = por %p29, %p30
      %p32 = scmp.ne.s32.totalorder %s21, %s22
      %p33 = scmp.eq.s32.totalorder %s13, 0
      %p34 = por %p32, %p33
      %p35 = scmp.ne.s32.totalorder %s21, %s22
      %p36 = scmp.eq.s32.totalorder %s14, 3
      %p37 = por %p35, %p36
      %p39 = scmp.ne.s32.totalorder %s22, %s38
      %p40 = scmp.eq.s32.totalorder %s14, 0
      %p41 = por %p39, %p40
      %s43 = sadd.s32 %s42, 1
      %p46 = scmp.eq.s32.totalorder %s8, 3
      %p47 = scmp.ne.s32.totalorder %s42, %s44
      %p48 = scmp.eq.s32.totalorder %s8, 0
      %p49 = por %p47, %p48
      %p50 = scmp.ne.s32.totalorder %s42, %s44
      %p51 = scmp.eq.s32.totalorder %s13, 3
      %p52 = por %p50, %p51
      %p53 = scmp.ne.s32.totalorder %s44, %s45
      %p54 = scmp.eq.s32.totalorder %s13, 0
      %p55 = por %p53, %p54
      %p56 = scmp.ne.s32.totalorder %s44, %s45
      %p57 = scmp.eq.s32.totalorder %s14, 3
      %p58 = por %p56, %p57
      %p60 = scmp.ne.s32.totalorder %s45, %s59
      %p61 = scmp.eq.s32.totalorder %s14, 0
      %p62 = por %p60, %p61
      %s63 = ssub.s32 %s8, %s15
      %p64 = scmp.eq.s32.totalorder %s63, 0
      %s66 = sadd.s32 %s65, 1
      %s67 = scalar_select %p64, %s65, %s66
      %p70 = pneg %p64
      %p71 = scmp.eq.s32.totalorder %s8, 3
      %p72 = por %p70, %p71
      %p73 = scmp.ne.s32.totalorder %s65, %s68
      %p74 = scmp.eq.s32.totalorder %s8, 0
      %p75 = por %p73, %p74
      %p76 = scmp.ne.s32.totalorder %s65, %s68
      %p77 = scmp.eq.s32.totalorder %s13, 3
      %p78 = por %p76, %p77
      %p79 = scmp.ne.s32.totalorder %s68, %s69
      %p80 = scmp.eq.s32.totalorder %s13, 0
      %p81 = por %p79, %p80
      %p82 = scmp.ne.s32.totalorder %s68, %s69
      %p83 = scmp.eq.s32.totalorder %s14, 3
      %p84 = por %p82, %p83
      %p86 = scmp.ne.s32.totalorder %s69, %s85
      %p87 = scmp.eq.s32.totalorder %s14, 0
      %p88 = por %p86, %p87
      %p89 = scmp.le.s32.totalorder 1, %s8
      %p90 = scmp.lt.s32.totalorder %s8, 5
      %p91 = pnand %p89, %p90
      %p92 = pneg %p91
      // Predicated region
      $region9: #{all_conv_plif_li_forward.6} parent=5 // pred_check
        _
      $region10: #{all_conv_plif_li_forward.6} parent=5 // pred_check_branch
        %94 = sbr.rel (%p91) target = $region12
      $region11: #{all_conv_plif_li_forward.6} parent=5 // pred_region
        %s95 = ssub.s32 %s8, 1
        // Predicated region
        $region13: #{all_conv_plif_li_forward.6} parent=11 // pred_check
          %p96 = pneg %p55
        $region14: #{all_conv_plif_li_forward.6} parent=11 // pred_check_branch
          %98 = sbr.rel (%p96) target = $region16
        $region15: #{all_conv_plif_li_forward.6} parent=11 // pred_region
          _
        $region16: #{all_conv_plif_li_forward.6} parent=11 // pred_fallthru
          _
      $region12: #{all_conv_plif_li_forward.6} parent=5 // pred_fallthru
        _
      %p99 = scmp.lt.s32.totalorder %s8, 4
      // Predicated region
      $region17: #{all_conv_plif_li_forward.6} parent=5 // pred_check
        %p100 = pneg %p99
      $region18: #{all_conv_plif_li_forward.6} parent=5 // pred_check_branch
        %102 = sbr.rel (%p100) target = $region20
      $region19: #{all_conv_plif_li_forward.6} parent=5 // pred_region
        // Predicated region
        $region21: #{all_conv_plif_li_forward.6} parent=19 // pred_check
          %p103 = pneg %p28
        $region22: #{all_conv_plif_li_forward.6} parent=19 // pred_check_branch
          %105 = sbr.rel (%p103) target = $region24
        $region23: #{all_conv_plif_li_forward.6} parent=19 // pred_region
          %s106 = sand.u32 %s18, 1
          %s107 = sand.u32 %s18, 1
          %s108 = smul.addr %s107, 480
          %s109 = scalar_lea.vmem [#allocation2], %s108
          %s110 = smul.u32 10, %s8
          %s111 = smul.addr %s110, 4
          %s112 = scalar_lea.vmem %s0, %s111
          // Predicated region
          $region25: #{all_conv_plif_li_forward.6} parent=23 // pred_check
            _
          $region26: #{all_conv_plif_li_forward.6} parent=23 // pred_check_branch
            %114 = sbr.rel (0) target = $region28
          $region27: #{all_conv_plif_li_forward.6} parent=23 // pred_region
            // Predicated region
            $region29: #{all_conv_plif_li_forward.6} parent=27 // pred_check
              _
            $region30: #{all_conv_plif_li_forward.6} parent=27 // pred_check_branch
              %116 = sbr.rel (0) target = $region32
            $region31: #{all_conv_plif_li_forward.6} parent=27 // pred_region
              loop: start=0, step=1, limit=1
              $region33: #{all_conv_plif_li_forward.6} parent=31 // loop_pre_header
                _
              $region34: #{all_conv_plif_li_forward.6} parent=31 // loop_header
                %s118 = sphi 0, %s122
                %p119 = scmp.ge.s32.totalorder %s118, 1
                %s123 = sphi %s112, %s112
                %s124 = sphi %s109, %s109
              $region35: #{all_conv_plif_li_forward.6} parent=31 // loop_header_branch
                %121 = sbr.rel (%p119) target = $region39
              $region36: #{all_conv_plif_li_forward.6} parent=31 // loop_body
                %v125 = vld [vmem:[%s123] sm:$0xff]
                %126 = vst [vmem:[%s124] sm:$0xff] %v125
                %v127 = vld [vmem:[%s123 + $0x8] sm:$0xff]
                %128 = vst [vmem:[%s124 + $0x8] sm:$0xff] %v127
                %v129 = vld [vmem:[%s123 + $0x10] sm:$0xff]
                %130 = vst [vmem:[%s124 + $0x10] sm:$0xff] %v129
                %v131 = vld [vmem:[%s123 + $0x18] sm:$0xff]
                %132 = vst [vmem:[%s124 + $0x18] sm:$0xff] %v131
                %v133 = vld [vmem:[%s123 + $0x20] sm:$0xff]
                %134 = vst [vmem:[%s124 + $0x20] sm:$0xff] %v133
                %v135 = vld [vmem:[%s123 + $0xa0] sm:$0xff]
                %136 = vst [vmem:[%s124 + $0x28] sm:$0xff] %v135
                %v137 = vld [vmem:[%s123 + $0xa8] sm:$0xff]
                %138 = vst [vmem:[%s124 + $0x30] sm:$0xff] %v137
                %v139 = vld [vmem:[%s123 + $0xb0] sm:$0xff]
                %140 = vst [vmem:[%s124 + $0x38] sm:$0xff] %v139
                %v141 = vld [vmem:[%s123 + $0xb8] sm:$0xff]
                %142 = vst [vmem:[%s124 + $0x40] sm:$0xff] %v141
                %v143 = vld [vmem:[%s123 + $0xc0] sm:$0xff]
                %144 = vst [vmem:[%s124 + $0x48] sm:$0xff] %v143
                %v145 = vld [vmem:[%s123 + $0x140] sm:$0xff]
                %146 = vst [vmem:[%s124 + $0x50] sm:$0xff] %v145
                %v147 = vld [vmem:[%s123 + $0x148] sm:$0xff]
                %148 = vst [vmem:[%s124 + $0x58] sm:$0xff] %v147
                %v149 = vld [vmem:[%s123 + $0x150] sm:$0xff]
                %150 = vst [vmem:[%s124 + $0x60] sm:$0xff] %v149
                %v151 = vld [vmem:[%s123 + $0x158] sm:$0xff]
                %152 = vst [vmem:[%s124 + $0x68] sm:$0xff] %v151
                %v153 = vld [vmem:[%s123 + $0x160] sm:$0xff]
                %154 = vst [vmem:[%s124 + $0x70] sm:$0xff] %v153
                %v155 = vld [vmem:[%s123 + $0x1e0] sm:$0xff]
                %156 = vst [vmem:[%s124 + $0x78] sm:$0xff] %v155
                %v157 = vld [vmem:[%s123 + $0x1e8] sm:$0xff]
                %158 = vst [vmem:[%s124 + $0x80] sm:$0xff] %v157
                %v159 = vld [vmem:[%s123 + $0x1f0] sm:$0xff]
                %160 = vst [vmem:[%s124 + $0x88] sm:$0xff] %v159
                %v161 = vld [vmem:[%s123 + $0x1f8] sm:$0xff]
                %162 = vst [vmem:[%s124 + $0x90] sm:$0xff] %v161
                %v163 = vld [vmem:[%s123 + $0x200] sm:$0xff]
                %164 = vst [vmem:[%s124 + $0x98] sm:$0xff] %v163
                %v165 = vld [vmem:[%s123 + $0x280] sm:$0xff]
                %166 = vst [vmem:[%s124 + $0xa0] sm:$0xff] %v165
                %v167 = vld [vmem:[%s123 + $0x288] sm:$0xff]
                %168 = vst [vmem:[%s124 + $0xa8] sm:$0xff] %v167
                %v169 = vld [vmem:[%s123 + $0x290] sm:$0xff]
                %170 = vst [vmem:[%s124 + $0xb0] sm:$0xff] %v169
                %v171 = vld [vmem:[%s123 + $0x298] sm:$0xff]
                %172 = vst [vmem:[%s124 + $0xb8] sm:$0xff] %v171
                %v173 = vld [vmem:[%s123 + $0x2a0] sm:$0xff]
                %174 = vst [vmem:[%s124 + $0xc0] sm:$0xff] %v173
                %v175 = vld [vmem:[%s123 + $0x320] sm:$0xff]
                %176 = vst [vmem:[%s124 + $0xc8] sm:$0xff] %v175
                %v177 = vld [vmem:[%s123 + $0x328] sm:$0xff]
                %178 = vst [vmem:[%s124 + $0xd0] sm:$0xff] %v177
                %v179 = vld [vmem:[%s123 + $0x330] sm:$0xff]
                %180 = vst [vmem:[%s124 + $0xd8] sm:$0xff] %v179
                %v181 = vld [vmem:[%s123 + $0x338] sm:$0xff]
                %182 = vst [vmem:[%s124 + $0xe0] sm:$0xff] %v181
                %v183 = vld [vmem:[%s123 + $0x340] sm:$0xff]
                %184 = vst [vmem:[%s124 + $0xe8] sm:$0xff] %v183
                %v185 = vld [vmem:[%s123 + $0x3c0] sm:$0xff]
                %186 = vst [vmem:[%s124 + $0xf0] sm:$0xff] %v185
                %v187 = vld [vmem:[%s123 + $0x3c8] sm:$0xff]
                %188 = vst [vmem:[%s124 + $0xf8] sm:$0xff] %v187
                %v189 = vld [vmem:[%s123 + $0x3d0] sm:$0xff]
                %190 = vst [vmem:[%s124 + $0x100] sm:$0xff] %v189
                %v191 = vld [vmem:[%s123 + $0x3d8] sm:$0xff]
                %192 = vst [vmem:[%s124 + $0x108] sm:$0xff] %v191
                %v193 = vld [vmem:[%s123 + $0x3e0] sm:$0xff]
                %194 = vst [vmem:[%s124 + $0x110] sm:$0xff] %v193
                %v195 = vld [vmem:[%s123 + $0x460] sm:$0xff]
                %196 = vst [vmem:[%s124 + $0x118] sm:$0xff] %v195
                %v197 = vld [vmem:[%s123 + $0x468] sm:$0xff]
                %198 = vst [vmem:[%s124 + $0x120] sm:$0xff] %v197
                %v199 = vld [vmem:[%s123 + $0x470] sm:$0xff]
                %200 = vst [vmem:[%s124 + $0x128] sm:$0xff] %v199
                %v201 = vld [vmem:[%s123 + $0x478] sm:$0xff]
                %202 = vst [vmem:[%s124 + $0x130] sm:$0xff] %v201
                %v203 = vld [vmem:[%s123 + $0x480] sm:$0xff]
                %204 = vst [vmem:[%s124 + $0x138] sm:$0xff] %v203
                %v205 = vld [vmem:[%s123 + $0x500] sm:$0xff]
                %206 = vst [vmem:[%s124 + $0x140] sm:$0xff] %v205
                %v207 = vld [vmem:[%s123 + $0x508] sm:$0xff]
                %208 = vst [vmem:[%s124 + $0x148] sm:$0xff] %v207
                %v209 = vld [vmem:[%s123 + $0x510] sm:$0xff]
                %210 = vst [vmem:[%s124 + $0x150] sm:$0xff] %v209
                %v211 = vld [vmem:[%s123 + $0x518] sm:$0xff]
                %212 = vst [vmem:[%s124 + $0x158] sm:$0xff] %v211
                %v213 = vld [vmem:[%s123 + $0x520] sm:$0xff]
                %214 = vst [vmem:[%s124 + $0x160] sm:$0xff] %v213
                %v215 = vld [vmem:[%s123 + $0x5a0] sm:$0xff]
                %216 = vst [vmem:[%s124 + $0x168] sm:$0xff] %v215
                %v217 = vld [vmem:[%s123 + $0x5a8] sm:$0xff]
                %218 = vst [vmem:[%s124 + $0x170] sm:$0xff] %v217
                %v219 = vld [vmem:[%s123 + $0x5b0] sm:$0xff]
                %220 = vst [vmem:[%s124 + $0x178] sm:$0xff] %v219
                %v221 = vld [vmem:[%s123 + $0x5b8] sm:$0xff]
                %222 = vst [vmem:[%s124 + $0x180] sm:$0xff] %v221
                %v223 = vld [vmem:[%s123 + $0x5c0] sm:$0xff]
                %224 = vst [vmem:[%s124 + $0x188] sm:$0xff] %v223
                %v225 = vld [vmem:[%s123 + $0x640] sm:$0xff]
                %226 = vst [vmem:[%s124 + $0x190] sm:$0xff] %v225
                %v227 = vld [vmem:[%s123 + $0x648] sm:$0xff]
                %228 = vst [vmem:[%s124 + $0x198] sm:$0xff] %v227
                %v229 = vld [vmem:[%s123 + $0x650] sm:$0xff]
                %230 = vst [vmem:[%s124 + $0x1a0] sm:$0xff] %v229
                %v231 = vld [vmem:[%s123 + $0x658] sm:$0xff]
                %232 = vst [vmem:[%s124 + $0x1a8] sm:$0xff] %v231
                %v233 = vld [vmem:[%s123 + $0x660] sm:$0xff]
                %234 = vst [vmem:[%s124 + $0x1b0] sm:$0xff] %v233
                %v235 = vld [vmem:[%s123 + $0x6e0] sm:$0xff]
                %236 = vst [vmem:[%s124 + $0x1b8] sm:$0xff] %v235
                %v237 = vld [vmem:[%s123 + $0x6e8] sm:$0xff]
                %238 = vst [vmem:[%s124 + $0x1c0] sm:$0xff] %v237
                %v239 = vld [vmem:[%s123 + $0x6f0] sm:$0xff]
                %240 = vst [vmem:[%s124 + $0x1c8] sm:$0xff] %v239
                %v241 = vld [vmem:[%s123 + $0x6f8] sm:$0xff]
                %242 = vst [vmem:[%s124 + $0x1d0] sm:$0xff] %v241
                %v243 = vld [vmem:[%s123 + $0x700] sm:$0xff]
                %244 = vst [vmem:[%s124 + $0x1d8] sm:$0xff] %v243
              $region37: #{all_conv_plif_li_forward.6} parent=31 // loop_footer
                %s122 = sadd.s32 1, %s118
              $region38: #{all_conv_plif_li_forward.6} parent=31 // loop_footer_branch
                %117 = sbr.rel target = $region34
              $region39: #{all_conv_plif_li_forward.6} parent=31 // loop_exit
                _
            $region32: #{all_conv_plif_li_forward.6} parent=27 // pred_fallthru
              _
            // Predicated region
            $region40: #{all_conv_plif_li_forward.6} parent=27 // pred_check
              _
            $region41: #{all_conv_plif_li_forward.6} parent=27 // pred_check_branch
              %246 = sbr.rel target = $region43
            $region42: #{all_conv_plif_li_forward.6} parent=27 // pred_region
              _
            $region43: #{all_conv_plif_li_forward.6} parent=27 // pred_fallthru
              _
          $region28: #{all_conv_plif_li_forward.6} parent=23 // pred_fallthru
            _
          %247 = vnop
        $region24: #{all_conv_plif_li_forward.6} parent=19 // pred_fallthru
          _
      $region20: #{all_conv_plif_li_forward.6} parent=5 // pred_fallthru
        _
      %p248 = scmp.le.s32.totalorder 1, %s8
      %p249 = scmp.lt.s32.totalorder %s8, 5
      %p250 = pnand %p248, %p249
      %p251 = pneg %p250
      // Predicated region
      $region44: #{all_conv_plif_li_forward.6} parent=5 // pred_check
        _
      $region45: #{all_conv_plif_li_forward.6} parent=5 // pred_check_branch
        %253 = sbr.rel (%p250) target = $region47
      $region46: #{all_conv_plif_li_forward.6} parent=5 // pred_region
        %s254 = ssub.s32 %s8, 1
        %s255 = sand.u32 %s21, 1
        %s256 = sand.u32 %s21, 1
        %s257 = smul.addr %s256, 480
        %s258 = scalar_lea.vmem [#allocation2], %s257
        // Predicated region
        $region48: #{all_conv_plif_li_forward.6} parent=46 // pred_check
          %p259 = pneg %p34
        $region49: #{all_conv_plif_li_forward.6} parent=46 // pred_check_branch
          %261 = sbr.rel (%p259) target = $region51
        $region50: #{all_conv_plif_li_forward.6} parent=46 // pred_region
          _
        $region51: #{all_conv_plif_li_forward.6} parent=46 // pred_fallthru
          _
        %s262 = sand.u32 %s21, 1
        %s263 = sand.u32 %s21, 1
        %s264 = smul.addr %s263, 480
        %s265 = scalar_lea.vmem [#allocation2], %s264
        %p266 = pneg %p34
        %p267 = pneg %p31
        %p268 = pneg %p55
        %p269 = pneg %p52
        %p270 = pneg %p81
        %p271 = pneg %p78
        %s272 = sand.u32 %s68, 1
        %s273 = sand.u32 %s68, 1
        %s274 = smul.addr %s273, 80
        %s275 = scalar_lea.vmem [#allocation3], %s274
        %s276 = smul.u32 10, %s13
        %s277 = smul.u32 10, %s13
        %v279 = vld [vmem:[%s1] sm:$0x3]
        %v280 = vld [vmem:[%s258] sm:$0xff]
        %v281 = vld [vmem:[%s258 + $0x8] sm:$0xff]
        %v282 = vld [vmem:[%s258 + $0x10] sm:$0xff]
        %v283 = vld [vmem:[%s258 + $0x18] sm:$0xff]
        %v284 = vld [vmem:[%s258 + $0x20] sm:$0xff]
        %v285 = vld [vmem:[%s258 + $0x28] sm:$0xff]
        %v286 = vld [vmem:[%s258 + $0x30] sm:$0xff]
        %v287 = vld [vmem:[%s258 + $0x38] sm:$0xff]
        %v288 = vld [vmem:[%s258 + $0x40] sm:$0xff]
        %v289 = vld [vmem:[%s258 + $0x48] sm:$0xff]
        %v290 = vld [vmem:[%s258 + $0x50] sm:$0x11]
        %v291 = vld [vmem:[%s258 + $0x58] sm:$0x11]
        %v292 = vld [vmem:[%s258 + $0x60] sm:$0x11]
        %v293 = vld [vmem:[%s258 + $0x68] sm:$0x11]
        %v294 = vld [vmem:[%s258 + $0x70] sm:$0x11]
        %v310 = vunpack.c.l.b16 %v280
        %v311 = vunpack.c.h.b16 %v280
        %v312 = vunpack.c.l.b16 %v281
        %v313 = vunpack.c.h.b16 %v281
        %v314 = vunpack.c.l.b16 %v282
        %v315 = vunpack.c.h.b16 %v282
        %v316 = vunpack.c.l.b16 %v283
        %v317 = vunpack.c.h.b16 %v283
        %v318 = vunpack.c.l.b16 %v284
        %v319 = vunpack.c.h.b16 %v284
        %v320 = vunpack.c.l.b16 %v285
        %v321 = vunpack.c.h.b16 %v285
        %v322 = vunpack.c.l.b16 %v286
        %v323 = vunpack.c.h.b16 %v286
        %v324 = vunpack.c.l.b16 %v287
        %v325 = vunpack.c.h.b16 %v287
        %v326 = vunpack.c.l.b16 %v288
        %v327 = vunpack.c.h.b16 %v288
        %v328 = vunpack.c.l.b16 %v289
        %v329 = vunpack.c.h.b16 %v289
        %v330 = vunpack.c.l.b16 %v290
        %v331 = vunpack.c.h.b16 %v290
        %v332 = vunpack.c.l.b16 %v291
        %v333 = vunpack.c.h.b16 %v291
        %v334 = vunpack.c.l.b16 %v292
        %v335 = vunpack.c.h.b16 %v292
        %v336 = vunpack.c.l.b16 %v293
        %v337 = vunpack.c.h.b16 %v293
        %v338 = vunpack.c.l.b16 %v294
        %v339 = vunpack.c.h.b16 %v294
        %v340 = vpack.c.b16 %v320, %v310
        %v341 = vpack.c.b16 %v321, %v311
        %v342 = vpack.c.b16 %v322, %v312
        %v343 = vpack.c.b16 %v323, %v313
        %v344 = vpack.c.b16 %v324, %v314
        %v345 = vpack.c.b16 %v325, %v315
        %v346 = vpack.c.b16 %v326, %v316
        %v347 = vpack.c.b16 %v327, %v317
        %v348 = vpack.c.b16 %v328, %v318
        %v349 = vpack.c.b16 %v329, %v319
        %v350 = vpack.c.b16 %v330, %v330
        %v351 = vpack.c.b16 %v331, %v331
        %v352 = vpack.c.b16 %v332, %v332
        %v353 = vpack.c.b16 %v333, %v333
        %v354 = vpack.c.b16 %v334, %v334
        %v355 = vpack.c.b16 %v335, %v335
        %v356 = vpack.c.b16 %v336, %v336
        %v357 = vpack.c.b16 %v337, %v337
        %v358 = vpack.c.b16 %v338, %v338
        %v359 = vpack.c.b16 %v339, %v339
        %vm370 = vcmask 146432
        %v372 = vsel %vm370, %v279, 0
        %vm374 = vcmask 1040384
        %v376 = vsel %vm374, %v350, 0
        %v379 = vsel %vm374, %v351, 0
        %v382 = vsel %vm374, %v352, 0
        %v385 = vsel %vm374, %v353, 0
        %v388 = vsel %vm374, %v354, 0
        %v391 = vsel %vm374, %v355, 0
        %v394 = vsel %vm374, %v356, 0
        %v397 = vsel %vm374, %v357, 0
        %v400 = vsel %vm374, %v358, 0
        %v403 = vsel %vm374, %v359, 0
        %405 = vmatpush.bf16.msra.mxu0 0
        %406 = vmatpush.bf16.msra.mxu0 0
        %407 = vmatpush.bf16.msra.mxu0 0
        %408 = vmatpush.bf16.msra.mxu0 0
        %409 = vmatpush.bf16.msra.mxu0 0
        %410 = vmatpush.bf16.msra.mxu0 0
        %411 = vmatpush.bf16.msra.mxu0 %v376
        %412 = vmatpush.bf16.msra.mxu0 %v340
        %413 = vmatmul.bf16.gmra.mxu0 %v372
        %v414 = vpop.f32.mrf.mxu0
        %v415 = vadd.f32 0.0, %v414
        %v416 = vpop.f32.mrf.mxu0
        %417 = vdwg.mxu0
        %418 = vmatpush.bf16.msra.mxu0 0
        %419 = vmatpush.bf16.msra.mxu0 0
        %420 = vmatpush.bf16.msra.mxu0 0
        %421 = vmatpush.bf16.msra.mxu0 0
        %422 = vmatpush.bf16.msra.mxu0 0
        %423 = vmatpush.bf16.msra.mxu0 0
        %424 = vmatpush.bf16.msra.mxu0 %v379
        %425 = vmatpush.bf16.msra.mxu0 %v341
        %426 = vmatmul.bf16.gmra.mxu0 %v372
        %v427 = vpop.f32.mrf.mxu0
        %v428 = vadd.f32 0.0, %v427
        %v429 = vpop.f32.mrf.mxu0
        %430 = vdwg.mxu0
        %431 = vmatpush.bf16.msra.mxu0 0
        %432 = vmatpush.bf16.msra.mxu0 0
        %433 = vmatpush.bf16.msra.mxu0 0
        %434 = vmatpush.bf16.msra.mxu0 0
        %435 = vmatpush.bf16.msra.mxu0 0
        %436 = vmatpush.bf16.msra.mxu0 0
        %437 = vmatpush.bf16.msra.mxu0 %v382
        %438 = vmatpush.bf16.msra.mxu0 %v342
        %439 = vmatmul.bf16.gmra.mxu0 %v372
        %v440 = vpop.f32.mrf.mxu0
        %v441 = vadd.f32 0.0, %v440
        %v442 = vpop.f32.mrf.mxu0
        %443 = vdwg.mxu0
        %444 = vmatpush.bf16.msra.mxu0 0
        %445 = vmatpush.bf16.msra.mxu0 0
        %446 = vmatpush.bf16.msra.mxu0 0
        %447 = vmatpush.bf16.msra.mxu0 0
        %448 = vmatpush.bf16.msra.mxu0 0
        %449 = vmatpush.bf16.msra.mxu0 0
        %450 = vmatpush.bf16.msra.mxu0 %v385
        %451 = vmatpush.bf16.msra.mxu0 %v343
        %452 = vmatmul.bf16.gmra.mxu0 %v372
        %v453 = vpop.f32.mrf.mxu0
        %v454 = vadd.f32 0.0, %v453
        %v455 = vpop.f32.mrf.mxu0
        %456 = vdwg.mxu0
        %457 = vmatpush.bf16.msra.mxu0 0
        %458 = vmatpush.bf16.msra.mxu0 0
        %459 = vmatpush.bf16.msra.mxu0 0
        %460 = vmatpush.bf16.msra.mxu0 0
        %461 = vmatpush.bf16.msra.mxu0 0
        %462 = vmatpush.bf16.msra.mxu0 0
        %463 = vmatpush.bf16.msra.mxu0 %v388
        %464 = vmatpush.bf16.msra.mxu0 %v344
        %465 = vmatmul.bf16.gmra.mxu0 %v372
        %v466 = vpop.f32.mrf.mxu0
        %v467 = vadd.f32 0.0, %v466
        %v468 = vpop.f32.mrf.mxu0
        %469 = vdwg.mxu0
        %470 = vmatpush.bf16.msra.mxu0 0
        %471 = vmatpush.bf16.msra.mxu0 0
        %472 = vmatpush.bf16.msra.mxu0 0
        %473 = vmatpush.bf16.msra.mxu0 0
        %474 = vmatpush.bf16.msra.mxu0 0
        %475 = vmatpush.bf16.msra.mxu0 0
        %476 = vmatpush.bf16.msra.mxu0 %v391
        %477 = vmatpush.bf16.msra.mxu0 %v345
        %478 = vmatmul.bf16.gmra.mxu0 %v372
        %v479 = vpop.f32.mrf.mxu0
        %v480 = vadd.f32 0.0, %v479
        %v481 = vpop.f32.mrf.mxu0
        %482 = vdwg.mxu0
        %483 = vmatpush.bf16.msra.mxu0 0
        %484 = vmatpush.bf16.msra.mxu0 0
        %485 = vmatpush.bf16.msra.mxu0 0
        %486 = vmatpush.bf16.msra.mxu0 0
        %487 = vmatpush.bf16.msra.mxu0 0
        %488 = vmatpush.bf16.msra.mxu0 0
        %489 = vmatpush.bf16.msra.mxu0 %v394
        %490 = vmatpush.bf16.msra.mxu0 %v346
        %491 = vmatmul.bf16.gmra.mxu0 %v372
        %v492 = vpop.f32.mrf.mxu0
        %v493 = vadd.f32 0.0, %v492
        %v494 = vpop.f32.mrf.mxu0
        %495 = vdwg.mxu0
        %496 = vmatpush.bf16.msra.mxu0 0
        %497 = vmatpush.bf16.msra.mxu0 0
        %498 = vmatpush.bf16.msra.mxu0 0
        %499 = vmatpush.bf16.msra.mxu0 0
        %500 = vmatpush.bf16.msra.mxu0 0
        %501 = vmatpush.bf16.msra.mxu0 0
        %502 = vmatpush.bf16.msra.mxu0 %v397
        %503 = vmatpush.bf16.msra.mxu0 %v347
        %504 = vmatmul.bf16.gmra.mxu0 %v372
        %v505 = vpop.f32.mrf.mxu0
        %v506 = vadd.f32 0.0, %v505
        %v507 = vpop.f32.mrf.mxu0
        %508 = vdwg.mxu0
        %509 = vmatpush.bf16.msra.mxu0 0
        %510 = vmatpush.bf16.msra.mxu0 0
        %511 = vmatpush.bf16.msra.mxu0 0
        %512 = vmatpush.bf16.msra.mxu0 0
        %513 = vmatpush.bf16.msra.mxu0 0
        %514 = vmatpush.bf16.msra.mxu0 0
        %515 = vmatpush.bf16.msra.mxu0 %v400
        %516 = vmatpush.bf16.msra.mxu0 %v348
        %517 = vmatmul.bf16.gmra.mxu0 %v372
        %v518 = vpop.f32.mrf.mxu0
        %v519 = vadd.f32 0.0, %v518
        %v520 = vpop.f32.mrf.mxu0
        %521 = vdwg.mxu0
        %522 = vmatpush.bf16.msra.mxu0 0
        %523 = vmatpush.bf16.msra.mxu0 0
        %524 = vmatpush.bf16.msra.mxu0 0
        %525 = vmatpush.bf16.msra.mxu0 0
        %526 = vmatpush.bf16.msra.mxu0 0
        %527 = vmatpush.bf16.msra.mxu0 0
        %528 = vmatpush.bf16.msra.mxu0 %v403
        %529 = vmatpush.bf16.msra.mxu0 %v349
        %530 = vmatmul.bf16.gmra.mxu0 %v372
        %v531 = vpop.f32.mrf.mxu0
        %v532 = vadd.f32 0.0, %v531
        %v533 = vpop.f32.mrf.mxu0
        %534 = vdwg.mxu0
        %v535 = vmul.f32 %v415, 0.5
        %v536 = vmul.f32 %v428, 0.5
        %v537 = vmul.f32 %v441, 0.5
        %v538 = vmul.f32 %v454, 0.5
        %v539 = vmul.f32 %v467, 0.5
        %v540 = vmul.f32 %v480, 0.5
        %v541 = vmul.f32 %v493, 0.5
        %v542 = vmul.f32 %v506, 0.5
        %v543 = vmul.f32 %v519, 0.5
        %v544 = vmul.f32 %v532, 0.5
        %v545 = vadd.f32 %v535, 0.0
        %v546 = vadd.f32 %v536, 0.0
        %v547 = vadd.f32 %v537, 0.0
        %v548 = vadd.f32 %v538, 0.0
        %v549 = vadd.f32 %v539, 0.0
        %v550 = vadd.f32 %v540, 0.0
        %v551 = vadd.f32 %v541, 0.0
        %v552 = vadd.f32 %v542, 0.0
        %v553 = vadd.f32 %v543, 0.0
        %v554 = vadd.f32 %v544, 0.0
        %vm555 = vcmp.ge.f32.partialorder %v545, 1.0
        %vm556 = vcmp.ge.f32.partialorder %v546, 1.0
        %vm557 = vcmp.ge.f32.partialorder %v547, 1.0
        %vm558 = vcmp.ge.f32.partialorder %v548, 1.0
        %vm559 = vcmp.ge.f32.partialorder %v549, 1.0
        %vm560 = vcmp.ge.f32.partialorder %v550, 1.0
        %vm561 = vcmp.ge.f32.partialorder %v551, 1.0
        %vm562 = vcmp.ge.f32.partialorder %v552, 1.0
        %vm563 = vcmp.ge.f32.partialorder %v553, 1.0
        %vm564 = vcmp.ge.f32.partialorder %v554, 1.0
        %v565 = vsel %vm555, 1, 0
        %v566 = vsel %vm556, 1, 0
        %v567 = vsel %vm557, 1, 0
        %v568 = vsel %vm558, 1, 0
        %v569 = vsel %vm559, 1, 0
        %v570 = vsel %vm560, 1, 0
        %v571 = vsel %vm561, 1, 0
        %v572 = vsel %vm562, 1, 0
        %v573 = vsel %vm563, 1, 0
        %v574 = vsel %vm564, 1, 0
        %v575 = vcvt.s32.f32 %v565
        %v576 = vcvt.s32.f32 %v566
        %v577 = vcvt.s32.f32 %v567
        %v578 = vcvt.s32.f32 %v568
        %v579 = vcvt.s32.f32 %v569
        %v580 = vcvt.s32.f32 %v570
        %v581 = vcvt.s32.f32 %v571
        %v582 = vcvt.s32.f32 %v572
        %v583 = vcvt.s32.f32 %v573
        %v584 = vcvt.s32.f32 %v574
        %v585 = vsub.f32 1.0, %v575
        %v586 = vsub.f32 1.0, %v576
        %v587 = vsub.f32 1.0, %v577
        %v588 = vsub.f32 1.0, %v578
        %v589 = vsub.f32 1.0, %v579
        %v590 = vsub.f32 1.0, %v580
        %v591 = vsub.f32 1.0, %v581
        %v592 = vsub.f32 1.0, %v582
        %v593 = vsub.f32 1.0, %v583
        %v594 = vsub.f32 1.0, %v584
        %v595 = vmul.f32 %v545, %v585
        %v596 = vmul.f32 %v546, %v586
        %v597 = vmul.f32 %v547, %v587
        %v598 = vmul.f32 %v548, %v588
        %v599 = vmul.f32 %v549, %v589
        %v600 = vmul.f32 %v550, %v590
        %v601 = vmul.f32 %v551, %v591
        %v602 = vmul.f32 %v552, %v592
        %v603 = vmul.f32 %v553, %v593
        %v604 = vmul.f32 %v554, %v594
        %v605 = vpack.c.bf16 %v576, %v575
        %v606 = vpack.c.bf16 %v578, %v577
        %v607 = vpack.c.bf16 %v580, %v579
        %v608 = vpack.c.bf16 %v582, %v581
        %v609 = vpack.c.bf16 %v584, %v583
        %v615 = vrot.slane %v605, 2
        %v616 = vrot.slane %v606, 4
        %v617 = vrot.slane %v606, 6
        %v618 = vrot.slane %v607, 2
        %v619 = vrot.slane %v608, 4
        %v620 = vrot.slane %v608, 6
        %v621 = vrot.slane %v609, 2
        %vm622 = vcmask 1041408
        %v625 = vsel %vm622, %v605, %v615
        %vm626 = vcmask 1045508
        %v629 = vsel %vm626, %v616, %v617
        %vm630 = vcmask 1043456
        %v631 = vsel %vm630, %v625, %v629
        %v634 = vsel %vm622, %v607, %v618
        %v637 = vsel %vm626, %v619, %v620
        %v638 = vsel %vm630, %v634, %v637
        %v641 = vsel %vm622, %v609, %v621
        %645 = vst [vmem:[%s275] sm:$0xff] %v631
        %646 = vst [vmem:[%s275 + $0x8] sm:$0xff] %v638
        %647 = vst [vmem:[%s275 + $0x10] sm:$0xf] %v641
        %s648 = scalar_lea.vmem %s258, 120 [#allocation2]
        %v649 = vld [vmem:[%s648] sm:$0xff]
        %v650 = vld [vmem:[%s648 + $0x8] sm:$0xff]
        %v651 = vld [vmem:[%s648 + $0x10] sm:$0xff]
        %v652 = vld [vmem:[%s648 + $0x18] sm:$0xff]
        %v653 = vld [vmem:[%s648 + $0x20] sm:$0xff]
        %v654 = vld [vmem:[%s648 + $0x28] sm:$0xff]
        %v655 = vld [vmem:[%s648 + $0x30] sm:$0xff]
        %v656 = vld [vmem:[%s648 + $0x38] sm:$0xff]
        %v657 = vld [vmem:[%s648 + $0x40] sm:$0xff]
        %v658 = vld [vmem:[%s648 + $0x48] sm:$0xff]
        %v659 = vld [vmem:[%s648 + $0x50] sm:$0x11]
        %v660 = vld [vmem:[%s648 + $0x58] sm:$0x11]
        %v661 = vld [vmem:[%s648 + $0x60] sm:$0x11]
        %v662 = vld [vmem:[%s648 + $0x68] sm:$0x11]
        %v663 = vld [vmem:[%s648 + $0x70] sm:$0x11]
        %v679 = vunpack.c.l.b16 %v649
        %v680 = vunpack.c.h.b16 %v649
        %v681 = vunpack.c.l.b16 %v650
        %v682 = vunpack.c.h.b16 %v650
        %v683 = vunpack.c.l.b16 %v651
        %v684 = vunpack.c.h.b16 %v651
        %v685 = vunpack.c.l.b16 %v652
        %v686 = vunpack.c.h.b16 %v652
        %v687 = vunpack.c.l.b16 %v653
        %v688 = vunpack.c.h.b16 %v653
        %v689 = vunpack.c.l.b16 %v654
        %v690 = vunpack.c.h.b16 %v654
        %v691 = vunpack.c.l.b16 %v655
        %v692 = vunpack.c.h.b16 %v655
        %v693 = vunpack.c.l.b16 %v656
        %v694 = vunpack.c.h.b16 %v656
        %v695 = vunpack.c.l.b16 %v657
        %v696 = vunpack.c.h.b16 %v657
        %v697 = vunpack.c.l.b16 %v658
        %v698 = vunpack.c.h.b16 %v658
        %v699 = vunpack.c.l.b16 %v659
        %v700 = vunpack.c.h.b16 %v659
        %v701 = vunpack.c.l.b16 %v660
        %v702 = vunpack.c.h.b16 %v660
        %v703 = vunpack.c.l.b16 %v661
        %v704 = vunpack.c.h.b16 %v661
        %v705 = vunpack.c.l.b16 %v662
        %v706 = vunpack.c.h.b16 %v662
        %v707 = vunpack.c.l.b16 %v663
        %v708 = vunpack.c.h.b16 %v663
        %v709 = vpack.c.b16 %v689, %v679
        %v710 = vpack.c.b16 %v690, %v680
        %v711 = vpack.c.b16 %v691, %v681
        %v712 = vpack.c.b16 %v692, %v682
        %v713 = vpack.c.b16 %v693, %v683
        %v714 = vpack.c.b16 %v694, %v684
        %v715 = vpack.c.b16 %v695, %v685
        %v716 = vpack.c.b16 %v696, %v686
        %v717 = vpack.c.b16 %v697, %v687
        %v718 = vpack.c.b16 %v698, %v688
        %v719 = vpack.c.b16 %v699, %v699
        %v720 = vpack.c.b16 %v700, %v700
        %v721 = vpack.c.b16 %v701, %v701
        %v722 = vpack.c.b16 %v702, %v702
        %v723 = vpack.c.b16 %v703, %v703
        %v724 = vpack.c.b16 %v704, %v704
        %v725 = vpack.c.b16 %v705, %v705
        %v726 = vpack.c.b16 %v706, %v706
        %v727 = vpack.c.b16 %v707, %v707
        %v728 = vpack.c.b16 %v708, %v708
        %v740 = vsel %vm374, %v719, 0
        %v743 = vsel %vm374, %v720, 0
        %v746 = vsel %vm374, %v721, 0
        %v749 = vsel %vm374, %v722, 0
        %v752 = vsel %vm374, %v723, 0
        %v755 = vsel %vm374, %v724, 0
        %v758 = vsel %vm374, %v725, 0
        %v761 = vsel %vm374, %v726, 0
        %v764 = vsel %vm374, %v727, 0
        %v767 = vsel %vm374, %v728, 0
        %769 = vmatpush.bf16.msra.mxu0 0
        %770 = vmatpush.bf16.msra.mxu0 0
        %771 = vmatpush.bf16.msra.mxu0 0
        %772 = vmatpush.bf16.msra.mxu0 0
        %773 = vmatpush.bf16.msra.mxu0 0
        %774 = vmatpush.bf16.msra.mxu0 0
        %775 = vmatpush.bf16.msra.mxu0 %v740
        %776 = vmatpush.bf16.msra.mxu0 %v709
        %777 = vmatmul.bf16.gmra.mxu0 %v372
        %v778 = vpop.f32.mrf.mxu0
        %v779 = vadd.f32 0.0, %v778
        %v780 = vpop.f32.mrf.mxu0
        %781 = vdwg.mxu0
        %782 = vmatpush.bf16.msra.mxu0 0
        %783 = vmatpush.bf16.msra.mxu0 0
        %784 = vmatpush.bf16.msra.mxu0 0
        %785 = vmatpush.bf16.msra.mxu0 0
        %786 = vmatpush.bf16.msra.mxu0 0
        %787 = vmatpush.bf16.msra.mxu0 0
        %788 = vmatpush.bf16.msra.mxu0 %v743
        %789 = vmatpush.bf16.msra.mxu0 %v710
        %790 = vmatmul.bf16.gmra.mxu0 %v372
        %v791 = vpop.f32.mrf.mxu0
        %v792 = vadd.f32 0.0, %v791
        %v793 = vpop.f32.mrf.mxu0
        %794 = vdwg.mxu0
        %795 = vmatpush.bf16.msra.mxu0 0
        %796 = vmatpush.bf16.msra.mxu0 0
        %797 = vmatpush.bf16.msra.mxu0 0
        %798 = vmatpush.bf16.msra.mxu0 0
        %799 = vmatpush.bf16.msra.mxu0 0
        %800 = vmatpush.bf16.msra.mxu0 0
        %801 = vmatpush.bf16.msra.mxu0 %v746
        %802 = vmatpush.bf16.msra.mxu0 %v711
        %803 = vmatmul.bf16.gmra.mxu0 %v372
        %v804 = vpop.f32.mrf.mxu0
        %v805 = vadd.f32 0.0, %v804
        %v806 = vpop.f32.mrf.mxu0
        %807 = vdwg.mxu0
        %808 = vmatpush.bf16.msra.mxu0 0
        %809 = vmatpush.bf16.msra.mxu0 0
        %810 = vmatpush.bf16.msra.mxu0 0
        %811 = vmatpush.bf16.msra.mxu0 0
        %812 = vmatpush.bf16.msra.mxu0 0
        %813 = vmatpush.bf16.msra.mxu0 0
        %814 = vmatpush.bf16.msra.mxu0 %v749
        %815 = vmatpush.bf16.msra.mxu0 %v712
        %816 = vmatmul.bf16.gmra.mxu0 %v372
        %v817 = vpop.f32.mrf.mxu0
        %v818 = vadd.f32 0.0, %v817
        %v819 = vpop.f32.mrf.mxu0
        %820 = vdwg.mxu0
        %821 = vmatpush.bf16.msra.mxu0 0
        %822 = vmatpush.bf16.msra.mxu0 0
        %823 = vmatpush.bf16.msra.mxu0 0
        %824 = vmatpush.bf16.msra.mxu0 0
        %825 = vmatpush.bf16.msra.mxu0 0
        %826 = vmatpush.bf16.msra.mxu0 0
        %827 = vmatpush.bf16.msra.mxu0 %v752
        %828 = vmatpush.bf16.msra.mxu0 %v713
        %829 = vmatmul.bf16.gmra.mxu0 %v372
        %v830 = vpop.f32.mrf.mxu0
        %v831 = vadd.f32 0.0, %v830
        %v832 = vpop.f32.mrf.mxu0
        %833 = vdwg.mxu0
        %834 = vmatpush.bf16.msra.mxu0 0
        %835 = vmatpush.bf16.msra.mxu0 0
        %836 = vmatpush.bf16.msra.mxu0 0
        %837 = vmatpush.bf16.msra.mxu0 0
        %838 = vmatpush.bf16.msra.mxu0 0
        %839 = vmatpush.bf16.msra.mxu0 0
        %840 = vmatpush.bf16.msra.mxu0 %v755
        %841 = vmatpush.bf16.msra.mxu0 %v714
        %842 = vmatmul.bf16.gmra.mxu0 %v372
        %v843 = vpop.f32.mrf.mxu0
        %v844 = vadd.f32 0.0, %v843
        %v845 = vpop.f32.mrf.mxu0
        %846 = vdwg.mxu0
        %847 = vmatpush.bf16.msra.mxu0 0
        %848 = vmatpush.bf16.msra.mxu0 0
        %849 = vmatpush.bf16.msra.mxu0 0
        %850 = vmatpush.bf16.msra.mxu0 0
        %851 = vmatpush.bf16.msra.mxu0 0
        %852 = vmatpush.bf16.msra.mxu0 0
        %853 = vmatpush.bf16.msra.mxu0 %v758
        %854 = vmatpush.bf16.msra.mxu0 %v715
        %855 = vmatmul.bf16.gmra.mxu0 %v372
        %v856 = vpop.f32.mrf.mxu0
        %v857 = vadd.f32 0.0, %v856
        %v858 = vpop.f32.mrf.mxu0
        %859 = vdwg.mxu0
        %860 = vmatpush.bf16.msra.mxu0 0
        %861 = vmatpush.bf16.msra.mxu0 0
        %862 = vmatpush.bf16.msra.mxu0 0
        %863 = vmatpush.bf16.msra.mxu0 0
        %864 = vmatpush.bf16.msra.mxu0 0
        %865 = vmatpush.bf16.msra.mxu0 0
        %866 = vmatpush.bf16.msra.mxu0 %v761
        %867 = vmatpush.bf16.msra.mxu0 %v716
        %868 = vmatmul.bf16.gmra.mxu0 %v372
        %v869 = vpop.f32.mrf.mxu0
        %v870 = vadd.f32 0.0, %v869
        %v871 = vpop.f32.mrf.mxu0
        %872 = vdwg.mxu0
        %873 = vmatpush.bf16.msra.mxu0 0
        %874 = vmatpush.bf16.msra.mxu0 0
        %875 = vmatpush.bf16.msra.mxu0 0
        %876 = vmatpush.bf16.msra.mxu0 0
        %877 = vmatpush.bf16.msra.mxu0 0
        %878 = vmatpush.bf16.msra.mxu0 0
        %879 = vmatpush.bf16.msra.mxu0 %v764
        %880 = vmatpush.bf16.msra.mxu0 %v717
        %881 = vmatmul.bf16.gmra.mxu0 %v372
        %v882 = vpop.f32.mrf.mxu0
        %v883 = vadd.f32 0.0, %v882
        %v884 = vpop.f32.mrf.mxu0
        %885 = vdwg.mxu0
        %886 = vmatpush.bf16.msra.mxu0 0
        %887 = vmatpush.bf16.msra.mxu0 0
        %888 = vmatpush.bf16.msra.mxu0 0
        %889 = vmatpush.bf16.msra.mxu0 0
        %890 = vmatpush.bf16.msra.mxu0 0
        %891 = vmatpush.bf16.msra.mxu0 0
        %892 = vmatpush.bf16.msra.mxu0 %v767
        %893 = vmatpush.bf16.msra.mxu0 %v718
        %894 = vmatmul.bf16.gmra.mxu0 %v372
        %v895 = vpop.f32.mrf.mxu0
        %v896 = vadd.f32 0.0, %v895
        %v897 = vpop.f32.mrf.mxu0
        %898 = vdwg.mxu0
        %v899 = vsub.f32 %v779, %v595
        %v900 = vsub.f32 %v792, %v596
        %v901 = vsub.f32 %v805, %v597
        %v902 = vsub.f32 %v818, %v598
        %v903 = vsub.f32 %v831, %v599
        %v904 = vsub.f32 %v844, %v600
        %v905 = vsub.f32 %v857, %v601
        %v906 = vsub.f32 %v870, %v602
        %v907 = vsub.f32 %v883, %v603
        %v908 = vsub.f32 %v896, %v604
        %v909 = vmul.f32 %v899, 0.5
        %v910 = vmul.f32 %v900, 0.5
        %v911 = vmul.f32 %v901, 0.5
        %v912 = vmul.f32 %v902, 0.5
        %v913 = vmul.f32 %v903, 0.5
        %v914 = vmul.f32 %v904, 0.5
        %v915 = vmul.f32 %v905, 0.5
        %v916 = vmul.f32 %v906, 0.5
        %v917 = vmul.f32 %v907, 0.5
        %v918 = vmul.f32 %v908, 0.5
        %v919 = vadd.f32 %v595, %v909
        %v920 = vadd.f32 %v596, %v910
        %v921 = vadd.f32 %v597, %v911
        %v922 = vadd.f32 %v598, %v912
        %v923 = vadd.f32 %v599, %v913
        %v924 = vadd.f32 %v600, %v914
        %v925 = vadd.f32 %v601, %v915
        %v926 = vadd.f32 %v602, %v916
        %v927 = vadd.f32 %v603, %v917
        %v928 = vadd.f32 %v604, %v918
        %vm929 = vcmp.ge.f32.partialorder %v919, 1.0
        %vm930 = vcmp.ge.f32.partialorder %v920, 1.0
        %vm931 = vcmp.ge.f32.partialorder %v921, 1.0
        %vm932 = vcmp.ge.f32.partialorder %v922, 1.0
        %vm933 = vcmp.ge.f32.partialorder %v923, 1.0
        %vm934 = vcmp.ge.f32.partialorder %v924, 1.0
        %vm935 = vcmp.ge.f32.partialorder %v925, 1.0
        %vm936 = vcmp.ge.f32.partialorder %v926, 1.0
        %vm937 = vcmp.ge.f32.partialorder %v927, 1.0
        %vm938 = vcmp.ge.f32.partialorder %v928, 1.0
        %v939 = vsel %vm929, 1, 0
        %v940 = vsel %vm930, 1, 0
        %v941 = vsel %vm931, 1, 0
        %v942 = vsel %vm932, 1, 0
        %v943 = vsel %vm933, 1, 0
        %v944 = vsel %vm934, 1, 0
        %v945 = vsel %vm935, 1, 0
        %v946 = vsel %vm936, 1, 0
        %v947 = vsel %vm937, 1, 0
        %v948 = vsel %vm938, 1, 0
        %v949 = vcvt.s32.f32 %v939
        %v950 = vcvt.s32.f32 %v940
        %v951 = vcvt.s32.f32 %v941
        %v952 = vcvt.s32.f32 %v942
        %v953 = vcvt.s32.f32 %v943
        %v954 = vcvt.s32.f32 %v944
        %v955 = vcvt.s32.f32 %v945
        %v956 = vcvt.s32.f32 %v946
        %v957 = vcvt.s32.f32 %v947
        %v958 = vcvt.s32.f32 %v948
        %v959 = vsub.f32 1.0, %v949
        %v960 = vsub.f32 1.0, %v950
        %v961 = vsub.f32 1.0, %v951
        %v962 = vsub.f32 1.0, %v952
        %v963 = vsub.f32 1.0, %v953
        %v964 = vsub.f32 1.0, %v954
        %v965 = vsub.f32 1.0, %v955
        %v966 = vsub.f32 1.0, %v956
        %v967 = vsub.f32 1.0, %v957
        %v968 = vsub.f32 1.0, %v958
        %v969 = vmul.f32 %v919, %v959
        %v970 = vmul.f32 %v920, %v960
        %v971 = vmul.f32 %v921, %v961
        %v972 = vmul.f32 %v922, %v962
        %v973 = vmul.f32 %v923, %v963
        %v974 = vmul.f32 %v924, %v964
        %v975 = vmul.f32 %v925, %v965
        %v976 = vmul.f32 %v926, %v966
        %v977 = vmul.f32 %v927, %v967
        %v978 = vmul.f32 %v928, %v968
        %v979 = vpack.c.bf16 %v950, %v949
        %v980 = vpack.c.bf16 %v952, %v951
        %v981 = vpack.c.bf16 %v954, %v953
        %v982 = vpack.c.bf16 %v956, %v955
        %v983 = vpack.c.bf16 %v958, %v957
        %v989 = vrot.slane %v979, 2
        %v990 = vrot.slane %v980, 4
        %v991 = vrot.slane %v980, 6
        %v992 = vrot.slane %v981, 2
        %v993 = vrot.slane %v982, 4
        %v994 = vrot.slane %v982, 6
        %v995 = vrot.slane %v983, 2
        %v998 = vsel %vm622, %v979, %v989
        %v1001 = vsel %vm626, %v990, %v991
        %v1002 = vsel %vm630, %v998, %v1001
        %v1005 = vsel %vm622, %v981, %v992
        %v1008 = vsel %vm626, %v993, %v994
        %v1009 = vsel %vm630, %v1005, %v1008
        %v1012 = vsel %vm622, %v983, %v995
        %s1016 = scalar_lea.vmem %s275, 20 [#allocation3]
        %1017 = vst [vmem:[%s1016] sm:$0xff] %v1002
        %1018 = vst [vmem:[%s1016 + $0x8] sm:$0xff] %v1009
        %1019 = vst [vmem:[%s1016 + $0x10] sm:$0xf] %v1012
        %s1020 = scalar_lea.vmem %s258, 240 [#allocation2]
        %v1021 = vld [vmem:[%s1020] sm:$0xff]
        %v1022 = vld [vmem:[%s1020 + $0x8] sm:$0xff]
        %v1023 = vld [vmem:[%s1020 + $0x10] sm:$0xff]
        %v1024 = vld [vmem:[%s1020 + $0x18] sm:$0xff]
        %v1025 = vld [vmem:[%s1020 + $0x20] sm:$0xff]
        %v1026 = vld [vmem:[%s1020 + $0x28] sm:$0xff]
        %v1027 = vld [vmem:[%s1020 + $0x30] sm:$0xff]
        %v1028 = vld [vmem:[%s1020 + $0x38] sm:$0xff]
        %v1029 = vld [vmem:[%s1020 + $0x40] sm:$0xff]
        %v1030 = vld [vmem:[%s1020 + $0x48] sm:$0xff]
        %v1031 = vld [vmem:[%s1020 + $0x50] sm:$0x11]
        %v1032 = vld [vmem:[%s1020 + $0x58] sm:$0x11]
        %v1033 = vld [vmem:[%s1020 + $0x60] sm:$0x11]
        %v1034 = vld [vmem:[%s1020 + $0x68] sm:$0x11]
        %v1035 = vld [vmem:[%s1020 + $0x70] sm:$0x11]
        %v1051 = vunpack.c.l.b16 %v1021
        %v1052 = vunpack.c.h.b16 %v1021
        %v1053 = vunpack.c.l.b16 %v1022
        %v1054 = vunpack.c.h.b16 %v1022
        %v1055 = vunpack.c.l.b16 %v1023
        %v1056 = vunpack.c.h.b16 %v1023
        %v1057 = vunpack.c.l.b16 %v1024
        %v1058 = vunpack.c.h.b16 %v1024
        %v1059 = vunpack.c.l.b16 %v1025
        %v1060 = vunpack.c.h.b16 %v1025
        %v1061 = vunpack.c.l.b16 %v1026
        %v1062 = vunpack.c.h.b16 %v1026
        %v1063 = vunpack.c.l.b16 %v1027
        %v1064 = vunpack.c.h.b16 %v1027
        %v1065 = vunpack.c.l.b16 %v1028
        %v1066 = vunpack.c.h.b16 %v1028
        %v1067 = vunpack.c.l.b16 %v1029
        %v1068 = vunpack.c.h.b16 %v1029
        %v1069 = vunpack.c.l.b16 %v1030
        %v1070 = vunpack.c.h.b16 %v1030
        %v1071 = vunpack.c.l.b16 %v1031
        %v1072 = vunpack.c.h.b16 %v1031
        %v1073 = vunpack.c.l.b16 %v1032
        %v1074 = vunpack.c.h.b16 %v1032
        %v1075 = vunpack.c.l.b16 %v1033
        %v1076 = vunpack.c.h.b16 %v1033
        %v1077 = vunpack.c.l.b16 %v1034
        %v1078 = vunpack.c.h.b16 %v1034
        %v1079 = vunpack.c.l.b16 %v1035
        %v1080 = vunpack.c.h.b16 %v1035
        %v1081 = vpack.c.b16 %v1061, %v1051
        %v1082 = vpack.c.b16 %v1062, %v1052
        %v1083 = vpack.c.b16 %v1063, %v1053
        %v1084 = vpack.c.b16 %v1064, %v1054
        %v1085 = vpack.c.b16 %v1065, %v1055
        %v1086 = vpack.c.b16 %v1066, %v1056
        %v1087 = vpack.c.b16 %v1067, %v1057
        %v1088 = vpack.c.b16 %v1068, %v1058
        %v1089 = vpack.c.b16 %v1069, %v1059
        %v1090 = vpack.c.b16 %v1070, %v1060
        %v1091 = vpack.c.b16 %v1071, %v1071
        %v1092 = vpack.c.b16 %v1072, %v1072
        %v1093 = vpack.c.b16 %v1073, %v1073
        %v1094 = vpack.c.b16 %v1074, %v1074
        %v1095 = vpack.c.b16 %v1075, %v1075
        %v1096 = vpack.c.b16 %v1076, %v1076
        %v1097 = vpack.c.b16 %v1077, %v1077
        %v1098 = vpack.c.b16 %v1078, %v1078
        %v1099 = vpack.c.b16 %v1079, %v1079
        %v1100 = vpack.c.b16 %v1080, %v1080
        %v1112 = vsel %vm374, %v1091, 0
        %v1115 = vsel %vm374, %v1092, 0
        %v1118 = vsel %vm374, %v1093, 0
        %v1121 = vsel %vm374, %v1094, 0
        %v1124 = vsel %vm374, %v1095, 0
        %v1127 = vsel %vm374, %v1096, 0
        %v1130 = vsel %vm374, %v1097, 0
        %v1133 = vsel %vm374, %v1098, 0
        %v1136 = vsel %vm374, %v1099, 0
        %v1139 = vsel %vm374, %v1100, 0
        %1141 = vmatpush.bf16.msra.mxu0 0
        %1142 = vmatpush.bf16.msra.mxu0 0
        %1143 = vmatpush.bf16.msra.mxu0 0
        %1144 = vmatpush.bf16.msra.mxu0 0
        %1145 = vmatpush.bf16.msra.mxu0 0
        %1146 = vmatpush.bf16.msra.mxu0 0
        %1147 = vmatpush.bf16.msra.mxu0 %v1112
        %1148 = vmatpush.bf16.msra.mxu0 %v1081
        %1149 = vmatmul.bf16.gmra.mxu0 %v372
        %v1150 = vpop.f32.mrf.mxu0
        %v1151 = vadd.f32 0.0, %v1150
        %v1152 = vpop.f32.mrf.mxu0
        %1153 = vdwg.mxu0
        %1154 = vmatpush.bf16.msra.mxu0 0
        %1155 = vmatpush.bf16.msra.mxu0 0
        %1156 = vmatpush.bf16.msra.mxu0 0
        %1157 = vmatpush.bf16.msra.mxu0 0
        %1158 = vmatpush.bf16.msra.mxu0 0
        %1159 = vmatpush.bf16.msra.mxu0 0
        %1160 = vmatpush.bf16.msra.mxu0 %v1115
        %1161 = vmatpush.bf16.msra.mxu0 %v1082
        %1162 = vmatmul.bf16.gmra.mxu0 %v372
        %v1163 = vpop.f32.mrf.mxu0
        %v1164 = vadd.f32 0.0, %v1163
        %v1165 = vpop.f32.mrf.mxu0
        %1166 = vdwg.mxu0
        %1167 = vmatpush.bf16.msra.mxu0 0
        %1168 = vmatpush.bf16.msra.mxu0 0
        %1169 = vmatpush.bf16.msra.mxu0 0
        %1170 = vmatpush.bf16.msra.mxu0 0
        %1171 = vmatpush.bf16.msra.mxu0 0
        %1172 = vmatpush.bf16.msra.mxu0 0
        %1173 = vmatpush.bf16.msra.mxu0 %v1118
        %1174 = vmatpush.bf16.msra.mxu0 %v1083
        %1175 = vmatmul.bf16.gmra.mxu0 %v372
        %v1176 = vpop.f32.mrf.mxu0
        %v1177 = vadd.f32 0.0, %v1176
        %v1178 = vpop.f32.mrf.mxu0
        %1179 = vdwg.mxu0
        %1180 = vmatpush.bf16.msra.mxu0 0
        %1181 = vmatpush.bf16.msra.mxu0 0
        %1182 = vmatpush.bf16.msra.mxu0 0
        %1183 = vmatpush.bf16.msra.mxu0 0
        %1184 = vmatpush.bf16.msra.mxu0 0
        %1185 = vmatpush.bf16.msra.mxu0 0
        %1186 = vmatpush.bf16.msra.mxu0 %v1121
        %1187 = vmatpush.bf16.msra.mxu0 %v1084
        %1188 = vmatmul.bf16.gmra.mxu0 %v372
        %v1189 = vpop.f32.mrf.mxu0
        %v1190 = vadd.f32 0.0, %v1189
        %v1191 = vpop.f32.mrf.mxu0
        %1192 = vdwg.mxu0
        %1193 = vmatpush.bf16.msra.mxu0 0
        %1194 = vmatpush.bf16.msra.mxu0 0
        %1195 = vmatpush.bf16.msra.mxu0 0
        %1196 = vmatpush.bf16.msra.mxu0 0
        %1197 = vmatpush.bf16.msra.mxu0 0
        %1198 = vmatpush.bf16.msra.mxu0 0
        %1199 = vmatpush.bf16.msra.mxu0 %v1124
        %1200 = vmatpush.bf16.msra.mxu0 %v1085
        %1201 = vmatmul.bf16.gmra.mxu0 %v372
        %v1202 = vpop.f32.mrf.mxu0
        %v1203 = vadd.f32 0.0, %v1202
        %v1204 = vpop.f32.mrf.mxu0
        %1205 = vdwg.mxu0
        %1206 = vmatpush.bf16.msra.mxu0 0
        %1207 = vmatpush.bf16.msra.mxu0 0
        %1208 = vmatpush.bf16.msra.mxu0 0
        %1209 = vmatpush.bf16.msra.mxu0 0
        %1210 = vmatpush.bf16.msra.mxu0 0
        %1211 = vmatpush.bf16.msra.mxu0 0
        %1212 = vmatpush.bf16.msra.mxu0 %v1127
        %1213 = vmatpush.bf16.msra.mxu0 %v1086
        %1214 = vmatmul.bf16.gmra.mxu0 %v372
        %v1215 = vpop.f32.mrf.mxu0
        %v1216 = vadd.f32 0.0, %v1215
        %v1217 = vpop.f32.mrf.mxu0
        %1218 = vdwg.mxu0
        %1219 = vmatpush.bf16.msra.mxu0 0
        %1220 = vmatpush.bf16.msra.mxu0 0
        %1221 = vmatpush.bf16.msra.mxu0 0
        %1222 = vmatpush.bf16.msra.mxu0 0
        %1223 = vmatpush.bf16.msra.mxu0 0
        %1224 = vmatpush.bf16.msra.mxu0 0
        %1225 = vmatpush.bf16.msra.mxu0 %v1130
        %1226 = vmatpush.bf16.msra.mxu0 %v1087
        %1227 = vmatmul.bf16.gmra.mxu0 %v372
        %v1228 = vpop.f32.mrf.mxu0
        %v1229 = vadd.f32 0.0, %v1228
        %v1230 = vpop.f32.mrf.mxu0
        %1231 = vdwg.mxu0
        %1232 = vmatpush.bf16.msra.mxu0 0
        %1233 = vmatpush.bf16.msra.mxu0 0
        %1234 = vmatpush.bf16.msra.mxu0 0
        %1235 = vmatpush.bf16.msra.mxu0 0
        %1236 = vmatpush.bf16.msra.mxu0 0
        %1237 = vmatpush.bf16.msra.mxu0 0
        %1238 = vmatpush.bf16.msra.mxu0 %v1133
        %1239 = vmatpush.bf16.msra.mxu0 %v1088
        %1240 = vmatmul.bf16.gmra.mxu0 %v372
        %v1241 = vpop.f32.mrf.mxu0
        %v1242 = vadd.f32 0.0, %v1241
        %v1243 = vpop.f32.mrf.mxu0
        %1244 = vdwg.mxu0
        %1245 = vmatpush.bf16.msra.mxu0 0
        %1246 = vmatpush.bf16.msra.mxu0 0
        %1247 = vmatpush.bf16.msra.mxu0 0
        %1248 = vmatpush.bf16.msra.mxu0 0
        %1249 = vmatpush.bf16.msra.mxu0 0
        %1250 = vmatpush.bf16.msra.mxu0 0
        %1251 = vmatpush.bf16.msra.mxu0 %v1136
        %1252 = vmatpush.bf16.msra.mxu0 %v1089
        %1253 = vmatmul.bf16.gmra.mxu0 %v372
        %v1254 = vpop.f32.mrf.mxu0
        %v1255 = vadd.f32 0.0, %v1254
        %v1256 = vpop.f32.mrf.mxu0
        %1257 = vdwg.mxu0
        %1258 = vmatpush.bf16.msra.mxu0 0
        %1259 = vmatpush.bf16.msra.mxu0 0
        %1260 = vmatpush.bf16.msra.mxu0 0
        %1261 = vmatpush.bf16.msra.mxu0 0
        %1262 = vmatpush.bf16.msra.mxu0 0
        %1263 = vmatpush.bf16.msra.mxu0 0
        %1264 = vmatpush.bf16.msra.mxu0 %v1139
        %1265 = vmatpush.bf16.msra.mxu0 %v1090
        %1266 = vmatmul.bf16.gmra.mxu0 %v372
        %v1267 = vpop.f32.mrf.mxu0
        %v1268 = vadd.f32 0.0, %v1267
        %v1269 = vpop.f32.mrf.mxu0
        %1270 = vdwg.mxu0
        %v1271 = vsub.f32 %v1151, %v969
        %v1272 = vsub.f32 %v1164, %v970
        %v1273 = vsub.f32 %v1177, %v971
        %v1274 = vsub.f32 %v1190, %v972
        %v1275 = vsub.f32 %v1203, %v973
        %v1276 = vsub.f32 %v1216, %v974
        %v1277 = vsub.f32 %v1229, %v975
        %v1278 = vsub.f32 %v1242, %v976
        %v1279 = vsub.f32 %v1255, %v977
        %v1280 = vsub.f32 %v1268, %v978
        %v1281 = vmul.f32 %v1271, 0.5
        %v1282 = vmul.f32 %v1272, 0.5
        %v1283 = vmul.f32 %v1273, 0.5
        %v1284 = vmul.f32 %v1274, 0.5
        %v1285 = vmul.f32 %v1275, 0.5
        %v1286 = vmul.f32 %v1276, 0.5
        %v1287 = vmul.f32 %v1277, 0.5
        %v1288 = vmul.f32 %v1278, 0.5
        %v1289 = vmul.f32 %v1279, 0.5
        %v1290 = vmul.f32 %v1280, 0.5
        %v1291 = vadd.f32 %v969, %v1281
        %v1292 = vadd.f32 %v970, %v1282
        %v1293 = vadd.f32 %v971, %v1283
        %v1294 = vadd.f32 %v972, %v1284
        %v1295 = vadd.f32 %v973, %v1285
        %v1296 = vadd.f32 %v974, %v1286
        %v1297 = vadd.f32 %v975, %v1287
        %v1298 = vadd.f32 %v976, %v1288
        %v1299 = vadd.f32 %v977, %v1289
        %v1300 = vadd.f32 %v978, %v1290
        %vm1301 = vcmp.ge.f32.partialorder %v1291, 1.0
        %vm1302 = vcmp.ge.f32.partialorder %v1292, 1.0
        %vm1303 = vcmp.ge.f32.partialorder %v1293, 1.0
        %vm1304 = vcmp.ge.f32.partialorder %v1294, 1.0
        %vm1305 = vcmp.ge.f32.partialorder %v1295, 1.0
        %vm1306 = vcmp.ge.f32.partialorder %v1296, 1.0
        %vm1307 = vcmp.ge.f32.partialorder %v1297, 1.0
        %vm1308 = vcmp.ge.f32.partialorder %v1298, 1.0
        %vm1309 = vcmp.ge.f32.partialorder %v1299, 1.0
        %vm1310 = vcmp.ge.f32.partialorder %v1300, 1.0
        %v1311 = vsel %vm1301, 1, 0
        %v1312 = vsel %vm1302, 1, 0
        %v1313 = vsel %vm1303, 1, 0
        %v1314 = vsel %vm1304, 1, 0
        %v1315 = vsel %vm1305, 1, 0
        %v1316 = vsel %vm1306, 1, 0
        %v1317 = vsel %vm1307, 1, 0
        %v1318 = vsel %vm1308, 1, 0
        %v1319 = vsel %vm1309, 1, 0
        %v1320 = vsel %vm1310, 1, 0
        %v1321 = vcvt.s32.f32 %v1311
        %v1322 = vcvt.s32.f32 %v1312
        %v1323 = vcvt.s32.f32 %v1313
        %v1324 = vcvt.s32.f32 %v1314
        %v1325 = vcvt.s32.f32 %v1315
        %v1326 = vcvt.s32.f32 %v1316
        %v1327 = vcvt.s32.f32 %v1317
        %v1328 = vcvt.s32.f32 %v1318
        %v1329 = vcvt.s32.f32 %v1319
        %v1330 = vcvt.s32.f32 %v1320
        %v1331 = vsub.f32 1.0, %v1321
        %v1332 = vsub.f32 1.0, %v1322
        %v1333 = vsub.f32 1.0, %v1323
        %v1334 = vsub.f32 1.0, %v1324
        %v1335 = vsub.f32 1.0, %v1325
        %v1336 = vsub.f32 1.0, %v1326
        %v1337 = vsub.f32 1.0, %v1327
        %v1338 = vsub.f32 1.0, %v1328
        %v1339 = vsub.f32 1.0, %v1329
        %v1340 = vsub.f32 1.0, %v1330
        %v1341 = vmul.f32 %v1291, %v1331
        %v1342 = vmul.f32 %v1292, %v1332
        %v1343 = vmul.f32 %v1293, %v1333
        %v1344 = vmul.f32 %v1294, %v1334
        %v1345 = vmul.f32 %v1295, %v1335
        %v1346 = vmul.f32 %v1296, %v1336
        %v1347 = vmul.f32 %v1297, %v1337
        %v1348 = vmul.f32 %v1298, %v1338
        %v1349 = vmul.f32 %v1299, %v1339
        %v1350 = vmul.f32 %v1300, %v1340
        %v1351 = vpack.c.bf16 %v1322, %v1321
        %v1352 = vpack.c.bf16 %v1324, %v1323
        %v1353 = vpack.c.bf16 %v1326, %v1325
        %v1354 = vpack.c.bf16 %v1328, %v1327
        %v1355 = vpack.c.bf16 %v1330, %v1329
        %v1361 = vrot.slane %v1351, 2
        %v1362 = vrot.slane %v1352, 4
        %v1363 = vrot.slane %v1352, 6
        %v1364 = vrot.slane %v1353, 2
        %v1365 = vrot.slane %v1354, 4
        %v1366 = vrot.slane %v1354, 6
        %v1367 = vrot.slane %v1355, 2
        %v1370 = vsel %vm622, %v1351, %v1361
        %v1373 = vsel %vm626, %v1362, %v1363
        %v1374 = vsel %vm630, %v1370, %v1373
        %v1377 = vsel %vm622, %v1353, %v1364
        %v1380 = vsel %vm626, %v1365, %v1366
        %v1381 = vsel %vm630, %v1377, %v1380
        %v1384 = vsel %vm622, %v1355, %v1367
        %s1388 = scalar_lea.vmem %s275, 40 [#allocation3]
        %1389 = vst [vmem:[%s1388] sm:$0xff] %v1374
        %1390 = vst [vmem:[%s1388 + $0x8] sm:$0xff] %v1381
        %1391 = vst [vmem:[%s1388 + $0x10] sm:$0xf] %v1384
        %s1392 = scalar_lea.vmem %s258, 360 [#allocation2]
        %v1393 = vld [vmem:[%s1392] sm:$0xff]
        %v1394 = vld [vmem:[%s1392 + $0x8] sm:$0xff]
        %v1395 = vld [vmem:[%s1392 + $0x10] sm:$0xff]
        %v1396 = vld [vmem:[%s1392 + $0x18] sm:$0xff]
        %v1397 = vld [vmem:[%s1392 + $0x20] sm:$0xff]
        %v1398 = vld [vmem:[%s1392 + $0x28] sm:$0xff]
        %v1399 = vld [vmem:[%s1392 + $0x30] sm:$0xff]
        %v1400 = vld [vmem:[%s1392 + $0x38] sm:$0xff]
        %v1401 = vld [vmem:[%s1392 + $0x40] sm:$0xff]
        %v1402 = vld [vmem:[%s1392 + $0x48] sm:$0xff]
        %v1403 = vld [vmem:[%s1392 + $0x50] sm:$0x11]
        %v1404 = vld [vmem:[%s1392 + $0x58] sm:$0x11]
        %v1405 = vld [vmem:[%s1392 + $0x60] sm:$0x11]
        %v1406 = vld [vmem:[%s1392 + $0x68] sm:$0x11]
        %v1407 = vld [vmem:[%s1392 + $0x70] sm:$0x11]
        %v1423 = vunpack.c.l.b16 %v1393
        %v1424 = vunpack.c.h.b16 %v1393
        %v1425 = vunpack.c.l.b16 %v1394
        %v1426 = vunpack.c.h.b16 %v1394
        %v1427 = vunpack.c.l.b16 %v1395
        %v1428 = vunpack.c.h.b16 %v1395
        %v1429 = vunpack.c.l.b16 %v1396
        %v1430 = vunpack.c.h.b16 %v1396
        %v1431 = vunpack.c.l.b16 %v1397
        %v1432 = vunpack.c.h.b16 %v1397
        %v1433 = vunpack.c.l.b16 %v1398
        %v1434 = vunpack.c.h.b16 %v1398
        %v1435 = vunpack.c.l.b16 %v1399
        %v1436 = vunpack.c.h.b16 %v1399
        %v1437 = vunpack.c.l.b16 %v1400
        %v1438 = vunpack.c.h.b16 %v1400
        %v1439 = vunpack.c.l.b16 %v1401
        %v1440 = vunpack.c.h.b16 %v1401
        %v1441 = vunpack.c.l.b16 %v1402
        %v1442 = vunpack.c.h.b16 %v1402
        %v1443 = vunpack.c.l.b16 %v1403
        %v1444 = vunpack.c.h.b16 %v1403
        %v1445 = vunpack.c.l.b16 %v1404
        %v1446 = vunpack.c.h.b16 %v1404
        %v1447 = vunpack.c.l.b16 %v1405
        %v1448 = vunpack.c.h.b16 %v1405
        %v1449 = vunpack.c.l.b16 %v1406
        %v1450 = vunpack.c.h.b16 %v1406
        %v1451 = vunpack.c.l.b16 %v1407
        %v1452 = vunpack.c.h.b16 %v1407
        %v1453 = vpack.c.b16 %v1433, %v1423
        %v1454 = vpack.c.b16 %v1434, %v1424
        %v1455 = vpack.c.b16 %v1435, %v1425
        %v1456 = vpack.c.b16 %v1436, %v1426
        %v1457 = vpack.c.b16 %v1437, %v1427
        %v1458 = vpack.c.b16 %v1438, %v1428
        %v1459 = vpack.c.b16 %v1439, %v1429
        %v1460 = vpack.c.b16 %v1440, %v1430
        %v1461 = vpack.c.b16 %v1441, %v1431
        %v1462 = vpack.c.b16 %v1442, %v1432
        %v1463 = vpack.c.b16 %v1443, %v1443
        %v1464 = vpack.c.b16 %v1444, %v1444
        %v1465 = vpack.c.b16 %v1445, %v1445
        %v1466 = vpack.c.b16 %v1446, %v1446
        %v1467 = vpack.c.b16 %v1447, %v1447
        %v1468 = vpack.c.b16 %v1448, %v1448
        %v1469 = vpack.c.b16 %v1449, %v1449
        %v1470 = vpack.c.b16 %v1450, %v1450
        %v1471 = vpack.c.b16 %v1451, %v1451
        %v1472 = vpack.c.b16 %v1452, %v1452
        %v1484 = vsel %vm374, %v1463, 0
        %v1487 = vsel %vm374, %v1464, 0
        %v1490 = vsel %vm374, %v1465, 0
        %v1493 = vsel %vm374, %v1466, 0
        %v1496 = vsel %vm374, %v1467, 0
        %v1499 = vsel %vm374, %v1468, 0
        %v1502 = vsel %vm374, %v1469, 0
        %v1505 = vsel %vm374, %v1470, 0
        %v1508 = vsel %vm374, %v1471, 0
        %v1511 = vsel %vm374, %v1472, 0
        %1513 = vmatpush.bf16.msra.mxu0 0
        %1514 = vmatpush.bf16.msra.mxu0 0
        %1515 = vmatpush.bf16.msra.mxu0 0
        %1516 = vmatpush.bf16.msra.mxu0 0
        %1517 = vmatpush.bf16.msra.mxu0 0
        %1518 = vmatpush.bf16.msra.mxu0 0
        %1519 = vmatpush.bf16.msra.mxu0 %v1484
        %1520 = vmatpush.bf16.msra.mxu0 %v1453
        %1521 = vmatmul.bf16.gmra.mxu0 %v372
        %v1522 = vpop.f32.mrf.mxu0
        %v1523 = vadd.f32 0.0, %v1522
        %v1524 = vpop.f32.mrf.mxu0
        %1525 = vdwg.mxu0
        %1526 = vmatpush.bf16.msra.mxu0 0
        %1527 = vmatpush.bf16.msra.mxu0 0
        %1528 = vmatpush.bf16.msra.mxu0 0
        %1529 = vmatpush.bf16.msra.mxu0 0
        %1530 = vmatpush.bf16.msra.mxu0 0
        %1531 = vmatpush.bf16.msra.mxu0 0
        %1532 = vmatpush.bf16.msra.mxu0 %v1487
        %1533 = vmatpush.bf16.msra.mxu0 %v1454
        %1534 = vmatmul.bf16.gmra.mxu0 %v372
        %v1535 = vpop.f32.mrf.mxu0
        %v1536 = vadd.f32 0.0, %v1535
        %v1537 = vpop.f32.mrf.mxu0
        %1538 = vdwg.mxu0
        %1539 = vmatpush.bf16.msra.mxu0 0
        %1540 = vmatpush.bf16.msra.mxu0 0
        %1541 = vmatpush.bf16.msra.mxu0 0
        %1542 = vmatpush.bf16.msra.mxu0 0
        %1543 = vmatpush.bf16.msra.mxu0 0
        %1544 = vmatpush.bf16.msra.mxu0 0
        %1545 = vmatpush.bf16.msra.mxu0 %v1490
        %1546 = vmatpush.bf16.msra.mxu0 %v1455
        %1547 = vmatmul.bf16.gmra.mxu0 %v372
        %v1548 = vpop.f32.mrf.mxu0
        %v1549 = vadd.f32 0.0, %v1548
        %v1550 = vpop.f32.mrf.mxu0
        %1551 = vdwg.mxu0
        %1552 = vmatpush.bf16.msra.mxu0 0
        %1553 = vmatpush.bf16.msra.mxu0 0
        %1554 = vmatpush.bf16.msra.mxu0 0
        %1555 = vmatpush.bf16.msra.mxu0 0
        %1556 = vmatpush.bf16.msra.mxu0 0
        %1557 = vmatpush.bf16.msra.mxu0 0
        %1558 = vmatpush.bf16.msra.mxu0 %v1493
        %1559 = vmatpush.bf16.msra.mxu0 %v1456
        %1560 = vmatmul.bf16.gmra.mxu0 %v372
        %v1561 = vpop.f32.mrf.mxu0
        %v1562 = vadd.f32 0.0, %v1561
        %v1563 = vpop.f32.mrf.mxu0
        %1564 = vdwg.mxu0
        %1565 = vmatpush.bf16.msra.mxu0 0
        %1566 = vmatpush.bf16.msra.mxu0 0
        %1567 = vmatpush.bf16.msra.mxu0 0
        %1568 = vmatpush.bf16.msra.mxu0 0
        %1569 = vmatpush.bf16.msra.mxu0 0
        %1570 = vmatpush.bf16.msra.mxu0 0
        %1571 = vmatpush.bf16.msra.mxu0 %v1496
        %1572 = vmatpush.bf16.msra.mxu0 %v1457
        %1573 = vmatmul.bf16.gmra.mxu0 %v372
        %v1574 = vpop.f32.mrf.mxu0
        %v1575 = vadd.f32 0.0, %v1574
        %v1576 = vpop.f32.mrf.mxu0
        %1577 = vdwg.mxu0
        %1578 = vmatpush.bf16.msra.mxu0 0
        %1579 = vmatpush.bf16.msra.mxu0 0
        %1580 = vmatpush.bf16.msra.mxu0 0
        %1581 = vmatpush.bf16.msra.mxu0 0
        %1582 = vmatpush.bf16.msra.mxu0 0
        %1583 = vmatpush.bf16.msra.mxu0 0
        %1584 = vmatpush.bf16.msra.mxu0 %v1499
        %1585 = vmatpush.bf16.msra.mxu0 %v1458
        %1586 = vmatmul.bf16.gmra.mxu0 %v372
        %v1587 = vpop.f32.mrf.mxu0
        %v1588 = vadd.f32 0.0, %v1587
        %v1589 = vpop.f32.mrf.mxu0
        %1590 = vdwg.mxu0
        %1591 = vmatpush.bf16.msra.mxu0 0
        %1592 = vmatpush.bf16.msra.mxu0 0
        %1593 = vmatpush.bf16.msra.mxu0 0
        %1594 = vmatpush.bf16.msra.mxu0 0
        %1595 = vmatpush.bf16.msra.mxu0 0
        %1596 = vmatpush.bf16.msra.mxu0 0
        %1597 = vmatpush.bf16.msra.mxu0 %v1502
        %1598 = vmatpush.bf16.msra.mxu0 %v1459
        %1599 = vmatmul.bf16.gmra.mxu0 %v372
        %v1600 = vpop.f32.mrf.mxu0
        %v1601 = vadd.f32 0.0, %v1600
        %v1602 = vpop.f32.mrf.mxu0
        %1603 = vdwg.mxu0
        %1604 = vmatpush.bf16.msra.mxu0 0
        %1605 = vmatpush.bf16.msra.mxu0 0
        %1606 = vmatpush.bf16.msra.mxu0 0
        %1607 = vmatpush.bf16.msra.mxu0 0
        %1608 = vmatpush.bf16.msra.mxu0 0
        %1609 = vmatpush.bf16.msra.mxu0 0
        %1610 = vmatpush.bf16.msra.mxu0 %v1505
        %1611 = vmatpush.bf16.msra.mxu0 %v1460
        %1612 = vmatmul.bf16.gmra.mxu0 %v372
        %v1613 = vpop.f32.mrf.mxu0
        %v1614 = vadd.f32 0.0, %v1613
        %v1615 = vpop.f32.mrf.mxu0
        %1616 = vdwg.mxu0
        %1617 = vmatpush.bf16.msra.mxu0 0
        %1618 = vmatpush.bf16.msra.mxu0 0
        %1619 = vmatpush.bf16.msra.mxu0 0
        %1620 = vmatpush.bf16.msra.mxu0 0
        %1621 = vmatpush.bf16.msra.mxu0 0
        %1622 = vmatpush.bf16.msra.mxu0 0
        %1623 = vmatpush.bf16.msra.mxu0 %v1508
        %1624 = vmatpush.bf16.msra.mxu0 %v1461
        %1625 = vmatmul.bf16.gmra.mxu0 %v372
        %v1626 = vpop.f32.mrf.mxu0
        %v1627 = vadd.f32 0.0, %v1626
        %v1628 = vpop.f32.mrf.mxu0
        %1629 = vdwg.mxu0
        %1630 = vmatpush.bf16.msra.mxu0 0
        %1631 = vmatpush.bf16.msra.mxu0 0
        %1632 = vmatpush.bf16.msra.mxu0 0
        %1633 = vmatpush.bf16.msra.mxu0 0
        %1634 = vmatpush.bf16.msra.mxu0 0
        %1635 = vmatpush.bf16.msra.mxu0 0
        %1636 = vmatpush.bf16.msra.mxu0 %v1511
        %1637 = vmatpush.bf16.msra.mxu0 %v1462
        %1638 = vmatmul.bf16.gmra.mxu0 %v372
        %v1639 = vpop.f32.mrf.mxu0
        %v1640 = vadd.f32 0.0, %v1639
        %v1641 = vpop.f32.mrf.mxu0
        %1642 = vdwg.mxu0
        %v1643 = vsub.f32 %v1523, %v1341
        %v1644 = vsub.f32 %v1536, %v1342
        %v1645 = vsub.f32 %v1549, %v1343
        %v1646 = vsub.f32 %v1562, %v1344
        %v1647 = vsub.f32 %v1575, %v1345
        %v1648 = vsub.f32 %v1588, %v1346
        %v1649 = vsub.f32 %v1601, %v1347
        %v1650 = vsub.f32 %v1614, %v1348
        %v1651 = vsub.f32 %v1627, %v1349
        %v1652 = vsub.f32 %v1640, %v1350
        %v1653 = vmul.f32 %v1643, 0.5
        %v1654 = vmul.f32 %v1644, 0.5
        %v1655 = vmul.f32 %v1645, 0.5
        %v1656 = vmul.f32 %v1646, 0.5
        %v1657 = vmul.f32 %v1647, 0.5
        %v1658 = vmul.f32 %v1648, 0.5
        %v1659 = vmul.f32 %v1649, 0.5
        %v1660 = vmul.f32 %v1650, 0.5
        %v1661 = vmul.f32 %v1651, 0.5
        %v1662 = vmul.f32 %v1652, 0.5
        %v1663 = vadd.f32 %v1341, %v1653
        %v1664 = vadd.f32 %v1342, %v1654
        %v1665 = vadd.f32 %v1343, %v1655
        %v1666 = vadd.f32 %v1344, %v1656
        %v1667 = vadd.f32 %v1345, %v1657
        %v1668 = vadd.f32 %v1346, %v1658
        %v1669 = vadd.f32 %v1347, %v1659
        %v1670 = vadd.f32 %v1348, %v1660
        %v1671 = vadd.f32 %v1349, %v1661
        %v1672 = vadd.f32 %v1350, %v1662
        %vm1673 = vcmp.ge.f32.partialorder %v1663, 1.0
        %vm1674 = vcmp.ge.f32.partialorder %v1664, 1.0
        %vm1675 = vcmp.ge.f32.partialorder %v1665, 1.0
        %vm1676 = vcmp.ge.f32.partialorder %v1666, 1.0
        %vm1677 = vcmp.ge.f32.partialorder %v1667, 1.0
        %vm1678 = vcmp.ge.f32.partialorder %v1668, 1.0
        %vm1679 = vcmp.ge.f32.partialorder %v1669, 1.0
        %vm1680 = vcmp.ge.f32.partialorder %v1670, 1.0
        %vm1681 = vcmp.ge.f32.partialorder %v1671, 1.0
        %vm1682 = vcmp.ge.f32.partialorder %v1672, 1.0
        %v1683 = vsel %vm1673, 1, 0
        %v1684 = vsel %vm1674, 1, 0
        %v1685 = vsel %vm1675, 1, 0
        %v1686 = vsel %vm1676, 1, 0
        %v1687 = vsel %vm1677, 1, 0
        %v1688 = vsel %vm1678, 1, 0
        %v1689 = vsel %vm1679, 1, 0
        %v1690 = vsel %vm1680, 1, 0
        %v1691 = vsel %vm1681, 1, 0
        %v1692 = vsel %vm1682, 1, 0
        %v1693 = vcvt.s32.f32 %v1683
        %v1694 = vcvt.s32.f32 %v1684
        %v1695 = vcvt.s32.f32 %v1685
        %v1696 = vcvt.s32.f32 %v1686
        %v1697 = vcvt.s32.f32 %v1687
        %v1698 = vcvt.s32.f32 %v1688
        %v1699 = vcvt.s32.f32 %v1689
        %v1700 = vcvt.s32.f32 %v1690
        %v1701 = vcvt.s32.f32 %v1691
        %v1702 = vcvt.s32.f32 %v1692
        %v1703 = vpack.c.bf16 %v1694, %v1693
        %v1704 = vpack.c.bf16 %v1696, %v1695
        %v1705 = vpack.c.bf16 %v1698, %v1697
        %v1706 = vpack.c.bf16 %v1700, %v1699
        %v1707 = vpack.c.bf16 %v1702, %v1701
        %v1713 = vrot.slane %v1703, 2
        %v1714 = vrot.slane %v1704, 4
        %v1715 = vrot.slane %v1704, 6
        %v1716 = vrot.slane %v1705, 2
        %v1717 = vrot.slane %v1706, 4
        %v1718 = vrot.slane %v1706, 6
        %v1719 = vrot.slane %v1707, 2
        %v1722 = vsel %vm622, %v1703, %v1713
        %v1725 = vsel %vm626, %v1714, %v1715
        %v1726 = vsel %vm630, %v1722, %v1725
        %v1729 = vsel %vm622, %v1705, %v1716
        %v1732 = vsel %vm626, %v1717, %v1718
        %v1733 = vsel %vm630, %v1729, %v1732
        %v1736 = vsel %vm622, %v1707, %v1719
        %s1740 = scalar_lea.vmem %s275, 60 [#allocation3]
        %1741 = vst [vmem:[%s1740] sm:$0xff] %v1726
        %1742 = vst [vmem:[%s1740 + $0x8] sm:$0xff] %v1733
        %1743 = vst [vmem:[%s1740 + $0x10] sm:$0xf] %v1736
        %s1744 = sand.u32 %s68, 1
        %s1745 = sand.u32 %s68, 1
        %s1746 = smul.addr %s1745, 80
        %s1747 = scalar_lea.vmem [#allocation3], %s1746
        // Predicated region
        $region52: #{all_conv_plif_li_forward.6} parent=46 // pred_check
          %p1748 = pneg %p78
        $region53: #{all_conv_plif_li_forward.6} parent=46 // pred_check_branch
          %1750 = sbr.rel (%p1748) target = $region55
        $region54: #{all_conv_plif_li_forward.6} parent=46 // pred_region
          %s1751 = smul.u32 10, %s13
          %s1752 = smul.addr %s1751, 2
          %s1753 = scalar_lea.vmem %s2, %s1752
          // Predicated region
          $region56: #{all_conv_plif_li_forward.6} parent=54 // pred_check
            _
          $region57: #{all_conv_plif_li_forward.6} parent=54 // pred_check_branch
            %1755 = sbr.rel (0) target = $region59
          $region58: #{all_conv_plif_li_forward.6} parent=54 // pred_region
            // Predicated region
            $region60: #{all_conv_plif_li_forward.6} parent=58 // pred_check
              _
            $region61: #{all_conv_plif_li_forward.6} parent=58 // pred_check_branch
              %1757 = sbr.rel (0) target = $region63
            $region62: #{all_conv_plif_li_forward.6} parent=58 // pred_region
              %s1758 = scalar_lea.vmem %s1747, 16 [#allocation3]
              %s1759 = scalar_lea.vmem %s1753, 16
              loop: start=0, step=1, limit=1
              $region64: #{all_conv_plif_li_forward.6} parent=62 // loop_pre_header
                _
              $region65: #{all_conv_plif_li_forward.6} parent=62 // loop_header
                %s1761 = sphi 0, %s1765
                %p1762 = scmp.ge.s32.totalorder %s1761, 1
                %s1766 = sphi %s1747, %s1747
                %s1767 = sphi %s1753, %s1753
              $region66: #{all_conv_plif_li_forward.6} parent=62 // loop_header_branch
                %1764 = sbr.rel (%p1762) target = $region70
              $region67: #{all_conv_plif_li_forward.6} parent=62 // loop_body
                %v1768 = vld [vmem:[%s1766] sm:$0xff]
                %1769 = vst [vmem:[%s1767] sm:$0xff] %v1768
                %v1770 = vld [vmem:[%s1766 + $0x8] sm:$0xff]
                %1771 = vst [vmem:[%s1767 + $0x8] sm:$0xff] %v1770
                %v1772 = vld [vmem:[%s1766 + $0x14] sm:$0xff]
                %1773 = vst [vmem:[%s1767 + $0x50] sm:$0xff] %v1772
                %v1774 = vld [vmem:[%s1766 + $0x1c] sm:$0xff]
                %1775 = vst [vmem:[%s1767 + $0x58] sm:$0xff] %v1774
                %v1776 = vld [vmem:[%s1766 + $0x28] sm:$0xff]
                %1777 = vst [vmem:[%s1767 + $0xa0] sm:$0xff] %v1776
                %v1778 = vld [vmem:[%s1766 + $0x30] sm:$0xff]
                %1779 = vst [vmem:[%s1767 + $0xa8] sm:$0xff] %v1778
                %v1780 = vld [vmem:[%s1766 + $0x3c] sm:$0xff]
                %1781 = vst [vmem:[%s1767 + $0xf0] sm:$0xff] %v1780
                %v1782 = vld [vmem:[%s1766 + $0x44] sm:$0xff]
                %1783 = vst [vmem:[%s1767 + $0xf8] sm:$0xff] %v1782
              $region68: #{all_conv_plif_li_forward.6} parent=62 // loop_footer
                %s1765 = sadd.s32 1, %s1761
              $region69: #{all_conv_plif_li_forward.6} parent=62 // loop_footer_branch
                %1760 = sbr.rel target = $region65
              $region70: #{all_conv_plif_li_forward.6} parent=62 // loop_exit
                _
              %s1785 = ssub.s32 16, 1
              loop: start=0, step=1, limit=1
              $region71: #{all_conv_plif_li_forward.6} parent=62 // loop_pre_header
                _
              $region72: #{all_conv_plif_li_forward.6} parent=62 // loop_header
                %s1787 = sphi 0, %s1791
                %p1788 = scmp.ge.s32.totalorder %s1787, 1
                %s1792 = sphi %s1758, %s1758
                %s1793 = sphi %s1759, %s1759
              $region73: #{all_conv_plif_li_forward.6} parent=62 // loop_header_branch
                %1790 = sbr.rel (%p1788) target = $region77
              $region74: #{all_conv_plif_li_forward.6} parent=62 // loop_body
                %v1794 = vld [vmem:[%s1792] sm:%s1785]
                %1795 = vst [vmem:[%s1793] sm:%s1785] %v1794
                %v1796 = vld [vmem:[%s1792 + $0x14] sm:%s1785]
                %1797 = vst [vmem:[%s1793 + $0x50] sm:%s1785] %v1796
                %v1798 = vld [vmem:[%s1792 + $0x28] sm:%s1785]
                %1799 = vst [vmem:[%s1793 + $0xa0] sm:%s1785] %v1798
                %v1800 = vld [vmem:[%s1792 + $0x3c] sm:%s1785]
                %1801 = vst [vmem:[%s1793 + $0xf0] sm:%s1785] %v1800
              $region75: #{all_conv_plif_li_forward.6} parent=62 // loop_footer
                %s1791 = sadd.s32 1, %s1787
              $region76: #{all_conv_plif_li_forward.6} parent=62 // loop_footer_branch
                %1786 = sbr.rel target = $region72
              $region77: #{all_conv_plif_li_forward.6} parent=62 // loop_exit
                _
            $region63: #{all_conv_plif_li_forward.6} parent=58 // pred_fallthru
              _
          $region59: #{all_conv_plif_li_forward.6} parent=54 // pred_fallthru
            _
          %1802 = vnop
        $region55: #{all_conv_plif_li_forward.6} parent=46 // pred_fallthru
          _
      $region47: #{all_conv_plif_li_forward.6} parent=5 // pred_fallthru
        _
      %p1803 = scmp.le.s32.totalorder 2, %s8
      // Predicated region
      $region78: #{all_conv_plif_li_forward.6} parent=5 // pred_check
        %p1804 = pneg %p1803
      $region79: #{all_conv_plif_li_forward.6} parent=5 // pred_check_branch
        %1806 = sbr.rel (%p1804) target = $region81
      $region80: #{all_conv_plif_li_forward.6} parent=5 // pred_region
        %s1807 = ssub.s32 %s8, 2
        // Predicated region
        $region82: #{all_conv_plif_li_forward.6} parent=80 // pred_check
          %p1808 = pneg %p84
        $region83: #{all_conv_plif_li_forward.6} parent=80 // pred_check_branch
          %1810 = sbr.rel (%p1808) target = $region85
        $region84: #{all_conv_plif_li_forward.6} parent=80 // pred_region
          %s1811 = sand.u32 %s69, 1
          %s1812 = sand.u32 %s69, 1
          %s1813 = smul.addr %s1812, 80
          %s1814 = scalar_lea.vmem [#allocation3], %s1813
        $region85: #{all_conv_plif_li_forward.6} parent=80 // pred_fallthru
          _
      $region81: #{all_conv_plif_li_forward.6} parent=5 // pred_fallthru
        _
    $region6: #{all_conv_plif_li_forward.6} parent=1 // loop_footer
      %s12 = sadd.s32 1, %s8
    $region7: #{all_conv_plif_li_forward.6} parent=1 // loop_footer_branch
      %7 = sbr.rel target = $region3
    $region8: #{all_conv_plif_li_forward.6} parent=1 // loop_exit
      _

// kernel: all_conv_plif_li_forward.7
$region0: #{all_conv_plif_li_forward.7}
  #allocation0 [shape = 'u32[]', space=smem, size = 0x4, offset = 0x4, fixed_abs, tag = 'smem constant byte address 0x4 - core index']
  #allocation1 [shape = 'u32[72,128]{1,0:T(1,128)}', space=vmem, size = 0x9000, scoped, tag = 'internal scratch']
  %s0 = inlined_call_operand.vmem [shape: bf16[4,36,1280], index: 0, kind: input, shape index: {}]
  %s1 = inlined_call_operand.vmem [shape: bf16[8,36], index: 1, kind: input, shape index: {}]
  %s2 = inlined_call_operand.vmem [shape: bf16[4,8,1280], index: 2, kind: output, shape index: {}]
  %s3 = sld [smem:[#allocation0]]
  $region89: #{all_conv_plif_li_forward.7} parent=0
    _
  %s5 = ssub.s32 1, %s3
  %s6 = scalar_select 0, %s5, %s3
  $region1: #{all_conv_plif_li_forward.7} parent=0
    #allocation2 [shape = 'u8[409600]{0}', space=vmem, size = 0x64000, scoped, tag = 'input window, operand 0']
    #allocation3 [shape = 'u8[81920]{0}', space=vmem, size = 0x14000, scoped, tag = 'output window, operand 0']
    loop: start=0, step=1, limit=4
    $region2: #{all_conv_plif_li_forward.7} parent=1 // loop_pre_header
      _
    $region3: #{all_conv_plif_li_forward.7} parent=1 // loop_header
      %s8 = sphi 0, %s12
      %p9 = scmp.ge.s32.totalorder %s8, 4
      %s18 = sphi 0, %s20
      %s21 = sphi 0, %s18
      %s22 = sphi 0, %s21
      %s38 = sphi 0, %s22
      %s42 = sphi 0, %s42
      %s44 = sphi 0, %s42
      %s45 = sphi 0, %s44
      %s59 = sphi 0, %s45
      %s65 = sphi 0, %s67
      %s68 = sphi 0, %s65
      %s69 = sphi 0, %s68
      %s85 = sphi 0, %s69
    $region4: #{all_conv_plif_li_forward.7} parent=1 // loop_header_branch
      %11 = sbr.rel (%p9) target = $region8
    $region5: #{all_conv_plif_li_forward.7} parent=1 // loop_body
      %s13 = ssub.s32 %s8, 1
      %s14 = ssub.s32 %s8, 2
      %s15 = sadd.s32 %s8, 1
      %s16 = ssub.s32 %s8, %s15
      %p17 = scmp.eq.s32.totalorder %s16, 0
      %s19 = sadd.s32 %s18, 1
      %s20 = scalar_select %p17, %s18, %s19
      %p23 = pneg %p17
      %p24 = scmp.eq.s32.totalorder %s8, 1
      %p25 = por %p23, %p24
      %p26 = scmp.ne.s32.totalorder %s18, %s21
      %p27 = scmp.eq.s32.totalorder %s8, 0
      %p28 = por %p26, %p27
      %p29 = scmp.ne.s32.totalorder %s18, %s21
      %p30 = scmp.eq.s32.totalorder %s13, 1
      %p31 = por %p29, %p30
      %p32 = scmp.ne.s32.totalorder %s21, %s22
      %p33 = scmp.eq.s32.totalorder %s13, 0
      %p34 = por %p32, %p33
      %p35 = scmp.ne.s32.totalorder %s21, %s22
      %p36 = scmp.eq.s32.totalorder %s14, 1
      %p37 = por %p35, %p36
      %p39 = scmp.ne.s32.totalorder %s22, %s38
      %p40 = scmp.eq.s32.totalorder %s14, 0
      %p41 = por %p39, %p40
      %s43 = sadd.s32 %s42, 1
      %p46 = scmp.eq.s32.totalorder %s8, 1
      %p47 = scmp.ne.s32.totalorder %s42, %s44
      %p48 = scmp.eq.s32.totalorder %s8, 0
      %p49 = por %p47, %p48
      %p50 = scmp.ne.s32.totalorder %s42, %s44
      %p51 = scmp.eq.s32.totalorder %s13, 1
      %p52 = por %p50, %p51
      %p53 = scmp.ne.s32.totalorder %s44, %s45
      %p54 = scmp.eq.s32.totalorder %s13, 0
      %p55 = por %p53, %p54
      %p56 = scmp.ne.s32.totalorder %s44, %s45
      %p57 = scmp.eq.s32.totalorder %s14, 1
      %p58 = por %p56, %p57
      %p60 = scmp.ne.s32.totalorder %s45, %s59
      %p61 = scmp.eq.s32.totalorder %s14, 0
      %p62 = por %p60, %p61
      %s63 = ssub.s32 %s8, %s15
      %p64 = scmp.eq.s32.totalorder %s63, 0
      %s66 = sadd.s32 %s65, 1
      %s67 = scalar_select %p64, %s65, %s66
      %p70 = pneg %p64
      %p71 = scmp.eq.s32.totalorder %s8, 1
      %p72 = por %p70, %p71
      %p73 = scmp.ne.s32.totalorder %s65, %s68
      %p74 = scmp.eq.s32.totalorder %s8, 0
      %p75 = por %p73, %p74
      %p76 = scmp.ne.s32.totalorder %s65, %s68
      %p77 = scmp.eq.s32.totalorder %s13, 1
      %p78 = por %p76, %p77
      %p79 = scmp.ne.s32.totalorder %s68, %s69
      %p80 = scmp.eq.s32.totalorder %s13, 0
      %p81 = por %p79, %p80
      %p82 = scmp.ne.s32.totalorder %s68, %s69
      %p83 = scmp.eq.s32.totalorder %s14, 1
      %p84 = por %p82, %p83
      %p86 = scmp.ne.s32.totalorder %s69, %s85
      %p87 = scmp.eq.s32.totalorder %s14, 0
      %p88 = por %p86, %p87
      %p89 = scmp.le.s32.totalorder 1, %s8
      %p90 = scmp.lt.s32.totalorder %s8, 3
      %p91 = pnand %p89, %p90
      %p92 = pneg %p91
      // Predicated region
      $region9: #{all_conv_plif_li_forward.7} parent=5 // pred_check
        _
      $region10: #{all_conv_plif_li_forward.7} parent=5 // pred_check_branch
        %94 = sbr.rel (%p91) target = $region12
      $region11: #{all_conv_plif_li_forward.7} parent=5 // pred_region
        %s95 = ssub.s32 %s8, 1
        // Predicated region
        $region13: #{all_conv_plif_li_forward.7} parent=11 // pred_check
          %p96 = pneg %p55
        $region14: #{all_conv_plif_li_forward.7} parent=11 // pred_check_branch
          %98 = sbr.rel (%p96) target = $region16
        $region15: #{all_conv_plif_li_forward.7} parent=11 // pred_region
          _
        $region16: #{all_conv_plif_li_forward.7} parent=11 // pred_fallthru
          _
      $region12: #{all_conv_plif_li_forward.7} parent=5 // pred_fallthru
        _
      %p99 = scmp.lt.s32.totalorder %s8, 2
      // Predicated region
      $region17: #{all_conv_plif_li_forward.7} parent=5 // pred_check
        %p100 = pneg %p99
      $region18: #{all_conv_plif_li_forward.7} parent=5 // pred_check_branch
        %102 = sbr.rel (%p100) target = $region20
      $region19: #{all_conv_plif_li_forward.7} parent=5 // pred_region
        // Predicated region
        $region21: #{all_conv_plif_li_forward.7} parent=19 // pred_check
          %p103 = pneg %p28
        $region22: #{all_conv_plif_li_forward.7} parent=19 // pred_check_branch
          %105 = sbr.rel (%p103) target = $region24
        $region23: #{all_conv_plif_li_forward.7} parent=19 // pred_region
          %s106 = sand.u32 %s18, 1
          %s107 = sand.u32 %s18, 1
          %s108 = smul.addr %s107, 400
          %s109 = scalar_lea.vmem [#allocation2], %s108
          %s110 = smul.u32 5, %s8
          %s111 = smul.addr %s110, 4
          %s112 = scalar_lea.vmem %s0, %s111
          // Predicated region
          $region25: #{all_conv_plif_li_forward.7} parent=23 // pred_check
            _
          $region26: #{all_conv_plif_li_forward.7} parent=23 // pred_check_branch
            %114 = sbr.rel (0) target = $region28
          $region27: #{all_conv_plif_li_forward.7} parent=23 // pred_region
            // Predicated region
            $region29: #{all_conv_plif_li_forward.7} parent=27 // pred_check
              _
            $region30: #{all_conv_plif_li_forward.7} parent=27 // pred_check_branch
              %116 = sbr.rel (0) target = $region32
            $region31: #{all_conv_plif_li_forward.7} parent=27 // pred_region
              %s117 = scalar_lea.vmem %s112, 16
              %s118 = scalar_lea.vmem %s109, 16 [#allocation2]
              loop: start=0, step=1, limit=1
              $region33: #{all_conv_plif_li_forward.7} parent=31 // loop_pre_header
                _
              $region34: #{all_conv_plif_li_forward.7} parent=31 // loop_header
                %s120 = sphi 0, %s124
                %p121 = scmp.ge.s32.totalorder %s120, 1
                %s125 = sphi %s112, %s112
                %s126 = sphi %s109, %s109
              $region35: #{all_conv_plif_li_forward.7} parent=31 // loop_header_branch
                %123 = sbr.rel (%p121) target = $region39
              $region36: #{all_conv_plif_li_forward.7} parent=31 // loop_body
                %v127 = vld [vmem:[%s125] sm:$0xff]
                %128 = vst [vmem:[%s126] sm:$0xff] %v127
                %v129 = vld [vmem:[%s125 + $0x8] sm:$0xff]
                %130 = vst [vmem:[%s126 + $0x8] sm:$0xff] %v129
                %v131 = vld [vmem:[%s125 + $0x28] sm:$0xff]
                %132 = vst [vmem:[%s126 + $0x14] sm:$0xff] %v131
                %v133 = vld [vmem:[%s125 + $0x30] sm:$0xff]
                %134 = vst [vmem:[%s126 + $0x1c] sm:$0xff] %v133
                %v135 = vld [vmem:[%s125 + $0x50] sm:$0xff]
                %136 = vst [vmem:[%s126 + $0x28] sm:$0xff] %v135
                %v137 = vld [vmem:[%s125 + $0x58] sm:$0xff]
                %138 = vst [vmem:[%s126 + $0x30] sm:$0xff] %v137
                %v139 = vld [vmem:[%s125 + $0x78] sm:$0xff]
                %140 = vst [vmem:[%s126 + $0x3c] sm:$0xff] %v139
                %v141 = vld [vmem:[%s125 + $0x80] sm:$0xff]
                %142 = vst [vmem:[%s126 + $0x44] sm:$0xff] %v141
                %v143 = vld [vmem:[%s125 + $0xa0] sm:$0xff]
                %144 = vst [vmem:[%s126 + $0x50] sm:$0xff] %v143
                %v145 = vld [vmem:[%s125 + $0xa8] sm:$0xff]
                %146 = vst [vmem:[%s126 + $0x58] sm:$0xff] %v145
                %v147 = vld [vmem:[%s125 + $0xc8] sm:$0xff]
                %148 = vst [vmem:[%s126 + $0x64] sm:$0xff] %v147
                %v149 = vld [vmem:[%s125 + $0xd0] sm:$0xff]
                %150 = vst [vmem:[%s126 + $0x6c] sm:$0xff] %v149
                %v151 = vld [vmem:[%s125 + $0xf0] sm:$0xff]
                %152 = vst [vmem:[%s126 + $0x78] sm:$0xff] %v151
                %v153 = vld [vmem:[%s125 + $0xf8] sm:$0xff]
                %154 = vst [vmem:[%s126 + $0x80] sm:$0xff] %v153
                %v155 = vld [vmem:[%s125 + $0x118] sm:$0xff]
                %156 = vst [vmem:[%s126 + $0x8c] sm:$0xff] %v155
                %v157 = vld [vmem:[%s125 + $0x120] sm:$0xff]
                %158 = vst [vmem:[%s126 + $0x94] sm:$0xff] %v157
                %v159 = vld [vmem:[%s125 + $0x140] sm:$0xff]
                %160 = vst [vmem:[%s126 + $0xa0] sm:$0xff] %v159
                %v161 = vld [vmem:[%s125 + $0x148] sm:$0xff]
                %162 = vst [vmem:[%s126 + $0xa8] sm:$0xff] %v161
                %v163 = vld [vmem:[%s125 + $0x168] sm:$0xff]
                %164 = vst [vmem:[%s126 + $0xb4] sm:$0xff] %v163
                %v165 = vld [vmem:[%s125 + $0x170] sm:$0xff]
                %166 = vst [vmem:[%s126 + $0xbc] sm:$0xff] %v165
                %v167 = vld [vmem:[%s125 + $0x190] sm:$0xff]
                %168 = vst [vmem:[%s126 + $0xc8] sm:$0xff] %v167
                %v169 = vld [vmem:[%s125 + $0x198] sm:$0xff]
                %170 = vst [vmem:[%s126 + $0xd0] sm:$0xff] %v169
                %v171 = vld [vmem:[%s125 + $0x1b8] sm:$0xff]
                %172 = vst [vmem:[%s126 + $0xdc] sm:$0xff] %v171
                %v173 = vld [vmem:[%s125 + $0x1c0] sm:$0xff]
                %174 = vst [vmem:[%s126 + $0xe4] sm:$0xff] %v173
                %v175 = vld [vmem:[%s125 + $0x1e0] sm:$0xff]
                %176 = vst [vmem:[%s126 + $0xf0] sm:$0xff] %v175
                %v177 = vld [vmem:[%s125 + $0x1e8] sm:$0xff]
                %178 = vst [vmem:[%s126 + $0xf8] sm:$0xff] %v177
                %v179 = vld [vmem:[%s125 + $0x208] sm:$0xff]
                %180 = vst [vmem:[%s126 + $0x104] sm:$0xff] %v179
                %v181 = vld [vmem:[%s125 + $0x210] sm:$0xff]
                %182 = vst [vmem:[%s126 + $0x10c] sm:$0xff] %v181
                %v183 = vld [vmem:[%s125 + $0x230] sm:$0xff]
                %184 = vst [vmem:[%s126 + $0x118] sm:$0xff] %v183
                %v185 = vld [vmem:[%s125 + $0x238] sm:$0xff]
                %186 = vst [vmem:[%s126 + $0x120] sm:$0xff] %v185
                %v187 = vld [vmem:[%s125 + $0x258] sm:$0xff]
                %188 = vst [vmem:[%s126 + $0x12c] sm:$0xff] %v187
                %v189 = vld [vmem:[%s125 + $0x260] sm:$0xff]
                %190 = vst [vmem:[%s126 + $0x134] sm:$0xff] %v189
                %v191 = vld [vmem:[%s125 + $0x280] sm:$0xff]
                %192 = vst [vmem:[%s126 + $0x140] sm:$0xff] %v191
                %v193 = vld [vmem:[%s125 + $0x288] sm:$0xff]
                %194 = vst [vmem:[%s126 + $0x148] sm:$0xff] %v193
                %v195 = vld [vmem:[%s125 + $0x2a8] sm:$0xff]
                %196 = vst [vmem:[%s126 + $0x154] sm:$0xff] %v195
                %v197 = vld [vmem:[%s125 + $0x2b0] sm:$0xff]
                %198 = vst [vmem:[%s126 + $0x15c] sm:$0xff] %v197
                %v199 = vld [vmem:[%s125 + $0x2d0] sm:$0xff]
                %200 = vst [vmem:[%s126 + $0x168] sm:$0xff] %v199
                %v201 = vld [vmem:[%s125 + $0x2d8] sm:$0xff]
                %202 = vst [vmem:[%s126 + $0x170] sm:$0xff] %v201
                %v203 = vld [vmem:[%s125 + $0x2f8] sm:$0xff]
                %204 = vst [vmem:[%s126 + $0x17c] sm:$0xff] %v203
                %v205 = vld [vmem:[%s125 + $0x300] sm:$0xff]
                %206 = vst [vmem:[%s126 + $0x184] sm:$0xff] %v205
              $region37: #{all_conv_plif_li_forward.7} parent=31 // loop_footer
                %s124 = sadd.s32 1, %s120
              $region38: #{all_conv_plif_li_forward.7} parent=31 // loop_footer_branch
                %119 = sbr.rel target = $region34
              $region39: #{all_conv_plif_li_forward.7} parent=31 // loop_exit
                _
              %s208 = ssub.s32 16, 1
              loop: start=0, step=1, limit=1
              $region40: #{all_conv_plif_li_forward.7} parent=31 // loop_pre_header
                _
              $region41: #{all_conv_plif_li_forward.7} parent=31 // loop_header
                %s210 = sphi 0, %s214
                %p211 = scmp.ge.s32.totalorder %s210, 1
                %s215 = sphi %s117, %s117
                %s216 = sphi %s118, %s118
              $region42: #{all_conv_plif_li_forward.7} parent=31 // loop_header_branch
                %213 = sbr.rel (%p211) target = $region46
              $region43: #{all_conv_plif_li_forward.7} parent=31 // loop_body
                %v217 = vld [vmem:[%s215] sm:%s208]
                %218 = vst [vmem:[%s216] sm:%s208] %v217
                %v219 = vld [vmem:[%s215 + $0x28] sm:%s208]
                %220 = vst [vmem:[%s216 + $0x14] sm:%s208] %v219
                %v221 = vld [vmem:[%s215 + $0x50] sm:%s208]
                %222 = vst [vmem:[%s216 + $0x28] sm:%s208] %v221
                %v223 = vld [vmem:[%s215 + $0x78] sm:%s208]
                %224 = vst [vmem:[%s216 + $0x3c] sm:%s208] %v223
                %v225 = vld [vmem:[%s215 + $0xa0] sm:%s208]
                %226 = vst [vmem:[%s216 + $0x50] sm:%s208] %v225
                %v227 = vld [vmem:[%s215 + $0xc8] sm:%s208]
                %228 = vst [vmem:[%s216 + $0x64] sm:%s208] %v227
                %v229 = vld [vmem:[%s215 + $0xf0] sm:%s208]
                %230 = vst [vmem:[%s216 + $0x78] sm:%s208] %v229
                %v231 = vld [vmem:[%s215 + $0x118] sm:%s208]
                %232 = vst [vmem:[%s216 + $0x8c] sm:%s208] %v231
                %v233 = vld [vmem:[%s215 + $0x140] sm:%s208]
                %234 = vst [vmem:[%s216 + $0xa0] sm:%s208] %v233
                %v235 = vld [vmem:[%s215 + $0x168] sm:%s208]
                %236 = vst [vmem:[%s216 + $0xb4] sm:%s208] %v235
                %v237 = vld [vmem:[%s215 + $0x190] sm:%s208]
                %238 = vst [vmem:[%s216 + $0xc8] sm:%s208] %v237
                %v239 = vld [vmem:[%s215 + $0x1b8] sm:%s208]
                %240 = vst [vmem:[%s216 + $0xdc] sm:%s208] %v239
                %v241 = vld [vmem:[%s215 + $0x1e0] sm:%s208]
                %242 = vst [vmem:[%s216 + $0xf0] sm:%s208] %v241
                %v243 = vld [vmem:[%s215 + $0x208] sm:%s208]
                %244 = vst [vmem:[%s216 + $0x104] sm:%s208] %v243
                %v245 = vld [vmem:[%s215 + $0x230] sm:%s208]
                %246 = vst [vmem:[%s216 + $0x118] sm:%s208] %v245
                %v247 = vld [vmem:[%s215 + $0x258] sm:%s208]
                %248 = vst [vmem:[%s216 + $0x12c] sm:%s208] %v247
                %v249 = vld [vmem:[%s215 + $0x280] sm:%s208]
                %250 = vst [vmem:[%s216 + $0x140] sm:%s208] %v249
                %v251 = vld [vmem:[%s215 + $0x2a8] sm:%s208]
                %252 = vst [vmem:[%s216 + $0x154] sm:%s208] %v251
                %v253 = vld [vmem:[%s215 + $0x2d0] sm:%s208]
                %254 = vst [vmem:[%s216 + $0x168] sm:%s208] %v253
                %v255 = vld [vmem:[%s215 + $0x2f8] sm:%s208]
                %256 = vst [vmem:[%s216 + $0x17c] sm:%s208] %v255
              $region44: #{all_conv_plif_li_forward.7} parent=31 // loop_footer
                %s214 = sadd.s32 1, %s210
              $region45: #{all_conv_plif_li_forward.7} parent=31 // loop_footer_branch
                %209 = sbr.rel target = $region41
              $region46: #{all_conv_plif_li_forward.7} parent=31 // loop_exit
                _
            $region32: #{all_conv_plif_li_forward.7} parent=27 // pred_fallthru
              _
          $region28: #{all_conv_plif_li_forward.7} parent=23 // pred_fallthru
            _
          %257 = vnop
        $region24: #{all_conv_plif_li_forward.7} parent=19 // pred_fallthru
          _
      $region20: #{all_conv_plif_li_forward.7} parent=5 // pred_fallthru
        _
      %p258 = scmp.le.s32.totalorder 1, %s8
      %p259 = scmp.lt.s32.totalorder %s8, 3
      %p260 = pnand %p258, %p259
      %p261 = pneg %p260
      // Predicated region
      $region47: #{all_conv_plif_li_forward.7} parent=5 // pred_check
        _
      $region48: #{all_conv_plif_li_forward.7} parent=5 // pred_check_branch
        %263 = sbr.rel (%p260) target = $region50
      $region49: #{all_conv_plif_li_forward.7} parent=5 // pred_region
        %s264 = ssub.s32 %s8, 1
        %s265 = sand.u32 %s21, 1
        %s266 = sand.u32 %s21, 1
        %s267 = smul.addr %s266, 400
        %s268 = scalar_lea.vmem [#allocation2], %s267
        // Predicated region
        $region51: #{all_conv_plif_li_forward.7} parent=49 // pred_check
          %p269 = pneg %p34
        $region52: #{all_conv_plif_li_forward.7} parent=49 // pred_check_branch
          %271 = sbr.rel (%p269) target = $region54
        $region53: #{all_conv_plif_li_forward.7} parent=49 // pred_region
          _
        $region54: #{all_conv_plif_li_forward.7} parent=49 // pred_fallthru
          _
        %s272 = sand.u32 %s21, 1
        %s273 = sand.u32 %s21, 1
        %s274 = smul.addr %s273, 400
        %s275 = scalar_lea.vmem [#allocation2], %s274
        %p276 = pneg %p34
        %p277 = pneg %p31
        %p278 = pneg %p55
        %p279 = pneg %p52
        %p280 = pneg %p81
        %p281 = pneg %p78
        %s282 = sand.u32 %s68, 1
        %s283 = sand.u32 %s68, 1
        %s284 = smul.addr %s283, 80
        %s285 = scalar_lea.vmem [#allocation3], %s284
        %s286 = smul.u32 5, %s13
        %s287 = smul.u32 5, %s13
        %v289 = vld [vmem:[%s1] sm:$0xf]
        %v290 = vld [vmem:[%s268] sm:$0xff]
        %v291 = vld [vmem:[%s268 + $0x8] sm:$0xff]
        %v292 = vld [vmem:[%s268 + $0x10] sm:$0xf]
        %v293 = vld [vmem:[%s268 + $0x14] sm:$0xff]
        %v294 = vld [vmem:[%s268 + $0x1c] sm:$0xff]
        %v295 = vld [vmem:[%s268 + $0x24] sm:$0xf]
        %v296 = vld [vmem:[%s268 + $0x28] sm:$0xff]
        %v297 = vld [vmem:[%s268 + $0x30] sm:$0xff]
        %v298 = vld [vmem:[%s268 + $0x38] sm:$0xf]
        %v299 = vld [vmem:[%s268 + $0x3c] sm:$0xff]
        %v300 = vld [vmem:[%s268 + $0x44] sm:$0xff]
        %v301 = vld [vmem:[%s268 + $0x4c] sm:$0xf]
        %v302 = vld [vmem:[%s268 + $0x50] sm:$0x33]
        %v303 = vld [vmem:[%s268 + $0x58] sm:$0x33]
        %v304 = vld [vmem:[%s268 + $0x60] sm:$0x3]
        %v320 = vunpack.c.l.b16 %v290
        %v321 = vunpack.c.h.b16 %v290
        %v322 = vunpack.c.l.b16 %v291
        %v323 = vunpack.c.h.b16 %v291
        %v324 = vunpack.c.l.b16 %v292
        %v325 = vunpack.c.l.b16 %v293
        %v326 = vunpack.c.h.b16 %v293
        %v327 = vunpack.c.l.b16 %v294
        %v328 = vunpack.c.h.b16 %v294
        %v329 = vunpack.c.l.b16 %v295
        %v330 = vunpack.c.l.b16 %v296
        %v331 = vunpack.c.h.b16 %v296
        %v332 = vunpack.c.l.b16 %v297
        %v333 = vunpack.c.h.b16 %v297
        %v334 = vunpack.c.l.b16 %v298
        %v335 = vunpack.c.l.b16 %v299
        %v336 = vunpack.c.h.b16 %v299
        %v337 = vunpack.c.l.b16 %v300
        %v338 = vunpack.c.h.b16 %v300
        %v339 = vunpack.c.l.b16 %v301
        %v340 = vunpack.c.l.b16 %v302
        %v341 = vunpack.c.h.b16 %v302
        %v342 = vunpack.c.l.b16 %v303
        %v343 = vunpack.c.h.b16 %v303
        %v344 = vunpack.c.l.b16 %v304
        %v345 = vpack.c.b16 %v325, %v320
        %v346 = vpack.c.b16 %v326, %v321
        %v347 = vpack.c.b16 %v327, %v322
        %v348 = vpack.c.b16 %v328, %v323
        %v349 = vpack.c.b16 %v329, %v324
        %v350 = vpack.c.b16 %v335, %v330
        %v351 = vpack.c.b16 %v336, %v331
        %v352 = vpack.c.b16 %v337, %v332
        %v353 = vpack.c.b16 %v338, %v333
        %v354 = vpack.c.b16 %v339, %v334
        %v355 = vpack.c.b16 %v340, %v340
        %v356 = vpack.c.b16 %v341, %v341
        %v357 = vpack.c.b16 %v342, %v342
        %v358 = vpack.c.b16 %v343, %v343
        %v359 = vpack.c.b16 %v344, %v344
        %vm370 = vcmask 293888
        %v372 = vsel %vm370, %v289, 0
        %vm374 = vcmask 1041408
        %v376 = vsel %vm374, %v355, 0
        %v379 = vsel %vm374, %v356, 0
        %v382 = vsel %vm374, %v357, 0
        %v385 = vsel %vm374, %v358, 0
        %v388 = vsel %vm374, %v359, 0
        %390 = vmatpush.bf16.msra.mxu0 0
        %391 = vmatpush.bf16.msra.mxu0 0
        %392 = vmatpush.bf16.msra.mxu0 0
        %393 = vmatpush.bf16.msra.mxu0 0
        %394 = vmatpush.bf16.msra.mxu0 0
        %395 = vmatpush.bf16.msra.mxu0 %v376
        %396 = vmatpush.bf16.msra.mxu0 %v350
        %397 = vmatpush.bf16.msra.mxu0 %v345
        %398 = vmatmul.bf16.gmra.mxu0 %v372
        %v399 = vpop.f32.mrf.mxu0
        %v400 = vadd.f32 0.0, %v399
        %v401 = vpop.f32.mrf.mxu0
        %402 = vdwg.mxu0
        %403 = vmatpush.bf16.msra.mxu0 0
        %404 = vmatpush.bf16.msra.mxu0 0
        %405 = vmatpush.bf16.msra.mxu0 0
        %406 = vmatpush.bf16.msra.mxu0 0
        %407 = vmatpush.bf16.msra.mxu0 0
        %408 = vmatpush.bf16.msra.mxu0 %v379
        %409 = vmatpush.bf16.msra.mxu0 %v351
        %410 = vmatpush.bf16.msra.mxu0 %v346
        %411 = vmatmul.bf16.gmra.mxu0 %v372
        %v412 = vpop.f32.mrf.mxu0
        %v413 = vadd.f32 0.0, %v412
        %v414 = vpop.f32.mrf.mxu0
        %415 = vdwg.mxu0
        %416 = vmatpush.bf16.msra.mxu0 0
        %417 = vmatpush.bf16.msra.mxu0 0
        %418 = vmatpush.bf16.msra.mxu0 0
        %419 = vmatpush.bf16.msra.mxu0 0
        %420 = vmatpush.bf16.msra.mxu0 0
        %421 = vmatpush.bf16.msra.mxu0 %v382
        %422 = vmatpush.bf16.msra.mxu0 %v352
        %423 = vmatpush.bf16.msra.mxu0 %v347
        %424 = vmatmul.bf16.gmra.mxu0 %v372
        %v425 = vpop.f32.mrf.mxu0
        %v426 = vadd.f32 0.0, %v425
        %v427 = vpop.f32.mrf.mxu0
        %428 = vdwg.mxu0
        %429 = vmatpush.bf16.msra.mxu0 0
        %430 = vmatpush.bf16.msra.mxu0 0
        %431 = vmatpush.bf16.msra.mxu0 0
        %432 = vmatpush.bf16.msra.mxu0 0
        %433 = vmatpush.bf16.msra.mxu0 0
        %434 = vmatpush.bf16.msra.mxu0 %v385
        %435 = vmatpush.bf16.msra.mxu0 %v353
        %436 = vmatpush.bf16.msra.mxu0 %v348
        %437 = vmatmul.bf16.gmra.mxu0 %v372
        %v438 = vpop.f32.mrf.mxu0
        %v439 = vadd.f32 0.0, %v438
        %v440 = vpop.f32.mrf.mxu0
        %441 = vdwg.mxu0
        %442 = vmatpush.bf16.msra.mxu0 0
        %443 = vmatpush.bf16.msra.mxu0 0
        %444 = vmatpush.bf16.msra.mxu0 0
        %445 = vmatpush.bf16.msra.mxu0 0
        %446 = vmatpush.bf16.msra.mxu0 0
        %447 = vmatpush.bf16.msra.mxu0 %v388
        %448 = vmatpush.bf16.msra.mxu0 %v354
        %449 = vmatpush.bf16.msra.mxu0 %v349
        %450 = vmatmul.bf16.gmra.mxu0 %v372
        %v451 = vpop.f32.mrf.mxu0
        %v452 = vadd.f32 0.0, %v451
        %v453 = vpop.f32.mrf.mxu0
        %454 = vdwg.mxu0
        %v455 = vmul.f32 %v400, 0.5
        %v456 = vmul.f32 %v413, 0.5
        %v457 = vmul.f32 %v426, 0.5
        %v458 = vmul.f32 %v439, 0.5
        %v459 = vmul.f32 %v452, 0.5
        %v460 = vadd.f32 %v455, 0.0
        %v461 = vadd.f32 %v456, 0.0
        %v462 = vadd.f32 %v457, 0.0
        %v463 = vadd.f32 %v458, 0.0
        %v464 = vadd.f32 %v459, 0.0
        %vm465 = vcmp.ge.f32.partialorder %v460, 1.0
        %vm466 = vcmp.ge.f32.partialorder %v461, 1.0
        %vm467 = vcmp.ge.f32.partialorder %v462, 1.0
        %vm468 = vcmp.ge.f32.partialorder %v463, 1.0
        %vm469 = vcmp.ge.f32.partialorder %v464, 1.0
        %v470 = vsel %vm465, 1, 0
        %v471 = vsel %vm466, 1, 0
        %v472 = vsel %vm467, 1, 0
        %v473 = vsel %vm468, 1, 0
        %v474 = vsel %vm469, 1, 0
        %v475 = vcvt.s32.f32 %v470
        %v476 = vcvt.s32.f32 %v471
        %v477 = vcvt.s32.f32 %v472
        %v478 = vcvt.s32.f32 %v473
        %v479 = vcvt.s32.f32 %v474
        %v480 = vsub.f32 1.0, %v475
        %v481 = vsub.f32 1.0, %v476
        %v482 = vsub.f32 1.0, %v477
        %v483 = vsub.f32 1.0, %v478
        %v484 = vsub.f32 1.0, %v479
        %v485 = vmul.f32 %v460, %v480
        %v486 = vmul.f32 %v461, %v481
        %v487 = vmul.f32 %v462, %v482
        %v488 = vmul.f32 %v463, %v483
        %v489 = vmul.f32 %v464, %v484
        %v490 = vpack.c.bf16 %v476, %v475
        %v491 = vpack.c.bf16 %v478, %v477
        %v492 = vpack.c.bf16 %v479, %v479
        %493 = vst [vmem:[%s285] sm:$0xff] %v490
        %494 = vst [vmem:[%s285 + $0x8] sm:$0xff] %v491
        %495 = vst [vmem:[%s285 + $0x10] sm:$0xf] %v492
        %s496 = scalar_lea.vmem %s268, 100 [#allocation2]
        %v497 = vld [vmem:[%s496] sm:$0xff]
        %v498 = vld [vmem:[%s496 + $0x8] sm:$0xff]
        %v499 = vld [vmem:[%s496 + $0x10] sm:$0xf]
        %v500 = vld [vmem:[%s496 + $0x14] sm:$0xff]
        %v501 = vld [vmem:[%s496 + $0x1c] sm:$0xff]
        %v502 = vld [vmem:[%s496 + $0x24] sm:$0xf]
        %v503 = vld [vmem:[%s496 + $0x28] sm:$0xff]
        %v504 = vld [vmem:[%s496 + $0x30] sm:$0xff]
        %v505 = vld [vmem:[%s496 + $0x38] sm:$0xf]
        %v506 = vld [vmem:[%s496 + $0x3c] sm:$0xff]
        %v507 = vld [vmem:[%s496 + $0x44] sm:$0xff]
        %v508 = vld [vmem:[%s496 + $0x4c] sm:$0xf]
        %v509 = vld [vmem:[%s496 + $0x50] sm:$0x33]
        %v510 = vld [vmem:[%s496 + $0x58] sm:$0x33]
        %v511 = vld [vmem:[%s496 + $0x60] sm:$0x3]
        %v527 = vunpack.c.l.b16 %v497
        %v528 = vunpack.c.h.b16 %v497
        %v529 = vunpack.c.l.b16 %v498
        %v530 = vunpack.c.h.b16 %v498
        %v531 = vunpack.c.l.b16 %v499
        %v532 = vunpack.c.l.b16 %v500
        %v533 = vunpack.c.h.b16 %v500
        %v534 = vunpack.c.l.b16 %v501
        %v535 = vunpack.c.h.b16 %v501
        %v536 = vunpack.c.l.b16 %v502
        %v537 = vunpack.c.l.b16 %v503
        %v538 = vunpack.c.h.b16 %v503
        %v539 = vunpack.c.l.b16 %v504
        %v540 = vunpack.c.h.b16 %v504
        %v541 = vunpack.c.l.b16 %v505
        %v542 = vunpack.c.l.b16 %v506
        %v543 = vunpack.c.h.b16 %v506
        %v544 = vunpack.c.l.b16 %v507
        %v545 = vunpack.c.h.b16 %v507
        %v546 = vunpack.c.l.b16 %v508
        %v547 = vunpack.c.l.b16 %v509
        %v548 = vunpack.c.h.b16 %v509
        %v549 = vunpack.c.l.b16 %v510
        %v550 = vunpack.c.h.b16 %v510
        %v551 = vunpack.c.l.b16 %v511
        %v552 = vpack.c.b16 %v532, %v527
        %v553 = vpack.c.b16 %v533, %v528
        %v554 = vpack.c.b16 %v534, %v529
        %v555 = vpack.c.b16 %v535, %v530
        %v556 = vpack.c.b16 %v536, %v531
        %v557 = vpack.c.b16 %v542, %v537
        %v558 = vpack.c.b16 %v543, %v538
        %v559 = vpack.c.b16 %v544, %v539
        %v560 = vpack.c.b16 %v545, %v540
        %v561 = vpack.c.b16 %v546, %v541
        %v562 = vpack.c.b16 %v547, %v547
        %v563 = vpack.c.b16 %v548, %v548
        %v564 = vpack.c.b16 %v549, %v549
        %v565 = vpack.c.b16 %v550, %v550
        %v566 = vpack.c.b16 %v551, %v551
        %v578 = vsel %vm374, %v562, 0
        %v581 = vsel %vm374, %v563, 0
        %v584 = vsel %vm374, %v564, 0
        %v587 = vsel %vm374, %v565, 0
        %v590 = vsel %vm374, %v566, 0
        %592 = vmatpush.bf16.msra.mxu0 0
        %593 = vmatpush.bf16.msra.mxu0 0
        %594 = vmatpush.bf16.msra.mxu0 0
        %595 = vmatpush.bf16.msra.mxu0 0
        %596 = vmatpush.bf16.msra.mxu0 0
        %597 = vmatpush.bf16.msra.mxu0 %v578
        %598 = vmatpush.bf16.msra.mxu0 %v557
        %599 = vmatpush.bf16.msra.mxu0 %v552
        %600 = vmatmul.bf16.gmra.mxu0 %v372
        %v601 = vpop.f32.mrf.mxu0
        %v602 = vadd.f32 0.0, %v601
        %v603 = vpop.f32.mrf.mxu0
        %604 = vdwg.mxu0
        %605 = vmatpush.bf16.msra.mxu0 0
        %606 = vmatpush.bf16.msra.mxu0 0
        %607 = vmatpush.bf16.msra.mxu0 0
        %608 = vmatpush.bf16.msra.mxu0 0
        %609 = vmatpush.bf16.msra.mxu0 0
        %610 = vmatpush.bf16.msra.mxu0 %v581
        %611 = vmatpush.bf16.msra.mxu0 %v558
        %612 = vmatpush.bf16.msra.mxu0 %v553
        %613 = vmatmul.bf16.gmra.mxu0 %v372
        %v614 = vpop.f32.mrf.mxu0
        %v615 = vadd.f32 0.0, %v614
        %v616 = vpop.f32.mrf.mxu0
        %617 = vdwg.mxu0
        %618 = vmatpush.bf16.msra.mxu0 0
        %619 = vmatpush.bf16.msra.mxu0 0
        %620 = vmatpush.bf16.msra.mxu0 0
        %621 = vmatpush.bf16.msra.mxu0 0
        %622 = vmatpush.bf16.msra.mxu0 0
        %623 = vmatpush.bf16.msra.mxu0 %v584
        %624 = vmatpush.bf16.msra.mxu0 %v559
        %625 = vmatpush.bf16.msra.mxu0 %v554
        %626 = vmatmul.bf16.gmra.mxu0 %v372
        %v627 = vpop.f32.mrf.mxu0
        %v628 = vadd.f32 0.0, %v627
        %v629 = vpop.f32.mrf.mxu0
        %630 = vdwg.mxu0
        %631 = vmatpush.bf16.msra.mxu0 0
        %632 = vmatpush.bf16.msra.mxu0 0
        %633 = vmatpush.bf16.msra.mxu0 0
        %634 = vmatpush.bf16.msra.mxu0 0
        %635 = vmatpush.bf16.msra.mxu0 0
        %636 = vmatpush.bf16.msra.mxu0 %v587
        %637 = vmatpush.bf16.msra.mxu0 %v560
        %638 = vmatpush.bf16.msra.mxu0 %v555
        %639 = vmatmul.bf16.gmra.mxu0 %v372
        %v640 = vpop.f32.mrf.mxu0
        %v641 = vadd.f32 0.0, %v640
        %v642 = vpop.f32.mrf.mxu0
        %643 = vdwg.mxu0
        %644 = vmatpush.bf16.msra.mxu0 0
        %645 = vmatpush.bf16.msra.mxu0 0
        %646 = vmatpush.bf16.msra.mxu0 0
        %647 = vmatpush.bf16.msra.mxu0 0
        %648 = vmatpush.bf16.msra.mxu0 0
        %649 = vmatpush.bf16.msra.mxu0 %v590
        %650 = vmatpush.bf16.msra.mxu0 %v561
        %651 = vmatpush.bf16.msra.mxu0 %v556
        %652 = vmatmul.bf16.gmra.mxu0 %v372
        %v653 = vpop.f32.mrf.mxu0
        %v654 = vadd.f32 0.0, %v653
        %v655 = vpop.f32.mrf.mxu0
        %656 = vdwg.mxu0
        %v657 = vsub.f32 %v602, %v485
        %v658 = vsub.f32 %v615, %v486
        %v659 = vsub.f32 %v628, %v487
        %v660 = vsub.f32 %v641, %v488
        %v661 = vsub.f32 %v654, %v489
        %v662 = vmul.f32 %v657, 0.5
        %v663 = vmul.f32 %v658, 0.5
        %v664 = vmul.f32 %v659, 0.5
        %v665 = vmul.f32 %v660, 0.5
        %v666 = vmul.f32 %v661, 0.5
        %v667 = vadd.f32 %v485, %v662
        %v668 = vadd.f32 %v486, %v663
        %v669 = vadd.f32 %v487, %v664
        %v670 = vadd.f32 %v488, %v665
        %v671 = vadd.f32 %v489, %v666
        %vm672 = vcmp.ge.f32.partialorder %v667, 1.0
        %vm673 = vcmp.ge.f32.partialorder %v668, 1.0
        %vm674 = vcmp.ge.f32.partialorder %v669, 1.0
        %vm675 = vcmp.ge.f32.partialorder %v670, 1.0
        %vm676 = vcmp.ge.f32.partialorder %v671, 1.0
        %v677 = vsel %vm672, 1, 0
        %v678 = vsel %vm673, 1, 0
        %v679 = vsel %vm674, 1, 0
        %v680 = vsel %vm675, 1, 0
        %v681 = vsel %vm676, 1, 0
        %v682 = vcvt.s32.f32 %v677
        %v683 = vcvt.s32.f32 %v678
        %v684 = vcvt.s32.f32 %v679
        %v685 = vcvt.s32.f32 %v680
        %v686 = vcvt.s32.f32 %v681
        %v687 = vsub.f32 1.0, %v682
        %v688 = vsub.f32 1.0, %v683
        %v689 = vsub.f32 1.0, %v684
        %v690 = vsub.f32 1.0, %v685
        %v691 = vsub.f32 1.0, %v686
        %v692 = vmul.f32 %v667, %v687
        %v693 = vmul.f32 %v668, %v688
        %v694 = vmul.f32 %v669, %v689
        %v695 = vmul.f32 %v670, %v690
        %v696 = vmul.f32 %v671, %v691
        %v697 = vpack.c.bf16 %v683, %v682
        %v698 = vpack.c.bf16 %v685, %v684
        %v699 = vpack.c.bf16 %v686, %v686
        %s700 = scalar_lea.vmem %s285, 20 [#allocation3]
        %701 = vst [vmem:[%s700] sm:$0xff] %v697
        %702 = vst [vmem:[%s700 + $0x8] sm:$0xff] %v698
        %703 = vst [vmem:[%s700 + $0x10] sm:$0xf] %v699
        %s704 = scalar_lea.vmem %s268, 200 [#allocation2]
        %v705 = vld [vmem:[%s704] sm:$0xff]
        %v706 = vld [vmem:[%s704 + $0x8] sm:$0xff]
        %v707 = vld [vmem:[%s704 + $0x10] sm:$0xf]
        %v708 = vld [vmem:[%s704 + $0x14] sm:$0xff]
        %v709 = vld [vmem:[%s704 + $0x1c] sm:$0xff]
        %v710 = vld [vmem:[%s704 + $0x24] sm:$0xf]
        %v711 = vld [vmem:[%s704 + $0x28] sm:$0xff]
        %v712 = vld [vmem:[%s704 + $0x30] sm:$0xff]
        %v713 = vld [vmem:[%s704 + $0x38] sm:$0xf]
        %v714 = vld [vmem:[%s704 + $0x3c] sm:$0xff]
        %v715 = vld [vmem:[%s704 + $0x44] sm:$0xff]
        %v716 = vld [vmem:[%s704 + $0x4c] sm:$0xf]
        %v717 = vld [vmem:[%s704 + $0x50] sm:$0x33]
        %v718 = vld [vmem:[%s704 + $0x58] sm:$0x33]
        %v719 = vld [vmem:[%s704 + $0x60] sm:$0x3]
        %v735 = vunpack.c.l.b16 %v705
        %v736 = vunpack.c.h.b16 %v705
        %v737 = vunpack.c.l.b16 %v706
        %v738 = vunpack.c.h.b16 %v706
        %v739 = vunpack.c.l.b16 %v707
        %v740 = vunpack.c.l.b16 %v708
        %v741 = vunpack.c.h.b16 %v708
        %v742 = vunpack.c.l.b16 %v709
        %v743 = vunpack.c.h.b16 %v709
        %v744 = vunpack.c.l.b16 %v710
        %v745 = vunpack.c.l.b16 %v711
        %v746 = vunpack.c.h.b16 %v711
        %v747 = vunpack.c.l.b16 %v712
        %v748 = vunpack.c.h.b16 %v712
        %v749 = vunpack.c.l.b16 %v713
        %v750 = vunpack.c.l.b16 %v714
        %v751 = vunpack.c.h.b16 %v714
        %v752 = vunpack.c.l.b16 %v715
        %v753 = vunpack.c.h.b16 %v715
        %v754 = vunpack.c.l.b16 %v716
        %v755 = vunpack.c.l.b16 %v717
        %v756 = vunpack.c.h.b16 %v717
        %v757 = vunpack.c.l.b16 %v718
        %v758 = vunpack.c.h.b16 %v718
        %v759 = vunpack.c.l.b16 %v719
        %v760 = vpack.c.b16 %v740, %v735
        %v761 = vpack.c.b16 %v741, %v736
        %v762 = vpack.c.b16 %v742, %v737
        %v763 = vpack.c.b16 %v743, %v738
        %v764 = vpack.c.b16 %v744, %v739
        %v765 = vpack.c.b16 %v750, %v745
        %v766 = vpack.c.b16 %v751, %v746
        %v767 = vpack.c.b16 %v752, %v747
        %v768 = vpack.c.b16 %v753, %v748
        %v769 = vpack.c.b16 %v754, %v749
        %v770 = vpack.c.b16 %v755, %v755
        %v771 = vpack.c.b16 %v756, %v756
        %v772 = vpack.c.b16 %v757, %v757
        %v773 = vpack.c.b16 %v758, %v758
        %v774 = vpack.c.b16 %v759, %v759
        %v786 = vsel %vm374, %v770, 0
        %v789 = vsel %vm374, %v771, 0
        %v792 = vsel %vm374, %v772, 0
        %v795 = vsel %vm374, %v773, 0
        %v798 = vsel %vm374, %v774, 0
        %800 = vmatpush.bf16.msra.mxu0 0
        %801 = vmatpush.bf16.msra.mxu0 0
        %802 = vmatpush.bf16.msra.mxu0 0
        %803 = vmatpush.bf16.msra.mxu0 0
        %804 = vmatpush.bf16.msra.mxu0 0
        %805 = vmatpush.bf16.msra.mxu0 %v786
        %806 = vmatpush.bf16.msra.mxu0 %v765
        %807 = vmatpush.bf16.msra.mxu0 %v760
        %808 = vmatmul.bf16.gmra.mxu0 %v372
        %v809 = vpop.f32.mrf.mxu0
        %v810 = vadd.f32 0.0, %v809
        %v811 = vpop.f32.mrf.mxu0
        %812 = vdwg.mxu0
        %813 = vmatpush.bf16.msra.mxu0 0
        %814 = vmatpush.bf16.msra.mxu0 0
        %815 = vmatpush.bf16.msra.mxu0 0
        %816 = vmatpush.bf16.msra.mxu0 0
        %817 = vmatpush.bf16.msra.mxu0 0
        %818 = vmatpush.bf16.msra.mxu0 %v789
        %819 = vmatpush.bf16.msra.mxu0 %v766
        %820 = vmatpush.bf16.msra.mxu0 %v761
        %821 = vmatmul.bf16.gmra.mxu0 %v372
        %v822 = vpop.f32.mrf.mxu0
        %v823 = vadd.f32 0.0, %v822
        %v824 = vpop.f32.mrf.mxu0
        %825 = vdwg.mxu0
        %826 = vmatpush.bf16.msra.mxu0 0
        %827 = vmatpush.bf16.msra.mxu0 0
        %828 = vmatpush.bf16.msra.mxu0 0
        %829 = vmatpush.bf16.msra.mxu0 0
        %830 = vmatpush.bf16.msra.mxu0 0
        %831 = vmatpush.bf16.msra.mxu0 %v792
        %832 = vmatpush.bf16.msra.mxu0 %v767
        %833 = vmatpush.bf16.msra.mxu0 %v762
        %834 = vmatmul.bf16.gmra.mxu0 %v372
        %v835 = vpop.f32.mrf.mxu0
        %v836 = vadd.f32 0.0, %v835
        %v837 = vpop.f32.mrf.mxu0
        %838 = vdwg.mxu0
        %839 = vmatpush.bf16.msra.mxu0 0
        %840 = vmatpush.bf16.msra.mxu0 0
        %841 = vmatpush.bf16.msra.mxu0 0
        %842 = vmatpush.bf16.msra.mxu0 0
        %843 = vmatpush.bf16.msra.mxu0 0
        %844 = vmatpush.bf16.msra.mxu0 %v795
        %845 = vmatpush.bf16.msra.mxu0 %v768
        %846 = vmatpush.bf16.msra.mxu0 %v763
        %847 = vmatmul.bf16.gmra.mxu0 %v372
        %v848 = vpop.f32.mrf.mxu0
        %v849 = vadd.f32 0.0, %v848
        %v850 = vpop.f32.mrf.mxu0
        %851 = vdwg.mxu0
        %852 = vmatpush.bf16.msra.mxu0 0
        %853 = vmatpush.bf16.msra.mxu0 0
        %854 = vmatpush.bf16.msra.mxu0 0
        %855 = vmatpush.bf16.msra.mxu0 0
        %856 = vmatpush.bf16.msra.mxu0 0
        %857 = vmatpush.bf16.msra.mxu0 %v798
        %858 = vmatpush.bf16.msra.mxu0 %v769
        %859 = vmatpush.bf16.msra.mxu0 %v764
        %860 = vmatmul.bf16.gmra.mxu0 %v372
        %v861 = vpop.f32.mrf.mxu0
        %v862 = vadd.f32 0.0, %v861
        %v863 = vpop.f32.mrf.mxu0
        %864 = vdwg.mxu0
        %v865 = vsub.f32 %v810, %v692
        %v866 = vsub.f32 %v823, %v693
        %v867 = vsub.f32 %v836, %v694
        %v868 = vsub.f32 %v849, %v695
        %v869 = vsub.f32 %v862, %v696
        %v870 = vmul.f32 %v865, 0.5
        %v871 = vmul.f32 %v866, 0.5
        %v872 = vmul.f32 %v867, 0.5
        %v873 = vmul.f32 %v868, 0.5
        %v874 = vmul.f32 %v869, 0.5
        %v875 = vadd.f32 %v692, %v870
        %v876 = vadd.f32 %v693, %v871
        %v877 = vadd.f32 %v694, %v872
        %v878 = vadd.f32 %v695, %v873
        %v879 = vadd.f32 %v696, %v874
        %vm880 = vcmp.ge.f32.partialorder %v875, 1.0
        %vm881 = vcmp.ge.f32.partialorder %v876, 1.0
        %vm882 = vcmp.ge.f32.partialorder %v877, 1.0
        %vm883 = vcmp.ge.f32.partialorder %v878, 1.0
        %vm884 = vcmp.ge.f32.partialorder %v879, 1.0
        %v885 = vsel %vm880, 1, 0
        %v886 = vsel %vm881, 1, 0
        %v887 = vsel %vm882, 1, 0
        %v888 = vsel %vm883, 1, 0
        %v889 = vsel %vm884, 1, 0
        %v890 = vcvt.s32.f32 %v885
        %v891 = vcvt.s32.f32 %v886
        %v892 = vcvt.s32.f32 %v887
        %v893 = vcvt.s32.f32 %v888
        %v894 = vcvt.s32.f32 %v889
        %v895 = vsub.f32 1.0, %v890
        %v896 = vsub.f32 1.0, %v891
        %v897 = vsub.f32 1.0, %v892
        %v898 = vsub.f32 1.0, %v893
        %v899 = vsub.f32 1.0, %v894
        %v900 = vmul.f32 %v875, %v895
        %v901 = vmul.f32 %v876, %v896
        %v902 = vmul.f32 %v877, %v897
        %v903 = vmul.f32 %v878, %v898
        %v904 = vmul.f32 %v879, %v899
        %v905 = vpack.c.bf16 %v891, %v890
        %v906 = vpack.c.bf16 %v893, %v892
        %v907 = vpack.c.bf16 %v894, %v894
        %s908 = scalar_lea.vmem %s285, 40 [#allocation3]
        %909 = vst [vmem:[%s908] sm:$0xff] %v905
        %910 = vst [vmem:[%s908 + $0x8] sm:$0xff] %v906
        %911 = vst [vmem:[%s908 + $0x10] sm:$0xf] %v907
        %s912 = scalar_lea.vmem %s268, 300 [#allocation2]
        %v913 = vld [vmem:[%s912] sm:$0xff]
        %v914 = vld [vmem:[%s912 + $0x8] sm:$0xff]
        %v915 = vld [vmem:[%s912 + $0x10] sm:$0xf]
        %v916 = vld [vmem:[%s912 + $0x14] sm:$0xff]
        %v917 = vld [vmem:[%s912 + $0x1c] sm:$0xff]
        %v918 = vld [vmem:[%s912 + $0x24] sm:$0xf]
        %v919 = vld [vmem:[%s912 + $0x28] sm:$0xff]
        %v920 = vld [vmem:[%s912 + $0x30] sm:$0xff]
        %v921 = vld [vmem:[%s912 + $0x38] sm:$0xf]
        %v922 = vld [vmem:[%s912 + $0x3c] sm:$0xff]
        %v923 = vld [vmem:[%s912 + $0x44] sm:$0xff]
        %v924 = vld [vmem:[%s912 + $0x4c] sm:$0xf]
        %v925 = vld [vmem:[%s912 + $0x50] sm:$0x33]
        %v926 = vld [vmem:[%s912 + $0x58] sm:$0x33]
        %v927 = vld [vmem:[%s912 + $0x60] sm:$0x3]
        %v943 = vunpack.c.l.b16 %v913
        %v944 = vunpack.c.h.b16 %v913
        %v945 = vunpack.c.l.b16 %v914
        %v946 = vunpack.c.h.b16 %v914
        %v947 = vunpack.c.l.b16 %v915
        %v948 = vunpack.c.l.b16 %v916
        %v949 = vunpack.c.h.b16 %v916
        %v950 = vunpack.c.l.b16 %v917
        %v951 = vunpack.c.h.b16 %v917
        %v952 = vunpack.c.l.b16 %v918
        %v953 = vunpack.c.l.b16 %v919
        %v954 = vunpack.c.h.b16 %v919
        %v955 = vunpack.c.l.b16 %v920
        %v956 = vunpack.c.h.b16 %v920
        %v957 = vunpack.c.l.b16 %v921
        %v958 = vunpack.c.l.b16 %v922
        %v959 = vunpack.c.h.b16 %v922
        %v960 = vunpack.c.l.b16 %v923
        %v961 = vunpack.c.h.b16 %v923
        %v962 = vunpack.c.l.b16 %v924
        %v963 = vunpack.c.l.b16 %v925
        %v964 = vunpack.c.h.b16 %v925
        %v965 = vunpack.c.l.b16 %v926
        %v966 = vunpack.c.h.b16 %v926
        %v967 = vunpack.c.l.b16 %v927
        %v968 = vpack.c.b16 %v948, %v943
        %v969 = vpack.c.b16 %v949, %v944
        %v970 = vpack.c.b16 %v950, %v945
        %v971 = vpack.c.b16 %v951, %v946
        %v972 = vpack.c.b16 %v952, %v947
        %v973 = vpack.c.b16 %v958, %v953
        %v974 = vpack.c.b16 %v959, %v954
        %v975 = vpack.c.b16 %v960, %v955
        %v976 = vpack.c.b16 %v961, %v956
        %v977 = vpack.c.b16 %v962, %v957
        %v978 = vpack.c.b16 %v963, %v963
        %v979 = vpack.c.b16 %v964, %v964
        %v980 = vpack.c.b16 %v965, %v965
        %v981 = vpack.c.b16 %v966, %v966
        %v982 = vpack.c.b16 %v967, %v967
        %v994 = vsel %vm374, %v978, 0
        %v997 = vsel %vm374, %v979, 0
        %v1000 = vsel %vm374, %v980, 0
        %v1003 = vsel %vm374, %v981, 0
        %v1006 = vsel %vm374, %v982, 0
        %1008 = vmatpush.bf16.msra.mxu0 0
        %1009 = vmatpush.bf16.msra.mxu0 0
        %1010 = vmatpush.bf16.msra.mxu0 0
        %1011 = vmatpush.bf16.msra.mxu0 0
        %1012 = vmatpush.bf16.msra.mxu0 0
        %1013 = vmatpush.bf16.msra.mxu0 %v994
        %1014 = vmatpush.bf16.msra.mxu0 %v973
        %1015 = vmatpush.bf16.msra.mxu0 %v968
        %1016 = vmatmul.bf16.gmra.mxu0 %v372
        %v1017 = vpop.f32.mrf.mxu0
        %v1018 = vadd.f32 0.0, %v1017
        %v1019 = vpop.f32.mrf.mxu0
        %1020 = vdwg.mxu0
        %1021 = vmatpush.bf16.msra.mxu0 0
        %1022 = vmatpush.bf16.msra.mxu0 0
        %1023 = vmatpush.bf16.msra.mxu0 0
        %1024 = vmatpush.bf16.msra.mxu0 0
        %1025 = vmatpush.bf16.msra.mxu0 0
        %1026 = vmatpush.bf16.msra.mxu0 %v997
        %1027 = vmatpush.bf16.msra.mxu0 %v974
        %1028 = vmatpush.bf16.msra.mxu0 %v969
        %1029 = vmatmul.bf16.gmra.mxu0 %v372
        %v1030 = vpop.f32.mrf.mxu0
        %v1031 = vadd.f32 0.0, %v1030
        %v1032 = vpop.f32.mrf.mxu0
        %1033 = vdwg.mxu0
        %1034 = vmatpush.bf16.msra.mxu0 0
        %1035 = vmatpush.bf16.msra.mxu0 0
        %1036 = vmatpush.bf16.msra.mxu0 0
        %1037 = vmatpush.bf16.msra.mxu0 0
        %1038 = vmatpush.bf16.msra.mxu0 0
        %1039 = vmatpush.bf16.msra.mxu0 %v1000
        %1040 = vmatpush.bf16.msra.mxu0 %v975
        %1041 = vmatpush.bf16.msra.mxu0 %v970
        %1042 = vmatmul.bf16.gmra.mxu0 %v372
        %v1043 = vpop.f32.mrf.mxu0
        %v1044 = vadd.f32 0.0, %v1043
        %v1045 = vpop.f32.mrf.mxu0
        %1046 = vdwg.mxu0
        %1047 = vmatpush.bf16.msra.mxu0 0
        %1048 = vmatpush.bf16.msra.mxu0 0
        %1049 = vmatpush.bf16.msra.mxu0 0
        %1050 = vmatpush.bf16.msra.mxu0 0
        %1051 = vmatpush.bf16.msra.mxu0 0
        %1052 = vmatpush.bf16.msra.mxu0 %v1003
        %1053 = vmatpush.bf16.msra.mxu0 %v976
        %1054 = vmatpush.bf16.msra.mxu0 %v971
        %1055 = vmatmul.bf16.gmra.mxu0 %v372
        %v1056 = vpop.f32.mrf.mxu0
        %v1057 = vadd.f32 0.0, %v1056
        %v1058 = vpop.f32.mrf.mxu0
        %1059 = vdwg.mxu0
        %1060 = vmatpush.bf16.msra.mxu0 0
        %1061 = vmatpush.bf16.msra.mxu0 0
        %1062 = vmatpush.bf16.msra.mxu0 0
        %1063 = vmatpush.bf16.msra.mxu0 0
        %1064 = vmatpush.bf16.msra.mxu0 0
        %1065 = vmatpush.bf16.msra.mxu0 %v1006
        %1066 = vmatpush.bf16.msra.mxu0 %v977
        %1067 = vmatpush.bf16.msra.mxu0 %v972
        %1068 = vmatmul.bf16.gmra.mxu0 %v372
        %v1069 = vpop.f32.mrf.mxu0
        %v1070 = vadd.f32 0.0, %v1069
        %v1071 = vpop.f32.mrf.mxu0
        %1072 = vdwg.mxu0
        %v1073 = vsub.f32 %v1018, %v900
        %v1074 = vsub.f32 %v1031, %v901
        %v1075 = vsub.f32 %v1044, %v902
        %v1076 = vsub.f32 %v1057, %v903
        %v1077 = vsub.f32 %v1070, %v904
        %v1078 = vmul.f32 %v1073, 0.5
        %v1079 = vmul.f32 %v1074, 0.5
        %v1080 = vmul.f32 %v1075, 0.5
        %v1081 = vmul.f32 %v1076, 0.5
        %v1082 = vmul.f32 %v1077, 0.5
        %v1083 = vadd.f32 %v900, %v1078
        %v1084 = vadd.f32 %v901, %v1079
        %v1085 = vadd.f32 %v902, %v1080
        %v1086 = vadd.f32 %v903, %v1081
        %v1087 = vadd.f32 %v904, %v1082
        %vm1088 = vcmp.ge.f32.partialorder %v1083, 1.0
        %vm1089 = vcmp.ge.f32.partialorder %v1084, 1.0
        %vm1090 = vcmp.ge.f32.partialorder %v1085, 1.0
        %vm1091 = vcmp.ge.f32.partialorder %v1086, 1.0
        %vm1092 = vcmp.ge.f32.partialorder %v1087, 1.0
        %v1093 = vsel %vm1088, 1, 0
        %v1094 = vsel %vm1089, 1, 0
        %v1095 = vsel %vm1090, 1, 0
        %v1096 = vsel %vm1091, 1, 0
        %v1097 = vsel %vm1092, 1, 0
        %v1098 = vcvt.s32.f32 %v1093
        %v1099 = vcvt.s32.f32 %v1094
        %v1100 = vcvt.s32.f32 %v1095
        %v1101 = vcvt.s32.f32 %v1096
        %v1102 = vcvt.s32.f32 %v1097
        %v1103 = vpack.c.bf16 %v1099, %v1098
        %v1104 = vpack.c.bf16 %v1101, %v1100
        %v1105 = vpack.c.bf16 %v1102, %v1102
        %s1106 = scalar_lea.vmem %s285, 60 [#allocation3]
        %1107 = vst [vmem:[%s1106] sm:$0xff] %v1103
        %1108 = vst [vmem:[%s1106 + $0x8] sm:$0xff] %v1104
        %1109 = vst [vmem:[%s1106 + $0x10] sm:$0xf] %v1105
        %s1110 = sand.u32 %s68, 1
        %s1111 = sand.u32 %s68, 1
        %s1112 = smul.addr %s1111, 80
        %s1113 = scalar_lea.vmem [#allocation3], %s1112
        // Predicated region
        $region55: #{all_conv_plif_li_forward.7} parent=49 // pred_check
          %p1114 = pneg %p78
        $region56: #{all_conv_plif_li_forward.7} parent=49 // pred_check_branch
          %1116 = sbr.rel (%p1114) target = $region58
        $region57: #{all_conv_plif_li_forward.7} parent=49 // pred_region
          %s1117 = smul.u32 5, %s13
          %s1118 = smul.addr %s1117, 4
          %s1119 = scalar_lea.vmem %s2, %s1118
          // Predicated region
          $region59: #{all_conv_plif_li_forward.7} parent=57 // pred_check
            _
          $region60: #{all_conv_plif_li_forward.7} parent=57 // pred_check_branch
            %1121 = sbr.rel (0) target = $region62
          $region61: #{all_conv_plif_li_forward.7} parent=57 // pred_region
            // Predicated region
            $region63: #{all_conv_plif_li_forward.7} parent=61 // pred_check
              _
            $region64: #{all_conv_plif_li_forward.7} parent=61 // pred_check_branch
              %1123 = sbr.rel (0) target = $region66
            $region65: #{all_conv_plif_li_forward.7} parent=61 // pred_region
              %s1124 = scalar_lea.vmem %s1113, 16 [#allocation3]
              %s1125 = scalar_lea.vmem %s1119, 16
              loop: start=0, step=1, limit=1
              $region67: #{all_conv_plif_li_forward.7} parent=65 // loop_pre_header
                _
              $region68: #{all_conv_plif_li_forward.7} parent=65 // loop_header
                %s1127 = sphi 0, %s1131
                %p1128 = scmp.ge.s32.totalorder %s1127, 1
                %s1132 = sphi %s1113, %s1113
                %s1133 = sphi %s1119, %s1119
              $region69: #{all_conv_plif_li_forward.7} parent=65 // loop_header_branch
                %1130 = sbr.rel (%p1128) target = $region73
              $region70: #{all_conv_plif_li_forward.7} parent=65 // loop_body
                %v1134 = vld [vmem:[%s1132] sm:$0xff]
                %1135 = vst [vmem:[%s1133] sm:$0xff] %v1134
                %v1136 = vld [vmem:[%s1132 + $0x8] sm:$0xff]
                %1137 = vst [vmem:[%s1133 + $0x8] sm:$0xff] %v1136
                %v1138 = vld [vmem:[%s1132 + $0x14] sm:$0xff]
                %1139 = vst [vmem:[%s1133 + $0x28] sm:$0xff] %v1138
                %v1140 = vld [vmem:[%s1132 + $0x1c] sm:$0xff]
                %1141 = vst [vmem:[%s1133 + $0x30] sm:$0xff] %v1140
                %v1142 = vld [vmem:[%s1132 + $0x28] sm:$0xff]
                %1143 = vst [vmem:[%s1133 + $0x50] sm:$0xff] %v1142
                %v1144 = vld [vmem:[%s1132 + $0x30] sm:$0xff]
                %1145 = vst [vmem:[%s1133 + $0x58] sm:$0xff] %v1144
                %v1146 = vld [vmem:[%s1132 + $0x3c] sm:$0xff]
                %1147 = vst [vmem:[%s1133 + $0x78] sm:$0xff] %v1146
                %v1148 = vld [vmem:[%s1132 + $0x44] sm:$0xff]
                %1149 = vst [vmem:[%s1133 + $0x80] sm:$0xff] %v1148
              $region71: #{all_conv_plif_li_forward.7} parent=65 // loop_footer
                %s1131 = sadd.s32 1, %s1127
              $region72: #{all_conv_plif_li_forward.7} parent=65 // loop_footer_branch
                %1126 = sbr.rel target = $region68
              $region73: #{all_conv_plif_li_forward.7} parent=65 // loop_exit
                _
              %s1151 = ssub.s32 16, 1
              loop: start=0, step=1, limit=1
              $region74: #{all_conv_plif_li_forward.7} parent=65 // loop_pre_header
                _
              $region75: #{all_conv_plif_li_forward.7} parent=65 // loop_header
                %s1153 = sphi 0, %s1157
                %p1154 = scmp.ge.s32.totalorder %s1153, 1
                %s1158 = sphi %s1124, %s1124
                %s1159 = sphi %s1125, %s1125
              $region76: #{all_conv_plif_li_forward.7} parent=65 // loop_header_branch
                %1156 = sbr.rel (%p1154) target = $region80
              $region77: #{all_conv_plif_li_forward.7} parent=65 // loop_body
                %v1160 = vld [vmem:[%s1158] sm:%s1151]
                %1161 = vst [vmem:[%s1159] sm:%s1151] %v1160
                %v1162 = vld [vmem:[%s1158 + $0x14] sm:%s1151]
                %1163 = vst [vmem:[%s1159 + $0x28] sm:%s1151] %v1162
                %v1164 = vld [vmem:[%s1158 + $0x28] sm:%s1151]
                %1165 = vst [vmem:[%s1159 + $0x50] sm:%s1151] %v1164
                %v1166 = vld [vmem:[%s1158 + $0x3c] sm:%s1151]
                %1167 = vst [vmem:[%s1159 + $0x78] sm:%s1151] %v1166
              $region78: #{all_conv_plif_li_forward.7} parent=65 // loop_footer
                %s1157 = sadd.s32 1, %s1153
              $region79: #{all_conv_plif_li_forward.7} parent=65 // loop_footer_branch
                %1152 = sbr.rel target = $region75
              $region80: #{all_conv_plif_li_forward.7} parent=65 // loop_exit
                _
            $region66: #{all_conv_plif_li_forward.7} parent=61 // pred_fallthru
              _
          $region62: #{all_conv_plif_li_forward.7} parent=57 // pred_fallthru
            _
          %1168 = vnop
        $region58: #{all_conv_plif_li_forward.7} parent=49 // pred_fallthru
          _
      $region50: #{all_conv_plif_li_forward.7} parent=5 // pred_fallthru
        _
      %p1169 = scmp.le.s32.totalorder 2, %s8
      // Predicated region
      $region81: #{all_conv_plif_li_forward.7} parent=5 // pred_check
        %p1170 = pneg %p1169
      $region82: #{all_conv_plif_li_forward.7} parent=5 // pred_check_branch
        %1172 = sbr.rel (%p1170) target = $region84
      $region83: #{all_conv_plif_li_forward.7} parent=5 // pred_region
        %s1173 = ssub.s32 %s8, 2
        // Predicated region
        $region85: #{all_conv_plif_li_forward.7} parent=83 // pred_check
          %p1174 = pneg %p84
        $region86: #{all_conv_plif_li_forward.7} parent=83 // pred_check_branch
          %1176 = sbr.rel (%p1174) target = $region88
        $region87: #{all_conv_plif_li_forward.7} parent=83 // pred_region
          %s1177 = sand.u32 %s69, 1
          %s1178 = sand.u32 %s69, 1
          %s1179 = smul.addr %s1178, 80
          %s1180 = scalar_lea.vmem [#allocation3], %s1179
        $region88: #{all_conv_plif_li_forward.7} parent=83 // pred_fallthru
          _
      $region84: #{all_conv_plif_li_forward.7} parent=5 // pred_fallthru
        _
    $region6: #{all_conv_plif_li_forward.7} parent=1 // loop_footer
      %s12 = sadd.s32 1, %s8
    $region7: #{all_conv_plif_li_forward.7} parent=1 // loop_footer_branch
      %7 = sbr.rel target = $region3
    $region8: #{all_conv_plif_li_forward.7} parent=1 // loop_exit
      _

// kernel: all_conv_plif_li_forward.8
$region0: #{all_conv_plif_li_forward.8}
  #allocation0 [shape = 'u32[]', space=smem, size = 0x4, offset = 0x4, fixed_abs, tag = 'smem constant byte address 0x4 - core index']
  #allocation1 [shape = 'u32[72,128]{1,0:T(1,128)}', space=vmem, size = 0x9000, scoped, tag = 'internal scratch']
  %s0 = inlined_call_operand.vmem [shape: bf16[4,72,384], index: 0, kind: input, shape index: {}]
  %s1 = inlined_call_operand.vmem [shape: bf16[16,72], index: 1, kind: input, shape index: {}]
  %s2 = inlined_call_operand.vmem [shape: bf16[4,16,384], index: 2, kind: output, shape index: {}]
  %s3 = sld [smem:[#allocation0]]
  $region119: #{all_conv_plif_li_forward.8} parent=0
    _
  %s5 = ssub.s32 1, %s3
  %s6 = scalar_select 0, %s5, %s3
  $region1: #{all_conv_plif_li_forward.8} parent=0
    #allocation2 [shape = 'u8[147456]{0}', space=vmem, size = 0x24000, scoped, tag = 'input window, operand 0']
    #allocation3 [shape = 'u8[32768]{0}', space=vmem, size = 0x8000, scoped, tag = 'output window, operand 0']
    loop: start=0, step=1, limit=5
    $region2: #{all_conv_plif_li_forward.8} parent=1 // loop_pre_header
      _
    $region3: #{all_conv_plif_li_forward.8} parent=1 // loop_header
      %s8 = sphi 0, %s12
      %p9 = scmp.ge.s32.totalorder %s8, 5
      %s18 = sphi 0, %s20
      %s21 = sphi 0, %s18
      %s22 = sphi 0, %s21
      %s38 = sphi 0, %s22
      %s42 = sphi 0, %s42
      %s44 = sphi 0, %s42
      %s45 = sphi 0, %s44
      %s59 = sphi 0, %s45
      %s65 = sphi 0, %s67
      %s68 = sphi 0, %s65
      %s69 = sphi 0, %s68
      %s85 = sphi 0, %s69
    $region4: #{all_conv_plif_li_forward.8} parent=1 // loop_header_branch
      %11 = sbr.rel (%p9) target = $region8
    $region5: #{all_conv_plif_li_forward.8} parent=1 // loop_body
      %s13 = ssub.s32 %s8, 1
      %s14 = ssub.s32 %s8, 2
      %s15 = sadd.s32 %s8, 1
      %s16 = ssub.s32 %s8, %s15
      %p17 = scmp.eq.s32.totalorder %s16, 0
      %s19 = sadd.s32 %s18, 1
      %s20 = scalar_select %p17, %s18, %s19
      %p23 = pneg %p17
      %p24 = scmp.eq.s32.totalorder %s8, 2
      %p25 = por %p23, %p24
      %p26 = scmp.ne.s32.totalorder %s18, %s21
      %p27 = scmp.eq.s32.totalorder %s8, 0
      %p28 = por %p26, %p27
      %p29 = scmp.ne.s32.totalorder %s18, %s21
      %p30 = scmp.eq.s32.totalorder %s13, 2
      %p31 = por %p29, %p30
      %p32 = scmp.ne.s32.totalorder %s21, %s22
      %p33 = scmp.eq.s32.totalorder %s13, 0
      %p34 = por %p32, %p33
      %p35 = scmp.ne.s32.totalorder %s21, %s22
      %p36 = scmp.eq.s32.totalorder %s14, 2
      %p37 = por %p35, %p36
      %p39 = scmp.ne.s32.totalorder %s22, %s38
      %p40 = scmp.eq.s32.totalorder %s14, 0
      %p41 = por %p39, %p40
      %s43 = sadd.s32 %s42, 1
      %p46 = scmp.eq.s32.totalorder %s8, 2
      %p47 = scmp.ne.s32.totalorder %s42, %s44
      %p48 = scmp.eq.s32.totalorder %s8, 0
      %p49 = por %p47, %p48
      %p50 = scmp.ne.s32.totalorder %s42, %s44
      %p51 = scmp.eq.s32.totalorder %s13, 2
      %p52 = por %p50, %p51
      %p53 = scmp.ne.s32.totalorder %s44, %s45
      %p54 = scmp.eq.s32.totalorder %s13, 0
      %p55 = por %p53, %p54
      %p56 = scmp.ne.s32.totalorder %s44, %s45
      %p57 = scmp.eq.s32.totalorder %s14, 2
      %p58 = por %p56, %p57
      %p60 = scmp.ne.s32.totalorder %s45, %s59
      %p61 = scmp.eq.s32.totalorder %s14, 0
      %p62 = por %p60, %p61
      %s63 = ssub.s32 %s8, %s15
      %p64 = scmp.eq.s32.totalorder %s63, 0
      %s66 = sadd.s32 %s65, 1
      %s67 = scalar_select %p64, %s65, %s66
      %p70 = pneg %p64
      %p71 = scmp.eq.s32.totalorder %s8, 2
      %p72 = por %p70, %p71
      %p73 = scmp.ne.s32.totalorder %s65, %s68
      %p74 = scmp.eq.s32.totalorder %s8, 0
      %p75 = por %p73, %p74
      %p76 = scmp.ne.s32.totalorder %s65, %s68
      %p77 = scmp.eq.s32.totalorder %s13, 2
      %p78 = por %p76, %p77
      %p79 = scmp.ne.s32.totalorder %s68, %s69
      %p80 = scmp.eq.s32.totalorder %s13, 0
      %p81 = por %p79, %p80
      %p82 = scmp.ne.s32.totalorder %s68, %s69
      %p83 = scmp.eq.s32.totalorder %s14, 2
      %p84 = por %p82, %p83
      %p86 = scmp.ne.s32.totalorder %s69, %s85
      %p87 = scmp.eq.s32.totalorder %s14, 0
      %p88 = por %p86, %p87
      %p89 = scmp.le.s32.totalorder 1, %s8
      %p90 = scmp.lt.s32.totalorder %s8, 4
      %p91 = pnand %p89, %p90
      %p92 = pneg %p91
      // Predicated region
      $region9: #{all_conv_plif_li_forward.8} parent=5 // pred_check
        _
      $region10: #{all_conv_plif_li_forward.8} parent=5 // pred_check_branch
        %94 = sbr.rel (%p91) target = $region12
      $region11: #{all_conv_plif_li_forward.8} parent=5 // pred_region
        %s95 = ssub.s32 %s8, 1
        // Predicated region
        $region13: #{all_conv_plif_li_forward.8} parent=11 // pred_check
          %p96 = pneg %p55
        $region14: #{all_conv_plif_li_forward.8} parent=11 // pred_check_branch
          %98 = sbr.rel (%p96) target = $region16
        $region15: #{all_conv_plif_li_forward.8} parent=11 // pred_region
          _
        $region16: #{all_conv_plif_li_forward.8} parent=11 // pred_fallthru
          _
      $region12: #{all_conv_plif_li_forward.8} parent=5 // pred_fallthru
        _
      %p99 = scmp.lt.s32.totalorder %s8, 3
      // Predicated region
      $region17: #{all_conv_plif_li_forward.8} parent=5 // pred_check
        %p100 = pneg %p99
      $region18: #{all_conv_plif_li_forward.8} parent=5 // pred_check_branch
        %102 = sbr.rel (%p100) target = $region20
      $region19: #{all_conv_plif_li_forward.8} parent=5 // pred_region
        // Predicated region
        $region21: #{all_conv_plif_li_forward.8} parent=19 // pred_check
          %p103 = pneg %p28
        $region22: #{all_conv_plif_li_forward.8} parent=19 // pred_check_branch
          %105 = sbr.rel (%p103) target = $region24
        $region23: #{all_conv_plif_li_forward.8} parent=19 // pred_region
          %s106 = sand.u32 %s18, 1
          %s107 = sand.u32 %s18, 1
          %s108 = smul.addr %s107, 144
          %s109 = scalar_lea.vmem [#allocation2], %s108
          %s110 = smul.addr %s8, 4
          %s111 = scalar_lea.vmem %s0, %s110
          // Predicated region
          $region25: #{all_conv_plif_li_forward.8} parent=23 // pred_check
            _
          $region26: #{all_conv_plif_li_forward.8} parent=23 // pred_check_branch
            %113 = sbr.rel (0) target = $region28
          $region27: #{all_conv_plif_li_forward.8} parent=23 // pred_region
            // Predicated region
            $region29: #{all_conv_plif_li_forward.8} parent=27 // pred_check
              _
            $region30: #{all_conv_plif_li_forward.8} parent=27 // pred_check_branch
              %115 = sbr.rel target = $region32
            $region31: #{all_conv_plif_li_forward.8} parent=27 // pred_region
              // Predicated region
              $region44: #{all_conv_plif_li_forward.8} parent=31 // pred_check
                _
              $region45: #{all_conv_plif_li_forward.8} parent=31 // pred_check_branch
                %201 = sbr.rel (0) target = $region47
              $region46: #{all_conv_plif_li_forward.8} parent=31 // pred_region
                loop: start=0, step=1, limit=1
                $region48: #{all_conv_plif_li_forward.8} parent=46 // loop_pre_header
                  _
                $region49: #{all_conv_plif_li_forward.8} parent=46 // loop_header
                  %s203 = sphi 0, %s207
                  %p204 = scmp.ge.s32.totalorder %s203, 1
                  %s208 = sphi %s111, %s111
                  %s209 = sphi %s109, %s109
                $region50: #{all_conv_plif_li_forward.8} parent=46 // loop_header_branch
                  %206 = sbr.rel (%p204) target = $region54
                $region51: #{all_conv_plif_li_forward.8} parent=46 // loop_body
                  _
                $region52: #{all_conv_plif_li_forward.8} parent=46 // loop_footer
                  %s207 = sadd.s32 1, %s203
                $region53: #{all_conv_plif_li_forward.8} parent=46 // loop_footer_branch
                  %202 = sbr.rel target = $region49
                $region54: #{all_conv_plif_li_forward.8} parent=46 // loop_exit
                  _
                %s211 = ssub.s32 16, 1
                loop: start=0, step=1, limit=1
                $region55: #{all_conv_plif_li_forward.8} parent=46 // loop_pre_header
                  _
                $region56: #{all_conv_plif_li_forward.8} parent=46 // loop_header
                  %s213 = sphi 0, %s217
                  %p214 = scmp.ge.s32.totalorder %s213, 1
                  %s218 = sphi %s111, %s111
                  %s219 = sphi %s109, %s109
                $region57: #{all_conv_plif_li_forward.8} parent=46 // loop_header_branch
                  %216 = sbr.rel (%p214) target = $region61
                $region58: #{all_conv_plif_li_forward.8} parent=46 // loop_body
                  %v220 = vld [vmem:[%s218] sm:%s211]
                  %221 = vst [vmem:[%s219] sm:%s211] %v220
                  %v222 = vld [vmem:[%s218 + $0xc] sm:%s211]
                  %223 = vst [vmem:[%s219 + $0x4] sm:%s211] %v222
                  %v224 = vld [vmem:[%s218 + $0x18] sm:%s211]
                  %225 = vst [vmem:[%s219 + $0x8] sm:%s211] %v224
                  %v226 = vld [vmem:[%s218 + $0x24] sm:%s211]
                  %227 = vst [vmem:[%s219 + $0xc] sm:%s211] %v226
                  %v228 = vld [vmem:[%s218 + $0x30] sm:%s211]
                  %229 = vst [vmem:[%s219 + $0x10] sm:%s211] %v228
                  %v230 = vld [vmem:[%s218 + $0x3c] sm:%s211]
                  %231 = vst [vmem:[%s219 + $0x14] sm:%s211] %v230
                  %v232 = vld [vmem:[%s218 + $0x48] sm:%s211]
                  %233 = vst [vmem:[%s219 + $0x18] sm:%s211] %v232
                  %v234 = vld [vmem:[%s218 + $0x54] sm:%s211]
                  %235 = vst [vmem:[%s219 + $0x1c] sm:%s211] %v234
                  %v236 = vld [vmem:[%s218 + $0x60] sm:%s211]
                  %237 = vst [vmem:[%s219 + $0x20] sm:%s211] %v236
                  %v238 = vld [vmem:[%s218 + $0x6c] sm:%s211]
                  %239 = vst [vmem:[%s219 + $0x24] sm:%s211] %v238
                  %v240 = vld [vmem:[%s218 + $0x78] sm:%s211]
                  %241 = vst [vmem:[%s219 + $0x28] sm:%s211] %v240
                  %v242 = vld [vmem:[%s218 + $0x84] sm:%s211]
                  %243 = vst [vmem:[%s219 + $0x2c] sm:%s211] %v242
                  %v244 = vld [vmem:[%s218 + $0x90] sm:%s211]
                  %245 = vst [vmem:[%s219 + $0x30] sm:%s211] %v244
                  %v246 = vld [vmem:[%s218 + $0x9c] sm:%s211]
                  %247 = vst [vmem:[%s219 + $0x34] sm:%s211] %v246
                  %v248 = vld [vmem:[%s218 + $0xa8] sm:%s211]
                  %249 = vst [vmem:[%s219 + $0x38] sm:%s211] %v248
                  %v250 = vld [vmem:[%s218 + $0xb4] sm:%s211]
                  %251 = vst [vmem:[%s219 + $0x3c] sm:%s211] %v250
                  %v252 = vld [vmem:[%s218 + $0xc0] sm:%s211]
                  %253 = vst [vmem:[%s219 + $0x40] sm:%s211] %v252
                  %v254 = vld [vmem:[%s218 + $0xcc] sm:%s211]
                  %255 = vst [vmem:[%s219 + $0x44] sm:%s211] %v254
                  %v256 = vld [vmem:[%s218 + $0xd8] sm:%s211]
                  %257 = vst [vmem:[%s219 + $0x48] sm:%s211] %v256
                  %v258 = vld [vmem:[%s218 + $0xe4] sm:%s211]
                  %259 = vst [vmem:[%s219 + $0x4c] sm:%s211] %v258
                  %v260 = vld [vmem:[%s218 + $0xf0] sm:%s211]
                  %261 = vst [vmem:[%s219 + $0x50] sm:%s211] %v260
                  %v262 = vld [vmem:[%s218 + $0xfc] sm:%s211]
                  %263 = vst [vmem:[%s219 + $0x54] sm:%s211] %v262
                  %v264 = vld [vmem:[%s218 + $0x108] sm:%s211]
                  %265 = vst [vmem:[%s219 + $0x58] sm:%s211] %v264
                  %v266 = vld [vmem:[%s218 + $0x114] sm:%s211]
                  %267 = vst [vmem:[%s219 + $0x5c] sm:%s211] %v266
                  %v268 = vld [vmem:[%s218 + $0x120] sm:%s211]
                  %269 = vst [vmem:[%s219 + $0x60] sm:%s211] %v268
                  %v270 = vld [vmem:[%s218 + $0x12c] sm:%s211]
                  %271 = vst [vmem:[%s219 + $0x64] sm:%s211] %v270
                  %v272 = vld [vmem:[%s218 + $0x138] sm:%s211]
                  %273 = vst [vmem:[%s219 + $0x68] sm:%s211] %v272
                  %v274 = vld [vmem:[%s218 + $0x144] sm:%s211]
                  %275 = vst [vmem:[%s219 + $0x6c] sm:%s211] %v274
                  %v276 = vld [vmem:[%s218 + $0x150] sm:%s211]
                  %277 = vst [vmem:[%s219 + $0x70] sm:%s211] %v276
                  %v278 = vld [vmem:[%s218 + $0x15c] sm:%s211]
                  %279 = vst [vmem:[%s219 + $0x74] sm:%s211] %v278
                  %v280 = vld [vmem:[%s218 + $0x168] sm:%s211]
                  %281 = vst [vmem:[%s219 + $0x78] sm:%s211] %v280
                  %v282 = vld [vmem:[%s218 + $0x174] sm:%s211]
                  %283 = vst [vmem:[%s219 + $0x7c] sm:%s211] %v282
                  %v284 = vld [vmem:[%s218 + $0x180] sm:%s211]
                  %285 = vst [vmem:[%s219 + $0x80] sm:%s211] %v284
                  %v286 = vld [vmem:[%s218 + $0x18c] sm:%s211]
                  %287 = vst [vmem:[%s219 + $0x84] sm:%s211] %v286
                  %v288 = vld [vmem:[%s218 + $0x198] sm:%s211]
                  %289 = vst [vmem:[%s219 + $0x88] sm:%s211] %v288
                  %v290 = vld [vmem:[%s218 + $0x1a4] sm:%s211]
                  %291 = vst [vmem:[%s219 + $0x8c] sm:%s211] %v290
                $region59: #{all_conv_plif_li_forward.8} parent=46 // loop_footer
                  %s217 = sadd.s32 1, %s213
                $region60: #{all_conv_plif_li_forward.8} parent=46 // loop_footer_branch
                  %212 = sbr.rel target = $region56
                $region61: #{all_conv_plif_li_forward.8} parent=46 // loop_exit
                  _
              $region47: #{all_conv_plif_li_forward.8} parent=31 // pred_fallthru
                _
            $region32: #{all_conv_plif_li_forward.8} parent=27 // pred_fallthru
              _
            // Predicated region
            $region33: #{all_conv_plif_li_forward.8} parent=27 // pred_check
              _
            $region34: #{all_conv_plif_li_forward.8} parent=27 // pred_check_branch
              %117 = sbr.rel (0) target = $region36
            $region35: #{all_conv_plif_li_forward.8} parent=27 // pred_region
              %s119 = ssub.s32 16, 1
              loop: start=0, step=1, limit=1
              $region37: #{all_conv_plif_li_forward.8} parent=35 // loop_pre_header
                _
              $region38: #{all_conv_plif_li_forward.8} parent=35 // loop_header
                %s121 = sphi 0, %s125
                %p122 = scmp.ge.s32.totalorder %s121, 1
                %s126 = sphi %s111, %s111
                %s127 = sphi %s109, %s109
              $region39: #{all_conv_plif_li_forward.8} parent=35 // loop_header_branch
                %124 = sbr.rel (%p122) target = $region43
              $region40: #{all_conv_plif_li_forward.8} parent=35 // loop_body
                %v128 = vld [vmem:[%s126] sm:%s119]
                %129 = vst [vmem:[%s127] sm:%s119] %v128
                %v130 = vld [vmem:[%s126 + $0xc] sm:%s119]
                %131 = vst [vmem:[%s127 + $0x4] sm:%s119] %v130
                %v132 = vld [vmem:[%s126 + $0x18] sm:%s119]
                %133 = vst [vmem:[%s127 + $0x8] sm:%s119] %v132
                %v134 = vld [vmem:[%s126 + $0x24] sm:%s119]
                %135 = vst [vmem:[%s127 + $0xc] sm:%s119] %v134
                %v136 = vld [vmem:[%s126 + $0x30] sm:%s119]
                %137 = vst [vmem:[%s127 + $0x10] sm:%s119] %v136
                %v138 = vld [vmem:[%s126 + $0x3c] sm:%s119]
                %139 = vst [vmem:[%s127 + $0x14] sm:%s119] %v138
                %v140 = vld [vmem:[%s126 + $0x48] sm:%s119]
                %141 = vst [vmem:[%s127 + $0x18] sm:%s119] %v140
                %v142 = vld [vmem:[%s126 + $0x54] sm:%s119]
                %143 = vst [vmem:[%s127 + $0x1c] sm:%s119] %v142
                %v144 = vld [vmem:[%s126 + $0x60] sm:%s119]
                %145 = vst [vmem:[%s127 + $0x20] sm:%s119] %v144
                %v146 = vld [vmem:[%s126 + $0x6c] sm:%s119]
                %147 = vst [vmem:[%s127 + $0x24] sm:%s119] %v146
                %v148 = vld [vmem:[%s126 + $0x78] sm:%s119]
                %149 = vst [vmem:[%s127 + $0x28] sm:%s119] %v148
                %v150 = vld [vmem:[%s126 + $0x84] sm:%s119]
                %151 = vst [vmem:[%s127 + $0x2c] sm:%s119] %v150
                %v152 = vld [vmem:[%s126 + $0x90] sm:%s119]
                %153 = vst [vmem:[%s127 + $0x30] sm:%s119] %v152
                %v154 = vld [vmem:[%s126 + $0x9c] sm:%s119]
                %155 = vst [vmem:[%s127 + $0x34] sm:%s119] %v154
                %v156 = vld [vmem:[%s126 + $0xa8] sm:%s119]
                %157 = vst [vmem:[%s127 + $0x38] sm:%s119] %v156
                %v158 = vld [vmem:[%s126 + $0xb4] sm:%s119]
                %159 = vst [vmem:[%s127 + $0x3c] sm:%s119] %v158
                %v160 = vld [vmem:[%s126 + $0xc0] sm:%s119]
                %161 = vst [vmem:[%s127 + $0x40] sm:%s119] %v160
                %v162 = vld [vmem:[%s126 + $0xcc] sm:%s119]
                %163 = vst [vmem:[%s127 + $0x44] sm:%s119] %v162
                %v164 = vld [vmem:[%s126 + $0xd8] sm:%s119]
                %165 = vst [vmem:[%s127 + $0x48] sm:%s119] %v164
                %v166 = vld [vmem:[%s126 + $0xe4] sm:%s119]
                %167 = vst [vmem:[%s127 + $0x4c] sm:%s119] %v166
                %v168 = vld [vmem:[%s126 + $0xf0] sm:%s119]
                %169 = vst [vmem:[%s127 + $0x50] sm:%s119] %v168
                %v170 = vld [vmem:[%s126 + $0xfc] sm:%s119]
                %171 = vst [vmem:[%s127 + $0x54] sm:%s119] %v170
                %v172 = vld [vmem:[%s126 + $0x108] sm:%s119]
                %173 = vst [vmem:[%s127 + $0x58] sm:%s119] %v172
                %v174 = vld [vmem:[%s126 + $0x114] sm:%s119]
                %175 = vst [vmem:[%s127 + $0x5c] sm:%s119] %v174
                %v176 = vld [vmem:[%s126 + $0x120] sm:%s119]
                %177 = vst [vmem:[%s127 + $0x60] sm:%s119] %v176
                %v178 = vld [vmem:[%s126 + $0x12c] sm:%s119]
                %179 = vst [vmem:[%s127 + $0x64] sm:%s119] %v178
                %v180 = vld [vmem:[%s126 + $0x138] sm:%s119]
                %181 = vst [vmem:[%s127 + $0x68] sm:%s119] %v180
                %v182 = vld [vmem:[%s126 + $0x144] sm:%s119]
                %183 = vst [vmem:[%s127 + $0x6c] sm:%s119] %v182
                %v184 = vld [vmem:[%s126 + $0x150] sm:%s119]
                %185 = vst [vmem:[%s127 + $0x70] sm:%s119] %v184
                %v186 = vld [vmem:[%s126 + $0x15c] sm:%s119]
                %187 = vst [vmem:[%s127 + $0x74] sm:%s119] %v186
                %v188 = vld [vmem:[%s126 + $0x168] sm:%s119]
                %189 = vst [vmem:[%s127 + $0x78] sm:%s119] %v188
                %v190 = vld [vmem:[%s126 + $0x174] sm:%s119]
                %191 = vst [vmem:[%s127 + $0x7c] sm:%s119] %v190
                %v192 = vld [vmem:[%s126 + $0x180] sm:%s119]
                %193 = vst [vmem:[%s127 + $0x80] sm:%s119] %v192
                %v194 = vld [vmem:[%s126 + $0x18c] sm:%s119]
                %195 = vst [vmem:[%s127 + $0x84] sm:%s119] %v194
                %v196 = vld [vmem:[%s126 + $0x198] sm:%s119]
                %197 = vst [vmem:[%s127 + $0x88] sm:%s119] %v196
                %v198 = vld [vmem:[%s126 + $0x1a4] sm:%s119]
                %199 = vst [vmem:[%s127 + $0x8c] sm:%s119] %v198
              $region41: #{all_conv_plif_li_forward.8} parent=35 // loop_footer
                %s125 = sadd.s32 1, %s121
              $region42: #{all_conv_plif_li_forward.8} parent=35 // loop_footer_branch
                %120 = sbr.rel target = $region38
              $region43: #{all_conv_plif_li_forward.8} parent=35 // loop_exit
                _
            $region36: #{all_conv_plif_li_forward.8} parent=27 // pred_fallthru
              _
          $region28: #{all_conv_plif_li_forward.8} parent=23 // pred_fallthru
            _
          %292 = vnop
        $region24: #{all_conv_plif_li_forward.8} parent=19 // pred_fallthru
          _
      $region20: #{all_conv_plif_li_forward.8} parent=5 // pred_fallthru
        _
      %p293 = scmp.le.s32.totalorder 1, %s8
      %p294 = scmp.lt.s32.totalorder %s8, 4
      %p295 = pnand %p293, %p294
      %p296 = pneg %p295
      // Predicated region
      $region62: #{all_conv_plif_li_forward.8} parent=5 // pred_check
        _
      $region63: #{all_conv_plif_li_forward.8} parent=5 // pred_check_branch
        %298 = sbr.rel (%p295) target = $region65
      $region64: #{all_conv_plif_li_forward.8} parent=5 // pred_region
        %s299 = ssub.s32 %s8, 1
        %s300 = sand.u32 %s21, 1
        %s301 = sand.u32 %s21, 1
        %s302 = smul.addr %s301, 144
        %s303 = scalar_lea.vmem [#allocation2], %s302
        // Predicated region
        $region66: #{all_conv_plif_li_forward.8} parent=64 // pred_check
          %p304 = pneg %p34
        $region67: #{all_conv_plif_li_forward.8} parent=64 // pred_check_branch
          %306 = sbr.rel (%p304) target = $region69
        $region68: #{all_conv_plif_li_forward.8} parent=64 // pred_region
          _
        $region69: #{all_conv_plif_li_forward.8} parent=64 // pred_fallthru
          _
        %s307 = sand.u32 %s21, 1
        %s308 = sand.u32 %s21, 1
        %s309 = smul.addr %s308, 144
        %s310 = scalar_lea.vmem [#allocation2], %s309
        %p311 = pneg %p34
        %p312 = pneg %p31
        %p313 = pneg %p55
        %p314 = pneg %p52
        %p315 = pneg %p81
        %p316 = pneg %p78
        %s317 = sand.u32 %s68, 1
        %s318 = sand.u32 %s68, 1
        %s319 = smul.addr %s318, 32
        %s320 = scalar_lea.vmem [#allocation3], %s319
        %v322 = vld [vmem:[%s1] sm:$0xf]
        %v323 = vld [vmem:[%s1 + $0x4] sm:$0xf]
        %v324 = vld [vmem:[%s303] sm:$0xf]
        %v325 = vld [vmem:[%s303 + $0x4] sm:$0xf]
        %v326 = vld [vmem:[%s303 + $0x8] sm:$0xf]
        %v327 = vld [vmem:[%s303 + $0xc] sm:$0xf]
        %v328 = vld [vmem:[%s303 + $0x10] sm:$0xf]
        %v329 = vld [vmem:[%s303 + $0x14] sm:$0xf]
        %v330 = vld [vmem:[%s303 + $0x18] sm:$0xf]
        %v331 = vld [vmem:[%s303 + $0x1c] sm:$0xf]
        %v332 = vld [vmem:[%s303 + $0x20] sm:$0xf]
        %v335 = vunpack.c.l.b16 %v322
        %v336 = vunpack.c.l.b16 %v323
        %v337 = vpack.c.b16 %v336, %v335
        %v347 = vunpack.c.l.b16 %v324
        %v348 = vunpack.c.l.b16 %v325
        %v349 = vunpack.c.l.b16 %v326
        %v350 = vunpack.c.l.b16 %v327
        %v351 = vunpack.c.l.b16 %v328
        %v352 = vunpack.c.l.b16 %v329
        %v353 = vunpack.c.l.b16 %v330
        %v354 = vunpack.c.l.b16 %v331
        %v355 = vunpack.c.l.b16 %v332
        %v356 = vpack.c.b16 %v348, %v347
        %v357 = vpack.c.b16 %v350, %v349
        %v358 = vpack.c.b16 %v352, %v351
        %v359 = vpack.c.b16 %v354, %v353
        %v360 = vpack.c.b16 %v355, %v355
        %vm365 = vcmask 588800
        %v367 = vsel %vm365, %v337, 0
        %vm369 = vcmask 1043456
        %v371 = vsel %vm369, %v360, 0
        %373 = vmatpush.bf16.msra.mxu0 0
        %374 = vmatpush.bf16.msra.mxu0 0
        %375 = vmatpush.bf16.msra.mxu0 0
        %376 = vmatpush.bf16.msra.mxu0 %v371
        %377 = vmatpush.bf16.msra.mxu0 %v359
        %378 = vmatpush.bf16.msra.mxu0 %v358
        %379 = vmatpush.bf16.msra.mxu0 %v357
        %380 = vmatpush.bf16.msra.mxu0 %v356
        %381 = vmatmul.bf16.gmra.mxu0 %v367
        %v382 = vpop.f32.mrf.mxu0
        %v383 = vadd.f32 0.0, %v382
        %v384 = vpop.f32.mrf.mxu0
        %v385 = vadd.f32 0.0, %v384
        %386 = vdwg.mxu0
        %v387 = vmul.f32 %v383, 0.5
        %v388 = vmul.f32 %v385, 0.5
        %v389 = vadd.f32 %v387, 0.0
        %v390 = vadd.f32 %v388, 0.0
        %vm391 = vcmp.ge.f32.partialorder %v389, 1.0
        %vm392 = vcmp.ge.f32.partialorder %v390, 1.0
        %v393 = vsel %vm391, 1, 0
        %v394 = vsel %vm392, 1, 0
        %v395 = vcvt.s32.f32 %v393
        %v396 = vcvt.s32.f32 %v394
        %v397 = vsub.f32 1.0, %v395
        %v398 = vsub.f32 1.0, %v396
        %v399 = vmul.f32 %v389, %v397
        %v400 = vmul.f32 %v390, %v398
        %v401 = vpack.c.bf16 %v395, %v395
        %v402 = vpack.c.bf16 %v396, %v396
        %403 = vst [vmem:[%s320] sm:$0xf] %v401
        %404 = vst [vmem:[%s320 + $0x4] sm:$0xf] %v402
        %s405 = scalar_lea.vmem %s303, 36 [#allocation2]
        %v406 = vld [vmem:[%s405] sm:$0xf]
        %v407 = vld [vmem:[%s405 + $0x4] sm:$0xf]
        %v408 = vld [vmem:[%s405 + $0x8] sm:$0xf]
        %v409 = vld [vmem:[%s405 + $0xc] sm:$0xf]
        %v410 = vld [vmem:[%s405 + $0x10] sm:$0xf]
        %v411 = vld [vmem:[%s405 + $0x14] sm:$0xf]
        %v412 = vld [vmem:[%s405 + $0x18] sm:$0xf]
        %v413 = vld [vmem:[%s405 + $0x1c] sm:$0xf]
        %v414 = vld [vmem:[%s405 + $0x20] sm:$0xf]
        %v424 = vunpack.c.l.b16 %v406
        %v425 = vunpack.c.l.b16 %v407
        %v426 = vunpack.c.l.b16 %v408
        %v427 = vunpack.c.l.b16 %v409
        %v428 = vunpack.c.l.b16 %v410
        %v429 = vunpack.c.l.b16 %v411
        %v430 = vunpack.c.l.b16 %v412
        %v431 = vunpack.c.l.b16 %v413
        %v432 = vunpack.c.l.b16 %v414
        %v433 = vpack.c.b16 %v425, %v424
        %v434 = vpack.c.b16 %v427, %v426
        %v435 = vpack.c.b16 %v429, %v428
        %v436 = vpack.c.b16 %v431, %v430
        %v437 = vpack.c.b16 %v432, %v432
        %v443 = vsel %vm369, %v437, 0
        %445 = vmatpush.bf16.msra.mxu0 0
        %446 = vmatpush.bf16.msra.mxu0 0
        %447 = vmatpush.bf16.msra.mxu0 0
        %448 = vmatpush.bf16.msra.mxu0 %v443
        %449 = vmatpush.bf16.msra.mxu0 %v436
        %450 = vmatpush.bf16.msra.mxu0 %v435
        %451 = vmatpush.bf16.msra.mxu0 %v434
        %452 = vmatpush.bf16.msra.mxu0 %v433
        %453 = vmatmul.bf16.gmra.mxu0 %v367
        %v454 = vpop.f32.mrf.mxu0
        %v455 = vadd.f32 0.0, %v454
        %v456 = vpop.f32.mrf.mxu0
        %v457 = vadd.f32 0.0, %v456
        %458 = vdwg.mxu0
        %v459 = vsub.f32 %v455, %v399
        %v460 = vsub.f32 %v457, %v400
        %v461 = vmul.f32 %v459, 0.5
        %v462 = vmul.f32 %v460, 0.5
        %v463 = vadd.f32 %v399, %v461
        %v464 = vadd.f32 %v400, %v462
        %vm465 = vcmp.ge.f32.partialorder %v463, 1.0
        %vm466 = vcmp.ge.f32.partialorder %v464, 1.0
        %v467 = vsel %vm465, 1, 0
        %v468 = vsel %vm466, 1, 0
        %v469 = vcvt.s32.f32 %v467
        %v470 = vcvt.s32.f32 %v468
        %v471 = vsub.f32 1.0, %v469
        %v472 = vsub.f32 1.0, %v470
        %v473 = vmul.f32 %v463, %v471
        %v474 = vmul.f32 %v464, %v472
        %v475 = vpack.c.bf16 %v469, %v469
        %v476 = vpack.c.bf16 %v470, %v470
        %s477 = scalar_lea.vmem %s320, 8 [#allocation3]
        %478 = vst [vmem:[%s477] sm:$0xf] %v475
        %479 = vst [vmem:[%s477 + $0x4] sm:$0xf] %v476
        %s480 = scalar_lea.vmem %s303, 72 [#allocation2]
        %v481 = vld [vmem:[%s480] sm:$0xf]
        %v482 = vld [vmem:[%s480 + $0x4] sm:$0xf]
        %v483 = vld [vmem:[%s480 + $0x8] sm:$0xf]
        %v484 = vld [vmem:[%s480 + $0xc] sm:$0xf]
        %v485 = vld [vmem:[%s480 + $0x10] sm:$0xf]
        %v486 = vld [vmem:[%s480 + $0x14] sm:$0xf]
        %v487 = vld [vmem:[%s480 + $0x18] sm:$0xf]
        %v488 = vld [vmem:[%s480 + $0x1c] sm:$0xf]
        %v489 = vld [vmem:[%s480 + $0x20] sm:$0xf]
        %v499 = vunpack.c.l.b16 %v481
        %v500 = vunpack.c.l.b16 %v482
        %v501 = vunpack.c.l.b16 %v483
        %v502 = vunpack.c.l.b16 %v484
        %v503 = vunpack.c.l.b16 %v485
        %v504 = vunpack.c.l.b16 %v486
        %v505 = vunpack.c.l.b16 %v487
        %v506 = vunpack.c.l.b16 %v488
        %v507 = vunpack.c.l.b16 %v489
        %v508 = vpack.c.b16 %v500, %v499
        %v509 = vpack.c.b16 %v502, %v501
        %v510 = vpack.c.b16 %v504, %v503
        %v511 = vpack.c.b16 %v506, %v505
        %v512 = vpack.c.b16 %v507, %v507
        %v518 = vsel %vm369, %v512, 0
        %520 = vmatpush.bf16.msra.mxu0 0
        %521 = vmatpush.bf16.msra.mxu0 0
        %522 = vmatpush.bf16.msra.mxu0 0
        %523 = vmatpush.bf16.msra.mxu0 %v518
        %524 = vmatpush.bf16.msra.mxu0 %v511
        %525 = vmatpush.bf16.msra.mxu0 %v510
        %526 = vmatpush.bf16.msra.mxu0 %v509
        %527 = vmatpush.bf16.msra.mxu0 %v508
        %528 = vmatmul.bf16.gmra.mxu0 %v367
        %v529 = vpop.f32.mrf.mxu0
        %v530 = vadd.f32 0.0, %v529
        %v531 = vpop.f32.mrf.mxu0
        %v532 = vadd.f32 0.0, %v531
        %533 = vdwg.mxu0
        %v534 = vsub.f32 %v530, %v473
        %v535 = vsub.f32 %v532, %v474
        %v536 = vmul.f32 %v534, 0.5
        %v537 = vmul.f32 %v535, 0.5
        %v538 = vadd.f32 %v473, %v536
        %v539 = vadd.f32 %v474, %v537
        %vm540 = vcmp.ge.f32.partialorder %v538, 1.0
        %vm541 = vcmp.ge.f32.partialorder %v539, 1.0
        %v542 = vsel %vm540, 1, 0
        %v543 = vsel %vm541, 1, 0
        %v544 = vcvt.s32.f32 %v542
        %v545 = vcvt.s32.f32 %v543
        %v546 = vsub.f32 1.0, %v544
        %v547 = vsub.f32 1.0, %v545
        %v548 = vmul.f32 %v538, %v546
        %v549 = vmul.f32 %v539, %v547
        %v550 = vpack.c.bf16 %v544, %v544
        %v551 = vpack.c.bf16 %v545, %v545
        %s552 = scalar_lea.vmem %s320, 16 [#allocation3]
        %553 = vst [vmem:[%s552] sm:$0xf] %v550
        %554 = vst [vmem:[%s552 + $0x4] sm:$0xf] %v551
        %s555 = scalar_lea.vmem %s303, 108 [#allocation2]
        %v556 = vld [vmem:[%s555] sm:$0xf]
        %v557 = vld [vmem:[%s555 + $0x4] sm:$0xf]
        %v558 = vld [vmem:[%s555 + $0x8] sm:$0xf]
        %v559 = vld [vmem:[%s555 + $0xc] sm:$0xf]
        %v560 = vld [vmem:[%s555 + $0x10] sm:$0xf]
        %v561 = vld [vmem:[%s555 + $0x14] sm:$0xf]
        %v562 = vld [vmem:[%s555 + $0x18] sm:$0xf]
        %v563 = vld [vmem:[%s555 + $0x1c] sm:$0xf]
        %v564 = vld [vmem:[%s555 + $0x20] sm:$0xf]
        %v574 = vunpack.c.l.b16 %v556
        %v575 = vunpack.c.l.b16 %v557
        %v576 = vunpack.c.l.b16 %v558
        %v577 = vunpack.c.l.b16 %v559
        %v578 = vunpack.c.l.b16 %v560
        %v579 = vunpack.c.l.b16 %v561
        %v580 = vunpack.c.l.b16 %v562
        %v581 = vunpack.c.l.b16 %v563
        %v582 = vunpack.c.l.b16 %v564
        %v583 = vpack.c.b16 %v575, %v574
        %v584 = vpack.c.b16 %v577, %v576
        %v585 = vpack.c.b16 %v579, %v578
        %v586 = vpack.c.b16 %v581, %v580
        %v587 = vpack.c.b16 %v582, %v582
        %v593 = vsel %vm369, %v587, 0
        %595 = vmatpush.bf16.msra.mxu0 0
        %596 = vmatpush.bf16.msra.mxu0 0
        %597 = vmatpush.bf16.msra.mxu0 0
        %598 = vmatpush.bf16.msra.mxu0 %v593
        %599 = vmatpush.bf16.msra.mxu0 %v586
        %600 = vmatpush.bf16.msra.mxu0 %v585
        %601 = vmatpush.bf16.msra.mxu0 %v584
        %602 = vmatpush.bf16.msra.mxu0 %v583
        %603 = vmatmul.bf16.gmra.mxu0 %v367
        %v604 = vpop.f32.mrf.mxu0
        %v605 = vadd.f32 0.0, %v604
        %v606 = vpop.f32.mrf.mxu0
        %v607 = vadd.f32 0.0, %v606
        %608 = vdwg.mxu0
        %v609 = vsub.f32 %v605, %v548
        %v610 = vsub.f32 %v607, %v549
        %v611 = vmul.f32 %v609, 0.5
        %v612 = vmul.f32 %v610, 0.5
        %v613 = vadd.f32 %v548, %v611
        %v614 = vadd.f32 %v549, %v612
        %vm615 = vcmp.ge.f32.partialorder %v613, 1.0
        %vm616 = vcmp.ge.f32.partialorder %v614, 1.0
        %v617 = vsel %vm615, 1, 0
        %v618 = vsel %vm616, 1, 0
        %v619 = vcvt.s32.f32 %v617
        %v620 = vcvt.s32.f32 %v618
        %v621 = vpack.c.bf16 %v619, %v619
        %v622 = vpack.c.bf16 %v620, %v620
        %s623 = scalar_lea.vmem %s320, 24 [#allocation3]
        %624 = vst [vmem:[%s623] sm:$0xf] %v621
        %625 = vst [vmem:[%s623 + $0x4] sm:$0xf] %v622
        %s626 = sand.u32 %s68, 1
        %s627 = sand.u32 %s68, 1
        %s628 = smul.addr %s627, 32
        %s629 = scalar_lea.vmem [#allocation3], %s628
        // Predicated region
        $region70: #{all_conv_plif_li_forward.8} parent=64 // pred_check
          %p630 = pneg %p78
        $region71: #{all_conv_plif_li_forward.8} parent=64 // pred_check_branch
          %632 = sbr.rel (%p630) target = $region73
        $region72: #{all_conv_plif_li_forward.8} parent=64 // pred_region
          %s633 = smul.addr %s13, 4
          %s634 = scalar_lea.vmem %s2, %s633
          // Predicated region
          $region74: #{all_conv_plif_li_forward.8} parent=72 // pred_check
            _
          $region75: #{all_conv_plif_li_forward.8} parent=72 // pred_check_branch
            %636 = sbr.rel (0) target = $region77
          $region76: #{all_conv_plif_li_forward.8} parent=72 // pred_region
            // Predicated region
            $region78: #{all_conv_plif_li_forward.8} parent=76 // pred_check
              _
            $region79: #{all_conv_plif_li_forward.8} parent=76 // pred_check_branch
              %638 = sbr.rel target = $region81
            $region80: #{all_conv_plif_li_forward.8} parent=76 // pred_region
              // Predicated region
              $region93: #{all_conv_plif_li_forward.8} parent=80 // pred_check
                _
              $region94: #{all_conv_plif_li_forward.8} parent=80 // pred_check_branch
                %668 = sbr.rel (0) target = $region96
              $region95: #{all_conv_plif_li_forward.8} parent=80 // pred_region
                loop: start=0, step=1, limit=1
                $region97: #{all_conv_plif_li_forward.8} parent=95 // loop_pre_header
                  _
                $region98: #{all_conv_plif_li_forward.8} parent=95 // loop_header
                  %s670 = sphi 0, %s674
                  %p671 = scmp.ge.s32.totalorder %s670, 1
                  %s675 = sphi %s629, %s629
                  %s676 = sphi %s634, %s634
                $region99: #{all_conv_plif_li_forward.8} parent=95 // loop_header_branch
                  %673 = sbr.rel (%p671) target = $region103
                $region100: #{all_conv_plif_li_forward.8} parent=95 // loop_body
                  _
                $region101: #{all_conv_plif_li_forward.8} parent=95 // loop_footer
                  %s674 = sadd.s32 1, %s670
                $region102: #{all_conv_plif_li_forward.8} parent=95 // loop_footer_branch
                  %669 = sbr.rel target = $region98
                $region103: #{all_conv_plif_li_forward.8} parent=95 // loop_exit
                  _
                %s678 = ssub.s32 16, 1
                loop: start=0, step=1, limit=1
                $region104: #{all_conv_plif_li_forward.8} parent=95 // loop_pre_header
                  _
                $region105: #{all_conv_plif_li_forward.8} parent=95 // loop_header
                  %s680 = sphi 0, %s684
                  %p681 = scmp.ge.s32.totalorder %s680, 1
                  %s685 = sphi %s629, %s629
                  %s686 = sphi %s634, %s634
                $region106: #{all_conv_plif_li_forward.8} parent=95 // loop_header_branch
                  %683 = sbr.rel (%p681) target = $region110
                $region107: #{all_conv_plif_li_forward.8} parent=95 // loop_body
                  %v687 = vld [vmem:[%s685] sm:%s678]
                  %688 = vst [vmem:[%s686] sm:%s678] %v687
                  %v689 = vld [vmem:[%s685 + $0x4] sm:%s678]
                  %690 = vst [vmem:[%s686 + $0xc] sm:%s678] %v689
                  %v691 = vld [vmem:[%s685 + $0x8] sm:%s678]
                  %692 = vst [vmem:[%s686 + $0x18] sm:%s678] %v691
                  %v693 = vld [vmem:[%s685 + $0xc] sm:%s678]
                  %694 = vst [vmem:[%s686 + $0x24] sm:%s678] %v693
                  %v695 = vld [vmem:[%s685 + $0x10] sm:%s678]
                  %696 = vst [vmem:[%s686 + $0x30] sm:%s678] %v695
                  %v697 = vld [vmem:[%s685 + $0x14] sm:%s678]
                  %698 = vst [vmem:[%s686 + $0x3c] sm:%s678] %v697
                  %v699 = vld [vmem:[%s685 + $0x18] sm:%s678]
                  %700 = vst [vmem:[%s686 + $0x48] sm:%s678] %v699
                  %v701 = vld [vmem:[%s685 + $0x1c] sm:%s678]
                  %702 = vst [vmem:[%s686 + $0x54] sm:%s678] %v701
                $region108: #{all_conv_plif_li_forward.8} parent=95 // loop_footer
                  %s684 = sadd.s32 1, %s680
                $region109: #{all_conv_plif_li_forward.8} parent=95 // loop_footer_branch
                  %679 = sbr.rel target = $region105
                $region110: #{all_conv_plif_li_forward.8} parent=95 // loop_exit
                  _
              $region96: #{all_conv_plif_li_forward.8} parent=80 // pred_fallthru
                _
            $region81: #{all_conv_plif_li_forward.8} parent=76 // pred_fallthru
              _
            // Predicated region
            $region82: #{all_conv_plif_li_forward.8} parent=76 // pred_check
              _
            $region83: #{all_conv_plif_li_forward.8} parent=76 // pred_check_branch
              %640 = sbr.rel (0) target = $region85
            $region84: #{all_conv_plif_li_forward.8} parent=76 // pred_region
              %s642 = ssub.s32 16, 1
              loop: start=0, step=1, limit=1
              $region86: #{all_conv_plif_li_forward.8} parent=84 // loop_pre_header
                _
              $region87: #{all_conv_plif_li_forward.8} parent=84 // loop_header
                %s644 = sphi 0, %s648
                %p645 = scmp.ge.s32.totalorder %s644, 1
                %s649 = sphi %s629, %s629
                %s650 = sphi %s634, %s634
              $region88: #{all_conv_plif_li_forward.8} parent=84 // loop_header_branch
                %647 = sbr.rel (%p645) target = $region92
              $region89: #{all_conv_plif_li_forward.8} parent=84 // loop_body
                %v651 = vld [vmem:[%s649] sm:%s642]
                %652 = vst [vmem:[%s650] sm:%s642] %v651
                %v653 = vld [vmem:[%s649 + $0x4] sm:%s642]
                %654 = vst [vmem:[%s650 + $0xc] sm:%s642] %v653
                %v655 = vld [vmem:[%s649 + $0x8] sm:%s642]
                %656 = vst [vmem:[%s650 + $0x18] sm:%s642] %v655
                %v657 = vld [vmem:[%s649 + $0xc] sm:%s642]
                %658 = vst [vmem:[%s650 + $0x24] sm:%s642] %v657
                %v659 = vld [vmem:[%s649 + $0x10] sm:%s642]
                %660 = vst [vmem:[%s650 + $0x30] sm:%s642] %v659
                %v661 = vld [vmem:[%s649 + $0x14] sm:%s642]
                %662 = vst [vmem:[%s650 + $0x3c] sm:%s642] %v661
                %v663 = vld [vmem:[%s649 + $0x18] sm:%s642]
                %664 = vst [vmem:[%s650 + $0x48] sm:%s642] %v663
                %v665 = vld [vmem:[%s649 + $0x1c] sm:%s642]
                %666 = vst [vmem:[%s650 + $0x54] sm:%s642] %v665
              $region90: #{all_conv_plif_li_forward.8} parent=84 // loop_footer
                %s648 = sadd.s32 1, %s644
              $region91: #{all_conv_plif_li_forward.8} parent=84 // loop_footer_branch
                %643 = sbr.rel target = $region87
              $region92: #{all_conv_plif_li_forward.8} parent=84 // loop_exit
                _
            $region85: #{all_conv_plif_li_forward.8} parent=76 // pred_fallthru
              _
          $region77: #{all_conv_plif_li_forward.8} parent=72 // pred_fallthru
            _
          %703 = vnop
        $region73: #{all_conv_plif_li_forward.8} parent=64 // pred_fallthru
          _
      $region65: #{all_conv_plif_li_forward.8} parent=5 // pred_fallthru
        _
      %p704 = scmp.le.s32.totalorder 2, %s8
      // Predicated region
      $region111: #{all_conv_plif_li_forward.8} parent=5 // pred_check
        %p705 = pneg %p704
      $region112: #{all_conv_plif_li_forward.8} parent=5 // pred_check_branch
        %707 = sbr.rel (%p705) target = $region114
      $region113: #{all_conv_plif_li_forward.8} parent=5 // pred_region
        %s708 = ssub.s32 %s8, 2
        // Predicated region
        $region115: #{all_conv_plif_li_forward.8} parent=113 // pred_check
          %p709 = pneg %p84
        $region116: #{all_conv_plif_li_forward.8} parent=113 // pred_check_branch
          %711 = sbr.rel (%p709) target = $region118
        $region117: #{all_conv_plif_li_forward.8} parent=113 // pred_region
          %s712 = sand.u32 %s69, 1
          %s713 = sand.u32 %s69, 1
          %s714 = smul.addr %s713, 32
          %s715 = scalar_lea.vmem [#allocation3], %s714
        $region118: #{all_conv_plif_li_forward.8} parent=113 // pred_fallthru
          _
      $region114: #{all_conv_plif_li_forward.8} parent=5 // pred_fallthru
        _
    $region6: #{all_conv_plif_li_forward.8} parent=1 // loop_footer
      %s12 = sadd.s32 1, %s8
    $region7: #{all_conv_plif_li_forward.8} parent=1 // loop_footer_branch
      %7 = sbr.rel target = $region3
    $region8: #{all_conv_plif_li_forward.8} parent=1 // loop_exit
      _

// kernel: all_conv_plif_li_forward.9
$region0: #{all_conv_plif_li_forward.9}
  #allocation0 [shape = 'u32[]', space=smem, size = 0x4, offset = 0x4, fixed_abs, tag = 'smem constant byte address 0x4 - core index']
  #allocation1 [shape = 'u32[72,128]{1,0:T(1,128)}', space=vmem, size = 0x9000, scoped, tag = 'internal scratch']
  %s0 = inlined_call_operand.vmem [shape: bf16[4,144,128], index: 0, kind: input, shape index: {}]
  %s1 = inlined_call_operand.vmem [shape: bf16[32,144], index: 1, kind: input, shape index: {}]
  %s2 = inlined_call_operand.vmem [shape: bf16[4,32,128], index: 2, kind: output, shape index: {}]
  %s3 = sld [smem:[#allocation0]]
  $region18: #{all_conv_plif_li_forward.9} parent=0
    _
  %s5 = ssub.s32 1, %s3
  %s6 = scalar_select 0, %s5, %s3
  // Predicated region
  $region2: #{all_conv_plif_li_forward.9} parent=0 // pred_check
    _
  $region3: #{all_conv_plif_li_forward.9} parent=0 // pred_check_branch
    %8 = sbr.rel (0) target = $region5
  $region4: #{all_conv_plif_li_forward.9} parent=0 // pred_region
    _
  $region5: #{all_conv_plif_li_forward.9} parent=0 // pred_fallthru
    _
  // Predicated region
  $region6: #{all_conv_plif_li_forward.9} parent=0 // pred_check
    _
  $region7: #{all_conv_plif_li_forward.9} parent=0 // pred_check_branch
    %10 = sbr.rel (0) target = $region9
  $region8: #{all_conv_plif_li_forward.9} parent=0 // pred_region
    _
  $region9: #{all_conv_plif_li_forward.9} parent=0 // pred_fallthru
    _
  %v12 = vld [vmem:[%s1] sm:$0xff]
  %v13 = vld [vmem:[%s1 + $0x8] sm:$0xff]
  %v14 = vld [vmem:[%s1 + $0x10] sm:$0xff]
  %v15 = vld [vmem:[%s1 + $0x18] sm:$0xff]
  %v16 = vld [vmem:[%s0] sm:$0xf]
  %v17 = vld [vmem:[%s0 + $0x4] sm:$0xf]
  %v18 = vld [vmem:[%s0 + $0x8] sm:$0xf]
  %v19 = vld [vmem:[%s0 + $0xc] sm:$0xf]
  %v20 = vld [vmem:[%s0 + $0x10] sm:$0xf]
  %v21 = vld [vmem:[%s0 + $0x14] sm:$0xf]
  %v22 = vld [vmem:[%s0 + $0x18] sm:$0xf]
  %v23 = vld [vmem:[%s0 + $0x1c] sm:$0xf]
  %v24 = vld [vmem:[%s0 + $0x20] sm:$0xf]
  %v25 = vld [vmem:[%s0 + $0x24] sm:$0xf]
  %v26 = vld [vmem:[%s0 + $0x28] sm:$0xf]
  %v27 = vld [vmem:[%s0 + $0x2c] sm:$0xf]
  %v28 = vld [vmem:[%s0 + $0x30] sm:$0xf]
  %v29 = vld [vmem:[%s0 + $0x34] sm:$0xf]
  %v30 = vld [vmem:[%s0 + $0x38] sm:$0xf]
  %v31 = vld [vmem:[%s0 + $0x3c] sm:$0xf]
  %v32 = vld [vmem:[%s0 + $0x40] sm:$0xf]
  %v33 = vld [vmem:[%s0 + $0x44] sm:$0xf]
  %v38 = vunpack.c.l.b16 %v12
  %v39 = vunpack.c.h.b16 %v12
  %v40 = vunpack.c.l.b16 %v13
  %v41 = vunpack.c.h.b16 %v13
  %v42 = vunpack.c.l.b16 %v14
  %v43 = vunpack.c.h.b16 %v14
  %v44 = vunpack.c.l.b16 %v15
  %v45 = vunpack.c.h.b16 %v15
  %v46 = vpack.c.b16 %v40, %v38
  %v47 = vpack.c.b16 %v41, %v39
  %v48 = vpack.c.b16 %v44, %v42
  %v49 = vpack.c.b16 %v45, %v43
  %v70 = vunpack.c.l.b16 %v16
  %v71 = vunpack.c.l.b16 %v17
  %v72 = vunpack.c.l.b16 %v18
  %v73 = vunpack.c.l.b16 %v19
  %v74 = vunpack.c.l.b16 %v20
  %v75 = vunpack.c.l.b16 %v21
  %v76 = vunpack.c.l.b16 %v22
  %v77 = vunpack.c.l.b16 %v23
  %v78 = vunpack.c.l.b16 %v24
  %v79 = vunpack.c.l.b16 %v25
  %v80 = vunpack.c.l.b16 %v26
  %v81 = vunpack.c.l.b16 %v27
  %v82 = vunpack.c.l.b16 %v28
  %v83 = vunpack.c.l.b16 %v29
  %v84 = vunpack.c.l.b16 %v30
  %v85 = vunpack.c.l.b16 %v31
  %v86 = vunpack.c.l.b16 %v32
  %v87 = vunpack.c.l.b16 %v33
  %v88 = vpack.c.b16 %v71, %v70
  %v89 = vpack.c.b16 %v73, %v72
  %v90 = vpack.c.b16 %v75, %v74
  %v91 = vpack.c.b16 %v77, %v76
  %v92 = vpack.c.b16 %v79, %v78
  %v93 = vpack.c.b16 %v81, %v80
  %v94 = vpack.c.b16 %v83, %v82
  %v95 = vpack.c.b16 %v85, %v84
  %v96 = vpack.c.b16 %v87, %v86
  %vm106 = vcmask 130048
  %v108 = vsel %vm106, %v47, 0
  %v111 = vsel %vm106, %v49, 0
  %113 = vmatpush.bf16.msra.mxu0 %v95
  %114 = vmatpush.bf16.msra.mxu0 %v94
  %115 = vmatpush.bf16.msra.mxu0 %v93
  %116 = vmatpush.bf16.msra.mxu0 %v92
  %117 = vmatpush.bf16.msra.mxu0 %v91
  %118 = vmatpush.bf16.msra.mxu0 %v90
  %119 = vmatpush.bf16.msra.mxu0 %v89
  %120 = vmatpush.bf16.msra.mxu0 %v88
  %121 = vmatmul.bf16.gmra.mxu0 %v46
  %v122 = vpop.f32.mrf.mxu0
  %v123 = vadd.f32 0.0, %v122
  %v124 = vpop.f32.mrf.mxu0
  %v125 = vadd.f32 0.0, %v124
  %126 = vmatmul.bf16.gmra.mxu0 %v48
  %v127 = vpop.f32.mrf.mxu0
  %v128 = vadd.f32 0.0, %v127
  %v129 = vpop.f32.mrf.mxu0
  %v130 = vadd.f32 0.0, %v129
  %131 = vdwg.mxu0
  %132 = vmatpush.bf16.msra.mxu0 0
  %133 = vmatpush.bf16.msra.mxu0 0
  %134 = vmatpush.bf16.msra.mxu0 0
  %135 = vmatpush.bf16.msra.mxu0 0
  %136 = vmatpush.bf16.msra.mxu0 0
  %137 = vmatpush.bf16.msra.mxu0 0
  %138 = vmatpush.bf16.msra.mxu0 0
  %139 = vmatpush.bf16.msra.mxu0 %v96
  %140 = vmatmul.bf16.gmra.mxu0 %v108
  %v141 = vpop.f32.mrf.mxu0
  %v142 = vadd.f32 %v123, %v141
  %v143 = vpop.f32.mrf.mxu0
  %v144 = vadd.f32 %v125, %v143
  %145 = vmatmul.bf16.gmra.mxu0 %v111
  %v146 = vpop.f32.mrf.mxu0
  %v147 = vadd.f32 %v128, %v146
  %v148 = vpop.f32.mrf.mxu0
  %v149 = vadd.f32 %v130, %v148
  %150 = vdwg.mxu0
  %v151 = vmul.f32 %v142, 0.5
  %v152 = vmul.f32 %v144, 0.5
  %v153 = vmul.f32 %v147, 0.5
  %v154 = vmul.f32 %v149, 0.5
  %v155 = vadd.f32 %v151, 0.0
  %v156 = vadd.f32 %v152, 0.0
  %v157 = vadd.f32 %v153, 0.0
  %v158 = vadd.f32 %v154, 0.0
  %vm159 = vcmp.ge.f32.partialorder %v155, 1.0
  %vm160 = vcmp.ge.f32.partialorder %v156, 1.0
  %vm161 = vcmp.ge.f32.partialorder %v157, 1.0
  %vm162 = vcmp.ge.f32.partialorder %v158, 1.0
  %v163 = vsel %vm159, 1, 0
  %v164 = vsel %vm160, 1, 0
  %v165 = vsel %vm161, 1, 0
  %v166 = vsel %vm162, 1, 0
  %v167 = vcvt.s32.f32 %v163
  %v168 = vcvt.s32.f32 %v164
  %v169 = vcvt.s32.f32 %v165
  %v170 = vcvt.s32.f32 %v166
  %v171 = vsub.f32 1.0, %v167
  %v172 = vsub.f32 1.0, %v168
  %v173 = vsub.f32 1.0, %v169
  %v174 = vsub.f32 1.0, %v170
  %v175 = vmul.f32 %v155, %v171
  %v176 = vmul.f32 %v156, %v172
  %v177 = vmul.f32 %v157, %v173
  %v178 = vmul.f32 %v158, %v174
  %v179 = vpack.c.bf16 %v167, %v167
  %v180 = vpack.c.bf16 %v168, %v168
  %v181 = vpack.c.bf16 %v169, %v169
  %v182 = vpack.c.bf16 %v170, %v170
  %183 = vst [vmem:[%s2] sm:$0xf] %v179
  %184 = vst [vmem:[%s2 + $0x4] sm:$0xf] %v180
  %185 = vst [vmem:[%s2 + $0x8] sm:$0xf] %v181
  %186 = vst [vmem:[%s2 + $0xc] sm:$0xf] %v182
  %s187 = scalar_lea.vmem %s0, 72
  %v188 = vld [vmem:[%s187] sm:$0xf]
  %v189 = vld [vmem:[%s187 + $0x4] sm:$0xf]
  %v190 = vld [vmem:[%s187 + $0x8] sm:$0xf]
  %v191 = vld [vmem:[%s187 + $0xc] sm:$0xf]
  %v192 = vld [vmem:[%s187 + $0x10] sm:$0xf]
  %v193 = vld [vmem:[%s187 + $0x14] sm:$0xf]
  %v194 = vld [vmem:[%s187 + $0x18] sm:$0xf]
  %v195 = vld [vmem:[%s187 + $0x1c] sm:$0xf]
  %v196 = vld [vmem:[%s187 + $0x20] sm:$0xf]
  %v197 = vld [vmem:[%s187 + $0x24] sm:$0xf]
  %v198 = vld [vmem:[%s187 + $0x28] sm:$0xf]
  %v199 = vld [vmem:[%s187 + $0x2c] sm:$0xf]
  %v200 = vld [vmem:[%s187 + $0x30] sm:$0xf]
  %v201 = vld [vmem:[%s187 + $0x34] sm:$0xf]
  %v202 = vld [vmem:[%s187 + $0x38] sm:$0xf]
  %v203 = vld [vmem:[%s187 + $0x3c] sm:$0xf]
  %v204 = vld [vmem:[%s187 + $0x40] sm:$0xf]
  %v205 = vld [vmem:[%s187 + $0x44] sm:$0xf]
  %v224 = vunpack.c.l.b16 %v188
  %v225 = vunpack.c.l.b16 %v189
  %v226 = vunpack.c.l.b16 %v190
  %v227 = vunpack.c.l.b16 %v191
  %v228 = vunpack.c.l.b16 %v192
  %v229 = vunpack.c.l.b16 %v193
  %v230 = vunpack.c.l.b16 %v194
  %v231 = vunpack.c.l.b16 %v195
  %v232 = vunpack.c.l.b16 %v196
  %v233 = vunpack.c.l.b16 %v197
  %v234 = vunpack.c.l.b16 %v198
  %v235 = vunpack.c.l.b16 %v199
  %v236 = vunpack.c.l.b16 %v200
  %v237 = vunpack.c.l.b16 %v201
  %v238 = vunpack.c.l.b16 %v202
  %v239 = vunpack.c.l.b16 %v203
  %v240 = vunpack.c.l.b16 %v204
  %v241 = vunpack.c.l.b16 %v205
  %v242 = vpack.c.b16 %v225, %v224
  %v243 = vpack.c.b16 %v227, %v226
  %v244 = vpack.c.b16 %v229, %v228
  %v245 = vpack.c.b16 %v231, %v230
  %v246 = vpack.c.b16 %v233, %v232
  %v247 = vpack.c.b16 %v235, %v234
  %v248 = vpack.c.b16 %v237, %v236
  %v249 = vpack.c.b16 %v239, %v238
  %v250 = vpack.c.b16 %v241, %v240
  %260 = vmatpush.bf16.msra.mxu0 %v249
  %261 = vmatpush.bf16.msra.mxu0 %v248
  %262 = vmatpush.bf16.msra.mxu0 %v247
  %263 = vmatpush.bf16.msra.mxu0 %v246
  %264 = vmatpush.bf16.msra.mxu0 %v245
  %265 = vmatpush.bf16.msra.mxu0 %v244
  %266 = vmatpush.bf16.msra.mxu0 %v243
  %267 = vmatpush.bf16.msra.mxu0 %v242
  %268 = vmatmul.bf16.gmra.mxu0 %v46
  %v269 = vpop.f32.mrf.mxu0
  %v270 = vadd.f32 0.0, %v269
  %v271 = vpop.f32.mrf.mxu0
  %v272 = vadd.f32 0.0, %v271
  %273 = vmatmul.bf16.gmra.mxu0 %v48
  %v274 = vpop.f32.mrf.mxu0
  %v275 = vadd.f32 0.0, %v274
  %v276 = vpop.f32.mrf.mxu0
  %v277 = vadd.f32 0.0, %v276
  %278 = vdwg.mxu0
  %279 = vmatpush.bf16.msra.mxu0 0
  %280 = vmatpush.bf16.msra.mxu0 0
  %281 = vmatpush.bf16.msra.mxu0 0
  %282 = vmatpush.bf16.msra.mxu0 0
  %283 = vmatpush.bf16.msra.mxu0 0
  %284 = vmatpush.bf16.msra.mxu0 0
  %285 = vmatpush.bf16.msra.mxu0 0
  %286 = vmatpush.bf16.msra.mxu0 %v250
  %287 = vmatmul.bf16.gmra.mxu0 %v108
  %v288 = vpop.f32.mrf.mxu0
  %v289 = vadd.f32 %v270, %v288
  %v290 = vpop.f32.mrf.mxu0
  %v291 = vadd.f32 %v272, %v290
  %292 = vmatmul.bf16.gmra.mxu0 %v111
  %v293 = vpop.f32.mrf.mxu0
  %v294 = vadd.f32 %v275, %v293
  %v295 = vpop.f32.mrf.mxu0
  %v296 = vadd.f32 %v277, %v295
  %297 = vdwg.mxu0
  %v298 = vsub.f32 %v289, %v175
  %v299 = vsub.f32 %v291, %v176
  %v300 = vsub.f32 %v294, %v177
  %v301 = vsub.f32 %v296, %v178
  %v302 = vmul.f32 %v298, 0.5
  %v303 = vmul.f32 %v299, 0.5
  %v304 = vmul.f32 %v300, 0.5
  %v305 = vmul.f32 %v301, 0.5
  %v306 = vadd.f32 %v175, %v302
  %v307 = vadd.f32 %v176, %v303
  %v308 = vadd.f32 %v177, %v304
  %v309 = vadd.f32 %v178, %v305
  %vm310 = vcmp.ge.f32.partialorder %v306, 1.0
  %vm311 = vcmp.ge.f32.partialorder %v307, 1.0
  %vm312 = vcmp.ge.f32.partialorder %v308, 1.0
  %vm313 = vcmp.ge.f32.partialorder %v309, 1.0
  %v314 = vsel %vm310, 1, 0
  %v315 = vsel %vm311, 1, 0
  %v316 = vsel %vm312, 1, 0
  %v317 = vsel %vm313, 1, 0
  %v318 = vcvt.s32.f32 %v314
  %v319 = vcvt.s32.f32 %v315
  %v320 = vcvt.s32.f32 %v316
  %v321 = vcvt.s32.f32 %v317
  %v322 = vsub.f32 1.0, %v318
  %v323 = vsub.f32 1.0, %v319
  %v324 = vsub.f32 1.0, %v320
  %v325 = vsub.f32 1.0, %v321
  %v326 = vmul.f32 %v306, %v322
  %v327 = vmul.f32 %v307, %v323
  %v328 = vmul.f32 %v308, %v324
  %v329 = vmul.f32 %v309, %v325
  %v330 = vpack.c.bf16 %v318, %v318
  %v331 = vpack.c.bf16 %v319, %v319
  %v332 = vpack.c.bf16 %v320, %v320
  %v333 = vpack.c.bf16 %v321, %v321
  %s334 = scalar_lea.vmem %s2, 16
  %335 = vst [vmem:[%s334] sm:$0xf] %v330
  %336 = vst [vmem:[%s334 + $0x4] sm:$0xf] %v331
  %337 = vst [vmem:[%s334 + $0x8] sm:$0xf] %v332
  %338 = vst [vmem:[%s334 + $0xc] sm:$0xf] %v333
  %s339 = scalar_lea.vmem %s0, 144
  %v340 = vld [vmem:[%s339] sm:$0xf]
  %v341 = vld [vmem:[%s339 + $0x4] sm:$0xf]
  %v342 = vld [vmem:[%s339 + $0x8] sm:$0xf]
  %v343 = vld [vmem:[%s339 + $0xc] sm:$0xf]
  %v344 = vld [vmem:[%s339 + $0x10] sm:$0xf]
  %v345 = vld [vmem:[%s339 + $0x14] sm:$0xf]
  %v346 = vld [vmem:[%s339 + $0x18] sm:$0xf]
  %v347 = vld [vmem:[%s339 + $0x1c] sm:$0xf]
  %v348 = vld [vmem:[%s339 + $0x20] sm:$0xf]
  %v349 = vld [vmem:[%s339 + $0x24] sm:$0xf]
  %v350 = vld [vmem:[%s339 + $0x28] sm:$0xf]
  %v351 = vld [vmem:[%s339 + $0x2c] sm:$0xf]
  %v352 = vld [vmem:[%s339 + $0x30] sm:$0xf]
  %v353 = vld [vmem:[%s339 + $0x34] sm:$0xf]
  %v354 = vld [vmem:[%s339 + $0x38] sm:$0xf]
  %v355 = vld [vmem:[%s339 + $0x3c] sm:$0xf]
  %v356 = vld [vmem:[%s339 + $0x40] sm:$0xf]
  %v357 = vld [vmem:[%s339 + $0x44] sm:$0xf]
  %v376 = vunpack.c.l.b16 %v340
  %v377 = vunpack.c.l.b16 %v341
  %v378 = vunpack.c.l.b16 %v342
  %v379 = vunpack.c.l.b16 %v343
  %v380 = vunpack.c.l.b16 %v344
  %v381 = vunpack.c.l.b16 %v345
  %v382 = vunpack.c.l.b16 %v346
  %v383 = vunpack.c.l.b16 %v347
  %v384 = vunpack.c.l.b16 %v348
  %v385 = vunpack.c.l.b16 %v349
  %v386 = vunpack.c.l.b16 %v350
  %v387 = vunpack.c.l.b16 %v351
  %v388 = vunpack.c.l.b16 %v352
  %v389 = vunpack.c.l.b16 %v353
  %v390 = vunpack.c.l.b16 %v354
  %v391 = vunpack.c.l.b16 %v355
  %v392 = vunpack.c.l.b16 %v356
  %v393 = vunpack.c.l.b16 %v357
  %v394 = vpack.c.b16 %v377, %v376
  %v395 = vpack.c.b16 %v379, %v378
  %v396 = vpack.c.b16 %v381, %v380
  %v397 = vpack.c.b16 %v383, %v382
  %v398 = vpack.c.b16 %v385, %v384
  %v399 = vpack.c.b16 %v387, %v386
  %v400 = vpack.c.b16 %v389, %v388
  %v401 = vpack.c.b16 %v391, %v390
  %v402 = vpack.c.b16 %v393, %v392
  %412 = vmatpush.bf16.msra.mxu0 %v401
  %413 = vmatpush.bf16.msra.mxu0 %v400
  %414 = vmatpush.bf16.msra.mxu0 %v399
  %415 = vmatpush.bf16.msra.mxu0 %v398
  %416 = vmatpush.bf16.msra.mxu0 %v397
  %417 = vmatpush.bf16.msra.mxu0 %v396
  %418 = vmatpush.bf16.msra.mxu0 %v395
  %419 = vmatpush.bf16.msra.mxu0 %v394
  %420 = vmatmul.bf16.gmra.mxu0 %v46
  %v421 = vpop.f32.mrf.mxu0
  %v422 = vadd.f32 0.0, %v421
  %v423 = vpop.f32.mrf.mxu0
  %v424 = vadd.f32 0.0, %v423
  %425 = vmatmul.bf16.gmra.mxu0 %v48
  %v426 = vpop.f32.mrf.mxu0
  %v427 = vadd.f32 0.0, %v426
  %v428 = vpop.f32.mrf.mxu0
  %v429 = vadd.f32 0.0, %v428
  %430 = vdwg.mxu0
  %431 = vmatpush.bf16.msra.mxu0 0
  %432 = vmatpush.bf16.msra.mxu0 0
  %433 = vmatpush.bf16.msra.mxu0 0
  %434 = vmatpush.bf16.msra.mxu0 0
  %435 = vmatpush.bf16.msra.mxu0 0
  %436 = vmatpush.bf16.msra.mxu0 0
  %437 = vmatpush.bf16.msra.mxu0 0
  %438 = vmatpush.bf16.msra.mxu0 %v402
  %439 = vmatmul.bf16.gmra.mxu0 %v108
  %v440 = vpop.f32.mrf.mxu0
  %v441 = vadd.f32 %v422, %v440
  %v442 = vpop.f32.mrf.mxu0
  %v443 = vadd.f32 %v424, %v442
  %444 = vmatmul.bf16.gmra.mxu0 %v111
  %v445 = vpop.f32.mrf.mxu0
  %v446 = vadd.f32 %v427, %v445
  %v447 = vpop.f32.mrf.mxu0
  %v448 = vadd.f32 %v429, %v447
  %449 = vdwg.mxu0
  %v450 = vsub.f32 %v441, %v326
  %v451 = vsub.f32 %v443, %v327
  %v452 = vsub.f32 %v446, %v328
  %v453 = vsub.f32 %v448, %v329
  %v454 = vmul.f32 %v450, 0.5
  %v455 = vmul.f32 %v451, 0.5
  %v456 = vmul.f32 %v452, 0.5
  %v457 = vmul.f32 %v453, 0.5
  %v458 = vadd.f32 %v326, %v454
  %v459 = vadd.f32 %v327, %v455
  %v460 = vadd.f32 %v328, %v456
  %v461 = vadd.f32 %v329, %v457
  %vm462 = vcmp.ge.f32.partialorder %v458, 1.0
  %vm463 = vcmp.ge.f32.partialorder %v459, 1.0
  %vm464 = vcmp.ge.f32.partialorder %v460, 1.0
  %vm465 = vcmp.ge.f32.partialorder %v461, 1.0
  %v466 = vsel %vm462, 1, 0
  %v467 = vsel %vm463, 1, 0
  %v468 = vsel %vm464, 1, 0
  %v469 = vsel %vm465, 1, 0
  %v470 = vcvt.s32.f32 %v466
  %v471 = vcvt.s32.f32 %v467
  %v472 = vcvt.s32.f32 %v468
  %v473 = vcvt.s32.f32 %v469
  %v474 = vsub.f32 1.0, %v470
  %v475 = vsub.f32 1.0, %v471
  %v476 = vsub.f32 1.0, %v472
  %v477 = vsub.f32 1.0, %v473
  %v478 = vmul.f32 %v458, %v474
  %v479 = vmul.f32 %v459, %v475
  %v480 = vmul.f32 %v460, %v476
  %v481 = vmul.f32 %v461, %v477
  %v482 = vpack.c.bf16 %v470, %v470
  %v483 = vpack.c.bf16 %v471, %v471
  %v484 = vpack.c.bf16 %v472, %v472
  %v485 = vpack.c.bf16 %v473, %v473
  %s486 = scalar_lea.vmem %s2, 32
  %487 = vst [vmem:[%s486] sm:$0xf] %v482
  %488 = vst [vmem:[%s486 + $0x4] sm:$0xf] %v483
  %489 = vst [vmem:[%s486 + $0x8] sm:$0xf] %v484
  %490 = vst [vmem:[%s486 + $0xc] sm:$0xf] %v485
  %s491 = scalar_lea.vmem %s0, 216
  %v492 = vld [vmem:[%s491] sm:$0xf]
  %v493 = vld [vmem:[%s491 + $0x4] sm:$0xf]
  %v494 = vld [vmem:[%s491 + $0x8] sm:$0xf]
  %v495 = vld [vmem:[%s491 + $0xc] sm:$0xf]
  %v496 = vld [vmem:[%s491 + $0x10] sm:$0xf]
  %v497 = vld [vmem:[%s491 + $0x14] sm:$0xf]
  %v498 = vld [vmem:[%s491 + $0x18] sm:$0xf]
  %v499 = vld [vmem:[%s491 + $0x1c] sm:$0xf]
  %v500 = vld [vmem:[%s491 + $0x20] sm:$0xf]
  %v501 = vld [vmem:[%s491 + $0x24] sm:$0xf]
  %v502 = vld [vmem:[%s491 + $0x28] sm:$0xf]
  %v503 = vld [vmem:[%s491 + $0x2c] sm:$0xf]
  %v504 = vld [vmem:[%s491 + $0x30] sm:$0xf]
  %v505 = vld [vmem:[%s491 + $0x34] sm:$0xf]
  %v506 = vld [vmem:[%s491 + $0x38] sm:$0xf]
  %v507 = vld [vmem:[%s491 + $0x3c] sm:$0xf]
  %v508 = vld [vmem:[%s491 + $0x40] sm:$0xf]
  %v509 = vld [vmem:[%s491 + $0x44] sm:$0xf]
  %v528 = vunpack.c.l.b16 %v492
  %v529 = vunpack.c.l.b16 %v493
  %v530 = vunpack.c.l.b16 %v494
  %v531 = vunpack.c.l.b16 %v495
  %v532 = vunpack.c.l.b16 %v496
  %v533 = vunpack.c.l.b16 %v497
  %v534 = vunpack.c.l.b16 %v498
  %v535 = vunpack.c.l.b16 %v499
  %v536 = vunpack.c.l.b16 %v500
  %v537 = vunpack.c.l.b16 %v501
  %v538 = vunpack.c.l.b16 %v502
  %v539 = vunpack.c.l.b16 %v503
  %v540 = vunpack.c.l.b16 %v504
  %v541 = vunpack.c.l.b16 %v505
  %v542 = vunpack.c.l.b16 %v506
  %v543 = vunpack.c.l.b16 %v507
  %v544 = vunpack.c.l.b16 %v508
  %v545 = vunpack.c.l.b16 %v509
  %v546 = vpack.c.b16 %v529, %v528
  %v547 = vpack.c.b16 %v531, %v530
  %v548 = vpack.c.b16 %v533, %v532
  %v549 = vpack.c.b16 %v535, %v534
  %v550 = vpack.c.b16 %v537, %v536
  %v551 = vpack.c.b16 %v539, %v538
  %v552 = vpack.c.b16 %v541, %v540
  %v553 = vpack.c.b16 %v543, %v542
  %v554 = vpack.c.b16 %v545, %v544
  %564 = vmatpush.bf16.msra.mxu0 %v553
  %565 = vmatpush.bf16.msra.mxu0 %v552
  %566 = vmatpush.bf16.msra.mxu0 %v551
  %567 = vmatpush.bf16.msra.mxu0 %v550
  %568 = vmatpush.bf16.msra.mxu0 %v549
  %569 = vmatpush.bf16.msra.mxu0 %v548
  %570 = vmatpush.bf16.msra.mxu0 %v547
  %571 = vmatpush.bf16.msra.mxu0 %v546
  %572 = vmatmul.bf16.gmra.mxu0 %v46
  %v573 = vpop.f32.mrf.mxu0
  %v574 = vadd.f32 0.0, %v573
  %v575 = vpop.f32.mrf.mxu0
  %v576 = vadd.f32 0.0, %v575
  %577 = vmatmul.bf16.gmra.mxu0 %v48
  %v578 = vpop.f32.mrf.mxu0
  %v579 = vadd.f32 0.0, %v578
  %v580 = vpop.f32.mrf.mxu0
  %v581 = vadd.f32 0.0, %v580
  %582 = vdwg.mxu0
  %583 = vmatpush.bf16.msra.mxu0 0
  %584 = vmatpush.bf16.msra.mxu0 0
  %585 = vmatpush.bf16.msra.mxu0 0
  %586 = vmatpush.bf16.msra.mxu0 0
  %587 = vmatpush.bf16.msra.mxu0 0
  %588 = vmatpush.bf16.msra.mxu0 0
  %589 = vmatpush.bf16.msra.mxu0 0
  %590 = vmatpush.bf16.msra.mxu0 %v554
  %591 = vmatmul.bf16.gmra.mxu0 %v108
  %v592 = vpop.f32.mrf.mxu0
  %v593 = vadd.f32 %v574, %v592
  %v594 = vpop.f32.mrf.mxu0
  %v595 = vadd.f32 %v576, %v594
  %596 = vmatmul.bf16.gmra.mxu0 %v111
  %v597 = vpop.f32.mrf.mxu0
  %v598 = vadd.f32 %v579, %v597
  %v599 = vpop.f32.mrf.mxu0
  %v600 = vadd.f32 %v581, %v599
  %601 = vdwg.mxu0
  %v602 = vsub.f32 %v593, %v478
  %v603 = vsub.f32 %v595, %v479
  %v604 = vsub.f32 %v598, %v480
  %v605 = vsub.f32 %v600, %v481
  %v606 = vmul.f32 %v602, 0.5
  %v607 = vmul.f32 %v603, 0.5
  %v608 = vmul.f32 %v604, 0.5
  %v609 = vmul.f32 %v605, 0.5
  %v610 = vadd.f32 %v478, %v606
  %v611 = vadd.f32 %v479, %v607
  %v612 = vadd.f32 %v480, %v608
  %v613 = vadd.f32 %v481, %v609
  %vm614 = vcmp.ge.f32.partialorder %v610, 1.0
  %vm615 = vcmp.ge.f32.partialorder %v611, 1.0
  %vm616 = vcmp.ge.f32.partialorder %v612, 1.0
  %vm617 = vcmp.ge.f32.partialorder %v613, 1.0
  %v618 = vsel %vm614, 1, 0
  %v619 = vsel %vm615, 1, 0
  %v620 = vsel %vm616, 1, 0
  %v621 = vsel %vm617, 1, 0
  %v622 = vcvt.s32.f32 %v618
  %v623 = vcvt.s32.f32 %v619
  %v624 = vcvt.s32.f32 %v620
  %v625 = vcvt.s32.f32 %v621
  %v626 = vpack.c.bf16 %v622, %v622
  %v627 = vpack.c.bf16 %v623, %v623
  %v628 = vpack.c.bf16 %v624, %v624
  %v629 = vpack.c.bf16 %v625, %v625
  %s630 = scalar_lea.vmem %s2, 48
  %631 = vst [vmem:[%s630] sm:$0xf] %v626
  %632 = vst [vmem:[%s630 + $0x4] sm:$0xf] %v627
  %633 = vst [vmem:[%s630 + $0x8] sm:$0xf] %v628
  %634 = vst [vmem:[%s630 + $0xc] sm:$0xf] %v629
  // Predicated region
  $region10: #{all_conv_plif_li_forward.9} parent=0 // pred_check
    _
  $region11: #{all_conv_plif_li_forward.9} parent=0 // pred_check_branch
    %636 = sbr.rel (0) target = $region13
  $region12: #{all_conv_plif_li_forward.9} parent=0 // pred_region
    _
  $region13: #{all_conv_plif_li_forward.9} parent=0 // pred_fallthru
    _
  // Predicated region
  $region14: #{all_conv_plif_li_forward.9} parent=0 // pred_check
    _
  $region15: #{all_conv_plif_li_forward.9} parent=0 // pred_check_branch
    %638 = sbr.rel (0) target = $region17
  $region16: #{all_conv_plif_li_forward.9} parent=0 // pred_region
    _
  $region17: #{all_conv_plif_li_forward.9} parent=0 // pred_fallthru
    _

// kernel: all_conv_plif_li_forward.10
$region0: #{all_conv_plif_li_forward.10}
  #allocation0 [shape = 'u32[]', space=smem, size = 0x4, offset = 0x4, fixed_abs, tag = 'smem constant byte address 0x4 - core index']
  #allocation1 [shape = 'u32[72,128]{1,0:T(1,128)}', space=vmem, size = 0x9000, scoped, tag = 'internal scratch']
  %s0 = inlined_call_operand.vmem [shape: bf16[4,288,128], index: 0, kind: input, shape index: {}]
  %s1 = inlined_call_operand.vmem [shape: bf16[32,288], index: 1, kind: input, shape index: {}]
  %s2 = inlined_call_operand.vmem [shape: bf16[4,32,128], index: 2, kind: output, shape index: {}]
  %s3 = sld [smem:[#allocation0]]
  $region18: #{all_conv_plif_li_forward.10} parent=0
    _
  %s5 = ssub.s32 1, %s3
  %s6 = scalar_select 0, %s5, %s3
  // Predicated region
  $region2: #{all_conv_plif_li_forward.10} parent=0 // pred_check
    _
  $region3: #{all_conv_plif_li_forward.10} parent=0 // pred_check_branch
    %8 = sbr.rel (0) target = $region5
  $region4: #{all_conv_plif_li_forward.10} parent=0 // pred_region
    _
  $region5: #{all_conv_plif_li_forward.10} parent=0 // pred_fallthru
    _
  // Predicated region
  $region6: #{all_conv_plif_li_forward.10} parent=0 // pred_check
    _
  $region7: #{all_conv_plif_li_forward.10} parent=0 // pred_check_branch
    %10 = sbr.rel (0) target = $region9
  $region8: #{all_conv_plif_li_forward.10} parent=0 // pred_region
    _
  $region9: #{all_conv_plif_li_forward.10} parent=0 // pred_fallthru
    _
  %v12 = vld [vmem:[%s1] sm:$0xff]
  %v13 = vld [vmem:[%s1 + $0x8] sm:$0xf]
  %v14 = vld [vmem:[%s1 + $0xc] sm:$0xff]
  %v15 = vld [vmem:[%s1 + $0x14] sm:$0xf]
  %v16 = vld [vmem:[%s1 + $0x18] sm:$0xff]
  %v17 = vld [vmem:[%s1 + $0x20] sm:$0xf]
  %v18 = vld [vmem:[%s1 + $0x24] sm:$0xff]
  %v19 = vld [vmem:[%s1 + $0x2c] sm:$0xf]
  %v20 = vld [vmem:[%s0] sm:$0xf]
  %v21 = vld [vmem:[%s0 + $0x4] sm:$0xf]
  %v22 = vld [vmem:[%s0 + $0x8] sm:$0xf]
  %v23 = vld [vmem:[%s0 + $0xc] sm:$0xf]
  %v24 = vld [vmem:[%s0 + $0x10] sm:$0xf]
  %v25 = vld [vmem:[%s0 + $0x14] sm:$0xf]
  %v26 = vld [vmem:[%s0 + $0x18] sm:$0xf]
  %v27 = vld [vmem:[%s0 + $0x1c] sm:$0xf]
  %v28 = vld [vmem:[%s0 + $0x20] sm:$0xf]
  %v29 = vld [vmem:[%s0 + $0x24] sm:$0xf]
  %v30 = vld [vmem:[%s0 + $0x28] sm:$0xf]
  %v31 = vld [vmem:[%s0 + $0x2c] sm:$0xf]
  %v32 = vld [vmem:[%s0 + $0x30] sm:$0xf]
  %v33 = vld [vmem:[%s0 + $0x34] sm:$0xf]
  %v34 = vld [vmem:[%s0 + $0x38] sm:$0xf]
  %v35 = vld [vmem:[%s0 + $0x3c] sm:$0xf]
  %v36 = vld [vmem:[%s0 + $0x40] sm:$0xf]
  %v37 = vld [vmem:[%s0 + $0x44] sm:$0xf]
  %v38 = vld [vmem:[%s0 + $0x48] sm:$0xf]
  %v39 = vld [vmem:[%s0 + $0x4c] sm:$0xf]
  %v40 = vld [vmem:[%s0 + $0x50] sm:$0xf]
  %v41 = vld [vmem:[%s0 + $0x54] sm:$0xf]
  %v42 = vld [vmem:[%s0 + $0x58] sm:$0xf]
  %v43 = vld [vmem:[%s0 + $0x5c] sm:$0xf]
  %v44 = vld [vmem:[%s0 + $0x60] sm:$0xf]
  %v45 = vld [vmem:[%s0 + $0x64] sm:$0xf]
  %v46 = vld [vmem:[%s0 + $0x68] sm:$0xf]
  %v47 = vld [vmem:[%s0 + $0x6c] sm:$0xf]
  %v48 = vld [vmem:[%s0 + $0x70] sm:$0xf]
  %v49 = vld [vmem:[%s0 + $0x74] sm:$0xf]
  %v50 = vld [vmem:[%s0 + $0x78] sm:$0xf]
  %v51 = vld [vmem:[%s0 + $0x7c] sm:$0xf]
  %v52 = vld [vmem:[%s0 + $0x80] sm:$0xf]
  %v53 = vld [vmem:[%s0 + $0x84] sm:$0xf]
  %v54 = vld [vmem:[%s0 + $0x88] sm:$0xf]
  %v55 = vld [vmem:[%s0 + $0x8c] sm:$0xf]
  %v64 = vunpack.c.l.b16 %v12
  %v65 = vunpack.c.h.b16 %v12
  %v66 = vunpack.c.l.b16 %v13
  %v67 = vunpack.c.l.b16 %v14
  %v68 = vunpack.c.h.b16 %v14
  %v69 = vunpack.c.l.b16 %v15
  %v70 = vunpack.c.l.b16 %v16
  %v71 = vunpack.c.h.b16 %v16
  %v72 = vunpack.c.l.b16 %v17
  %v73 = vunpack.c.l.b16 %v18
  %v74 = vunpack.c.h.b16 %v18
  %v75 = vunpack.c.l.b16 %v19
  %v76 = vpack.c.b16 %v67, %v64
  %v77 = vpack.c.b16 %v68, %v65
  %v78 = vpack.c.b16 %v69, %v66
  %v79 = vpack.c.b16 %v73, %v70
  %v80 = vpack.c.b16 %v74, %v71
  %v81 = vpack.c.b16 %v75, %v72
  %v122 = vunpack.c.l.b16 %v20
  %v123 = vunpack.c.l.b16 %v21
  %v124 = vunpack.c.l.b16 %v22
  %v125 = vunpack.c.l.b16 %v23
  %v126 = vunpack.c.l.b16 %v24
  %v127 = vunpack.c.l.b16 %v25
  %v128 = vunpack.c.l.b16 %v26
  %v129 = vunpack.c.l.b16 %v27
  %v130 = vunpack.c.l.b16 %v28
  %v131 = vunpack.c.l.b16 %v29
  %v132 = vunpack.c.l.b16 %v30
  %v133 = vunpack.c.l.b16 %v31
  %v134 = vunpack.c.l.b16 %v32
  %v135 = vunpack.c.l.b16 %v33
  %v136 = vunpack.c.l.b16 %v34
  %v137 = vunpack.c.l.b16 %v35
  %v138 = vunpack.c.l.b16 %v36
  %v139 = vunpack.c.l.b16 %v37
  %v140 = vunpack.c.l.b16 %v38
  %v141 = vunpack.c.l.b16 %v39
  %v142 = vunpack.c.l.b16 %v40
  %v143 = vunpack.c.l.b16 %v41
  %v144 = vunpack.c.l.b16 %v42
  %v145 = vunpack.c.l.b16 %v43
  %v146 = vunpack.c.l.b16 %v44
  %v147 = vunpack.c.l.b16 %v45
  %v148 = vunpack.c.l.b16 %v46
  %v149 = vunpack.c.l.b16 %v47
  %v150 = vunpack.c.l.b16 %v48
  %v151 = vunpack.c.l.b16 %v49
  %v152 = vunpack.c.l.b16 %v50
  %v153 = vunpack.c.l.b16 %v51
  %v154 = vunpack.c.l.b16 %v52
  %v155 = vunpack.c.l.b16 %v53
  %v156 = vunpack.c.l.b16 %v54
  %v157 = vunpack.c.l.b16 %v55
  %v158 = vpack.c.b16 %v123, %v122
  %v159 = vpack.c.b16 %v125, %v124
  %v160 = vpack.c.b16 %v127, %v126
  %v161 = vpack.c.b16 %v129, %v128
  %v162 = vpack.c.b16 %v131, %v130
  %v163 = vpack.c.b16 %v133, %v132
  %v164 = vpack.c.b16 %v135, %v134
  %v165 = vpack.c.b16 %v137, %v136
  %v166 = vpack.c.b16 %v139, %v138
  %v167 = vpack.c.b16 %v141, %v140
  %v168 = vpack.c.b16 %v143, %v142
  %v169 = vpack.c.b16 %v145, %v144
  %v170 = vpack.c.b16 %v147, %v146
  %v171 = vpack.c.b16 %v149, %v148
  %v172 = vpack.c.b16 %v151, %v150
  %v173 = vpack.c.b16 %v153, %v152
  %v174 = vpack.c.b16 %v155, %v154
  %v175 = vpack.c.b16 %v157, %v156
  %vm194 = vcmask 261120
  %v196 = vsel %vm194, %v78, 0
  %v199 = vsel %vm194, %v81, 0
  %201 = vmatpush.bf16.msra.mxu0 %v165
  %202 = vmatpush.bf16.msra.mxu0 %v164
  %203 = vmatpush.bf16.msra.mxu0 %v163
  %204 = vmatpush.bf16.msra.mxu0 %v162
  %205 = vmatpush.bf16.msra.mxu0 %v161
  %206 = vmatpush.bf16.msra.mxu0 %v160
  %207 = vmatpush.bf16.msra.mxu0 %v159
  %208 = vmatpush.bf16.msra.mxu0 %v158
  %209 = vmatmul.bf16.gmra.mxu0 %v76
  %v210 = vpop.f32.mrf.mxu0
  %v211 = vadd.f32 0.0, %v210
  %v212 = vpop.f32.mrf.mxu0
  %v213 = vadd.f32 0.0, %v212
  %214 = vmatmul.bf16.gmra.mxu0 %v79
  %v215 = vpop.f32.mrf.mxu0
  %v216 = vadd.f32 0.0, %v215
  %v217 = vpop.f32.mrf.mxu0
  %v218 = vadd.f32 0.0, %v217
  %219 = vdwg.mxu0
  %220 = vmatpush.bf16.msra.mxu0 %v173
  %221 = vmatpush.bf16.msra.mxu0 %v172
  %222 = vmatpush.bf16.msra.mxu0 %v171
  %223 = vmatpush.bf16.msra.mxu0 %v170
  %224 = vmatpush.bf16.msra.mxu0 %v169
  %225 = vmatpush.bf16.msra.mxu0 %v168
  %226 = vmatpush.bf16.msra.mxu0 %v167
  %227 = vmatpush.bf16.msra.mxu0 %v166
  %228 = vmatmul.bf16.gmra.mxu0 %v77
  %v229 = vpop.f32.mrf.mxu0
  %v230 = vadd.f32 %v211, %v229
  %v231 = vpop.f32.mrf.mxu0
  %v232 = vadd.f32 %v213, %v231
  %233 = vmatmul.bf16.gmra.mxu0 %v80
  %v234 = vpop.f32.mrf.mxu0
  %v235 = vadd.f32 %v216, %v234
  %v236 = vpop.f32.mrf.mxu0
  %v237 = vadd.f32 %v218, %v236
  %238 = vdwg.mxu0
  %239 = vmatpush.bf16.msra.mxu0 0
  %240 = vmatpush.bf16.msra.mxu0 0
  %241 = vmatpush.bf16.msra.mxu0 0
  %242 = vmatpush.bf16.msra.mxu0 0
  %243 = vmatpush.bf16.msra.mxu0 0
  %244 = vmatpush.bf16.msra.mxu0 0
  %245 = vmatpush.bf16.msra.mxu0 %v175
  %246 = vmatpush.bf16.msra.mxu0 %v174
  %247 = vmatmul.bf16.gmra.mxu0 %v196
  %v248 = vpop.f32.mrf.mxu0
  %v249 = vadd.f32 %v230, %v248
  %v250 = vpop.f32.mrf.mxu0
  %v251 = vadd.f32 %v232, %v250
  %252 = vmatmul.bf16.gmra.mxu0 %v199
  %v253 = vpop.f32.mrf.mxu0
  %v254 = vadd.f32 %v235, %v253
  %v255 = vpop.f32.mrf.mxu0
  %v256 = vadd.f32 %v237, %v255
  %257 = vdwg.mxu0
  %v258 = vmul.f32 %v249, 0.5
  %v259 = vmul.f32 %v251, 0.5
  %v260 = vmul.f32 %v254, 0.5
  %v261 = vmul.f32 %v256, 0.5
  %v262 = vadd.f32 %v258, 0.0
  %v263 = vadd.f32 %v259, 0.0
  %v264 = vadd.f32 %v260, 0.0
  %v265 = vadd.f32 %v261, 0.0
  %vm266 = vcmp.ge.f32.partialorder %v262, 1.0
  %vm267 = vcmp.ge.f32.partialorder %v263, 1.0
  %vm268 = vcmp.ge.f32.partialorder %v264, 1.0
  %vm269 = vcmp.ge.f32.partialorder %v265, 1.0
  %v270 = vsel %vm266, 1, 0
  %v271 = vsel %vm267, 1, 0
  %v272 = vsel %vm268, 1, 0
  %v273 = vsel %vm269, 1, 0
  %v274 = vcvt.s32.f32 %v270
  %v275 = vcvt.s32.f32 %v271
  %v276 = vcvt.s32.f32 %v272
  %v277 = vcvt.s32.f32 %v273
  %v278 = vsub.f32 1.0, %v274
  %v279 = vsub.f32 1.0, %v275
  %v280 = vsub.f32 1.0, %v276
  %v281 = vsub.f32 1.0, %v277
  %v282 = vmul.f32 %v262, %v278
  %v283 = vmul.f32 %v263, %v279
  %v284 = vmul.f32 %v264, %v280
  %v285 = vmul.f32 %v265, %v281
  %v286 = vpack.c.bf16 %v274, %v274
  %v287 = vpack.c.bf16 %v275, %v275
  %v288 = vpack.c.bf16 %v276, %v276
  %v289 = vpack.c.bf16 %v277, %v277
  %290 = vst [vmem:[%s2] sm:$0xf] %v286
  %291 = vst [vmem:[%s2 + $0x4] sm:$0xf] %v287
  %292 = vst [vmem:[%s2 + $0x8] sm:$0xf] %v288
  %293 = vst [vmem:[%s2 + $0xc] sm:$0xf] %v289
  %s294 = scalar_lea.vmem %s0, 144
  %v295 = vld [vmem:[%s294] sm:$0xf]
  %v296 = vld [vmem:[%s294 + $0x4] sm:$0xf]
  %v297 = vld [vmem:[%s294 + $0x8] sm:$0xf]
  %v298 = vld [vmem:[%s294 + $0xc] sm:$0xf]
  %v299 = vld [vmem:[%s294 + $0x10] sm:$0xf]
  %v300 = vld [vmem:[%s294 + $0x14] sm:$0xf]
  %v301 = vld [vmem:[%s294 + $0x18] sm:$0xf]
  %v302 = vld [vmem:[%s294 + $0x1c] sm:$0xf]
  %v303 = vld [vmem:[%s294 + $0x20] sm:$0xf]
  %v304 = vld [vmem:[%s294 + $0x24] sm:$0xf]
  %v305 = vld [vmem:[%s294 + $0x28] sm:$0xf]
  %v306 = vld [vmem:[%s294 + $0x2c] sm:$0xf]
  %v307 = vld [vmem:[%s294 + $0x30] sm:$0xf]
  %v308 = vld [vmem:[%s294 + $0x34] sm:$0xf]
  %v309 = vld [vmem:[%s294 + $0x38] sm:$0xf]
  %v310 = vld [vmem:[%s294 + $0x3c] sm:$0xf]
  %v311 = vld [vmem:[%s294 + $0x40] sm:$0xf]
  %v312 = vld [vmem:[%s294 + $0x44] sm:$0xf]
  %v313 = vld [vmem:[%s294 + $0x48] sm:$0xf]
  %v314 = vld [vmem:[%s294 + $0x4c] sm:$0xf]
  %v315 = vld [vmem:[%s294 + $0x50] sm:$0xf]
  %v316 = vld [vmem:[%s294 + $0x54] sm:$0xf]
  %v317 = vld [vmem:[%s294 + $0x58] sm:$0xf]
  %v318 = vld [vmem:[%s294 + $0x5c] sm:$0xf]
  %v319 = vld [vmem:[%s294 + $0x60] sm:$0xf]
  %v320 = vld [vmem:[%s294 + $0x64] sm:$0xf]
  %v321 = vld [vmem:[%s294 + $0x68] sm:$0xf]
  %v322 = vld [vmem:[%s294 + $0x6c] sm:$0xf]
  %v323 = vld [vmem:[%s294 + $0x70] sm:$0xf]
  %v324 = vld [vmem:[%s294 + $0x74] sm:$0xf]
  %v325 = vld [vmem:[%s294 + $0x78] sm:$0xf]
  %v326 = vld [vmem:[%s294 + $0x7c] sm:$0xf]
  %v327 = vld [vmem:[%s294 + $0x80] sm:$0xf]
  %v328 = vld [vmem:[%s294 + $0x84] sm:$0xf]
  %v329 = vld [vmem:[%s294 + $0x88] sm:$0xf]
  %v330 = vld [vmem:[%s294 + $0x8c] sm:$0xf]
  %v367 = vunpack.c.l.b16 %v295
  %v368 = vunpack.c.l.b16 %v296
  %v369 = vunpack.c.l.b16 %v297
  %v370 = vunpack.c.l.b16 %v298
  %v371 = vunpack.c.l.b16 %v299
  %v372 = vunpack.c.l.b16 %v300
  %v373 = vunpack.c.l.b16 %v301
  %v374 = vunpack.c.l.b16 %v302
  %v375 = vunpack.c.l.b16 %v303
  %v376 = vunpack.c.l.b16 %v304
  %v377 = vunpack.c.l.b16 %v305
  %v378 = vunpack.c.l.b16 %v306
  %v379 = vunpack.c.l.b16 %v307
  %v380 = vunpack.c.l.b16 %v308
  %v381 = vunpack.c.l.b16 %v309
  %v382 = vunpack.c.l.b16 %v310
  %v383 = vunpack.c.l.b16 %v311
  %v384 = vunpack.c.l.b16 %v312
  %v385 = vunpack.c.l.b16 %v313
  %v386 = vunpack.c.l.b16 %v314
  %v387 = vunpack.c.l.b16 %v315
  %v388 = vunpack.c.l.b16 %v316
  %v389 = vunpack.c.l.b16 %v317
  %v390 = vunpack.c.l.b16 %v318
  %v391 = vunpack.c.l.b16 %v319
  %v392 = vunpack.c.l.b16 %v320
  %v393 = vunpack.c.l.b16 %v321
  %v394 = vunpack.c.l.b16 %v322
  %v395 = vunpack.c.l.b16 %v323
  %v396 = vunpack.c.l.b16 %v324
  %v397 = vunpack.c.l.b16 %v325
  %v398 = vunpack.c.l.b16 %v326
  %v399 = vunpack.c.l.b16 %v327
  %v400 = vunpack.c.l.b16 %v328
  %v401 = vunpack.c.l.b16 %v329
  %v402 = vunpack.c.l.b16 %v330
  %v403 = vpack.c.b16 %v368, %v367
  %v404 = vpack.c.b16 %v370, %v369
  %v405 = vpack.c.b16 %v372, %v371
  %v406 = vpack.c.b16 %v374, %v373
  %v407 = vpack.c.b16 %v376, %v375
  %v408 = vpack.c.b16 %v378, %v377
  %v409 = vpack.c.b16 %v380, %v379
  %v410 = vpack.c.b16 %v382, %v381
  %v411 = vpack.c.b16 %v384, %v383
  %v412 = vpack.c.b16 %v386, %v385
  %v413 = vpack.c.b16 %v388, %v387
  %v414 = vpack.c.b16 %v390, %v389
  %v415 = vpack.c.b16 %v392, %v391
  %v416 = vpack.c.b16 %v394, %v393
  %v417 = vpack.c.b16 %v396, %v395
  %v418 = vpack.c.b16 %v398, %v397
  %v419 = vpack.c.b16 %v400, %v399
  %v420 = vpack.c.b16 %v402, %v401
  %439 = vmatpush.bf16.msra.mxu0 %v410
  %440 = vmatpush.bf16.msra.mxu0 %v409
  %441 = vmatpush.bf16.msra.mxu0 %v408
  %442 = vmatpush.bf16.msra.mxu0 %v407
  %443 = vmatpush.bf16.msra.mxu0 %v406
  %444 = vmatpush.bf16.msra.mxu0 %v405
  %445 = vmatpush.bf16.msra.mxu0 %v404
  %446 = vmatpush.bf16.msra.mxu0 %v403
  %447 = vmatmul.bf16.gmra.mxu0 %v76
  %v448 = vpop.f32.mrf.mxu0
  %v449 = vadd.f32 0.0, %v448
  %v450 = vpop.f32.mrf.mxu0
  %v451 = vadd.f32 0.0, %v450
  %452 = vmatmul.bf16.gmra.mxu0 %v79
  %v453 = vpop.f32.mrf.mxu0
  %v454 = vadd.f32 0.0, %v453
  %v455 = vpop.f32.mrf.mxu0
  %v456 = vadd.f32 0.0, %v455
  %457 = vdwg.mxu0
  %458 = vmatpush.bf16.msra.mxu0 %v418
  %459 = vmatpush.bf16.msra.mxu0 %v417
  %460 = vmatpush.bf16.msra.mxu0 %v416
  %461 = vmatpush.bf16.msra.mxu0 %v415
  %462 = vmatpush.bf16.msra.mxu0 %v414
  %463 = vmatpush.bf16.msra.mxu0 %v413
  %464 = vmatpush.bf16.msra.mxu0 %v412
  %465 = vmatpush.bf16.msra.mxu0 %v411
  %466 = vmatmul.bf16.gmra.mxu0 %v77
  %v467 = vpop.f32.mrf.mxu0
  %v468 = vadd.f32 %v449, %v467
  %v469 = vpop.f32.mrf.mxu0
  %v470 = vadd.f32 %v451, %v469
  %471 = vmatmul.bf16.gmra.mxu0 %v80
  %v472 = vpop.f32.mrf.mxu0
  %v473 = vadd.f32 %v454, %v472
  %v474 = vpop.f32.mrf.mxu0
  %v475 = vadd.f32 %v456, %v474
  %476 = vdwg.mxu0
  %477 = vmatpush.bf16.msra.mxu0 0
  %478 = vmatpush.bf16.msra.mxu0 0
  %479 = vmatpush.bf16.msra.mxu0 0
  %480 = vmatpush.bf16.msra.mxu0 0
  %481 = vmatpush.bf16.msra.mxu0 0
  %482 = vmatpush.bf16.msra.mxu0 0
  %483 = vmatpush.bf16.msra.mxu0 %v420
  %484 = vmatpush.bf16.msra.mxu0 %v419
  %485 = vmatmul.bf16.gmra.mxu0 %v196
  %v486 = vpop.f32.mrf.mxu0
  %v487 = vadd.f32 %v468, %v486
  %v488 = vpop.f32.mrf.mxu0
  %v489 = vadd.f32 %v470, %v488
  %490 = vmatmul.bf16.gmra.mxu0 %v199
  %v491 = vpop.f32.mrf.mxu0
  %v492 = vadd.f32 %v473, %v491
  %v493 = vpop.f32.mrf.mxu0
  %v494 = vadd.f32 %v475, %v493
  %495 = vdwg.mxu0
  %v496 = vsub.f32 %v487, %v282
  %v497 = vsub.f32 %v489, %v283
  %v498 = vsub.f32 %v492, %v284
  %v499 = vsub.f32 %v494, %v285
  %v500 = vmul.f32 %v496, 0.5
  %v501 = vmul.f32 %v497, 0.5
  %v502 = vmul.f32 %v498, 0.5
  %v503 = vmul.f32 %v499, 0.5
  %v504 = vadd.f32 %v282, %v500
  %v505 = vadd.f32 %v283, %v501
  %v506 = vadd.f32 %v284, %v502
  %v507 = vadd.f32 %v285, %v503
  %vm508 = vcmp.ge.f32.partialorder %v504, 1.0
  %vm509 = vcmp.ge.f32.partialorder %v505, 1.0
  %vm510 = vcmp.ge.f32.partialorder %v506, 1.0
  %vm511 = vcmp.ge.f32.partialorder %v507, 1.0
  %v512 = vsel %vm508, 1, 0
  %v513 = vsel %vm509, 1, 0
  %v514 = vsel %vm510, 1, 0
  %v515 = vsel %vm511, 1, 0
  %v516 = vcvt.s32.f32 %v512
  %v517 = vcvt.s32.f32 %v513
  %v518 = vcvt.s32.f32 %v514
  %v519 = vcvt.s32.f32 %v515
  %v520 = vsub.f32 1.0, %v516
  %v521 = vsub.f32 1.0, %v517
  %v522 = vsub.f32 1.0, %v518
  %v523 = vsub.f32 1.0, %v519
  %v524 = vmul.f32 %v504, %v520
  %v525 = vmul.f32 %v505, %v521
  %v526 = vmul.f32 %v506, %v522
  %v527 = vmul.f32 %v507, %v523
  %v528 = vpack.c.bf16 %v516, %v516
  %v529 = vpack.c.bf16 %v517, %v517
  %v530 = vpack.c.bf16 %v518, %v518
  %v531 = vpack.c.bf16 %v519, %v519
  %s532 = scalar_lea.vmem %s2, 16
  %533 = vst [vmem:[%s532] sm:$0xf] %v528
  %534 = vst [vmem:[%s532 + $0x4] sm:$0xf] %v529
  %535 = vst [vmem:[%s532 + $0x8] sm:$0xf] %v530
  %536 = vst [vmem:[%s532 + $0xc] sm:$0xf] %v531
  %s537 = scalar_lea.vmem %s0, 288
  %v538 = vld [vmem:[%s537] sm:$0xf]
  %v539 = vld [vmem:[%s537 + $0x4] sm:$0xf]
  %v540 = vld [vmem:[%s537 + $0x8] sm:$0xf]
  %v541 = vld [vmem:[%s537 + $0xc] sm:$0xf]
  %v542 = vld [vmem:[%s537 + $0x10] sm:$0xf]
  %v543 = vld [vmem:[%s537 + $0x14] sm:$0xf]
  %v544 = vld [vmem:[%s537 + $0x18] sm:$0xf]
  %v545 = vld [vmem:[%s537 + $0x1c] sm:$0xf]
  %v546 = vld [vmem:[%s537 + $0x20] sm:$0xf]
  %v547 = vld [vmem:[%s537 + $0x24] sm:$0xf]
  %v548 = vld [vmem:[%s537 + $0x28] sm:$0xf]
  %v549 = vld [vmem:[%s537 + $0x2c] sm:$0xf]
  %v550 = vld [vmem:[%s537 + $0x30] sm:$0xf]
  %v551 = vld [vmem:[%s537 + $0x34] sm:$0xf]
  %v552 = vld [vmem:[%s537 + $0x38] sm:$0xf]
  %v553 = vld [vmem:[%s537 + $0x3c] sm:$0xf]
  %v554 = vld [vmem:[%s537 + $0x40] sm:$0xf]
  %v555 = vld [vmem:[%s537 + $0x44] sm:$0xf]
  %v556 = vld [vmem:[%s537 + $0x48] sm:$0xf]
  %v557 = vld [vmem:[%s537 + $0x4c] sm:$0xf]
  %v558 = vld [vmem:[%s537 + $0x50] sm:$0xf]
  %v559 = vld [vmem:[%s537 + $0x54] sm:$0xf]
  %v560 = vld [vmem:[%s537 + $0x58] sm:$0xf]
  %v561 = vld [vmem:[%s537 + $0x5c] sm:$0xf]
  %v562 = vld [vmem:[%s537 + $0x60] sm:$0xf]
  %v563 = vld [vmem:[%s537 + $0x64] sm:$0xf]
  %v564 = vld [vmem:[%s537 + $0x68] sm:$0xf]
  %v565 = vld [vmem:[%s537 + $0x6c] sm:$0xf]
  %v566 = vld [vmem:[%s537 + $0x70] sm:$0xf]
  %v567 = vld [vmem:[%s537 + $0x74] sm:$0xf]
  %v568 = vld [vmem:[%s537 + $0x78] sm:$0xf]
  %v569 = vld [vmem:[%s537 + $0x7c] sm:$0xf]
  %v570 = vld [vmem:[%s537 + $0x80] sm:$0xf]
  %v571 = vld [vmem:[%s537 + $0x84] sm:$0xf]
  %v572 = vld [vmem:[%s537 + $0x88] sm:$0xf]
  %v573 = vld [vmem:[%s537 + $0x8c] sm:$0xf]
  %v610 = vunpack.c.l.b16 %v538
  %v611 = vunpack.c.l.b16 %v539
  %v612 = vunpack.c.l.b16 %v540
  %v613 = vunpack.c.l.b16 %v541
  %v614 = vunpack.c.l.b16 %v542
  %v615 = vunpack.c.l.b16 %v543
  %v616 = vunpack.c.l.b16 %v544
  %v617 = vunpack.c.l.b16 %v545
  %v618 = vunpack.c.l.b16 %v546
  %v619 = vunpack.c.l.b16 %v547
  %v620 = vunpack.c.l.b16 %v548
  %v621 = vunpack.c.l.b16 %v549
  %v622 = vunpack.c.l.b16 %v550
  %v623 = vunpack.c.l.b16 %v551
  %v624 = vunpack.c.l.b16 %v552
  %v625 = vunpack.c.l.b16 %v553
  %v626 = vunpack.c.l.b16 %v554
  %v627 = vunpack.c.l.b16 %v555
  %v628 = vunpack.c.l.b16 %v556
  %v629 = vunpack.c.l.b16 %v557
  %v630 = vunpack.c.l.b16 %v558
  %v631 = vunpack.c.l.b16 %v559
  %v632 = vunpack.c.l.b16 %v560
  %v633 = vunpack.c.l.b16 %v561
  %v634 = vunpack.c.l.b16 %v562
  %v635 = vunpack.c.l.b16 %v563
  %v636 = vunpack.c.l.b16 %v564
  %v637 = vunpack.c.l.b16 %v565
  %v638 = vunpack.c.l.b16 %v566
  %v639 = vunpack.c.l.b16 %v567
  %v640 = vunpack.c.l.b16 %v568
  %v641 = vunpack.c.l.b16 %v569
  %v642 = vunpack.c.l.b16 %v570
  %v643 = vunpack.c.l.b16 %v571
  %v644 = vunpack.c.l.b16 %v572
  %v645 = vunpack.c.l.b16 %v573
  %v646 = vpack.c.b16 %v611, %v610
  %v647 = vpack.c.b16 %v613, %v612
  %v648 = vpack.c.b16 %v615, %v614
  %v649 = vpack.c.b16 %v617, %v616
  %v650 = vpack.c.b16 %v619, %v618
  %v651 = vpack.c.b16 %v621, %v620
  %v652 = vpack.c.b16 %v623, %v622
  %v653 = vpack.c.b16 %v625, %v624
  %v654 = vpack.c.b16 %v627, %v626
  %v655 = vpack.c.b16 %v629, %v628
  %v656 = vpack.c.b16 %v631, %v630
  %v657 = vpack.c.b16 %v633, %v632
  %v658 = vpack.c.b16 %v635, %v634
  %v659 = vpack.c.b16 %v637, %v636
  %v660 = vpack.c.b16 %v639, %v638
  %v661 = vpack.c.b16 %v641, %v640
  %v662 = vpack.c.b16 %v643, %v642
  %v663 = vpack.c.b16 %v645, %v644
  %682 = vmatpush.bf16.msra.mxu0 %v653
  %683 = vmatpush.bf16.msra.mxu0 %v652
  %684 = vmatpush.bf16.msra.mxu0 %v651
  %685 = vmatpush.bf16.msra.mxu0 %v650
  %686 = vmatpush.bf16.msra.mxu0 %v649
  %687 = vmatpush.bf16.msra.mxu0 %v648
  %688 = vmatpush.bf16.msra.mxu0 %v647
  %689 = vmatpush.bf16.msra.mxu0 %v646
  %690 = vmatmul.bf16.gmra.mxu0 %v76
  %v691 = vpop.f32.mrf.mxu0
  %v692 = vadd.f32 0.0, %v691
  %v693 = vpop.f32.mrf.mxu0
  %v694 = vadd.f32 0.0, %v693
  %695 = vmatmul.bf16.gmra.mxu0 %v79
  %v696 = vpop.f32.mrf.mxu0
  %v697 = vadd.f32 0.0, %v696
  %v698 = vpop.f32.mrf.mxu0
  %v699 = vadd.f32 0.0, %v698
  %700 = vdwg.mxu0
  %701 = vmatpush.bf16.msra.mxu0 %v661
  %702 = vmatpush.bf16.msra.mxu0 %v660
  %703 = vmatpush.bf16.msra.mxu0 %v659
  %704 = vmatpush.bf16.msra.mxu0 %v658
  %705 = vmatpush.bf16.msra.mxu0 %v657
  %706 = vmatpush.bf16.msra.mxu0 %v656
  %707 = vmatpush.bf16.msra.mxu0 %v655
  %708 = vmatpush.bf16.msra.mxu0 %v654
  %709 = vmatmul.bf16.gmra.mxu0 %v77
  %v710 = vpop.f32.mrf.mxu0
  %v711 = vadd.f32 %v692, %v710
  %v712 = vpop.f32.mrf.mxu0
  %v713 = vadd.f32 %v694, %v712
  %714 = vmatmul.bf16.gmra.mxu0 %v80
  %v715 = vpop.f32.mrf.mxu0
  %v716 = vadd.f32 %v697, %v715
  %v717 = vpop.f32.mrf.mxu0
  %v718 = vadd.f32 %v699, %v717
  %719 = vdwg.mxu0
  %720 = vmatpush.bf16.msra.mxu0 0
  %721 = vmatpush.bf16.msra.mxu0 0
  %722 = vmatpush.bf16.msra.mxu0 0
  %723 = vmatpush.bf16.msra.mxu0 0
  %724 = vmatpush.bf16.msra.mxu0 0
  %725 = vmatpush.bf16.msra.mxu0 0
  %726 = vmatpush.bf16.msra.mxu0 %v663
  %727 = vmatpush.bf16.msra.mxu0 %v662
  %728 = vmatmul.bf16.gmra.mxu0 %v196
  %v729 = vpop.f32.mrf.mxu0
  %v730 = vadd.f32 %v711, %v729
  %v731 = vpop.f32.mrf.mxu0
  %v732 = vadd.f32 %v713, %v731
  %733 = vmatmul.bf16.gmra.mxu0 %v199
  %v734 = vpop.f32.mrf.mxu0
  %v735 = vadd.f32 %v716, %v734
  %v736 = vpop.f32.mrf.mxu0
  %v737 = vadd.f32 %v718, %v736
  %738 = vdwg.mxu0
  %v739 = vsub.f32 %v730, %v524
  %v740 = vsub.f32 %v732, %v525
  %v741 = vsub.f32 %v735, %v526
  %v742 = vsub.f32 %v737, %v527
  %v743 = vmul.f32 %v739, 0.5
  %v744 = vmul.f32 %v740, 0.5
  %v745 = vmul.f32 %v741, 0.5
  %v746 = vmul.f32 %v742, 0.5
  %v747 = vadd.f32 %v524, %v743
  %v748 = vadd.f32 %v525, %v744
  %v749 = vadd.f32 %v526, %v745
  %v750 = vadd.f32 %v527, %v746
  %vm751 = vcmp.ge.f32.partialorder %v747, 1.0
  %vm752 = vcmp.ge.f32.partialorder %v748, 1.0
  %vm753 = vcmp.ge.f32.partialorder %v749, 1.0
  %vm754 = vcmp.ge.f32.partialorder %v750, 1.0
  %v755 = vsel %vm751, 1, 0
  %v756 = vsel %vm752, 1, 0
  %v757 = vsel %vm753, 1, 0
  %v758 = vsel %vm754, 1, 0
  %v759 = vcvt.s32.f32 %v755
  %v760 = vcvt.s32.f32 %v756
  %v761 = vcvt.s32.f32 %v757
  %v762 = vcvt.s32.f32 %v758
  %v763 = vsub.f32 1.0, %v759
  %v764 = vsub.f32 1.0, %v760
  %v765 = vsub.f32 1.0, %v761
  %v766 = vsub.f32 1.0, %v762
  %v767 = vmul.f32 %v747, %v763
  %v768 = vmul.f32 %v748, %v764
  %v769 = vmul.f32 %v749, %v765
  %v770 = vmul.f32 %v750, %v766
  %v771 = vpack.c.bf16 %v759, %v759
  %v772 = vpack.c.bf16 %v760, %v760
  %v773 = vpack.c.bf16 %v761, %v761
  %v774 = vpack.c.bf16 %v762, %v762
  %s775 = scalar_lea.vmem %s2, 32
  %776 = vst [vmem:[%s775] sm:$0xf] %v771
  %777 = vst [vmem:[%s775 + $0x4] sm:$0xf] %v772
  %778 = vst [vmem:[%s775 + $0x8] sm:$0xf] %v773
  %779 = vst [vmem:[%s775 + $0xc] sm:$0xf] %v774
  %s780 = scalar_lea.vmem %s0, 432
  %v781 = vld [vmem:[%s780] sm:$0xf]
  %v782 = vld [vmem:[%s780 + $0x4] sm:$0xf]
  %v783 = vld [vmem:[%s780 + $0x8] sm:$0xf]
  %v784 = vld [vmem:[%s780 + $0xc] sm:$0xf]
  %v785 = vld [vmem:[%s780 + $0x10] sm:$0xf]
  %v786 = vld [vmem:[%s780 + $0x14] sm:$0xf]
  %v787 = vld [vmem:[%s780 + $0x18] sm:$0xf]
  %v788 = vld [vmem:[%s780 + $0x1c] sm:$0xf]
  %v789 = vld [vmem:[%s780 + $0x20] sm:$0xf]
  %v790 = vld [vmem:[%s780 + $0x24] sm:$0xf]
  %v791 = vld [vmem:[%s780 + $0x28] sm:$0xf]
  %v792 = vld [vmem:[%s780 + $0x2c] sm:$0xf]
  %v793 = vld [vmem:[%s780 + $0x30] sm:$0xf]
  %v794 = vld [vmem:[%s780 + $0x34] sm:$0xf]
  %v795 = vld [vmem:[%s780 + $0x38] sm:$0xf]
  %v796 = vld [vmem:[%s780 + $0x3c] sm:$0xf]
  %v797 = vld [vmem:[%s780 + $0x40] sm:$0xf]
  %v798 = vld [vmem:[%s780 + $0x44] sm:$0xf]
  %v799 = vld [vmem:[%s780 + $0x48] sm:$0xf]
  %v800 = vld [vmem:[%s780 + $0x4c] sm:$0xf]
  %v801 = vld [vmem:[%s780 + $0x50] sm:$0xf]
  %v802 = vld [vmem:[%s780 + $0x54] sm:$0xf]
  %v803 = vld [vmem:[%s780 + $0x58] sm:$0xf]
  %v804 = vld [vmem:[%s780 + $0x5c] sm:$0xf]
  %v805 = vld [vmem:[%s780 + $0x60] sm:$0xf]
  %v806 = vld [vmem:[%s780 + $0x64] sm:$0xf]
  %v807 = vld [vmem:[%s780 + $0x68] sm:$0xf]
  %v808 = vld [vmem:[%s780 + $0x6c] sm:$0xf]
  %v809 = vld [vmem:[%s780 + $0x70] sm:$0xf]
  %v810 = vld [vmem:[%s780 + $0x74] sm:$0xf]
  %v811 = vld [vmem:[%s780 + $0x78] sm:$0xf]
  %v812 = vld [vmem:[%s780 + $0x7c] sm:$0xf]
  %v813 = vld [vmem:[%s780 + $0x80] sm:$0xf]
  %v814 = vld [vmem:[%s780 + $0x84] sm:$0xf]
  %v815 = vld [vmem:[%s780 + $0x88] sm:$0xf]
  %v816 = vld [vmem:[%s780 + $0x8c] sm:$0xf]
  %v853 = vunpack.c.l.b16 %v781
  %v854 = vunpack.c.l.b16 %v782
  %v855 = vunpack.c.l.b16 %v783
  %v856 = vunpack.c.l.b16 %v784
  %v857 = vunpack.c.l.b16 %v785
  %v858 = vunpack.c.l.b16 %v786
  %v859 = vunpack.c.l.b16 %v787
  %v860 = vunpack.c.l.b16 %v788
  %v861 = vunpack.c.l.b16 %v789
  %v862 = vunpack.c.l.b16 %v790
  %v863 = vunpack.c.l.b16 %v791
  %v864 = vunpack.c.l.b16 %v792
  %v865 = vunpack.c.l.b16 %v793
  %v866 = vunpack.c.l.b16 %v794
  %v867 = vunpack.c.l.b16 %v795
  %v868 = vunpack.c.l.b16 %v796
  %v869 = vunpack.c.l.b16 %v797
  %v870 = vunpack.c.l.b16 %v798
  %v871 = vunpack.c.l.b16 %v799
  %v872 = vunpack.c.l.b16 %v800
  %v873 = vunpack.c.l.b16 %v801
  %v874 = vunpack.c.l.b16 %v802
  %v875 = vunpack.c.l.b16 %v803
  %v876 = vunpack.c.l.b16 %v804
  %v877 = vunpack.c.l.b16 %v805
  %v878 = vunpack.c.l.b16 %v806
  %v879 = vunpack.c.l.b16 %v807
  %v880 = vunpack.c.l.b16 %v808
  %v881 = vunpack.c.l.b16 %v809
  %v882 = vunpack.c.l.b16 %v810
  %v883 = vunpack.c.l.b16 %v811
  %v884 = vunpack.c.l.b16 %v812
  %v885 = vunpack.c.l.b16 %v813
  %v886 = vunpack.c.l.b16 %v814
  %v887 = vunpack.c.l.b16 %v815
  %v888 = vunpack.c.l.b16 %v816
  %v889 = vpack.c.b16 %v854, %v853
  %v890 = vpack.c.b16 %v856, %v855
  %v891 = vpack.c.b16 %v858, %v857
  %v892 = vpack.c.b16 %v860, %v859
  %v893 = vpack.c.b16 %v862, %v861
  %v894 = vpack.c.b16 %v864, %v863
  %v895 = vpack.c.b16 %v866, %v865
  %v896 = vpack.c.b16 %v868, %v867
  %v897 = vpack.c.b16 %v870, %v869
  %v898 = vpack.c.b16 %v872, %v871
  %v899 = vpack.c.b16 %v874, %v873
  %v900 = vpack.c.b16 %v876, %v875
  %v901 = vpack.c.b16 %v878, %v877
  %v902 = vpack.c.b16 %v880, %v879
  %v903 = vpack.c.b16 %v882, %v881
  %v904 = vpack.c.b16 %v884, %v883
  %v905 = vpack.c.b16 %v886, %v885
  %v906 = vpack.c.b16 %v888, %v887
  %925 = vmatpush.bf16.msra.mxu0 %v896
  %926 = vmatpush.bf16.msra.mxu0 %v895
  %927 = vmatpush.bf16.msra.mxu0 %v894
  %928 = vmatpush.bf16.msra.mxu0 %v893
  %929 = vmatpush.bf16.msra.mxu0 %v892
  %930 = vmatpush.bf16.msra.mxu0 %v891
  %931 = vmatpush.bf16.msra.mxu0 %v890
  %932 = vmatpush.bf16.msra.mxu0 %v889
  %933 = vmatmul.bf16.gmra.mxu0 %v76
  %v934 = vpop.f32.mrf.mxu0
  %v935 = vadd.f32 0.0, %v934
  %v936 = vpop.f32.mrf.mxu0
  %v937 = vadd.f32 0.0, %v936
  %938 = vmatmul.bf16.gmra.mxu0 %v79
  %v939 = vpop.f32.mrf.mxu0
  %v940 = vadd.f32 0.0, %v939
  %v941 = vpop.f32.mrf.mxu0
  %v942 = vadd.f32 0.0, %v941
  %943 = vdwg.mxu0
  %944 = vmatpush.bf16.msra.mxu0 %v904
  %945 = vmatpush.bf16.msra.mxu0 %v903
  %946 = vmatpush.bf16.msra.mxu0 %v902
  %947 = vmatpush.bf16.msra.mxu0 %v901
  %948 = vmatpush.bf16.msra.mxu0 %v900
  %949 = vmatpush.bf16.msra.mxu0 %v899
  %950 = vmatpush.bf16.msra.mxu0 %v898
  %951 = vmatpush.bf16.msra.mxu0 %v897
  %952 = vmatmul.bf16.gmra.mxu0 %v77
  %v953 = vpop.f32.mrf.mxu0
  %v954 = vadd.f32 %v935, %v953
  %v955 = vpop.f32.mrf.mxu0
  %v956 = vadd.f32 %v937, %v955
  %957 = vmatmul.bf16.gmra.mxu0 %v80
  %v958 = vpop.f32.mrf.mxu0
  %v959 = vadd.f32 %v940, %v958
  %v960 = vpop.f32.mrf.mxu0
  %v961 = vadd.f32 %v942, %v960
  %962 = vdwg.mxu0
  %963 = vmatpush.bf16.msra.mxu0 0
  %964 = vmatpush.bf16.msra.mxu0 0
  %965 = vmatpush.bf16.msra.mxu0 0
  %966 = vmatpush.bf16.msra.mxu0 0
  %967 = vmatpush.bf16.msra.mxu0 0
  %968 = vmatpush.bf16.msra.mxu0 0
  %969 = vmatpush.bf16.msra.mxu0 %v906
  %970 = vmatpush.bf16.msra.mxu0 %v905
  %971 = vmatmul.bf16.gmra.mxu0 %v196
  %v972 = vpop.f32.mrf.mxu0
  %v973 = vadd.f32 %v954, %v972
  %v974 = vpop.f32.mrf.mxu0
  %v975 = vadd.f32 %v956, %v974
  %976 = vmatmul.bf16.gmra.mxu0 %v199
  %v977 = vpop.f32.mrf.mxu0
  %v978 = vadd.f32 %v959, %v977
  %v979 = vpop.f32.mrf.mxu0
  %v980 = vadd.f32 %v961, %v979
  %981 = vdwg.mxu0
  %v982 = vsub.f32 %v973, %v767
  %v983 = vsub.f32 %v975, %v768
  %v984 = vsub.f32 %v978, %v769
  %v985 = vsub.f32 %v980, %v770
  %v986 = vmul.f32 %v982, 0.5
  %v987 = vmul.f32 %v983, 0.5
  %v988 = vmul.f32 %v984, 0.5
  %v989 = vmul.f32 %v985, 0.5
  %v990 = vadd.f32 %v767, %v986
  %v991 = vadd.f32 %v768, %v987
  %v992 = vadd.f32 %v769, %v988
  %v993 = vadd.f32 %v770, %v989
  %vm994 = vcmp.ge.f32.partialorder %v990, 1.0
  %vm995 = vcmp.ge.f32.partialorder %v991, 1.0
  %vm996 = vcmp.ge.f32.partialorder %v992, 1.0
  %vm997 = vcmp.ge.f32.partialorder %v993, 1.0
  %v998 = vsel %vm994, 1, 0
  %v999 = vsel %vm995, 1, 0
  %v1000 = vsel %vm996, 1, 0
  %v1001 = vsel %vm997, 1, 0
  %v1002 = vcvt.s32.f32 %v998
  %v1003 = vcvt.s32.f32 %v999
  %v1004 = vcvt.s32.f32 %v1000
  %v1005 = vcvt.s32.f32 %v1001
  %v1006 = vpack.c.bf16 %v1002, %v1002
  %v1007 = vpack.c.bf16 %v1003, %v1003
  %v1008 = vpack.c.bf16 %v1004, %v1004
  %v1009 = vpack.c.bf16 %v1005, %v1005
  %s1010 = scalar_lea.vmem %s2, 48
  %1011 = vst [vmem:[%s1010] sm:$0xf] %v1006
  %1012 = vst [vmem:[%s1010 + $0x4] sm:$0xf] %v1007
  %1013 = vst [vmem:[%s1010 + $0x8] sm:$0xf] %v1008
  %1014 = vst [vmem:[%s1010 + $0xc] sm:$0xf] %v1009
  // Predicated region
  $region10: #{all_conv_plif_li_forward.10} parent=0 // pred_check
    _
  $region11: #{all_conv_plif_li_forward.10} parent=0 // pred_check_branch
    %1016 = sbr.rel (0) target = $region13
  $region12: #{all_conv_plif_li_forward.10} parent=0 // pred_region
    _
  $region13: #{all_conv_plif_li_forward.10} parent=0 // pred_fallthru
    _
  // Predicated region
  $region14: #{all_conv_plif_li_forward.10} parent=0 // pred_check
    _
  $region15: #{all_conv_plif_li_forward.10} parent=0 // pred_check_branch
    %1018 = sbr.rel (0) target = $region17
  $region16: #{all_conv_plif_li_forward.10} parent=0 // pred_region
    _
  $region17: #{all_conv_plif_li_forward.10} parent=0 // pred_fallthru
    _

// kernel: all_conv_plif_li_forward.11
$region0: #{all_conv_plif_li_forward.11}
  #allocation0 [shape = 'u32[]', space=smem, size = 0x4, offset = 0x4, fixed_abs, tag = 'smem constant byte address 0x4 - core index']
  #allocation1 [shape = 'u32[72,128]{1,0:T(1,128)}', space=vmem, size = 0x9000, scoped, tag = 'internal scratch']
  %s0 = inlined_call_operand.vmem [shape: bf16[4,2,1152], index: 0, kind: input, shape index: {}]
  %s1 = inlined_call_operand.vmem [shape: bf16[1152,32], index: 1, kind: input, shape index: {}]
  %s2 = inlined_call_operand.vmem [shape: bf16[32,12], index: 2, kind: input, shape index: {}]
  %s3 = inlined_call_operand.vmem [shape: f32[4,2,12], index: 3, kind: output, shape index: {0}]
  %s4 = inlined_call_operand.hbm [shape: f32[2,32], index: 4, kind: output, shape index: {1}]
  %5 = xla_tuple %s3, %s4
  %s6 = sld [smem:[#allocation0]]
  $region30: #{all_conv_plif_li_forward.11} parent=0
    _
  %s8 = ssub.s32 1, %s6
  %s9 = scalar_select 0, %s8, %s6
  $region1: #{all_conv_plif_li_forward.11} parent=0
    #allocation2 [shape = 'u8[1024]{0}', space=vmem, size = 0x400, scoped, tag = 'output window, operand 1, single buffered']
    #allocation3 [shape = 's32[1]{0}', space=sflag, size = 0x4, scoped, tag = 'scoped memory for all_conv_plif_li_forward.11']
    %10 = vsyncpa [#allocation3], 0
    // Predicated region
    $region2: #{all_conv_plif_li_forward.11} parent=1 // pred_check
      _
    $region3: #{all_conv_plif_li_forward.11} parent=1 // pred_check_branch
      %12 = sbr.rel (0) target = $region5
    $region4: #{all_conv_plif_li_forward.11} parent=1 // pred_region
      _
    $region5: #{all_conv_plif_li_forward.11} parent=1 // pred_fallthru
      _
    // Predicated region
    $region6: #{all_conv_plif_li_forward.11} parent=1 // pred_check
      _
    $region7: #{all_conv_plif_li_forward.11} parent=1 // pred_check_branch
      %14 = sbr.rel (0) target = $region9
    $region8: #{all_conv_plif_li_forward.11} parent=1 // pred_region
      _
    $region9: #{all_conv_plif_li_forward.11} parent=1 // pred_fallthru
      _
    // Predicated region
    $region10: #{all_conv_plif_li_forward.11} parent=1 // pred_check
      _
    $region11: #{all_conv_plif_li_forward.11} parent=1 // pred_check_branch
      %16 = sbr.rel (0) target = $region13
    $region12: #{all_conv_plif_li_forward.11} parent=1 // pred_region
      _
    $region13: #{all_conv_plif_li_forward.11} parent=1 // pred_fallthru
      _
    %v18 = vld [vmem:[%s1] sm:$0xf]
    %v19 = vld [vmem:[%s1 + $0x4] sm:$0xf]
    %v20 = vld [vmem:[%s1 + $0x8] sm:$0xf]
    %v21 = vld [vmem:[%s1 + $0xc] sm:$0xf]
    %v22 = vld [vmem:[%s1 + $0x10] sm:$0xf]
    %v23 = vld [vmem:[%s1 + $0x14] sm:$0xf]
    %v24 = vld [vmem:[%s1 + $0x18] sm:$0xf]
    %v25 = vld [vmem:[%s1 + $0x1c] sm:$0xf]
    %v26 = vld [vmem:[%s1 + $0x20] sm:$0xf]
    %v27 = vld [vmem:[%s1 + $0x24] sm:$0xf]
    %v28 = vld [vmem:[%s1 + $0x28] sm:$0xf]
    %v29 = vld [vmem:[%s1 + $0x2c] sm:$0xf]
    %v30 = vld [vmem:[%s1 + $0x30] sm:$0xf]
    %v31 = vld [vmem:[%s1 + $0x34] sm:$0xf]
    %v32 = vld [vmem:[%s1 + $0x38] sm:$0xf]
    %v33 = vld [vmem:[%s1 + $0x3c] sm:$0xf]
    %v34 = vld [vmem:[%s1 + $0x40] sm:$0xf]
    %v35 = vld [vmem:[%s1 + $0x44] sm:$0xf]
    %v36 = vld [vmem:[%s1 + $0x48] sm:$0xf]
    %v37 = vld [vmem:[%s1 + $0x4c] sm:$0xf]
    %v38 = vld [vmem:[%s1 + $0x50] sm:$0xf]
    %v39 = vld [vmem:[%s1 + $0x54] sm:$0xf]
    %v40 = vld [vmem:[%s1 + $0x58] sm:$0xf]
    %v41 = vld [vmem:[%s1 + $0x5c] sm:$0xf]
    %v42 = vld [vmem:[%s1 + $0x60] sm:$0xf]
    %v43 = vld [vmem:[%s1 + $0x64] sm:$0xf]
    %v44 = vld [vmem:[%s1 + $0x68] sm:$0xf]
    %v45 = vld [vmem:[%s1 + $0x6c] sm:$0xf]
    %v46 = vld [vmem:[%s1 + $0x70] sm:$0xf]
    %v47 = vld [vmem:[%s1 + $0x74] sm:$0xf]
    %v48 = vld [vmem:[%s1 + $0x78] sm:$0xf]
    %v49 = vld [vmem:[%s1 + $0x7c] sm:$0xf]
    %v50 = vld [vmem:[%s1 + $0x80] sm:$0xf]
    %v51 = vld [vmem:[%s1 + $0x84] sm:$0xf]
    %v52 = vld [vmem:[%s1 + $0x88] sm:$0xf]
    %v53 = vld [vmem:[%s1 + $0x8c] sm:$0xf]
    %v54 = vld [vmem:[%s1 + $0x90] sm:$0xf]
    %v55 = vld [vmem:[%s1 + $0x94] sm:$0xf]
    %v56 = vld [vmem:[%s1 + $0x98] sm:$0xf]
    %v57 = vld [vmem:[%s1 + $0x9c] sm:$0xf]
    %v58 = vld [vmem:[%s1 + $0xa0] sm:$0xf]
    %v59 = vld [vmem:[%s1 + $0xa4] sm:$0xf]
    %v60 = vld [vmem:[%s1 + $0xa8] sm:$0xf]
    %v61 = vld [vmem:[%s1 + $0xac] sm:$0xf]
    %v62 = vld [vmem:[%s1 + $0xb0] sm:$0xf]
    %v63 = vld [vmem:[%s1 + $0xb4] sm:$0xf]
    %v64 = vld [vmem:[%s1 + $0xb8] sm:$0xf]
    %v65 = vld [vmem:[%s1 + $0xbc] sm:$0xf]
    %v66 = vld [vmem:[%s1 + $0xc0] sm:$0xf]
    %v67 = vld [vmem:[%s1 + $0xc4] sm:$0xf]
    %v68 = vld [vmem:[%s1 + $0xc8] sm:$0xf]
    %v69 = vld [vmem:[%s1 + $0xcc] sm:$0xf]
    %v70 = vld [vmem:[%s1 + $0xd0] sm:$0xf]
    %v71 = vld [vmem:[%s1 + $0xd4] sm:$0xf]
    %v72 = vld [vmem:[%s1 + $0xd8] sm:$0xf]
    %v73 = vld [vmem:[%s1 + $0xdc] sm:$0xf]
    %v74 = vld [vmem:[%s1 + $0xe0] sm:$0xf]
    %v75 = vld [vmem:[%s1 + $0xe4] sm:$0xf]
    %v76 = vld [vmem:[%s1 + $0xe8] sm:$0xf]
    %v77 = vld [vmem:[%s1 + $0xec] sm:$0xf]
    %v78 = vld [vmem:[%s1 + $0xf0] sm:$0xf]
    %v79 = vld [vmem:[%s1 + $0xf4] sm:$0xf]
    %v80 = vld [vmem:[%s1 + $0xf8] sm:$0xf]
    %v81 = vld [vmem:[%s1 + $0xfc] sm:$0xf]
    %v82 = vld [vmem:[%s1 + $0x100] sm:$0xf]
    %v83 = vld [vmem:[%s1 + $0x104] sm:$0xf]
    %v84 = vld [vmem:[%s1 + $0x108] sm:$0xf]
    %v85 = vld [vmem:[%s1 + $0x10c] sm:$0xf]
    %v86 = vld [vmem:[%s1 + $0x110] sm:$0xf]
    %v87 = vld [vmem:[%s1 + $0x114] sm:$0xf]
    %v88 = vld [vmem:[%s1 + $0x118] sm:$0xf]
    %v89 = vld [vmem:[%s1 + $0x11c] sm:$0xf]
    %v90 = vld [vmem:[%s1 + $0x120] sm:$0xf]
    %v91 = vld [vmem:[%s1 + $0x124] sm:$0xf]
    %v92 = vld [vmem:[%s1 + $0x128] sm:$0xf]
    %v93 = vld [vmem:[%s1 + $0x12c] sm:$0xf]
    %v94 = vld [vmem:[%s1 + $0x130] sm:$0xf]
    %v95 = vld [vmem:[%s1 + $0x134] sm:$0xf]
    %v96 = vld [vmem:[%s1 + $0x138] sm:$0xf]
    %v97 = vld [vmem:[%s1 + $0x13c] sm:$0xf]
    %v98 = vld [vmem:[%s1 + $0x140] sm:$0xf]
    %v99 = vld [vmem:[%s1 + $0x144] sm:$0xf]
    %v100 = vld [vmem:[%s1 + $0x148] sm:$0xf]
    %v101 = vld [vmem:[%s1 + $0x14c] sm:$0xf]
    %v102 = vld [vmem:[%s1 + $0x150] sm:$0xf]
    %v103 = vld [vmem:[%s1 + $0x154] sm:$0xf]
    %v104 = vld [vmem:[%s1 + $0x158] sm:$0xf]
    %v105 = vld [vmem:[%s1 + $0x15c] sm:$0xf]
    %v106 = vld [vmem:[%s1 + $0x160] sm:$0xf]
    %v107 = vld [vmem:[%s1 + $0x164] sm:$0xf]
    %v108 = vld [vmem:[%s1 + $0x168] sm:$0xf]
    %v109 = vld [vmem:[%s1 + $0x16c] sm:$0xf]
    %v110 = vld [vmem:[%s1 + $0x170] sm:$0xf]
    %v111 = vld [vmem:[%s1 + $0x174] sm:$0xf]
    %v112 = vld [vmem:[%s1 + $0x178] sm:$0xf]
    %v113 = vld [vmem:[%s1 + $0x17c] sm:$0xf]
    %v114 = vld [vmem:[%s1 + $0x180] sm:$0xf]
    %v115 = vld [vmem:[%s1 + $0x184] sm:$0xf]
    %v116 = vld [vmem:[%s1 + $0x188] sm:$0xf]
    %v117 = vld [vmem:[%s1 + $0x18c] sm:$0xf]
    %v118 = vld [vmem:[%s1 + $0x190] sm:$0xf]
    %v119 = vld [vmem:[%s1 + $0x194] sm:$0xf]
    %v120 = vld [vmem:[%s1 + $0x198] sm:$0xf]
    %v121 = vld [vmem:[%s1 + $0x19c] sm:$0xf]
    %v122 = vld [vmem:[%s1 + $0x1a0] sm:$0xf]
    %v123 = vld [vmem:[%s1 + $0x1a4] sm:$0xf]
    %v124 = vld [vmem:[%s1 + $0x1a8] sm:$0xf]
    %v125 = vld [vmem:[%s1 + $0x1ac] sm:$0xf]
    %v126 = vld [vmem:[%s1 + $0x1b0] sm:$0xf]
    %v127 = vld [vmem:[%s1 + $0x1b4] sm:$0xf]
    %v128 = vld [vmem:[%s1 + $0x1b8] sm:$0xf]
    %v129 = vld [vmem:[%s1 + $0x1bc] sm:$0xf]
    %v130 = vld [vmem:[%s1 + $0x1c0] sm:$0xf]
    %v131 = vld [vmem:[%s1 + $0x1c4] sm:$0xf]
    %v132 = vld [vmem:[%s1 + $0x1c8] sm:$0xf]
    %v133 = vld [vmem:[%s1 + $0x1cc] sm:$0xf]
    %v134 = vld [vmem:[%s1 + $0x1d0] sm:$0xf]
    %v135 = vld [vmem:[%s1 + $0x1d4] sm:$0xf]
    %v136 = vld [vmem:[%s1 + $0x1d8] sm:$0xf]
    %v137 = vld [vmem:[%s1 + $0x1dc] sm:$0xf]
    %v138 = vld [vmem:[%s1 + $0x1e0] sm:$0xf]
    %v139 = vld [vmem:[%s1 + $0x1e4] sm:$0xf]
    %v140 = vld [vmem:[%s1 + $0x1e8] sm:$0xf]
    %v141 = vld [vmem:[%s1 + $0x1ec] sm:$0xf]
    %v142 = vld [vmem:[%s1 + $0x1f0] sm:$0xf]
    %v143 = vld [vmem:[%s1 + $0x1f4] sm:$0xf]
    %v144 = vld [vmem:[%s1 + $0x1f8] sm:$0xf]
    %v145 = vld [vmem:[%s1 + $0x1fc] sm:$0xf]
    %v146 = vld [vmem:[%s1 + $0x200] sm:$0xf]
    %v147 = vld [vmem:[%s1 + $0x204] sm:$0xf]
    %v148 = vld [vmem:[%s1 + $0x208] sm:$0xf]
    %v149 = vld [vmem:[%s1 + $0x20c] sm:$0xf]
    %v150 = vld [vmem:[%s1 + $0x210] sm:$0xf]
    %v151 = vld [vmem:[%s1 + $0x214] sm:$0xf]
    %v152 = vld [vmem:[%s1 + $0x218] sm:$0xf]
    %v153 = vld [vmem:[%s1 + $0x21c] sm:$0xf]
    %v154 = vld [vmem:[%s1 + $0x220] sm:$0xf]
    %v155 = vld [vmem:[%s1 + $0x224] sm:$0xf]
    %v156 = vld [vmem:[%s1 + $0x228] sm:$0xf]
    %v157 = vld [vmem:[%s1 + $0x22c] sm:$0xf]
    %v158 = vld [vmem:[%s1 + $0x230] sm:$0xf]
    %v159 = vld [vmem:[%s1 + $0x234] sm:$0xf]
    %v160 = vld [vmem:[%s1 + $0x238] sm:$0xf]
    %v161 = vld [vmem:[%s1 + $0x23c] sm:$0xf]
    %v162 = vld [vmem:[%s2] sm:$0xf]
    %v163 = vld [vmem:[%s2 + $0x4] sm:$0xf]
    %v164 = vld [vmem:[%s2 + $0x8] sm:$0xf]
    %v165 = vld [vmem:[%s2 + $0xc] sm:$0xf]
    %v166 = vld [vmem:[%s0] sm:$0xff]
    %v167 = vld [vmem:[%s0 + $0x8] sm:$0x1]
    %169 = vst [vmem:[#allocation1] ss:$9 sm:$0xff] %v166
    %v170 = vld [vmem:[#allocation1] sm:$0xff]
    %v171 = vld [vmem:[#allocation1 + $0x9] sm:$0xff]
    %v172 = vld [vmem:[#allocation1 + $0x12] sm:$0xff]
    %v173 = vld [vmem:[#allocation1 + $0x1b] sm:$0xff]
    %v174 = vld [vmem:[#allocation1 + $0x24] sm:$0xff]
    %v175 = vld [vmem:[#allocation1 + $0x2d] sm:$0xff]
    %v176 = vld [vmem:[#allocation1 + $0x36] sm:$0xff]
    %v177 = vld [vmem:[#allocation1 + $0x3f] sm:$0xff]
    %179 = vst [vmem:[#allocation1] ss:$9 sm:$0xff] %v167
    %v180 = vld [vmem:[#allocation1] sm:$0xff]
    %v334 = vunpack.c.l.b16 %v18
    %v335 = vunpack.c.l.b16 %v19
    %v336 = vunpack.c.l.b16 %v20
    %v337 = vunpack.c.l.b16 %v21
    %v338 = vunpack.c.l.b16 %v22
    %v339 = vunpack.c.l.b16 %v23
    %v340 = vunpack.c.l.b16 %v24
    %v341 = vunpack.c.l.b16 %v25
    %v342 = vunpack.c.l.b16 %v26
    %v343 = vunpack.c.l.b16 %v27
    %v344 = vunpack.c.l.b16 %v28
    %v345 = vunpack.c.l.b16 %v29
    %v346 = vunpack.c.l.b16 %v30
    %v347 = vunpack.c.l.b16 %v31
    %v348 = vunpack.c.l.b16 %v32
    %v349 = vunpack.c.l.b16 %v33
    %v350 = vunpack.c.l.b16 %v34
    %v351 = vunpack.c.l.b16 %v35
    %v352 = vunpack.c.l.b16 %v36
    %v353 = vunpack.c.l.b16 %v37
    %v354 = vunpack.c.l.b16 %v38
    %v355 = vunpack.c.l.b16 %v39
    %v356 = vunpack.c.l.b16 %v40
    %v357 = vunpack.c.l.b16 %v41
    %v358 = vunpack.c.l.b16 %v42
    %v359 = vunpack.c.l.b16 %v43
    %v360 = vunpack.c.l.b16 %v44
    %v361 = vunpack.c.l.b16 %v45
    %v362 = vunpack.c.l.b16 %v46
    %v363 = vunpack.c.l.b16 %v47
    %v364 = vunpack.c.l.b16 %v48
    %v365 = vunpack.c.l.b16 %v49
    %v366 = vunpack.c.l.b16 %v50
    %v367 = vunpack.c.l.b16 %v51
    %v368 = vunpack.c.l.b16 %v52
    %v369 = vunpack.c.l.b16 %v53
    %v370 = vunpack.c.l.b16 %v54
    %v371 = vunpack.c.l.b16 %v55
    %v372 = vunpack.c.l.b16 %v56
    %v373 = vunpack.c.l.b16 %v57
    %v374 = vunpack.c.l.b16 %v58
    %v375 = vunpack.c.l.b16 %v59
    %v376 = vunpack.c.l.b16 %v60
    %v377 = vunpack.c.l.b16 %v61
    %v378 = vunpack.c.l.b16 %v62
    %v379 = vunpack.c.l.b16 %v63
    %v380 = vunpack.c.l.b16 %v64
    %v381 = vunpack.c.l.b16 %v65
    %v382 = vunpack.c.l.b16 %v66
    %v383 = vunpack.c.l.b16 %v67
    %v384 = vunpack.c.l.b16 %v68
    %v385 = vunpack.c.l.b16 %v69
    %v386 = vunpack.c.l.b16 %v70
    %v387 = vunpack.c.l.b16 %v71
    %v388 = vunpack.c.l.b16 %v72
    %v389 = vunpack.c.l.b16 %v73
    %v390 = vunpack.c.l.b16 %v74
    %v391 = vunpack.c.l.b16 %v75
    %v392 = vunpack.c.l.b16 %v76
    %v393 = vunpack.c.l.b16 %v77
    %v394 = vunpack.c.l.b16 %v78
    %v395 = vunpack.c.l.b16 %v79
    %v396 = vunpack.c.l.b16 %v80
    %v397 = vunpack.c.l.b16 %v81
    %v398 = vunpack.c.l.b16 %v82
    %v399 = vunpack.c.l.b16 %v83
    %v400 = vunpack.c.l.b16 %v84
    %v401 = vunpack.c.l.b16 %v85
    %v402 = vunpack.c.l.b16 %v86
    %v403 = vunpack.c.l.b16 %v87
    %v404 = vunpack.c.l.b16 %v88
    %v405 = vunpack.c.l.b16 %v89
    %v406 = vunpack.c.l.b16 %v90
    %v407 = vunpack.c.l.b16 %v91
    %v408 = vunpack.c.l.b16 %v92
    %v409 = vunpack.c.l.b16 %v93
    %v410 = vunpack.c.l.b16 %v94
    %v411 = vunpack.c.l.b16 %v95
    %v412 = vunpack.c.l.b16 %v96
    %v413 = vunpack.c.l.b16 %v97
    %v414 = vunpack.c.l.b16 %v98
    %v415 = vunpack.c.l.b16 %v99
    %v416 = vunpack.c.l.b16 %v100
    %v417 = vunpack.c.l.b16 %v101
    %v418 = vunpack.c.l.b16 %v102
    %v419 = vunpack.c.l.b16 %v103
    %v420 = vunpack.c.l.b16 %v104
    %v421 = vunpack.c.l.b16 %v105
    %v422 = vunpack.c.l.b16 %v106
    %v423 = vunpack.c.l.b16 %v107
    %v424 = vunpack.c.l.b16 %v108
    %v425 = vunpack.c.l.b16 %v109
    %v426 = vunpack.c.l.b16 %v110
    %v427 = vunpack.c.l.b16 %v111
    %v428 = vunpack.c.l.b16 %v112
    %v429 = vunpack.c.l.b16 %v113
    %v430 = vunpack.c.l.b16 %v114
    %v431 = vunpack.c.l.b16 %v115
    %v432 = vunpack.c.l.b16 %v116
    %v433 = vunpack.c.l.b16 %v117
    %v434 = vunpack.c.l.b16 %v118
    %v435 = vunpack.c.l.b16 %v119
    %v436 = vunpack.c.l.b16 %v120
    %v437 = vunpack.c.l.b16 %v121
    %v438 = vunpack.c.l.b16 %v122
    %v439 = vunpack.c.l.b16 %v123
    %v440 = vunpack.c.l.b16 %v124
    %v441 = vunpack.c.l.b16 %v125
    %v442 = vunpack.c.l.b16 %v126
    %v443 = vunpack.c.l.b16 %v127
    %v444 = vunpack.c.l.b16 %v128
    %v445 = vunpack.c.l.b16 %v129
    %v446 = vunpack.c.l.b16 %v130
    %v447 = vunpack.c.l.b16 %v131
    %v448 = vunpack.c.l.b16 %v132
    %v449 = vunpack.c.l.b16 %v133
    %v450 = vunpack.c.l.b16 %v134
    %v451 = vunpack.c.l.b16 %v135
    %v452 = vunpack.c.l.b16 %v136
    %v453 = vunpack.c.l.b16 %v137
    %v454 = vunpack.c.l.b16 %v138
    %v455 = vunpack.c.l.b16 %v139
    %v456 = vunpack.c.l.b16 %v140
    %v457 = vunpack.c.l.b16 %v141
    %v458 = vunpack.c.l.b16 %v142
    %v459 = vunpack.c.l.b16 %v143
    %v460 = vunpack.c.l.b16 %v144
    %v461 = vunpack.c.l.b16 %v145
    %v462 = vunpack.c.l.b16 %v146
    %v463 = vunpack.c.l.b16 %v147
    %v464 = vunpack.c.l.b16 %v148
    %v465 = vunpack.c.l.b16 %v149
    %v466 = vunpack.c.l.b16 %v150
    %v467 = vunpack.c.l.b16 %v151
    %v468 = vunpack.c.l.b16 %v152
    %v469 = vunpack.c.l.b16 %v153
    %v470 = vunpack.c.l.b16 %v154
    %v471 = vunpack.c.l.b16 %v155
    %v472 = vunpack.c.l.b16 %v156
    %v473 = vunpack.c.l.b16 %v157
    %v474 = vunpack.c.l.b16 %v158
    %v475 = vunpack.c.l.b16 %v159
    %v476 = vunpack.c.l.b16 %v160
    %v477 = vunpack.c.l.b16 %v161
    %v478 = vpack.c.b16 %v335, %v334
    %v479 = vpack.c.b16 %v337, %v336
    %v480 = vpack.c.b16 %v339, %v338
    %v481 = vpack.c.b16 %v341, %v340
    %v482 = vpack.c.b16 %v343, %v342
    %v483 = vpack.c.b16 %v345, %v344
    %v484 = vpack.c.b16 %v347, %v346
    %v485 = vpack.c.b16 %v349, %v348
    %v486 = vpack.c.b16 %v351, %v350
    %v487 = vpack.c.b16 %v353, %v352
    %v488 = vpack.c.b16 %v355, %v354
    %v489 = vpack.c.b16 %v357, %v356
    %v490 = vpack.c.b16 %v359, %v358
    %v491 = vpack.c.b16 %v361, %v360
    %v492 = vpack.c.b16 %v363, %v362
    %v493 = vpack.c.b16 %v365, %v364
    %v494 = vpack.c.b16 %v367, %v366
    %v495 = vpack.c.b16 %v369, %v368
    %v496 = vpack.c.b16 %v371, %v370
    %v497 = vpack.c.b16 %v373, %v372
    %v498 = vpack.c.b16 %v375, %v374
    %v499 = vpack.c.b16 %v377, %v376
    %v500 = vpack.c.b16 %v379, %v378
    %v501 = vpack.c.b16 %v381, %v380
    %v502 = vpack.c.b16 %v383, %v382
    %v503 = vpack.c.b16 %v385, %v384
    %v504 = vpack.c.b16 %v387, %v386
    %v505 = vpack.c.b16 %v389, %v388
    %v506 = vpack.c.b16 %v391, %v390
    %v507 = vpack.c.b16 %v393, %v392
    %v508 = vpack.c.b16 %v395, %v394
    %v509 = vpack.c.b16 %v397, %v396
    %v510 = vpack.c.b16 %v399, %v398
    %v511 = vpack.c.b16 %v401, %v400
    %v512 = vpack.c.b16 %v403, %v402
    %v513 = vpack.c.b16 %v405, %v404
    %v514 = vpack.c.b16 %v407, %v406
    %v515 = vpack.c.b16 %v409, %v408
    %v516 = vpack.c.b16 %v411, %v410
    %v517 = vpack.c.b16 %v413, %v412
    %v518 = vpack.c.b16 %v415, %v414
    %v519 = vpack.c.b16 %v417, %v416
    %v520 = vpack.c.b16 %v419, %v418
    %v521 = vpack.c.b16 %v421, %v420
    %v522 = vpack.c.b16 %v423, %v422
    %v523 = vpack.c.b16 %v425, %v424
    %v524 = vpack.c.b16 %v427, %v426
    %v525 = vpack.c.b16 %v429, %v428
    %v526 = vpack.c.b16 %v431, %v430
    %v527 = vpack.c.b16 %v433, %v432
    %v528 = vpack.c.b16 %v435, %v434
    %v529 = vpack.c.b16 %v437, %v436
    %v530 = vpack.c.b16 %v439, %v438
    %v531 = vpack.c.b16 %v441, %v440
    %v532 = vpack.c.b16 %v443, %v442
    %v533 = vpack.c.b16 %v445, %v444
    %v534 = vpack.c.b16 %v447, %v446
    %v535 = vpack.c.b16 %v449, %v448
    %v536 = vpack.c.b16 %v451, %v450
    %v537 = vpack.c.b16 %v453, %v452
    %v538 = vpack.c.b16 %v455, %v454
    %v539 = vpack.c.b16 %v457, %v456
    %v540 = vpack.c.b16 %v459, %v458
    %v541 = vpack.c.b16 %v461, %v460
    %v542 = vpack.c.b16 %v463, %v462
    %v543 = vpack.c.b16 %v465, %v464
    %v544 = vpack.c.b16 %v467, %v466
    %v545 = vpack.c.b16 %v469, %v468
    %v546 = vpack.c.b16 %v471, %v470
    %v547 = vpack.c.b16 %v473, %v472
    %v548 = vpack.c.b16 %v475, %v474
    %v549 = vpack.c.b16 %v477, %v476
    %622 = vmatpush.bf16.msra.mxu0 %v485
    %623 = vmatpush.bf16.msra.mxu0 %v484
    %624 = vmatpush.bf16.msra.mxu0 %v483
    %625 = vmatpush.bf16.msra.mxu0 %v482
    %626 = vmatpush.bf16.msra.mxu0 %v481
    %627 = vmatpush.bf16.msra.mxu0 %v480
    %628 = vmatpush.bf16.msra.mxu0 %v479
    %629 = vmatpush.bf16.msra.mxu0 %v478
    %630 = vmatmul.bf16.gmra.mxu0 %v170
    %v631 = vpop.f32.mrf.mxu0
    %v632 = vadd.f32 0.0, %v631
    %v633 = vpop.f32.mrf.mxu0
    %634 = vdwg.mxu0
    %635 = vmatpush.bf16.msra.mxu0 %v493
    %636 = vmatpush.bf16.msra.mxu0 %v492
    %637 = vmatpush.bf16.msra.mxu0 %v491
    %638 = vmatpush.bf16.msra.mxu0 %v490
    %639 = vmatpush.bf16.msra.mxu0 %v489
    %640 = vmatpush.bf16.msra.mxu0 %v488
    %641 = vmatpush.bf16.msra.mxu0 %v487
    %642 = vmatpush.bf16.msra.mxu0 %v486
    %643 = vmatmul.bf16.gmra.mxu0 %v171
    %v644 = vpop.f32.mrf.mxu0
    %v645 = vadd.f32 %v632, %v644
    %v646 = vpop.f32.mrf.mxu0
    %647 = vdwg.mxu0
    %648 = vmatpush.bf16.msra.mxu0 %v501
    %649 = vmatpush.bf16.msra.mxu0 %v500
    %650 = vmatpush.bf16.msra.mxu0 %v499
    %651 = vmatpush.bf16.msra.mxu0 %v498
    %652 = vmatpush.bf16.msra.mxu0 %v497
    %653 = vmatpush.bf16.msra.mxu0 %v496
    %654 = vmatpush.bf16.msra.mxu0 %v495
    %655 = vmatpush.bf16.msra.mxu0 %v494
    %656 = vmatmul.bf16.gmra.mxu0 %v172
    %v657 = vpop.f32.mrf.mxu0
    %v658 = vadd.f32 %v645, %v657
    %v659 = vpop.f32.mrf.mxu0
    %660 = vdwg.mxu0
    %661 = vmatpush.bf16.msra.mxu0 %v509
    %662 = vmatpush.bf16.msra.mxu0 %v508
    %663 = vmatpush.bf16.msra.mxu0 %v507
    %664 = vmatpush.bf16.msra.mxu0 %v506
    %665 = vmatpush.bf16.msra.mxu0 %v505
    %666 = vmatpush.bf16.msra.mxu0 %v504
    %667 = vmatpush.bf16.msra.mxu0 %v503
    %668 = vmatpush.bf16.msra.mxu0 %v502
    %669 = vmatmul.bf16.gmra.mxu0 %v173
    %v670 = vpop.f32.mrf.mxu0
    %v671 = vadd.f32 %v658, %v670
    %v672 = vpop.f32.mrf.mxu0
    %673 = vdwg.mxu0
    %674 = vmatpush.bf16.msra.mxu0 %v517
    %675 = vmatpush.bf16.msra.mxu0 %v516
    %676 = vmatpush.bf16.msra.mxu0 %v515
    %677 = vmatpush.bf16.msra.mxu0 %v514
    %678 = vmatpush.bf16.msra.mxu0 %v513
    %679 = vmatpush.bf16.msra.mxu0 %v512
    %680 = vmatpush.bf16.msra.mxu0 %v511
    %681 = vmatpush.bf16.msra.mxu0 %v510
    %682 = vmatmul.bf16.gmra.mxu0 %v174
    %v683 = vpop.f32.mrf.mxu0
    %v684 = vadd.f32 %v671, %v683
    %v685 = vpop.f32.mrf.mxu0
    %686 = vdwg.mxu0
    %687 = vmatpush.bf16.msra.mxu0 %v525
    %688 = vmatpush.bf16.msra.mxu0 %v524
    %689 = vmatpush.bf16.msra.mxu0 %v523
    %690 = vmatpush.bf16.msra.mxu0 %v522
    %691 = vmatpush.bf16.msra.mxu0 %v521
    %692 = vmatpush.bf16.msra.mxu0 %v520
    %693 = vmatpush.bf16.msra.mxu0 %v519
    %694 = vmatpush.bf16.msra.mxu0 %v518
    %695 = vmatmul.bf16.gmra.mxu0 %v175
    %v696 = vpop.f32.mrf.mxu0
    %v697 = vadd.f32 %v684, %v696
    %v698 = vpop.f32.mrf.mxu0
    %699 = vdwg.mxu0
    %700 = vmatpush.bf16.msra.mxu0 %v533
    %701 = vmatpush.bf16.msra.mxu0 %v532
    %702 = vmatpush.bf16.msra.mxu0 %v531
    %703 = vmatpush.bf16.msra.mxu0 %v530
    %704 = vmatpush.bf16.msra.mxu0 %v529
    %705 = vmatpush.bf16.msra.mxu0 %v528
    %706 = vmatpush.bf16.msra.mxu0 %v527
    %707 = vmatpush.bf16.msra.mxu0 %v526
    %708 = vmatmul.bf16.gmra.mxu0 %v176
    %v709 = vpop.f32.mrf.mxu0
    %v710 = vadd.f32 %v697, %v709
    %v711 = vpop.f32.mrf.mxu0
    %712 = vdwg.mxu0
    %713 = vmatpush.bf16.msra.mxu0 %v541
    %714 = vmatpush.bf16.msra.mxu0 %v540
    %715 = vmatpush.bf16.msra.mxu0 %v539
    %716 = vmatpush.bf16.msra.mxu0 %v538
    %717 = vmatpush.bf16.msra.mxu0 %v537
    %718 = vmatpush.bf16.msra.mxu0 %v536
    %719 = vmatpush.bf16.msra.mxu0 %v535
    %720 = vmatpush.bf16.msra.mxu0 %v534
    %721 = vmatmul.bf16.gmra.mxu0 %v177
    %v722 = vpop.f32.mrf.mxu0
    %v723 = vadd.f32 %v710, %v722
    %v724 = vpop.f32.mrf.mxu0
    %725 = vdwg.mxu0
    %726 = vmatpush.bf16.msra.mxu0 %v549
    %727 = vmatpush.bf16.msra.mxu0 %v548
    %728 = vmatpush.bf16.msra.mxu0 %v547
    %729 = vmatpush.bf16.msra.mxu0 %v546
    %730 = vmatpush.bf16.msra.mxu0 %v545
    %731 = vmatpush.bf16.msra.mxu0 %v544
    %732 = vmatpush.bf16.msra.mxu0 %v543
    %733 = vmatpush.bf16.msra.mxu0 %v542
    %734 = vmatmul.bf16.gmra.mxu0 %v180
    %v735 = vpop.f32.mrf.mxu0
    %v736 = vadd.f32 %v723, %v735
    %v737 = vpop.f32.mrf.mxu0
    %738 = vdwg.mxu0
    %v739 = vmul.f32 %v736, 0.5
    %v740 = vadd.f32 %v739, 0.0
    %vm741 = vcmp.ge.f32.partialorder %v740, 1.0
    %v742 = vsel %vm741, 1, 0
    %v743 = vcvt.s32.f32 %v742
    %v744 = vsub.f32 1.0, %v743
    %v745 = vmul.f32 %v740, %v744
    %v746 = vadd.f32 %v743, 0.0
    %v747 = vpack.c.bf16 %v743, %v743
    %v752 = vunpack.c.l.b16 %v162
    %v753 = vunpack.c.l.b16 %v163
    %v754 = vunpack.c.l.b16 %v164
    %v755 = vunpack.c.l.b16 %v165
    %v756 = vpack.c.b16 %v753, %v752
    %v757 = vpack.c.b16 %v755, %v754
    %vm760 = vcmask 261120
    %v762 = vsel %vm760, %v747, 0
    %764 = vmatpush.bf16.msra.mxu0 0
    %765 = vmatpush.bf16.msra.mxu0 0
    %766 = vmatpush.bf16.msra.mxu0 0
    %767 = vmatpush.bf16.msra.mxu0 0
    %768 = vmatpush.bf16.msra.mxu0 0
    %769 = vmatpush.bf16.msra.mxu0 0
    %770 = vmatpush.bf16.msra.mxu0 %v757
    %771 = vmatpush.bf16.msra.mxu0 %v756
    %772 = vmatmul.bf16.gmra.mxu0 %v762
    %v773 = vpop.f32.mrf.mxu0
    %v774 = vadd.f32 0.0, %v773
    %v775 = vpop.f32.mrf.mxu0
    %776 = vdwg.mxu0
    %v777 = vmul.f32 %v774, 0.5
    %v778 = vadd.f32 %v777, 0.0
    %vm779 = vcmask 91136
    %780 = vst.msk [vmem:[%s3] sm:$0x3] %vm779, %v778
    %s781 = scalar_lea.vmem %s0, 9
    %v782 = vld [vmem:[%s781] sm:$0xff]
    %v783 = vld [vmem:[%s781 + $0x8] sm:$0x1]
    %785 = vst [vmem:[#allocation1] ss:$9 sm:$0xff] %v782
    %v786 = vld [vmem:[#allocation1] sm:$0xff]
    %v787 = vld [vmem:[#allocation1 + $0x9] sm:$0xff]
    %v788 = vld [vmem:[#allocation1 + $0x12] sm:$0xff]
    %v789 = vld [vmem:[#allocation1 + $0x1b] sm:$0xff]
    %v790 = vld [vmem:[#allocation1 + $0x24] sm:$0xff]
    %v791 = vld [vmem:[#allocation1 + $0x2d] sm:$0xff]
    %v792 = vld [vmem:[#allocation1 + $0x36] sm:$0xff]
    %v793 = vld [vmem:[#allocation1 + $0x3f] sm:$0xff]
    %795 = vst [vmem:[#allocation1] ss:$9 sm:$0xff] %v783
    %v796 = vld [vmem:[#allocation1] sm:$0xff]
    %806 = vmatpush.bf16.msra.mxu0 %v485
    %807 = vmatpush.bf16.msra.mxu0 %v484
    %808 = vmatpush.bf16.msra.mxu0 %v483
    %809 = vmatpush.bf16.msra.mxu0 %v482
    %810 = vmatpush.bf16.msra.mxu0 %v481
    %811 = vmatpush.bf16.msra.mxu0 %v480
    %812 = vmatpush.bf16.msra.mxu0 %v479
    %813 = vmatpush.bf16.msra.mxu0 %v478
    %814 = vmatmul.bf16.gmra.mxu0 %v786
    %v815 = vpop.f32.mrf.mxu0
    %v816 = vadd.f32 0.0, %v815
    %v817 = vpop.f32.mrf.mxu0
    %818 = vdwg.mxu0
    %819 = vmatpush.bf16.msra.mxu0 %v493
    %820 = vmatpush.bf16.msra.mxu0 %v492
    %821 = vmatpush.bf16.msra.mxu0 %v491
    %822 = vmatpush.bf16.msra.mxu0 %v490
    %823 = vmatpush.bf16.msra.mxu0 %v489
    %824 = vmatpush.bf16.msra.mxu0 %v488
    %825 = vmatpush.bf16.msra.mxu0 %v487
    %826 = vmatpush.bf16.msra.mxu0 %v486
    %827 = vmatmul.bf16.gmra.mxu0 %v787
    %v828 = vpop.f32.mrf.mxu0
    %v829 = vadd.f32 %v816, %v828
    %v830 = vpop.f32.mrf.mxu0
    %831 = vdwg.mxu0
    %832 = vmatpush.bf16.msra.mxu0 %v501
    %833 = vmatpush.bf16.msra.mxu0 %v500
    %834 = vmatpush.bf16.msra.mxu0 %v499
    %835 = vmatpush.bf16.msra.mxu0 %v498
    %836 = vmatpush.bf16.msra.mxu0 %v497
    %837 = vmatpush.bf16.msra.mxu0 %v496
    %838 = vmatpush.bf16.msra.mxu0 %v495
    %839 = vmatpush.bf16.msra.mxu0 %v494
    %840 = vmatmul.bf16.gmra.mxu0 %v788
    %v841 = vpop.f32.mrf.mxu0
    %v842 = vadd.f32 %v829, %v841
    %v843 = vpop.f32.mrf.mxu0
    %844 = vdwg.mxu0
    %845 = vmatpush.bf16.msra.mxu0 %v509
    %846 = vmatpush.bf16.msra.mxu0 %v508
    %847 = vmatpush.bf16.msra.mxu0 %v507
    %848 = vmatpush.bf16.msra.mxu0 %v506
    %849 = vmatpush.bf16.msra.mxu0 %v505
    %850 = vmatpush.bf16.msra.mxu0 %v504
    %851 = vmatpush.bf16.msra.mxu0 %v503
    %852 = vmatpush.bf16.msra.mxu0 %v502
    %853 = vmatmul.bf16.gmra.mxu0 %v789
    %v854 = vpop.f32.mrf.mxu0
    %v855 = vadd.f32 %v842, %v854
    %v856 = vpop.f32.mrf.mxu0
    %857 = vdwg.mxu0
    %858 = vmatpush.bf16.msra.mxu0 %v517
    %859 = vmatpush.bf16.msra.mxu0 %v516
    %860 = vmatpush.bf16.msra.mxu0 %v515
    %861 = vmatpush.bf16.msra.mxu0 %v514
    %862 = vmatpush.bf16.msra.mxu0 %v513
    %863 = vmatpush.bf16.msra.mxu0 %v512
    %864 = vmatpush.bf16.msra.mxu0 %v511
    %865 = vmatpush.bf16.msra.mxu0 %v510
    %866 = vmatmul.bf16.gmra.mxu0 %v790
    %v867 = vpop.f32.mrf.mxu0
    %v868 = vadd.f32 %v855, %v867
    %v869 = vpop.f32.mrf.mxu0
    %870 = vdwg.mxu0
    %871 = vmatpush.bf16.msra.mxu0 %v525
    %872 = vmatpush.bf16.msra.mxu0 %v524
    %873 = vmatpush.bf16.msra.mxu0 %v523
    %874 = vmatpush.bf16.msra.mxu0 %v522
    %875 = vmatpush.bf16.msra.mxu0 %v521
    %876 = vmatpush.bf16.msra.mxu0 %v520
    %877 = vmatpush.bf16.msra.mxu0 %v519
    %878 = vmatpush.bf16.msra.mxu0 %v518
    %879 = vmatmul.bf16.gmra.mxu0 %v791
    %v880 = vpop.f32.mrf.mxu0
    %v881 = vadd.f32 %v868, %v880
    %v882 = vpop.f32.mrf.mxu0
    %883 = vdwg.mxu0
    %884 = vmatpush.bf16.msra.mxu0 %v533
    %885 = vmatpush.bf16.msra.mxu0 %v532
    %886 = vmatpush.bf16.msra.mxu0 %v531
    %887 = vmatpush.bf16.msra.mxu0 %v530
    %888 = vmatpush.bf16.msra.mxu0 %v529
    %889 = vmatpush.bf16.msra.mxu0 %v528
    %890 = vmatpush.bf16.msra.mxu0 %v527
    %891 = vmatpush.bf16.msra.mxu0 %v526
    %892 = vmatmul.bf16.gmra.mxu0 %v792
    %v893 = vpop.f32.mrf.mxu0
    %v894 = vadd.f32 %v881, %v893
    %v895 = vpop.f32.mrf.mxu0
    %896 = vdwg.mxu0
    %897 = vmatpush.bf16.msra.mxu0 %v541
    %898 = vmatpush.bf16.msra.mxu0 %v540
    %899 = vmatpush.bf16.msra.mxu0 %v539
    %900 = vmatpush.bf16.msra.mxu0 %v538
    %901 = vmatpush.bf16.msra.mxu0 %v537
    %902 = vmatpush.bf16.msra.mxu0 %v536
    %903 = vmatpush.bf16.msra.mxu0 %v535
    %904 = vmatpush.bf16.msra.mxu0 %v534
    %905 = vmatmul.bf16.gmra.mxu0 %v793
    %v906 = vpop.f32.mrf.mxu0
    %v907 = vadd.f32 %v894, %v906
    %v908 = vpop.f32.mrf.mxu0
    %909 = vdwg.mxu0
    %910 = vmatpush.bf16.msra.mxu0 %v549
    %911 = vmatpush.bf16.msra.mxu0 %v548
    %912 = vmatpush.bf16.msra.mxu0 %v547
    %913 = vmatpush.bf16.msra.mxu0 %v546
    %914 = vmatpush.bf16.msra.mxu0 %v545
    %915 = vmatpush.bf16.msra.mxu0 %v544
    %916 = vmatpush.bf16.msra.mxu0 %v543
    %917 = vmatpush.bf16.msra.mxu0 %v542
    %918 = vmatmul.bf16.gmra.mxu0 %v796
    %v919 = vpop.f32.mrf.mxu0
    %v920 = vadd.f32 %v907, %v919
    %v921 = vpop.f32.mrf.mxu0
    %922 = vdwg.mxu0
    %v923 = vsub.f32 %v920, %v745
    %v924 = vmul.f32 %v923, 0.5
    %v925 = vadd.f32 %v745, %v924
    %vm926 = vcmp.ge.f32.partialorder %v925, 1.0
    %v927 = vsel %vm926, 1, 0
    %v928 = vcvt.s32.f32 %v927
    %v929 = vsub.f32 1.0, %v928
    %v930 = vmul.f32 %v925, %v929
    %v931 = vadd.f32 %v746, %v928
    %v932 = vpack.c.bf16 %v928, %v928
    %v934 = vsel %vm760, %v932, 0
    %936 = vmatpush.bf16.msra.mxu0 0
    %937 = vmatpush.bf16.msra.mxu0 0
    %938 = vmatpush.bf16.msra.mxu0 0
    %939 = vmatpush.bf16.msra.mxu0 0
    %940 = vmatpush.bf16.msra.mxu0 0
    %941 = vmatpush.bf16.msra.mxu0 0
    %942 = vmatpush.bf16.msra.mxu0 %v757
    %943 = vmatpush.bf16.msra.mxu0 %v756
    %944 = vmatmul.bf16.gmra.mxu0 %v934
    %v945 = vpop.f32.mrf.mxu0
    %v946 = vadd.f32 0.0, %v945
    %v947 = vpop.f32.mrf.mxu0
    %948 = vdwg.mxu0
    %v949 = vsub.f32 %v946, %v778
    %v950 = vmul.f32 %v949, 0.5
    %v951 = vadd.f32 %v778, %v950
    %s952 = scalar_lea.vmem %s3, 2
    %953 = vst.msk [vmem:[%s952] sm:$0x3] %vm779, %v951
    %s954 = scalar_lea.vmem %s0, 18
    %v955 = vld [vmem:[%s954] sm:$0xff]
    %v956 = vld [vmem:[%s954 + $0x8] sm:$0x1]
    %958 = vst [vmem:[#allocation1] ss:$9 sm:$0xff] %v955
    %v959 = vld [vmem:[#allocation1] sm:$0xff]
    %v960 = vld [vmem:[#allocation1 + $0x9] sm:$0xff]
    %v961 = vld [vmem:[#allocation1 + $0x12] sm:$0xff]
    %v962 = vld [vmem:[#allocation1 + $0x1b] sm:$0xff]
    %v963 = vld [vmem:[#allocation1 + $0x24] sm:$0xff]
    %v964 = vld [vmem:[#allocation1 + $0x2d] sm:$0xff]
    %v965 = vld [vmem:[#allocation1 + $0x36] sm:$0xff]
    %v966 = vld [vmem:[#allocation1 + $0x3f] sm:$0xff]
    %968 = vst [vmem:[#allocation1] ss:$9 sm:$0xff] %v956
    %v969 = vld [vmem:[#allocation1] sm:$0xff]
    %979 = vmatpush.bf16.msra.mxu0 %v485
    %980 = vmatpush.bf16.msra.mxu0 %v484
    %981 = vmatpush.bf16.msra.mxu0 %v483
    %982 = vmatpush.bf16.msra.mxu0 %v482
    %983 = vmatpush.bf16.msra.mxu0 %v481
    %984 = vmatpush.bf16.msra.mxu0 %v480
    %985 = vmatpush.bf16.msra.mxu0 %v479
    %986 = vmatpush.bf16.msra.mxu0 %v478
    %987 = vmatmul.bf16.gmra.mxu0 %v959
    %v988 = vpop.f32.mrf.mxu0
    %v989 = vadd.f32 0.0, %v988
    %v990 = vpop.f32.mrf.mxu0
    %991 = vdwg.mxu0
    %992 = vmatpush.bf16.msra.mxu0 %v493
    %993 = vmatpush.bf16.msra.mxu0 %v492
    %994 = vmatpush.bf16.msra.mxu0 %v491
    %995 = vmatpush.bf16.msra.mxu0 %v490
    %996 = vmatpush.bf16.msra.mxu0 %v489
    %997 = vmatpush.bf16.msra.mxu0 %v488
    %998 = vmatpush.bf16.msra.mxu0 %v487
    %999 = vmatpush.bf16.msra.mxu0 %v486
    %1000 = vmatmul.bf16.gmra.mxu0 %v960
    %v1001 = vpop.f32.mrf.mxu0
    %v1002 = vadd.f32 %v989, %v1001
    %v1003 = vpop.f32.mrf.mxu0
    %1004 = vdwg.mxu0
    %1005 = vmatpush.bf16.msra.mxu0 %v501
    %1006 = vmatpush.bf16.msra.mxu0 %v500
    %1007 = vmatpush.bf16.msra.mxu0 %v499
    %1008 = vmatpush.bf16.msra.mxu0 %v498
    %1009 = vmatpush.bf16.msra.mxu0 %v497
    %1010 = vmatpush.bf16.msra.mxu0 %v496
    %1011 = vmatpush.bf16.msra.mxu0 %v495
    %1012 = vmatpush.bf16.msra.mxu0 %v494
    %1013 = vmatmul.bf16.gmra.mxu0 %v961
    %v1014 = vpop.f32.mrf.mxu0
    %v1015 = vadd.f32 %v1002, %v1014
    %v1016 = vpop.f32.mrf.mxu0
    %1017 = vdwg.mxu0
    %1018 = vmatpush.bf16.msra.mxu0 %v509
    %1019 = vmatpush.bf16.msra.mxu0 %v508
    %1020 = vmatpush.bf16.msra.mxu0 %v507
    %1021 = vmatpush.bf16.msra.mxu0 %v506
    %1022 = vmatpush.bf16.msra.mxu0 %v505
    %1023 = vmatpush.bf16.msra.mxu0 %v504
    %1024 = vmatpush.bf16.msra.mxu0 %v503
    %1025 = vmatpush.bf16.msra.mxu0 %v502
    %1026 = vmatmul.bf16.gmra.mxu0 %v962
    %v1027 = vpop.f32.mrf.mxu0
    %v1028 = vadd.f32 %v1015, %v1027
    %v1029 = vpop.f32.mrf.mxu0
    %1030 = vdwg.mxu0
    %1031 = vmatpush.bf16.msra.mxu0 %v517
    %1032 = vmatpush.bf16.msra.mxu0 %v516
    %1033 = vmatpush.bf16.msra.mxu0 %v515
    %1034 = vmatpush.bf16.msra.mxu0 %v514
    %1035 = vmatpush.bf16.msra.mxu0 %v513
    %1036 = vmatpush.bf16.msra.mxu0 %v512
    %1037 = vmatpush.bf16.msra.mxu0 %v511
    %1038 = vmatpush.bf16.msra.mxu0 %v510
    %1039 = vmatmul.bf16.gmra.mxu0 %v963
    %v1040 = vpop.f32.mrf.mxu0
    %v1041 = vadd.f32 %v1028, %v1040
    %v1042 = vpop.f32.mrf.mxu0
    %1043 = vdwg.mxu0
    %1044 = vmatpush.bf16.msra.mxu0 %v525
    %1045 = vmatpush.bf16.msra.mxu0 %v524
    %1046 = vmatpush.bf16.msra.mxu0 %v523
    %1047 = vmatpush.bf16.msra.mxu0 %v522
    %1048 = vmatpush.bf16.msra.mxu0 %v521
    %1049 = vmatpush.bf16.msra.mxu0 %v520
    %1050 = vmatpush.bf16.msra.mxu0 %v519
    %1051 = vmatpush.bf16.msra.mxu0 %v518
    %1052 = vmatmul.bf16.gmra.mxu0 %v964
    %v1053 = vpop.f32.mrf.mxu0
    %v1054 = vadd.f32 %v1041, %v1053
    %v1055 = vpop.f32.mrf.mxu0
    %1056 = vdwg.mxu0
    %1057 = vmatpush.bf16.msra.mxu0 %v533
    %1058 = vmatpush.bf16.msra.mxu0 %v532
    %1059 = vmatpush.bf16.msra.mxu0 %v531
    %1060 = vmatpush.bf16.msra.mxu0 %v530
    %1061 = vmatpush.bf16.msra.mxu0 %v529
    %1062 = vmatpush.bf16.msra.mxu0 %v528
    %1063 = vmatpush.bf16.msra.mxu0 %v527
    %1064 = vmatpush.bf16.msra.mxu0 %v526
    %1065 = vmatmul.bf16.gmra.mxu0 %v965
    %v1066 = vpop.f32.mrf.mxu0
    %v1067 = vadd.f32 %v1054, %v1066
    %v1068 = vpop.f32.mrf.mxu0
    %1069 = vdwg.mxu0
    %1070 = vmatpush.bf16.msra.mxu0 %v541
    %1071 = vmatpush.bf16.msra.mxu0 %v540
    %1072 = vmatpush.bf16.msra.mxu0 %v539
    %1073 = vmatpush.bf16.msra.mxu0 %v538
    %1074 = vmatpush.bf16.msra.mxu0 %v537
    %1075 = vmatpush.bf16.msra.mxu0 %v536
    %1076 = vmatpush.bf16.msra.mxu0 %v535
    %1077 = vmatpush.bf16.msra.mxu0 %v534
    %1078 = vmatmul.bf16.gmra.mxu0 %v966
    %v1079 = vpop.f32.mrf.mxu0
    %v1080 = vadd.f32 %v1067, %v1079
    %v1081 = vpop.f32.mrf.mxu0
    %1082 = vdwg.mxu0
    %1083 = vmatpush.bf16.msra.mxu0 %v549
    %1084 = vmatpush.bf16.msra.mxu0 %v548
    %1085 = vmatpush.bf16.msra.mxu0 %v547
    %1086 = vmatpush.bf16.msra.mxu0 %v546
    %1087 = vmatpush.bf16.msra.mxu0 %v545
    %1088 = vmatpush.bf16.msra.mxu0 %v544
    %1089 = vmatpush.bf16.msra.mxu0 %v543
    %1090 = vmatpush.bf16.msra.mxu0 %v542
    %1091 = vmatmul.bf16.gmra.mxu0 %v969
    %v1092 = vpop.f32.mrf.mxu0
    %v1093 = vadd.f32 %v1080, %v1092
    %v1094 = vpop.f32.mrf.mxu0
    %1095 = vdwg.mxu0
    %v1096 = vsub.f32 %v1093, %v930
    %v1097 = vmul.f32 %v1096, 0.5
    %v1098 = vadd.f32 %v930, %v1097
    %vm1099 = vcmp.ge.f32.partialorder %v1098, 1.0
    %v1100 = vsel %vm1099, 1, 0
    %v1101 = vcvt.s32.f32 %v1100
    %v1102 = vsub.f32 1.0, %v1101
    %v1103 = vmul.f32 %v1098, %v1102
    %v1104 = vadd.f32 %v931, %v1101
    %v1105 = vpack.c.bf16 %v1101, %v1101
    %v1107 = vsel %vm760, %v1105, 0
    %1109 = vmatpush.bf16.msra.mxu0 0
    %1110 = vmatpush.bf16.msra.mxu0 0
    %1111 = vmatpush.bf16.msra.mxu0 0
    %1112 = vmatpush.bf16.msra.mxu0 0
    %1113 = vmatpush.bf16.msra.mxu0 0
    %1114 = vmatpush.bf16.msra.mxu0 0
    %1115 = vmatpush.bf16.msra.mxu0 %v757
    %1116 = vmatpush.bf16.msra.mxu0 %v756
    %1117 = vmatmul.bf16.gmra.mxu0 %v1107
    %v1118 = vpop.f32.mrf.mxu0
    %v1119 = vadd.f32 0.0, %v1118
    %v1120 = vpop.f32.mrf.mxu0
    %1121 = vdwg.mxu0
    %v1122 = vsub.f32 %v1119, %v951
    %v1123 = vmul.f32 %v1122, 0.5
    %v1124 = vadd.f32 %v951, %v1123
    %s1125 = scalar_lea.vmem %s3, 4
    %1126 = vst.msk [vmem:[%s1125] sm:$0x3] %vm779, %v1124
    %s1127 = scalar_lea.vmem %s0, 27
    %v1128 = vld [vmem:[%s1127] sm:$0xff]
    %v1129 = vld [vmem:[%s1127 + $0x8] sm:$0x1]
    %1131 = vst [vmem:[#allocation1] ss:$9 sm:$0xff] %v1128
    %v1132 = vld [vmem:[#allocation1] sm:$0xff]
    %v1133 = vld [vmem:[#allocation1 + $0x9] sm:$0xff]
    %v1134 = vld [vmem:[#allocation1 + $0x12] sm:$0xff]
    %v1135 = vld [vmem:[#allocation1 + $0x1b] sm:$0xff]
    %v1136 = vld [vmem:[#allocation1 + $0x24] sm:$0xff]
    %v1137 = vld [vmem:[#allocation1 + $0x2d] sm:$0xff]
    %v1138 = vld [vmem:[#allocation1 + $0x36] sm:$0xff]
    %v1139 = vld [vmem:[#allocation1 + $0x3f] sm:$0xff]
    %1141 = vst [vmem:[#allocation1] ss:$9 sm:$0xff] %v1129
    %v1142 = vld [vmem:[#allocation1] sm:$0xff]
    %1152 = vmatpush.bf16.msra.mxu0 %v485
    %1153 = vmatpush.bf16.msra.mxu0 %v484
    %1154 = vmatpush.bf16.msra.mxu0 %v483
    %1155 = vmatpush.bf16.msra.mxu0 %v482
    %1156 = vmatpush.bf16.msra.mxu0 %v481
    %1157 = vmatpush.bf16.msra.mxu0 %v480
    %1158 = vmatpush.bf16.msra.mxu0 %v479
    %1159 = vmatpush.bf16.msra.mxu0 %v478
    %1160 = vmatmul.bf16.gmra.mxu0 %v1132
    %v1161 = vpop.f32.mrf.mxu0
    %v1162 = vadd.f32 0.0, %v1161
    %v1163 = vpop.f32.mrf.mxu0
    %1164 = vdwg.mxu0
    %1165 = vmatpush.bf16.msra.mxu0 %v493
    %1166 = vmatpush.bf16.msra.mxu0 %v492
    %1167 = vmatpush.bf16.msra.mxu0 %v491
    %1168 = vmatpush.bf16.msra.mxu0 %v490
    %1169 = vmatpush.bf16.msra.mxu0 %v489
    %1170 = vmatpush.bf16.msra.mxu0 %v488
    %1171 = vmatpush.bf16.msra.mxu0 %v487
    %1172 = vmatpush.bf16.msra.mxu0 %v486
    %1173 = vmatmul.bf16.gmra.mxu0 %v1133
    %v1174 = vpop.f32.mrf.mxu0
    %v1175 = vadd.f32 %v1162, %v1174
    %v1176 = vpop.f32.mrf.mxu0
    %1177 = vdwg.mxu0
    %1178 = vmatpush.bf16.msra.mxu0 %v501
    %1179 = vmatpush.bf16.msra.mxu0 %v500
    %1180 = vmatpush.bf16.msra.mxu0 %v499
    %1181 = vmatpush.bf16.msra.mxu0 %v498
    %1182 = vmatpush.bf16.msra.mxu0 %v497
    %1183 = vmatpush.bf16.msra.mxu0 %v496
    %1184 = vmatpush.bf16.msra.mxu0 %v495
    %1185 = vmatpush.bf16.msra.mxu0 %v494
    %1186 = vmatmul.bf16.gmra.mxu0 %v1134
    %v1187 = vpop.f32.mrf.mxu0
    %v1188 = vadd.f32 %v1175, %v1187
    %v1189 = vpop.f32.mrf.mxu0
    %1190 = vdwg.mxu0
    %1191 = vmatpush.bf16.msra.mxu0 %v509
    %1192 = vmatpush.bf16.msra.mxu0 %v508
    %1193 = vmatpush.bf16.msra.mxu0 %v507
    %1194 = vmatpush.bf16.msra.mxu0 %v506
    %1195 = vmatpush.bf16.msra.mxu0 %v505
    %1196 = vmatpush.bf16.msra.mxu0 %v504
    %1197 = vmatpush.bf16.msra.mxu0 %v503
    %1198 = vmatpush.bf16.msra.mxu0 %v502
    %1199 = vmatmul.bf16.gmra.mxu0 %v1135
    %v1200 = vpop.f32.mrf.mxu0
    %v1201 = vadd.f32 %v1188, %v1200
    %v1202 = vpop.f32.mrf.mxu0
    %1203 = vdwg.mxu0
    %1204 = vmatpush.bf16.msra.mxu0 %v517
    %1205 = vmatpush.bf16.msra.mxu0 %v516
    %1206 = vmatpush.bf16.msra.mxu0 %v515
    %1207 = vmatpush.bf16.msra.mxu0 %v514
    %1208 = vmatpush.bf16.msra.mxu0 %v513
    %1209 = vmatpush.bf16.msra.mxu0 %v512
    %1210 = vmatpush.bf16.msra.mxu0 %v511
    %1211 = vmatpush.bf16.msra.mxu0 %v510
    %1212 = vmatmul.bf16.gmra.mxu0 %v1136
    %v1213 = vpop.f32.mrf.mxu0
    %v1214 = vadd.f32 %v1201, %v1213
    %v1215 = vpop.f32.mrf.mxu0
    %1216 = vdwg.mxu0
    %1217 = vmatpush.bf16.msra.mxu0 %v525
    %1218 = vmatpush.bf16.msra.mxu0 %v524
    %1219 = vmatpush.bf16.msra.mxu0 %v523
    %1220 = vmatpush.bf16.msra.mxu0 %v522
    %1221 = vmatpush.bf16.msra.mxu0 %v521
    %1222 = vmatpush.bf16.msra.mxu0 %v520
    %1223 = vmatpush.bf16.msra.mxu0 %v519
    %1224 = vmatpush.bf16.msra.mxu0 %v518
    %1225 = vmatmul.bf16.gmra.mxu0 %v1137
    %v1226 = vpop.f32.mrf.mxu0
    %v1227 = vadd.f32 %v1214, %v1226
    %v1228 = vpop.f32.mrf.mxu0
    %1229 = vdwg.mxu0
    %1230 = vmatpush.bf16.msra.mxu0 %v533
    %1231 = vmatpush.bf16.msra.mxu0 %v532
    %1232 = vmatpush.bf16.msra.mxu0 %v531
    %1233 = vmatpush.bf16.msra.mxu0 %v530
    %1234 = vmatpush.bf16.msra.mxu0 %v529
    %1235 = vmatpush.bf16.msra.mxu0 %v528
    %1236 = vmatpush.bf16.msra.mxu0 %v527
    %1237 = vmatpush.bf16.msra.mxu0 %v526
    %1238 = vmatmul.bf16.gmra.mxu0 %v1138
    %v1239 = vpop.f32.mrf.mxu0
    %v1240 = vadd.f32 %v1227, %v1239
    %v1241 = vpop.f32.mrf.mxu0
    %1242 = vdwg.mxu0
    %1243 = vmatpush.bf16.msra.mxu0 %v541
    %1244 = vmatpush.bf16.msra.mxu0 %v540
    %1245 = vmatpush.bf16.msra.mxu0 %v539
    %1246 = vmatpush.bf16.msra.mxu0 %v538
    %1247 = vmatpush.bf16.msra.mxu0 %v537
    %1248 = vmatpush.bf16.msra.mxu0 %v536
    %1249 = vmatpush.bf16.msra.mxu0 %v535
    %1250 = vmatpush.bf16.msra.mxu0 %v534
    %1251 = vmatmul.bf16.gmra.mxu0 %v1139
    %v1252 = vpop.f32.mrf.mxu0
    %v1253 = vadd.f32 %v1240, %v1252
    %v1254 = vpop.f32.mrf.mxu0
    %1255 = vdwg.mxu0
    %1256 = vmatpush.bf16.msra.mxu0 %v549
    %1257 = vmatpush.bf16.msra.mxu0 %v548
    %1258 = vmatpush.bf16.msra.mxu0 %v547
    %1259 = vmatpush.bf16.msra.mxu0 %v546
    %1260 = vmatpush.bf16.msra.mxu0 %v545
    %1261 = vmatpush.bf16.msra.mxu0 %v544
    %1262 = vmatpush.bf16.msra.mxu0 %v543
    %1263 = vmatpush.bf16.msra.mxu0 %v542
    %1264 = vmatmul.bf16.gmra.mxu0 %v1142
    %v1265 = vpop.f32.mrf.mxu0
    %v1266 = vadd.f32 %v1253, %v1265
    %v1267 = vpop.f32.mrf.mxu0
    %1268 = vdwg.mxu0
    %v1269 = vsub.f32 %v1266, %v1103
    %v1270 = vmul.f32 %v1269, 0.5
    %v1271 = vadd.f32 %v1103, %v1270
    %vm1272 = vcmp.ge.f32.partialorder %v1271, 1.0
    %v1273 = vsel %vm1272, 1, 0
    %v1274 = vcvt.s32.f32 %v1273
    %v1275 = vadd.f32 %v1104, %v1274
    %v1276 = vpack.c.bf16 %v1274, %v1274
    %v1278 = vsel %vm760, %v1276, 0
    %1280 = vmatpush.bf16.msra.mxu0 0
    %1281 = vmatpush.bf16.msra.mxu0 0
    %1282 = vmatpush.bf16.msra.mxu0 0
    %1283 = vmatpush.bf16.msra.mxu0 0
    %1284 = vmatpush.bf16.msra.mxu0 0
    %1285 = vmatpush.bf16.msra.mxu0 0
    %1286 = vmatpush.bf16.msra.mxu0 %v757
    %1287 = vmatpush.bf16.msra.mxu0 %v756
    %1288 = vmatmul.bf16.gmra.mxu0 %v1278
    %v1289 = vpop.f32.mrf.mxu0
    %v1290 = vadd.f32 0.0, %v1289
    %v1291 = vpop.f32.mrf.mxu0
    %1292 = vdwg.mxu0
    %v1293 = vsub.f32 %v1290, %v1124
    %v1294 = vmul.f32 %v1293, 0.5
    %v1295 = vadd.f32 %v1124, %v1294
    %s1296 = scalar_lea.vmem %s3, 6
    %1297 = vst.msk [vmem:[%s1296] sm:$0x3] %vm779, %v1295
    %v1298 = vmul.f32 %v1275, 0.25
    %vm1299 = vcmask 254976
    %1300 = vst.msk [vmem:[#allocation2] sm:$0x3] %vm1299, %v1298
    // Predicated region
    $region14: #{all_conv_plif_li_forward.11} parent=1 // pred_check
      _
    $region15: #{all_conv_plif_li_forward.11} parent=1 // pred_check_branch
      %1302 = sbr.rel (0) target = $region17
    $region16: #{all_conv_plif_li_forward.11} parent=1 // pred_region
      _
    $region17: #{all_conv_plif_li_forward.11} parent=1 // pred_fallthru
      _
    // Predicated region
    $region18: #{all_conv_plif_li_forward.11} parent=1 // pred_check
      _
    $region19: #{all_conv_plif_li_forward.11} parent=1 // pred_check_branch
      %1304 = sbr.rel (0) target = $region21
    $region20: #{all_conv_plif_li_forward.11} parent=1 // pred_region
      %1306 = vsyncadd [#allocation3], 0
      %s1308 = sshll.u32 [#allocation2], 4
      %s1309 = int_to_ptr.vmem [resolvable:$true] %s1308
      %s1310 = sshll.u32 %s4, 4
      %s1311 = int_to_ptr.hbm [resolvable:$true] %s1310
      %1313 = dma.vmem_to_hbm [thread:$0]  %s1309, 32, %s1311, [#allocation3]
    $region21: #{all_conv_plif_li_forward.11} parent=1 // pred_fallthru
      _
    // Predicated region
    $region22: #{all_conv_plif_li_forward.11} parent=1 // pred_check
      _
    $region23: #{all_conv_plif_li_forward.11} parent=1 // pred_check_branch
      %1315 = sbr.rel (0) target = $region25
    $region24: #{all_conv_plif_li_forward.11} parent=1 // pred_region
      _
    $region25: #{all_conv_plif_li_forward.11} parent=1 // pred_fallthru
      _
    // Predicated region
    $region26: #{all_conv_plif_li_forward.11} parent=1 // pred_check
      _
    $region27: #{all_conv_plif_li_forward.11} parent=1 // pred_check_branch
      %1317 = sbr.rel (0) target = $region29
    $region28: #{all_conv_plif_li_forward.11} parent=1 // pred_region
      %1319 = dma.done [#allocation3], 32
    $region29: #{all_conv_plif_li_forward.11} parent=1 // pred_fallthru
      _
    %1320 = vsyncpa [#allocation3], 1

</llo_original>
